<compile_context>
chip_gen: v5e
topology: v5e:2x2
jax: 0.10.0
libtpu: 0.0.40
codegen_flags: <defaults>
</compile_context>

<pallas_src>
import functools

import jax
import jax.numpy as jnp
from jax.experimental import pallas as pl
from jax.experimental.pallas import tpu as pltpu

_MXU_DTYPE = jnp.bfloat16      # MXU operand dtype (accumulation is always f32)
_PROJ_DTYPE = jnp.bfloat16     # storage dtype of Q/K/V projection intermediates
_LN_EPS = 1e-5


def _pick_tile(dim, pref, align=128):
    """Largest tile <= pref dividing dim; prefer multiples of `align`, then 16
    (bf16 sublane packing).  Falls back to the full dim."""
    if dim <= pref:
        return dim
    for a in (align, 16):
        t = (pref // a) * a
        while t >= a:
            if dim % t == 0:
                return t
            t -= a
    # TODO(synk): awkward dims fall back to one full-dim tile; pad + mask instead for
    # very large M/S so a single tile cannot exceed VMEM (notably on v7x, 64 MiB).
    return dim


def _resident_spec(block_shape, index_map):
    """BlockSpec for grid-constant operands: single-buffered when supported."""
    if hasattr(pl, "Buffered"):
        try:
            return pl.BlockSpec(block_shape, index_map, pipeline_mode=pl.Buffered(1))
        except TypeError:
            pass
    return pl.BlockSpec(block_shape, index_map)


# --------------------------------------------------------------------------
# Kernel 1: grouped linear  out[g] = x @ w[g] + b[g]      (fused Q/K/V, K/V, Q)
# --------------------------------------------------------------------------
def _grouped_linear_kernel(x_ref, w_ref, b_ref, o_ref, acc_ref, *, G):
    k = pl.program_id(1)

    @pl.when(k == 0)
    def _():
        acc_ref[...] = jnp.zeros_like(acc_ref)

    x = x_ref[...].astype(_MXU_DTYPE)
    for g in range(G):                       # static unroll over the fused groups
        acc_ref[g] += jnp.dot(x, w_ref[g].astype(_MXU_DTYPE),
                              preferred_element_type=jnp.float32)

    @pl.when(k == pl.num_programs(1) - 1)
    def _():
        o_ref[...] = (acc_ref[...] + b_ref[...].astype(jnp.float32)).astype(o_ref.dtype)


def grouped_linear(x, w, b):
    """x:(M,K)  w:(G,K,N)  b:(G,N)  ->  (G,M,N) in bf16 (consumed by MXU only)."""
    M, K = x.shape
    G, _, N = w.shape
    tm = _pick_tile(M, 256)
    tk = _pick_tile(K, 512)     # d_model <= 512 -> single K tile, weights stay resident
    # TODO(synk): for d_model > 512, reorder grid so the weight block is reused across
    # M tiles instead of being re-streamed from HBM per M tile.
    return pl.pallas_call(
        functools.partial(_grouped_linear_kernel, G=G),
        out_shape=jax.ShapeDtypeStruct((G, M, N), _PROJ_DTYPE),
        grid=(M // tm, K // tk),
        in_specs=[
            pl.BlockSpec((tm, tk), lambda i, k: (i, k)),
            pl.BlockSpec((G, tk, N), lambda i, k: (0, k, 0)),
            _resident_spec((G, 1, N), lambda i, k: (0, 0, 0)),
        ],
        out_specs=pl.BlockSpec((G, tm, N), lambda i, k: (0, i, 0)),
        scratch_shapes=[pltpu.VMEM((G, tm, N), jnp.float32)],
        compiler_params=pltpu.CompilerParams(
            dimension_semantics=("parallel", "arbitrary")),
    )(x, w, b.reshape(G, 1, N))


# --------------------------------------------------------------------------
# Kernel 2: fused attention — flash-style online softmax over S, heads looped
# inside, with the output projection + residual + LayerNorm as the epilogue.
# --------------------------------------------------------------------------
def _attn_fused_kernel(q_ref, k_ref, v_ref, r_ref, wo_ref, bo_ref, g_ref, bt_ref,
                       o_ref, m_sc, l_sc, acc_sc, *, H, Dh, scale, eps):
    si = pl.program_id(2)

    @pl.when(si == 0)
    def _():
        m_sc[...] = jnp.full(m_sc.shape, -jnp.inf, m_sc.dtype)
        l_sc[...] = jnp.zeros_like(l_sc)
        acc_sc[...] = jnp.zeros_like(acc_sc)

    q = q_ref[0, 0].astype(_MXU_DTYPE)        # (tl, D)  — heads contiguous on lane axis
    k = k_ref[0, 0].astype(_MXU_DTYPE)        # (ts, D)
    v = v_ref[0, 0].astype(_MXU_DTYPE)        # (ts, D)

    # TODO(synk): x_mask / cross_mask (e.g. causal masking) are not applied here.
    # TODO(synk): for Dh == 64, process head pairs as 128-lane slices (batched
    # dot_general) to avoid mid-vreg lane extraction.
    for h in range(H):                        # static unroll over heads
        sl = slice(h * Dh, (h + 1) * Dh)
        # contract on Dh directly (no explicit transpose -> no XLU / VMEM copy)
        s = jax.lax.dot_general(q[:, sl], k[:, sl], (((1,), (1,)), ((), ())),
                                preferred_element_type=jnp.float32) * scale  # (tl, ts)
        m_prev = m_sc[h]                      # (tl, 1)
        m_new = jnp.maximum(m_prev, jnp.max(s, axis=-1, keepdims=True))
        alpha = jnp.exp(m_prev - m_new)       # f32 EUP (v5e has no bf16 EUP)
        p = jnp.exp(s - m_new)
        l_sc[h] = alpha * l_sc[h] + jnp.sum(p, axis=-1, keepdims=True)
        m_sc[h] = m_new
        pv = jnp.dot(p.astype(_MXU_DTYPE), v[:, sl],
                     preferred_element_type=jnp.float32)                     # (tl, Dh)
        acc_sc[:, sl] = alpha * acc_sc[:, sl] + pv     # per-head write into VMEM scratch

    @pl.when(si == pl.num_programs(2) - 1)
    def _():
        # normalize each head in place (approx reciprocal -> EUP slot, ~1e-3 rel err)
        for h in range(H):
            sl = slice(h * Dh, (h + 1) * Dh)
            acc_sc[:, sl] = acc_sc[:, sl] * pl.reciprocal(l_sc[h], approx=True)
        attn = acc_sc[...]                                                   # (tl, D)
        # fused output projection + residual + LayerNorm (saves an HBM round trip)
        y = jnp.dot(attn.astype(_MXU_DTYPE), wo_ref[...].astype(_MXU_DTYPE),
                    preferred_element_type=jnp.float32)
        z = (y + bo_ref[...].astype(jnp.float32) + r_ref[0].astype(jnp.float32))
        mean = jnp.mean(z, axis=-1, keepdims=True)
        zc = z - mean
        var = jnp.mean(zc * zc, axis=-1, keepdims=True)
        inv = jax.lax.rsqrt(var + eps)
        o_ref[0] = (zc * inv * g_ref[...].astype(jnp.float32)
                    + bt_ref[...].astype(jnp.float32)).astype(o_ref.dtype)


def attention_block(q_arr, kv_arr, q_idx, k_idx, v_idx, x_res, wo, bo, gamma, beta,
                    B, Lq, S, D, H, eps=_LN_EPS):
    """LayerNorm(x_res + Attention(q, k, v) @ wo + bo).

    q_arr:(Gq,B,Lq,D)  kv_arr:(Gk,B,S,D) — q/k/v selected by leading-dim block index.
    x_res:(B*Lq, D) residual stream (caller dtype)."""
    Dh = D // H
    tl = _pick_tile(Lq, 256)
    ts = _pick_tile(S, 512)
    out = pl.pallas_call(
        functools.partial(_attn_fused_kernel, H=H, Dh=Dh, scale=Dh ** -0.5, eps=eps),
        out_shape=jax.ShapeDtypeStruct((B, Lq, D), x_res.dtype),
        grid=(B, Lq // tl, S // ts),
        in_specs=[
            pl.BlockSpec((1, 1, tl, D), lambda b, l, s, g=q_idx: (g, b, l, 0)),
            pl.BlockSpec((1, 1, ts, D), lambda b, l, s, g=k_idx: (g, b, s, 0)),
            pl.BlockSpec((1, 1, ts, D), lambda b, l, s, g=v_idx: (g, b, s, 0)),
            pl.BlockSpec((1, tl, D), lambda b, l, s: (b, l, 0)),
            _resident_spec((D, D), lambda b, l, s: (0, 0)),
            _resident_spec((1, D), lambda b, l, s: (0, 0)),
            _resident_spec((1, D), lambda b, l, s: (0, 0)),
            _resident_spec((1, D), lambda b, l, s: (0, 0)),
        ],
        out_specs=pl.BlockSpec((1, tl, D), lambda b, l, s: (b, l, 0)),
        scratch_shapes=[pltpu.VMEM((H, tl, 1), jnp.float32),   # running max
                        pltpu.VMEM((H, tl, 1), jnp.float32),   # running sum
                        pltpu.VMEM((tl, D), jnp.float32)],     # output accumulator
        compiler_params=pltpu.CompilerParams(
            dimension_semantics=("parallel", "parallel", "arbitrary")),
    )(q_arr, kv_arr, kv_arr, x_res.reshape(B, Lq, D), wo,
      bo.reshape(1, D), gamma.reshape(1, D), beta.reshape(1, D))
    return out.reshape(B * Lq, D)


# --------------------------------------------------------------------------
# Kernel 3: fused FFN (Conv1d k=1 -> ReLU -> Conv1d k=1) + residual + LayerNorm,
# tiled over the FF dimension (weights streamed; (tm, FF) never materialized).
# --------------------------------------------------------------------------
def _ffn_add_ln_kernel(x_ref, w1_ref, b1_ref, w2_ref, b2_ref, g_ref, bt_ref,
                       o_ref, acc_ref, *, eps):
    f = pl.program_id(1)

    @pl.when(f == 0)
    def _():
        acc_ref[...] = jnp.zeros_like(acc_ref)

    x = x_ref[...]
    h = jnp.dot(x.astype(_MXU_DTYPE), w1_ref[...].astype(_MXU_DTYPE),
                preferred_element_type=jnp.float32)
    h = jnp.maximum(h + b1_ref[...].astype(jnp.float32), 0.0)       # (tm, tf) stays in VMEM
    acc_ref[...] += jnp.dot(h.astype(_MXU_DTYPE), w2_ref[...].astype(_MXU_DTYPE),
                            preferred_element_type=jnp.float32)

    @pl.when(f == pl.num_programs(1) - 1)
    def _():
        z = x.astype(jnp.float32) + acc_ref[...] + b2_ref[...].astype(jnp.float32)
        mean = jnp.mean(z, axis=-1, keepdims=True)
        zc = z - mean
        var = jnp.mean(zc * zc, axis=-1, keepdims=True)
        inv = jax.lax.rsqrt(var + eps)
        o_ref[...] = (zc * inv * g_ref[...].astype(jnp.float32)
                      + bt_ref[...].astype(jnp.float32)).astype(o_ref.dtype)


def ffn_add_ln(x, w1, b1, w2, b2, gamma, beta, eps=_LN_EPS):
    """LayerNorm(x + relu(x@w1+b1)@w2 + b2).  x:(M,D)."""
    M, D = x.shape
    FF = w1.shape[1]
    tm = _pick_tile(M, 256)
    tf = _pick_tile(FF, 512)
    return pl.pallas_call(
        functools.partial(_ffn_add_ln_kernel, eps=eps),
        out_shape=jax.ShapeDtypeStruct((M, D), x.dtype),
        grid=(M // tm, FF // tf),
        in_specs=[
            pl.BlockSpec((tm, D), lambda i, f: (i, 0)),
            pl.BlockSpec((D, tf), lambda i, f: (0, f)),
            pl.BlockSpec((1, tf), lambda i, f: (0, f)),
            pl.BlockSpec((tf, D), lambda i, f: (f, 0)),
            _resident_spec((1, D), lambda i, f: (0, 0)),
            _resident_spec((1, D), lambda i, f: (0, 0)),
            _resident_spec((1, D), lambda i, f: (0, 0)),
        ],
        out_specs=pl.BlockSpec((tm, D), lambda i, f: (i, 0)),
        scratch_shapes=[pltpu.VMEM((tm, D), jnp.float32)],
        compiler_params=pltpu.CompilerParams(
            dimension_semantics=("parallel", "arbitrary")),
    )(x, w1, b1.reshape(1, FF), w2, b2.reshape(1, D),
      gamma.reshape(1, D), beta.reshape(1, D))


# --------------------------------------------------------------------------
# Kernel 4: plain LayerNorm (final norm)
# --------------------------------------------------------------------------
def _ln_kernel(x_ref, g_ref, b_ref, o_ref, *, eps):
    z = x_ref[...].astype(jnp.float32)
    mean = jnp.mean(z, axis=-1, keepdims=True)
    zc = z - mean
    var = jnp.mean(zc * zc, axis=-1, keepdims=True)
    inv = jax.lax.rsqrt(var + eps)
    o_ref[...] = (zc * inv * g_ref[...].astype(jnp.float32)
                  + b_ref[...].astype(jnp.float32)).astype(o_ref.dtype)


def layer_norm(x, gamma, beta, eps=_LN_EPS):
    M, D = x.shape
    tm = _pick_tile(M, 512)
    return pl.pallas_call(
        functools.partial(_ln_kernel, eps=eps),
        out_shape=jax.ShapeDtypeStruct((M, D), x.dtype),
        grid=(M // tm,),
        in_specs=[pl.BlockSpec((tm, D), lambda i: (i, 0)),
                  _resident_spec((1, D), lambda i: (0, 0)),
                  _resident_spec((1, D), lambda i: (0, 0))],
        out_specs=pl.BlockSpec((tm, D), lambda i: (i, 0)),
        compiler_params=pltpu.CompilerParams(dimension_semantics=("parallel",)),
    )(x, gamma.reshape(1, D), beta.reshape(1, D))


# ------------------------------ model glue ---------------------------------
def decoder_layer(x_flat, cross_flat, p, B, L, S, D, H):
    # ---- self attention (QKV proj -> fused attn + out-proj + residual + norm1) ----
    sp = p["self_attn"]
    qkv = grouped_linear(x_flat, sp["w_qkv"], sp["b_qkv"]).reshape(3, B, L, D)
    x_flat = attention_block(qkv, qkv, 0, 1, 2, x_flat, sp["wo"], sp["bo"],
                             p["g1"], p["b1"], B, L, L, D, H)
    # ---- cross attention ----
    cp = p["cross_attn"]
    q = grouped_linear(x_flat, cp["w_q"], cp["b_q"]).reshape(1, B, L, D)
    kv = grouped_linear(cross_flat, cp["w_kv"], cp["b_kv"]).reshape(2, B, S, D)
    x_flat = attention_block(q, kv, 0, 0, 1, x_flat, cp["wo"], cp["bo"],
                             p["g2"], p["b2"], B, L, S, D, H)
    # ---- FFN (Conv1d k=1 pair) + residual + norm3 ----
    return ffn_add_ln(x_flat, p["w_ff1"], p["b_ff1"], p["w_ff2"], p["b_ff2"],
                      p["g3"], p["b3"])


def decoder_forward(x, cross, params, n_heads, x_mask=None, cross_mask=None):
    """Pallas equivalent of Decoder.forward.  x:(B,L,D) cross:(B,S,D)."""
    assert x_mask is None and cross_mask is None
    # TODO(synk): x_mask / cross_mask are not wired into the attention kernel.
    B, L, D = x.shape
    S = cross.shape[1]
    x_flat = x.reshape(B * L, D)               # residual stream kept in the caller dtype
    cross_flat = cross.reshape(B * S, D)
    for p in params["layers"]:
        x_flat = decoder_layer(x_flat, cross_flat, p, B, L, S, D, n_heads)
    x_flat = layer_norm(x_flat, params["norm_g"], params["norm_b"])
    return x_flat.reshape(B, L, D)


# --------------------------- deterministic init -----------------------------
def _init_self_attn(key, d):
    k1, k2 = jax.random.split(key)
    return {"w_qkv": jax.random.normal(k1, (3, d, d), jnp.float32) * 0.02,
            "b_qkv": jnp.zeros((3, d), jnp.float32),
            "wo": jax.random.normal(k2, (d, d), jnp.float32) * 0.02,
            "bo": jnp.zeros((d,), jnp.float32)}


def _init_cross_attn(key, d):
    k1, k2, k3 = jax.random.split(key, 3)
    return {"w_q": jax.random.normal(k1, (1, d, d), jnp.float32) * 0.02,
            "b_q": jnp.zeros((1, d), jnp.float32),
            "w_kv": jax.random.normal(k2, (2, d, d), jnp.float32) * 0.02,
            "b_kv": jnp.zeros((2, d), jnp.float32),
            "wo": jax.random.normal(k3, (d, d), jnp.float32) * 0.02,
            "bo": jnp.zeros((d,), jnp.float32)}


def init_params(key, n_layers, d_model, d_ff):
    layers = []
    for _ in range(n_layers):
        key, k1, k2, k3, k4 = jax.random.split(key, 5)
        layers.append({
            "self_attn": _init_self_attn(k1, d_model),
            "cross_attn": _init_cross_attn(k2, d_model),
            "w_ff1": jax.random.normal(k3, (d_model, d_ff), jnp.float32) * 0.02,
            "b_ff1": jnp.zeros((d_ff,), jnp.float32),
            "w_ff2": jax.random.normal(k4, (d_ff, d_model), jnp.float32) * 0.02,
            "b_ff2": jnp.zeros((d_model,), jnp.float32),
            "g1": jnp.ones((d_model,), jnp.float32), "b1": jnp.zeros((d_model,), jnp.float32),
            "g2": jnp.ones((d_model,), jnp.float32), "b2": jnp.zeros((d_model,), jnp.float32),
            "g3": jnp.ones((d_model,), jnp.float32), "b3": jnp.zeros((d_model,), jnp.float32),
        })
    return {"layers": layers,
            "norm_g": jnp.ones((d_model,), jnp.float32),
            "norm_b": jnp.zeros((d_model,), jnp.float32)}


# --------------------------- pure-JAX reference ------------------------------
def _ref_ln(x, g, b, eps=_LN_EPS):
    mean = jnp.mean(x, axis=-1, keepdims=True)
    var = jnp.mean((x - mean) ** 2, axis=-1, keepdims=True)
    return (x - mean) * jax.lax.rsqrt(var + eps) * g + b


def _ref_attention(q, k, v, H):
    B, L, D = q.shape
    S = k.shape[1]
    Dh = D // H
    qh = q.reshape(B, L, H, Dh).transpose(0, 2, 1, 3)
    kh = k.reshape(B, S, H, Dh).transpose(0, 2, 1, 3)
    vh = v.reshape(B, S, H, Dh).transpose(0, 2, 1, 3)
    s = jnp.einsum("bhld,bhsd->bhls", qh, kh) / (Dh ** 0.5)
    p = jax.nn.softmax(s, axis=-1)
    o = jnp.einsum("bhls,bhsd->bhld", p, vh)
    return o.transpose(0, 2, 1, 3).reshape(B, L, D)


def reference_forward(x, cross, params, H):
    for p in params["layers"]:
        sp = p["self_attn"]
        q = x @ sp["w_qkv"][0] + sp["b_qkv"][0]
        k = x @ sp["w_qkv"][1] + sp["b_qkv"][1]
        v = x @ sp["w_qkv"][2] + sp["b_qkv"][2]
        sa = _ref_attention(q, k, v, H) @ sp["wo"] + sp["bo"]
        x = _ref_ln(x + sa, p["g1"], p["b1"])
        cp = p["cross_attn"]
        q = x @ cp["w_q"][0] + cp["b_q"][0]
        k = cross @ cp["w_kv"][0] + cp["b_kv"][0]
        v = cross @ cp["w_kv"][1] + cp["b_kv"][1]
        ca = _ref_attention(q, k, v, H) @ cp["wo"] + cp["bo"]
        x = _ref_ln(x + ca, p["g2"], p["b2"])
        y = jnp.maximum(x @ p["w_ff1"] + p["b_ff1"], 0.0)
        y = y @ p["w_ff2"] + p["b_ff2"]
        x = _ref_ln(x + y, p["g3"], p["b3"])
    return _ref_ln(x, params["norm_g"], params["norm_b"])


# ---------------------------------- main ------------------------------------
if __name__ == "__main__":
    B, L, S, D, H, FF, N_LAYERS = 2, 8, 8, 32, 4, 64, 2

    key = jax.random.PRNGKey(0)
    kx, kc, kp = jax.random.split(key, 3)
    x = jax.random.normal(kx, (B, L, D), jnp.float32)
    cross = jax.random.normal(kc, (B, S, D), jnp.float32)
    params = init_params(kp, N_LAYERS, D, FF)

    fwd = jax.jit(functools.partial(decoder_forward, n_heads=H))
    out = jax.block_until_ready(fwd(x, cross, params))
    assert out.shape == (B, L, D)

    ref = reference_forward(x, cross, params, H)
    # bf16 MXU operands + bf16 projection intermediates; residual stream stays f32.
    assert jnp.allclose(out, ref, rtol=1e-2, atol=1e-2), \
        float(jnp.max(jnp.abs(out - ref)))
    print("KERNEL_OK")
</pallas_src>

<mosaic_0001>
module attributes {stable_mosaic.version = 11 : i64} {
  func.func @_grouped_linear_kernel(%arg0: i32, %arg1: i32, %arg2: memref<16x32xf32, #tpu.memory_space<vmem>>, %arg3: memref<3x32x32xf32, #tpu.memory_space<vmem>>, %arg4: memref<3x1x32xf32, #tpu.memory_space<vmem>>, %arg5: memref<3x16x32xbf16, #tpu.memory_space<vmem>>, %arg6: memref<3x16x32xf32, #tpu.memory_space<vmem>>) attributes {dimension_semantics = [#tpu.dimension_semantics<parallel>, #tpu.dimension_semantics<arbitrary>], iteration_bounds = array<i64: 1, 1>, scalar_prefetch = 0 : i64, scratch_operands = 1 : i64, tpu.core_type = #tpu.core_type<tc>, window_params = [{transform_indices = @transform_0, window_bounds = array<i64: 16, 32>}, {transform_indices = @transform_1, window_bounds = array<i64: 3, 32, 32>}, {pipeline_mode = #tpu.pipeline_mode<synchronous>, transform_indices = @transform_2, window_bounds = array<i64: 3, 1, 32>}, {transform_indices = @transform_3, window_bounds = array<i64: 3, 16, 32>}]} {
    %c0_i32 = arith.constant 0 : i32
    %0 = arith.cmpi eq, %arg1, %c0_i32 : i32
    %1 = arith.extui %0 : i1 to i32
    %c0_i32_0 = arith.constant 0 : i32
    %2 = arith.cmpi ne, %1, %c0_i32_0 : i32
    scf.if %2 {
      %cst_31 = arith.constant 0.000000e+00 : f32
      %38 = vector.broadcast %cst_31 : f32 to vector<3x16x32xf32>
      %c0_32 = arith.constant 0 : index
      %c0_33 = arith.constant 0 : index
      %c0_34 = arith.constant 0 : index
      %39 = vector.load %arg6[%c0_32, %c0_33, %c0_34] : memref<3x16x32xf32, #tpu.memory_space<vmem>>, vector<3x16x32xf32>
      tpu.vector_store %arg6[%c0_32, %c0_33, %c0_34], %38 {strides = array<i32>} : memref<3x16x32xf32, #tpu.memory_space<vmem>>, vector<3x16x32xf32>,
    } else {
    }
    %c0 = arith.constant 0 : index
    %c0_1 = arith.constant 0 : index
    %3 = vector.load %arg2[%c0, %c0_1] : memref<16x32xf32, #tpu.memory_space<vmem>>, vector<16x32xf32>
    %4 = arith.truncf %3 : vector<16x32xf32> to vector<16x32xbf16>
    %c0_2 = arith.constant 0 : index
    %c0_3 = arith.constant 0 : index
    %c0_4 = arith.constant 0 : index
    %5 = vector.load %arg6[%c0_2, %c0_3, %c0_4] : memref<3x16x32xf32, #tpu.memory_space<vmem>>, vector<1x16x32xf32>
    %6 = vector.shape_cast %5 : vector<1x16x32xf32> to vector<16x32xf32>
    %c0_5 = arith.constant 0 : index
    %c0_6 = arith.constant 0 : index
    %c0_7 = arith.constant 0 : index
    %7 = vector.load %arg3[%c0_5, %c0_6, %c0_7] : memref<3x32x32xf32, #tpu.memory_space<vmem>>, vector<1x32x32xf32>
    %8 = vector.shape_cast %7 : vector<1x32x32xf32> to vector<32x32xf32>
    %9 = arith.truncf %8 : vector<32x32xf32> to vector<32x32xbf16>
    %cst = arith.constant dense<0.000000e+00> : vector<16x32xf32>
    %10 = tpu.matmul %4, %9, %cst {dimension_numbers = #tpu.dot_dimension_numbers<[1], [0], [0], [1], [0, 0, 1, 1], [], []>} : vector<16x32xbf16>, vector<32x32xbf16>, vector<16x32xf32> -> vector<16x32xf32>
    %11 = arith.addf %6, %10 : vector<16x32xf32>
    %c0_8 = arith.constant 0 : index
    %c0_9 = arith.constant 0 : index
    %c0_10 = arith.constant 0 : index
    %12 = vector.load %arg6[%c0_8, %c0_9, %c0_10] : memref<3x16x32xf32, #tpu.memory_space<vmem>>, vector<1x16x32xf32>
    %13 = vector.shape_cast %12 : vector<1x16x32xf32> to vector<16x32xf32>
    %14 = vector.shape_cast %11 : vector<16x32xf32> to vector<1x16x32xf32>
    tpu.vector_store %arg6[%c0_8, %c0_9, %c0_10], %14 {strides = array<i32>} : memref<3x16x32xf32, #tpu.memory_space<vmem>>, vector<1x16x32xf32>,
    %c1 = arith.constant 1 : index
    %c0_11 = arith.constant 0 : index
    %c0_12 = arith.constant 0 : index
    %15 = vector.load %arg6[%c1, %c0_11, %c0_12] : memref<3x16x32xf32, #tpu.memory_space<vmem>>, vector<1x16x32xf32>
    %16 = vector.shape_cast %15 : vector<1x16x32xf32> to vector<16x32xf32>
    %c1_13 = arith.constant 1 : index
    %c0_14 = arith.constant 0 : index
    %c0_15 = arith.constant 0 : index
    %17 = vector.load %arg3[%c1_13, %c0_14, %c0_15] : memref<3x32x32xf32, #tpu.memory_space<vmem>>, vector<1x32x32xf32>
    %18 = vector.shape_cast %17 : vector<1x32x32xf32> to vector<32x32xf32>
    %19 = arith.truncf %18 : vector<32x32xf32> to vector<32x32xbf16>
    %cst_16 = arith.constant dense<0.000000e+00> : vector<16x32xf32>
    %20 = tpu.matmul %4, %19, %cst_16 {dimension_numbers = #tpu.dot_dimension_numbers<[1], [0], [0], [1], [0, 0, 1, 1], [], []>} : vector<16x32xbf16>, vector<32x32xbf16>, vector<16x32xf32> -> vector<16x32xf32>
    %21 = arith.addf %16, %20 : vector<16x32xf32>
    %c1_17 = arith.constant 1 : index
    %c0_18 = arith.constant 0 : index
    %c0_19 = arith.constant 0 : index
    %22 = vector.load %arg6[%c1_17, %c0_18, %c0_19] : memref<3x16x32xf32, #tpu.memory_space<vmem>>, vector<1x16x32xf32>
    %23 = vector.shape_cast %22 : vector<1x16x32xf32> to vector<16x32xf32>
    %24 = vector.shape_cast %21 : vector<16x32xf32> to vector<1x16x32xf32>
    tpu.vector_store %arg6[%c1_17, %c0_18, %c0_19], %24 {strides = array<i32>} : memref<3x16x32xf32, #tpu.memory_space<vmem>>, vector<1x16x32xf32>,
    %c2 = arith.constant 2 : index
    %c0_20 = arith.constant 0 : index
    %c0_21 = arith.constant 0 : index
    %25 = vector.load %arg6[%c2, %c0_20, %c0_21] : memref<3x16x32xf32, #tpu.memory_space<vmem>>, vector<1x16x32xf32>
    %26 = vector.shape_cast %25 : vector<1x16x32xf32> to vector<16x32xf32>
    %c2_22 = arith.constant 2 : index
    %c0_23 = arith.constant 0 : index
    %c0_24 = arith.constant 0 : index
    %27 = vector.load %arg3[%c2_22, %c0_23, %c0_24] : memref<3x32x32xf32, #tpu.memory_space<vmem>>, vector<1x32x32xf32>
    %28 = vector.shape_cast %27 : vector<1x32x32xf32> to vector<32x32xf32>
    %29 = arith.truncf %28 : vector<32x32xf32> to vector<32x32xbf16>
    %cst_25 = arith.constant dense<0.000000e+00> : vector<16x32xf32>
    %30 = tpu.matmul %4, %29, %cst_25 {dimension_numbers = #tpu.dot_dimension_numbers<[1], [0], [0], [1], [0, 0, 1, 1], [], []>} : vector<16x32xbf16>, vector<32x32xbf16>, vector<16x32xf32> -> vector<16x32xf32>
    %31 = arith.addf %26, %30 : vector<16x32xf32>
    %c2_26 = arith.constant 2 : index
    %c0_27 = arith.constant 0 : index
    %c0_28 = arith.constant 0 : index
    %32 = vector.load %arg6[%c2_26, %c0_27, %c0_28] : memref<3x16x32xf32, #tpu.memory_space<vmem>>, vector<1x16x32xf32>
    %33 = vector.shape_cast %32 : vector<1x16x32xf32> to vector<16x32xf32>
    %34 = vector.shape_cast %31 : vector<16x32xf32> to vector<1x16x32xf32>
    tpu.vector_store %arg6[%c2_26, %c0_27, %c0_28], %34 {strides = array<i32>} : memref<3x16x32xf32, #tpu.memory_space<vmem>>, vector<1x16x32xf32>,
    %c0_i32_29 = arith.constant 0 : i32
    %35 = arith.cmpi eq, %arg1, %c0_i32_29 : i32
    %36 = arith.extui %35 : i1 to i32
    %c0_i32_30 = arith.constant 0 : i32
    %37 = arith.cmpi ne, %36, %c0_i32_30 : i32
    scf.if %37 {
      %c0_31 = arith.constant 0 : index
      %c0_32 = arith.constant 0 : index
      %c0_33 = arith.constant 0 : index
      %38 = vector.load %arg6[%c0_31, %c0_32, %c0_33] : memref<3x16x32xf32, #tpu.memory_space<vmem>>, vector<3x16x32xf32>
      %c0_34 = arith.constant 0 : index
      %c0_35 = arith.constant 0 : index
      %c0_36 = arith.constant 0 : index
      %39 = vector.load %arg4[%c0_34, %c0_35, %c0_36] : memref<3x1x32xf32, #tpu.memory_space<vmem>>, vector<3x1x32xf32>
      %40 = vector.broadcast %39 : vector<3x1x32xf32> to vector<3x16x32xf32>
      %41 = arith.addf %38, %40 : vector<3x16x32xf32>
      %42 = arith.truncf %41 : vector<3x16x32xf32> to vector<3x16x32xbf16>
      %c0_37 = arith.constant 0 : index
      %c0_38 = arith.constant 0 : index
      %c0_39 = arith.constant 0 : index
      %43 = vector.load %arg5[%c0_37, %c0_38, %c0_39] : memref<3x16x32xbf16, #tpu.memory_space<vmem>>, vector<3x16x32xbf16>
      tpu.vector_store %arg5[%c0_37, %c0_38, %c0_39], %42 {strides = array<i32>} : memref<3x16x32xbf16, #tpu.memory_space<vmem>>, vector<3x16x32xbf16>,
    } else {
    }
    return
  }
  func.func @transform_0(%arg0: i32, %arg1: i32) -> (i32, i32) {
    %c0_i32 = arith.constant 0 : i32
    return %arg0, %arg1 : i32, i32
  }
  func.func @transform_1(%arg0: i32, %arg1: i32) -> (i32, i32, i32) {
    %c0_i32 = arith.constant 0 : i32
    %c0_i32_0 = arith.constant 0 : i32
    %c0_i32_1 = arith.constant 0 : i32
    return %c0_i32, %arg1, %c0_i32_0 : i32, i32, i32
  }
  func.func @transform_2(%arg0: i32, %arg1: i32) -> (i32, i32, i32) {
    %c0_i32 = arith.constant 0 : i32
    %c0_i32_0 = arith.constant 0 : i32
    %c0_i32_1 = arith.constant 0 : i32
    %c0_i32_2 = arith.constant 0 : i32
    return %c0_i32, %c0_i32_0, %c0_i32_1 : i32, i32, i32
  }
  func.func @transform_3(%arg0: i32, %arg1: i32) -> (i32, i32, i32) {
    %c0_i32 = arith.constant 0 : i32
    %c0_i32_0 = arith.constant 0 : i32
    %c0_i32_1 = arith.constant 0 : i32
    return %c0_i32, %arg0, %c0_i32_0 : i32, i32, i32
  }
}

module attributes {stable_mosaic.version = 11 : i64} {
  func.func @_attn_fused_kernel(%arg0: i32, %arg1: i32, %arg2: i32, %arg3: memref<1x1x8x32xbf16, #tpu.memory_space<vmem>>, %arg4: memref<1x1x8x32xbf16, #tpu.memory_space<vmem>>, %arg5: memref<1x1x8x32xbf16, #tpu.memory_space<vmem>>, %arg6: memref<1x8x32xf32, #tpu.memory_space<vmem>>, %arg7: memref<32x32xf32, #tpu.memory_space<vmem>>, %arg8: memref<1x32xf32, #tpu.memory_space<vmem>>, %arg9: memref<1x32xf32, #tpu.memory_space<vmem>>, %arg10: memref<1x32xf32, #tpu.memory_space<vmem>>, %arg11: memref<1x8x32xf32, #tpu.memory_space<vmem>>, %arg12: memref<4x8x1xf32, #tpu.memory_space<vmem>>, %arg13: memref<4x8x1xf32, #tpu.memory_space<vmem>>, %arg14: memref<8x32xf32, #tpu.memory_space<vmem>>) attributes {dimension_semantics = [#tpu.dimension_semantics<parallel>, #tpu.dimension_semantics<parallel>, #tpu.dimension_semantics<arbitrary>], iteration_bounds = array<i64: 2, 1, 1>, scalar_prefetch = 0 : i64, scratch_operands = 3 : i64, tpu.core_type = #tpu.core_type<tc>, window_params = [{transform_indices = @transform_0, window_bounds = array<i64: 1, 1, 8, 32>}, {transform_indices = @transform_1, window_bounds = array<i64: 1, 1, 8, 32>}, {transform_indices = @transform_2, window_bounds = array<i64: 1, 1, 8, 32>}, {transform_indices = @transform_3, window_bounds = array<i64: 1, 8, 32>}, {pipeline_mode = #tpu.pipeline_mode<synchronous>, transform_indices = @transform_4, window_bounds = array<i64: 32, 32>}, {pipeline_mode = #tpu.pipeline_mode<synchronous>, transform_indices = @transform_5, window_bounds = array<i64: 1, 32>}, {pipeline_mode = #tpu.pipeline_mode<synchronous>, transform_indices = @transform_6, window_bounds = array<i64: 1, 32>}, {pipeline_mode = #tpu.pipeline_mode<synchronous>, transform_indices = @transform_7, window_bounds = array<i64: 1, 32>}, {transform_indices = @transform_8, window_bounds = array<i64: 1, 8, 32>}]} {
    %c0_i32 = arith.constant 0 : i32
    %0 = arith.cmpi eq, %arg2, %c0_i32 : i32
    %1 = arith.extui %0 : i1 to i32
    %c0_i32_0 = arith.constant 0 : i32
    %2 = arith.cmpi ne, %1, %c0_i32_0 : i32
    scf.if %2 {
      %cst_91 = arith.constant 0xFF800000 : f32
      %152 = vector.broadcast %cst_91 : f32 to vector<4x8x1xf32>
      %c0_92 = arith.constant 0 : index
      %c0_93 = arith.constant 0 : index
      %c0_94 = arith.constant 0 : index
      %153 = vector.load %arg12[%c0_92, %c0_93, %c0_94] : memref<4x8x1xf32, #tpu.memory_space<vmem>>, vector<4x8x1xf32>
      tpu.vector_store %arg12[%c0_92, %c0_93, %c0_94], %152 {strides = array<i32>} : memref<4x8x1xf32, #tpu.memory_space<vmem>>, vector<4x8x1xf32>,
      %cst_95 = arith.constant 0.000000e+00 : f32
      %154 = vector.broadcast %cst_95 : f32 to vector<4x8x1xf32>
      %c0_96 = arith.constant 0 : index
      %c0_97 = arith.constant 0 : index
      %c0_98 = arith.constant 0 : index
      %155 = vector.load %arg13[%c0_96, %c0_97, %c0_98] : memref<4x8x1xf32, #tpu.memory_space<vmem>>, vector<4x8x1xf32>
      tpu.vector_store %arg13[%c0_96, %c0_97, %c0_98], %154 {strides = array<i32>} : memref<4x8x1xf32, #tpu.memory_space<vmem>>, vector<4x8x1xf32>,
      %cst_99 = arith.constant 0.000000e+00 : f32
      %156 = vector.broadcast %cst_99 : f32 to vector<8x32xf32>
      %c0_100 = arith.constant 0 : index
      %c0_101 = arith.constant 0 : index
      %157 = vector.load %arg14[%c0_100, %c0_101] : memref<8x32xf32, #tpu.memory_space<vmem>>, vector<8x32xf32>
      tpu.vector_store %arg14[%c0_100, %c0_101], %156 {strides = array<i32>} : memref<8x32xf32, #tpu.memory_space<vmem>>, vector<8x32xf32>,
    } else {
    }
    %c0 = arith.constant 0 : index
    %c0_1 = arith.constant 0 : index
    %c0_2 = arith.constant 0 : index
    %c0_3 = arith.constant 0 : index
    %3 = vector.load %arg3[%c0, %c0_1, %c0_2, %c0_3] : memref<1x1x8x32xbf16, #tpu.memory_space<vmem>>, vector<1x1x8x32xbf16>
    %4 = vector.shape_cast %3 : vector<1x1x8x32xbf16> to vector<8x32xbf16>
    %c0_4 = arith.constant 0 : index
    %c0_5 = arith.constant 0 : index
    %c0_6 = arith.constant 0 : index
    %c0_7 = arith.constant 0 : index
    %5 = vector.load %arg4[%c0_4, %c0_5, %c0_6, %c0_7] : memref<1x1x8x32xbf16, #tpu.memory_space<vmem>>, vector<1x1x8x32xbf16>
    %6 = vector.shape_cast %5 : vector<1x1x8x32xbf16> to vector<8x32xbf16>
    %c0_8 = arith.constant 0 : index
    %c0_9 = arith.constant 0 : index
    %c0_10 = arith.constant 0 : index
    %c0_11 = arith.constant 0 : index
    %7 = vector.load %arg5[%c0_8, %c0_9, %c0_10, %c0_11] : memref<1x1x8x32xbf16, #tpu.memory_space<vmem>>, vector<1x1x8x32xbf16>
    %8 = vector.shape_cast %7 : vector<1x1x8x32xbf16> to vector<8x32xbf16>
    %9 = vector.extract_strided_slice %4 {offsets = [0, 0], sizes = [8, 8], strides = [1, 1]} : vector<8x32xbf16> to vector<8x8xbf16>
    %10 = vector.extract_strided_slice %6 {offsets = [0, 0], sizes = [8, 8], strides = [1, 1]} : vector<8x32xbf16> to vector<8x8xbf16>
    %cst = arith.constant dense<0.000000e+00> : vector<8x8xf32>
    %11 = tpu.matmul %9, %10, %cst {dimension_numbers = #tpu.dot_dimension_numbers<[1], [1], [0], [0], [0, 0, 1, 0], [], []>} : vector<8x8xbf16>, vector<8x8xbf16>, vector<8x8xf32> -> vector<8x8xf32>
    %cst_12 = arith.constant 0.353553385 : f32
    %12 = vector.broadcast %cst_12 : f32 to vector<8x8xf32>
    %13 = arith.mulf %11, %12 : vector<8x8xf32>
    %c0_13 = arith.constant 0 : index
    %c0_14 = arith.constant 0 : index
    %c0_15 = arith.constant 0 : index
    %14 = vector.load %arg12[%c0_13, %c0_14, %c0_15] : memref<4x8x1xf32, #tpu.memory_space<vmem>>, vector<1x8x1xf32>
    %15 = vector.shape_cast %14 : vector<1x8x1xf32> to vector<8x1xf32>
    %cst_16 = arith.constant dense<0xFF800000> : vector<8xf32>
    %16 = vector.multi_reduction <maximumf>, %13, %cst_16 [1] : vector<8x8xf32> to vector<8xf32>
    %17 = vector.shape_cast %16 : vector<8xf32> to vector<8x1xf32>
    %18 = arith.maximumf %15, %17 : vector<8x1xf32>
    %19 = arith.subf %15, %18 : vector<8x1xf32>
    %20 = math.exp %19 : vector<8x1xf32>
    %21 = vector.broadcast %18 : vector<8x1xf32> to vector<8x8xf32>
    %22 = arith.subf %13, %21 : vector<8x8xf32>
    %23 = math.exp %22 : vector<8x8xf32>
    %c0_17 = arith.constant 0 : index
    %c0_18 = arith.constant 0 : index
    %c0_19 = arith.constant 0 : index
    %24 = vector.load %arg13[%c0_17, %c0_18, %c0_19] : memref<4x8x1xf32, #tpu.memory_space<vmem>>, vector<1x8x1xf32>
    %25 = vector.shape_cast %24 : vector<1x8x1xf32> to vector<8x1xf32>
    %26 = arith.mulf %20, %25 : vector<8x1xf32>
    %cst_20 = arith.constant dense<0.000000e+00> : vector<8xf32>
    %27 = vector.multi_reduction <add>, %23, %cst_20 [1] : vector<8x8xf32> to vector<8xf32>
    %28 = vector.shape_cast %27 : vector<8xf32> to vector<8x1xf32>
    %29 = arith.addf %26, %28 : vector<8x1xf32>
    %c0_21 = arith.constant 0 : index
    %c0_22 = arith.constant 0 : index
    %c0_23 = arith.constant 0 : index
    %30 = vector.load %arg13[%c0_21, %c0_22, %c0_23] : memref<4x8x1xf32, #tpu.memory_space<vmem>>, vector<1x8x1xf32>
    %31 = vector.shape_cast %30 : vector<1x8x1xf32> to vector<8x1xf32>
    %32 = vector.shape_cast %29 : vector<8x1xf32> to vector<1x8x1xf32>
    tpu.vector_store %arg13[%c0_21, %c0_22, %c0_23], %32 {strides = array<i32>} : memref<4x8x1xf32, #tpu.memory_space<vmem>>, vector<1x8x1xf32>,
    %c0_24 = arith.constant 0 : index
    %c0_25 = arith.constant 0 : index
    %c0_26 = arith.constant 0 : index
    %33 = vector.load %arg12[%c0_24, %c0_25, %c0_26] : memref<4x8x1xf32, #tpu.memory_space<vmem>>, vector<1x8x1xf32>
    %34 = vector.shape_cast %33 : vector<1x8x1xf32> to vector<8x1xf32>
    %35 = vector.shape_cast %18 : vector<8x1xf32> to vector<1x8x1xf32>
    tpu.vector_store %arg12[%c0_24, %c0_25, %c0_26], %35 {strides = array<i32>} : memref<4x8x1xf32, #tpu.memory_space<vmem>>, vector<1x8x1xf32>,
    %36 = arith.truncf %23 : vector<8x8xf32> to vector<8x8xbf16>
    %37 = vector.extract_strided_slice %8 {offsets = [0, 0], sizes = [8, 8], strides = [1, 1]} : vector<8x32xbf16> to vector<8x8xbf16>
    %cst_27 = arith.constant dense<0.000000e+00> : vector<8x8xf32>
    %38 = tpu.matmul %36, %37, %cst_27 {dimension_numbers = #tpu.dot_dimension_numbers<[1], [0], [0], [1], [0, 0, 1, 1], [], []>} : vector<8x8xbf16>, vector<8x8xbf16>, vector<8x8xf32> -> vector<8x8xf32>
    %c0_28 = arith.constant 0 : index
    %c0_29 = arith.constant 0 : index
    %39 = vector.load %arg14[%c0_28, %c0_29] : memref<8x32xf32, #tpu.memory_space<vmem>>, vector<8x8xf32>
    %40 = vector.broadcast %20 : vector<8x1xf32> to vector<8x8xf32>
    %41 = arith.mulf %40, %39 : vector<8x8xf32>
    %42 = arith.addf %41, %38 : vector<8x8xf32>
    %c0_30 = arith.constant 0 : index
    %c0_31 = arith.constant 0 : index
    %43 = vector.load %arg14[%c0_30, %c0_31] : memref<8x32xf32, #tpu.memory_space<vmem>>, vector<8x8xf32>
    tpu.vector_store %arg14[%c0_30, %c0_31], %42 {strides = array<i32>} : memref<8x32xf32, #tpu.memory_space<vmem>>, vector<8x8xf32>,
    %44 = vector.extract_strided_slice %4 {offsets = [0, 8], sizes = [8, 8], strides = [1, 1]} : vector<8x32xbf16> to vector<8x8xbf16>
    %45 = vector.extract_strided_slice %6 {offsets = [0, 8], sizes = [8, 8], strides = [1, 1]} : vector<8x32xbf16> to vector<8x8xbf16>
    %cst_32 = arith.constant dense<0.000000e+00> : vector<8x8xf32>
    %46 = tpu.matmul %44, %45, %cst_32 {dimension_numbers = #tpu.dot_dimension_numbers<[1], [1], [0], [0], [0, 0, 1, 0], [], []>} : vector<8x8xbf16>, vector<8x8xbf16>, vector<8x8xf32> -> vector<8x8xf32>
    %cst_33 = arith.constant 0.353553385 : f32
    %47 = vector.broadcast %cst_33 : f32 to vector<8x8xf32>
    %48 = arith.mulf %46, %47 : vector<8x8xf32>
    %c1 = arith.constant 1 : index
    %c0_34 = arith.constant 0 : index
    %c0_35 = arith.constant 0 : index
    %49 = vector.load %arg12[%c1, %c0_34, %c0_35] : memref<4x8x1xf32, #tpu.memory_space<vmem>>, vector<1x8x1xf32>
    %50 = vector.shape_cast %49 : vector<1x8x1xf32> to vector<8x1xf32>
    %cst_36 = arith.constant dense<0xFF800000> : vector<8xf32>
    %51 = vector.multi_reduction <maximumf>, %48, %cst_36 [1] : vector<8x8xf32> to vector<8xf32>
    %52 = vector.shape_cast %51 : vector<8xf32> to vector<8x1xf32>
    %53 = arith.maximumf %50, %52 : vector<8x1xf32>
    %54 = arith.subf %50, %53 : vector<8x1xf32>
    %55 = math.exp %54 : vector<8x1xf32>
    %56 = vector.broadcast %53 : vector<8x1xf32> to vector<8x8xf32>
    %57 = arith.subf %48, %56 : vector<8x8xf32>
    %58 = math.exp %57 : vector<8x8xf32>
    %c1_37 = arith.constant 1 : index
    %c0_38 = arith.constant 0 : index
    %c0_39 = arith.constant 0 : index
    %59 = vector.load %arg13[%c1_37, %c0_38, %c0_39] : memref<4x8x1xf32, #tpu.memory_space<vmem>>, vector<1x8x1xf32>
    %60 = vector.shape_cast %59 : vector<1x8x1xf32> to vector<8x1xf32>
    %61 = arith.mulf %55, %60 : vector<8x1xf32>
    %cst_40 = arith.constant dense<0.000000e+00> : vector<8xf32>
    %62 = vector.multi_reduction <add>, %58, %cst_40 [1] : vector<8x8xf32> to vector<8xf32>
    %63 = vector.shape_cast %62 : vector<8xf32> to vector<8x1xf32>
    %64 = arith.addf %61, %63 : vector<8x1xf32>
    %c1_41 = arith.constant 1 : index
    %c0_42 = arith.constant 0 : index
    %c0_43 = arith.constant 0 : index
    %65 = vector.load %arg13[%c1_41, %c0_42, %c0_43] : memref<4x8x1xf32, #tpu.memory_space<vmem>>, vector<1x8x1xf32>
    %66 = vector.shape_cast %65 : vector<1x8x1xf32> to vector<8x1xf32>
    %67 = vector.shape_cast %64 : vector<8x1xf32> to vector<1x8x1xf32>
    tpu.vector_store %arg13[%c1_41, %c0_42, %c0_43], %67 {strides = array<i32>} : memref<4x8x1xf32, #tpu.memory_space<vmem>>, vector<1x8x1xf32>,
    %c1_44 = arith.constant 1 : index
    %c0_45 = arith.constant 0 : index
    %c0_46 = arith.constant 0 : index
    %68 = vector.load %arg12[%c1_44, %c0_45, %c0_46] : memref<4x8x1xf32, #tpu.memory_space<vmem>>, vector<1x8x1xf32>
    %69 = vector.shape_cast %68 : vector<1x8x1xf32> to vector<8x1xf32>
    %70 = vector.shape_cast %53 : vector<8x1xf32> to vector<1x8x1xf32>
    tpu.vector_store %arg12[%c1_44, %c0_45, %c0_46], %70 {strides = array<i32>} : memref<4x8x1xf32, #tpu.memory_space<vmem>>, vector<1x8x1xf32>,
    %71 = arith.truncf %58 : vector<8x8xf32> to vector<8x8xbf16>
    %72 = vector.extract_strided_slice %8 {offsets = [0, 8], sizes = [8, 8], strides = [1, 1]} : vector<8x32xbf16> to vector<8x8xbf16>
    %cst_47 = arith.constant dense<0.000000e+00> : vector<8x8xf32>
    %73 = tpu.matmul %71, %72, %cst_47 {dimension_numbers = #tpu.dot_dimension_numbers<[1], [0], [0], [1], [0, 0, 1, 1], [], []>} : vector<8x8xbf16>, vector<8x8xbf16>, vector<8x8xf32> -> vector<8x8xf32>
    %c0_48 = arith.constant 0 : index
    %c8 = arith.constant 8 : index
    %74 = vector.load %arg14[%c0_48, %c8] : memref<8x32xf32, #tpu.memory_space<vmem>>, vector<8x8xf32>
    %75 = vector.broadcast %55 : vector<8x1xf32> to vector<8x8xf32>
    %76 = arith.mulf %75, %74 : vector<8x8xf32>
    %77 = arith.addf %76, %73 : vector<8x8xf32>
    %c0_49 = arith.constant 0 : index
    %c8_50 = arith.constant 8 : index
    %78 = vector.load %arg14[%c0_49, %c8_50] : memref<8x32xf32, #tpu.memory_space<vmem>>, vector<8x8xf32>
    tpu.vector_store %arg14[%c0_49, %c8_50], %77 {strides = array<i32>} : memref<8x32xf32, #tpu.memory_space<vmem>>, vector<8x8xf32>,
    %79 = vector.extract_strided_slice %4 {offsets = [0, 16], sizes = [8, 8], strides = [1, 1]} : vector<8x32xbf16> to vector<8x8xbf16>
    %80 = vector.extract_strided_slice %6 {offsets = [0, 16], sizes = [8, 8], strides = [1, 1]} : vector<8x32xbf16> to vector<8x8xbf16>
    %cst_51 = arith.constant dense<0.000000e+00> : vector<8x8xf32>
    %81 = tpu.matmul %79, %80, %cst_51 {dimension_numbers = #tpu.dot_dimension_numbers<[1], [1], [0], [0], [0, 0, 1, 0], [], []>} : vector<8x8xbf16>, vector<8x8xbf16>, vector<8x8xf32> -> vector<8x8xf32>
    %cst_52 = arith.constant 0.353553385 : f32
    %82 = vector.broadcast %cst_52 : f32 to vector<8x8xf32>
    %83 = arith.mulf %81, %82 : vector<8x8xf32>
    %c2 = arith.constant 2 : index
    %c0_53 = arith.constant 0 : index
    %c0_54 = arith.constant 0 : index
    %84 = vector.load %arg12[%c2, %c0_53, %c0_54] : memref<4x8x1xf32, #tpu.memory_space<vmem>>, vector<1x8x1xf32>
    %85 = vector.shape_cast %84 : vector<1x8x1xf32> to vector<8x1xf32>
    %cst_55 = arith.constant dense<0xFF800000> : vector<8xf32>
    %86 = vector.multi_reduction <maximumf>, %83, %cst_55 [1] : vector<8x8xf32> to vector<8xf32>
    %87 = vector.shape_cast %86 : vector<8xf32> to vector<8x1xf32>
    %88 = arith.maximumf %85, %87 : vector<8x1xf32>
    %89 = arith.subf %85, %88 : vector<8x1xf32>
    %90 = math.exp %89 : vector<8x1xf32>
    %91 = vector.broadcast %88 : vector<8x1xf32> to vector<8x8xf32>
    %92 = arith.subf %83, %91 : vector<8x8xf32>
    %93 = math.exp %92 : vector<8x8xf32>
    %c2_56 = arith.constant 2 : index
    %c0_57 = arith.constant 0 : index
    %c0_58 = arith.constant 0 : index
    %94 = vector.load %arg13[%c2_56, %c0_57, %c0_58] : memref<4x8x1xf32, #tpu.memory_space<vmem>>, vector<1x8x1xf32>
    %95 = vector.shape_cast %94 : vector<1x8x1xf32> to vector<8x1xf32>
    %96 = arith.mulf %90, %95 : vector<8x1xf32>
    %cst_59 = arith.constant dense<0.000000e+00> : vector<8xf32>
    %97 = vector.multi_reduction <add>, %93, %cst_59 [1] : vector<8x8xf32> to vector<8xf32>
    %98 = vector.shape_cast %97 : vector<8xf32> to vector<8x1xf32>
    %99 = arith.addf %96, %98 : vector<8x1xf32>
    %c2_60 = arith.constant 2 : index
    %c0_61 = arith.constant 0 : index
    %c0_62 = arith.constant 0 : index
    %100 = vector.load %arg13[%c2_60, %c0_61, %c0_62] : memref<4x8x1xf32, #tpu.memory_space<vmem>>, vector<1x8x1xf32>
    %101 = vector.shape_cast %100 : vector<1x8x1xf32> to vector<8x1xf32>
    %102 = vector.shape_cast %99 : vector<8x1xf32> to vector<1x8x1xf32>
    tpu.vector_store %arg13[%c2_60, %c0_61, %c0_62], %102 {strides = array<i32>} : memref<4x8x1xf32, #tpu.memory_space<vmem>>, vector<1x8x1xf32>,
    %c2_63 = arith.constant 2 : index
    %c0_64 = arith.constant 0 : index
    %c0_65 = arith.constant 0 : index
    %103 = vector.load %arg12[%c2_63, %c0_64, %c0_65] : memref<4x8x1xf32, #tpu.memory_space<vmem>>, vector<1x8x1xf32>
    %104 = vector.shape_cast %103 : vector<1x8x1xf32> to vector<8x1xf32>
    %105 = vector.shape_cast %88 : vector<8x1xf32> to vector<1x8x1xf32>
    tpu.vector_store %arg12[%c2_63, %c0_64, %c0_65], %105 {strides = array<i32>} : memref<4x8x1xf32, #tpu.memory_space<vmem>>, vector<1x8x1xf32>,
    %106 = arith.truncf %93 : vector<8x8xf32> to vector<8x8xbf16>
    %107 = vector.extract_strided_slice %8 {offsets = [0, 16], sizes = [8, 8], strides = [1, 1]} : vector<8x32xbf16> to vector<8x8xbf16>
    %cst_66 = arith.constant dense<0.000000e+00> : vector<8x8xf32>
    %108 = tpu.matmul %106, %107, %cst_66 {dimension_numbers = #tpu.dot_dimension_numbers<[1], [0], [0], [1], [0, 0, 1, 1], [], []>} : vector<8x8xbf16>, vector<8x8xbf16>, vector<8x8xf32> -> vector<8x8xf32>
    %c0_67 = arith.constant 0 : index
    %c16 = arith.constant 16 : index
    %109 = vector.load %arg14[%c0_67, %c16] : memref<8x32xf32, #tpu.memory_space<vmem>>, vector<8x8xf32>
    %110 = vector.broadcast %90 : vector<8x1xf32> to vector<8x8xf32>
    %111 = arith.mulf %110, %109 : vector<8x8xf32>
    %112 = arith.addf %111, %108 : vector<8x8xf32>
    %c0_68 = arith.constant 0 : index
    %c16_69 = arith.constant 16 : index
    %113 = vector.load %arg14[%c0_68, %c16_69] : memref<8x32xf32, #tpu.memory_space<vmem>>, vector<8x8xf32>
    tpu.vector_store %arg14[%c0_68, %c16_69], %112 {strides = array<i32>} : memref<8x32xf32, #tpu.memory_space<vmem>>, vector<8x8xf32>,
    %114 = vector.extract_strided_slice %4 {offsets = [0, 24], sizes = [8, 8], strides = [1, 1]} : vector<8x32xbf16> to vector<8x8xbf16>
    %115 = vector.extract_strided_slice %6 {offsets = [0, 24], sizes = [8, 8], strides = [1, 1]} : vector<8x32xbf16> to vector<8x8xbf16>
    %cst_70 = arith.constant dense<0.000000e+00> : vector<8x8xf32>
    %116 = tpu.matmul %114, %115, %cst_70 {dimension_numbers = #tpu.dot_dimension_numbers<[1], [1], [0], [0], [0, 0, 1, 0], [], []>} : vector<8x8xbf16>, vector<8x8xbf16>, vector<8x8xf32> -> vector<8x8xf32>
    %cst_71 = arith.constant 0.353553385 : f32
    %117 = vector.broadcast %cst_71 : f32 to vector<8x8xf32>
    %118 = arith.mulf %116, %117 : vector<8x8xf32>
    %c3 = arith.constant 3 : index
    %c0_72 = arith.constant 0 : index
    %c0_73 = arith.constant 0 : index
    %119 = vector.load %arg12[%c3, %c0_72, %c0_73] : memref<4x8x1xf32, #tpu.memory_space<vmem>>, vector<1x8x1xf32>
    %120 = vector.shape_cast %119 : vector<1x8x1xf32> to vector<8x1xf32>
    %cst_74 = arith.constant dense<0xFF800000> : vector<8xf32>
    %121 = vector.multi_reduction <maximumf>, %118, %cst_74 [1] : vector<8x8xf32> to vector<8xf32>
    %122 = vector.shape_cast %121 : vector<8xf32> to vector<8x1xf32>
    %123 = arith.maximumf %120, %122 : vector<8x1xf32>
    %124 = arith.subf %120, %123 : vector<8x1xf32>
    %125 = math.exp %124 : vector<8x1xf32>
    %126 = vector.broadcast %123 : vector<8x1xf32> to vector<8x8xf32>
    %127 = arith.subf %118, %126 : vector<8x8xf32>
    %128 = math.exp %127 : vector<8x8xf32>
    %c3_75 = arith.constant 3 : index
    %c0_76 = arith.constant 0 : index
    %c0_77 = arith.constant 0 : index
    %129 = vector.load %arg13[%c3_75, %c0_76, %c0_77] : memref<4x8x1xf32, #tpu.memory_space<vmem>>, vector<1x8x1xf32>
    %130 = vector.shape_cast %129 : vector<1x8x1xf32> to vector<8x1xf32>
    %131 = arith.mulf %125, %130 : vector<8x1xf32>
    %cst_78 = arith.constant dense<0.000000e+00> : vector<8xf32>
    %132 = vector.multi_reduction <add>, %128, %cst_78 [1] : vector<8x8xf32> to vector<8xf32>
    %133 = vector.shape_cast %132 : vector<8xf32> to vector<8x1xf32>
    %134 = arith.addf %131, %133 : vector<8x1xf32>
    %c3_79 = arith.constant 3 : index
    %c0_80 = arith.constant 0 : index
    %c0_81 = arith.constant 0 : index
    %135 = vector.load %arg13[%c3_79, %c0_80, %c0_81] : memref<4x8x1xf32, #tpu.memory_space<vmem>>, vector<1x8x1xf32>
    %136 = vector.shape_cast %135 : vector<1x8x1xf32> to vector<8x1xf32>
    %137 = vector.shape_cast %134 : vector<8x1xf32> to vector<1x8x1xf32>
    tpu.vector_store %arg13[%c3_79, %c0_80, %c0_81], %137 {strides = array<i32>} : memref<4x8x1xf32, #tpu.memory_space<vmem>>, vector<1x8x1xf32>,
    %c3_82 = arith.constant 3 : index
    %c0_83 = arith.constant 0 : index
    %c0_84 = arith.constant 0 : index
    %138 = vector.load %arg12[%c3_82, %c0_83, %c0_84] : memref<4x8x1xf32, #tpu.memory_space<vmem>>, vector<1x8x1xf32>
    %139 = vector.shape_cast %138 : vector<1x8x1xf32> to vector<8x1xf32>
    %140 = vector.shape_cast %123 : vector<8x1xf32> to vector<1x8x1xf32>
    tpu.vector_store %arg12[%c3_82, %c0_83, %c0_84], %140 {strides = array<i32>} : memref<4x8x1xf32, #tpu.memory_space<vmem>>, vector<1x8x1xf32>,
    %141 = arith.truncf %128 : vector<8x8xf32> to vector<8x8xbf16>
    %142 = vector.extract_strided_slice %8 {offsets = [0, 24], sizes = [8, 8], strides = [1, 1]} : vector<8x32xbf16> to vector<8x8xbf16>
    %cst_85 = arith.constant dense<0.000000e+00> : vector<8x8xf32>
    %143 = tpu.matmul %141, %142, %cst_85 {dimension_numbers = #tpu.dot_dimension_numbers<[1], [0], [0], [1], [0, 0, 1, 1], [], []>} : vector<8x8xbf16>, vector<8x8xbf16>, vector<8x8xf32> -> vector<8x8xf32>
    %c0_86 = arith.constant 0 : index
    %c24 = arith.constant 24 : index
    %144 = vector.load %arg14[%c0_86, %c24] : memref<8x32xf32, #tpu.memory_space<vmem>>, vector<8x8xf32>
    %145 = vector.broadcast %125 : vector<8x1xf32> to vector<8x8xf32>
    %146 = arith.mulf %145, %144 : vector<8x8xf32>
    %147 = arith.addf %146, %143 : vector<8x8xf32>
    %c0_87 = arith.constant 0 : index
    %c24_88 = arith.constant 24 : index
    %148 = vector.load %arg14[%c0_87, %c24_88] : memref<8x32xf32, #tpu.memory_space<vmem>>, vector<8x8xf32>
    tpu.vector_store %arg14[%c0_87, %c24_88], %147 {strides = array<i32>} : memref<8x32xf32, #tpu.memory_space<vmem>>, vector<8x8xf32>,
    %c0_i32_89 = arith.constant 0 : i32
    %149 = arith.cmpi eq, %arg2, %c0_i32_89 : i32
    %150 = arith.extui %149 : i1 to i32
    %c0_i32_90 = arith.constant 0 : i32
    %151 = arith.cmpi ne, %150, %c0_i32_90 : i32
    scf.if %151 {
      %c0_91 = arith.constant 0 : index
      %c0_92 = arith.constant 0 : index
      %152 = vector.load %arg14[%c0_91, %c0_92] : memref<8x32xf32, #tpu.memory_space<vmem>>, vector<8x8xf32>
      %c0_93 = arith.constant 0 : index
      %c0_94 = arith.constant 0 : index
      %c0_95 = arith.constant 0 : index
      %153 = vector.load %arg13[%c0_93, %c0_94, %c0_95] : memref<4x8x1xf32, #tpu.memory_space<vmem>>, vector<1x8x1xf32>
      %154 = vector.shape_cast %153 : vector<1x8x1xf32> to vector<8x1xf32>
      %155 = tpu.reciprocal %154 {approx = true} : vector<8x1xf32> -> vector<8x1xf32>
      %156 = vector.broadcast %155 : vector<8x1xf32> to vector<8x8xf32>
      %157 = arith.mulf %152, %156 : vector<8x8xf32>
      %c0_96 = arith.constant 0 : index
      %c0_97 = arith.constant 0 : index
      %158 = vector.load %arg14[%c0_96, %c0_97] : memref<8x32xf32, #tpu.memory_space<vmem>>, vector<8x8xf32>
      tpu.vector_store %arg14[%c0_96, %c0_97], %157 {strides = array<i32>} : memref<8x32xf32, #tpu.memory_space<vmem>>, vector<8x8xf32>,
      %c0_98 = arith.constant 0 : index
      %c8_99 = arith.constant 8 : index
      %159 = vector.load %arg14[%c0_98, %c8_99] : memref<8x32xf32, #tpu.memory_space<vmem>>, vector<8x8xf32>
      %c1_100 = arith.constant 1 : index
      %c0_101 = arith.constant 0 : index
      %c0_102 = arith.constant 0 : index
      %160 = vector.load %arg13[%c1_100, %c0_101, %c0_102] : memref<4x8x1xf32, #tpu.memory_space<vmem>>, vector<1x8x1xf32>
      %161 = vector.shape_cast %160 : vector<1x8x1xf32> to vector<8x1xf32>
      %162 = tpu.reciprocal %161 {approx = true} : vector<8x1xf32> -> vector<8x1xf32>
      %163 = vector.broadcast %162 : vector<8x1xf32> to vector<8x8xf32>
      %164 = arith.mulf %159, %163 : vector<8x8xf32>
      %c0_103 = arith.constant 0 : index
      %c8_104 = arith.constant 8 : index
      %165 = vector.load %arg14[%c0_103, %c8_104] : memref<8x32xf32, #tpu.memory_space<vmem>>, vector<8x8xf32>
      tpu.vector_store %arg14[%c0_103, %c8_104], %164 {strides = array<i32>} : memref<8x32xf32, #tpu.memory_space<vmem>>, vector<8x8xf32>,
      %c0_105 = arith.constant 0 : index
      %c16_106 = arith.constant 16 : index
      %166 = vector.load %arg14[%c0_105, %c16_106] : memref<8x32xf32, #tpu.memory_space<vmem>>, vector<8x8xf32>
      %c2_107 = arith.constant 2 : index
      %c0_108 = arith.constant 0 : index
      %c0_109 = arith.constant 0 : index
      %167 = vector.load %arg13[%c2_107, %c0_108, %c0_109] : memref<4x8x1xf32, #tpu.memory_space<vmem>>, vector<1x8x1xf32>
      %168 = vector.shape_cast %167 : vector<1x8x1xf32> to vector<8x1xf32>
      %169 = tpu.reciprocal %168 {approx = true} : vector<8x1xf32> -> vector<8x1xf32>
      %170 = vector.broadcast %169 : vector<8x1xf32> to vector<8x8xf32>
      %171 = arith.mulf %166, %170 : vector<8x8xf32>
      %c0_110 = arith.constant 0 : index
      %c16_111 = arith.constant 16 : index
      %172 = vector.load %arg14[%c0_110, %c16_111] : memref<8x32xf32, #tpu.memory_space<vmem>>, vector<8x8xf32>
      tpu.vector_store %arg14[%c0_110, %c16_111], %171 {strides = array<i32>} : memref<8x32xf32, #tpu.memory_space<vmem>>, vector<8x8xf32>,
      %c0_112 = arith.constant 0 : index
      %c24_113 = arith.constant 24 : index
      %173 = vector.load %arg14[%c0_112, %c24_113] : memref<8x32xf32, #tpu.memory_space<vmem>>, vector<8x8xf32>
      %c3_114 = arith.constant 3 : index
      %c0_115 = arith.constant 0 : index
      %c0_116 = arith.constant 0 : index
      %174 = vector.load %arg13[%c3_114, %c0_115, %c0_116] : memref<4x8x1xf32, #tpu.memory_space<vmem>>, vector<1x8x1xf32>
      %175 = vector.shape_cast %174 : vector<1x8x1xf32> to vector<8x1xf32>
      %176 = tpu.reciprocal %175 {approx = true} : vector<8x1xf32> -> vector<8x1xf32>
      %177 = vector.broadcast %176 : vector<8x1xf32> to vector<8x8xf32>
      %178 = arith.mulf %173, %177 : vector<8x8xf32>
      %c0_117 = arith.constant 0 : index
      %c24_118 = arith.constant 24 : index
      %179 = vector.load %arg14[%c0_117, %c24_118] : memref<8x32xf32, #tpu.memory_space<vmem>>, vector<8x8xf32>
      tpu.vector_store %arg14[%c0_117, %c24_118], %178 {strides = array<i32>} : memref<8x32xf32, #tpu.memory_space<vmem>>, vector<8x8xf32>,
      %c0_119 = arith.constant 0 : index
      %c0_120 = arith.constant 0 : index
      %180 = vector.load %arg14[%c0_119, %c0_120] : memref<8x32xf32, #tpu.memory_space<vmem>>, vector<8x32xf32>
      %181 = arith.truncf %180 : vector<8x32xf32> to vector<8x32xbf16>
      %c0_121 = arith.constant 0 : index
      %c0_122 = arith.constant 0 : index
      %182 = vector.load %arg7[%c0_121, %c0_122] : memref<32x32xf32, #tpu.memory_space<vmem>>, vector<32x32xf32>
      %183 = arith.truncf %182 : vector<32x32xf32> to vector<32x32xbf16>
      %cst_123 = arith.constant dense<0.000000e+00> : vector<8x32xf32>
      %184 = tpu.matmul %181, %183, %cst_123 {dimension_numbers = #tpu.dot_dimension_numbers<[1], [0], [0], [1], [0, 0, 1, 1], [], []>} : vector<8x32xbf16>, vector<32x32xbf16>, vector<8x32xf32> -> vector<8x32xf32>
      %c0_124 = arith.constant 0 : index
      %c0_125 = arith.constant 0 : index
      %185 = vector.load %arg8[%c0_124, %c0_125] : memref<1x32xf32, #tpu.memory_space<vmem>>, vector<1x32xf32>
      %186 = vector.broadcast %185 : vector<1x32xf32> to vector<8x32xf32>
      %187 = arith.addf %184, %186 : vector<8x32xf32>
      %c0_126 = arith.constant 0 : index
      %c0_127 = arith.constant 0 : index
      %c0_128 = arith.constant 0 : index
      %188 = vector.load %arg6[%c0_126, %c0_127, %c0_128] : memref<1x8x32xf32, #tpu.memory_space<vmem>>, vector<1x8x32xf32>
      %189 = vector.shape_cast %188 : vector<1x8x32xf32> to vector<8x32xf32>
      %190 = arith.addf %187, %189 : vector<8x32xf32>
      %cst_129 = arith.constant dense<0.000000e+00> : vector<8xf32>
      %191 = vector.multi_reduction <add>, %190, %cst_129 [1] : vector<8x32xf32> to vector<8xf32>
      %192 = vector.shape_cast %191 : vector<8xf32> to vector<8x1xf32>
      %cst_130 = arith.constant 3.200000e+01 : f32
      %193 = vector.broadcast %cst_130 : f32 to vector<8x1xf32>
      %194 = arith.divf %192, %193 : vector<8x1xf32>
      %195 = vector.broadcast %194 : vector<8x1xf32> to vector<8x32xf32>
      %196 = arith.subf %190, %195 : vector<8x32xf32>
      %197 = arith.mulf %196, %196 : vector<8x32xf32>
      %cst_131 = arith.constant dense<0.000000e+00> : vector<8xf32>
      %198 = vector.multi_reduction <add>, %197, %cst_131 [1] : vector<8x32xf32> to vector<8xf32>
      %199 = vector.shape_cast %198 : vector<8xf32> to vector<8x1xf32>
      %cst_132 = arith.constant 3.200000e+01 : f32
      %200 = vector.broadcast %cst_132 : f32 to vector<8x1xf32>
      %201 = arith.divf %199, %200 : vector<8x1xf32>
      %cst_133 = arith.constant 9.99999974E-6 : f32
      %202 = vector.broadcast %cst_133 : f32 to vector<8x1xf32>
      %203 = arith.addf %201, %202 : vector<8x1xf32>
      %204 = math.rsqrt %203 : vector<8x1xf32>
      %205 = vector.broadcast %204 : vector<8x1xf32> to vector<8x32xf32>
      %206 = arith.mulf %196, %205 : vector<8x32xf32>
      %c0_134 = arith.constant 0 : index
      %c0_135 = arith.constant 0 : index
      %207 = vector.load %arg9[%c0_134, %c0_135] : memref<1x32xf32, #tpu.memory_space<vmem>>, vector<1x32xf32>
      %208 = vector.broadcast %207 : vector<1x32xf32> to vector<8x32xf32>
      %209 = arith.mulf %206, %208 : vector<8x32xf32>
      %c0_136 = arith.constant 0 : index
      %c0_137 = arith.constant 0 : index
      %210 = vector.load %arg10[%c0_136, %c0_137] : memref<1x32xf32, #tpu.memory_space<vmem>>, vector<1x32xf32>
      %211 = vector.broadcast %210 : vector<1x32xf32> to vector<8x32xf32>
      %212 = arith.addf %209, %211 : vector<8x32xf32>
      %c0_138 = arith.constant 0 : index
      %c0_139 = arith.constant 0 : index
      %c0_140 = arith.constant 0 : index
      %213 = vector.load %arg11[%c0_138, %c0_139, %c0_140] : memref<1x8x32xf32, #tpu.memory_space<vmem>>, vector<1x8x32xf32>
      %214 = vector.shape_cast %213 : vector<1x8x32xf32> to vector<8x32xf32>
      %215 = vector.shape_cast %212 : vector<8x32xf32> to vector<1x8x32xf32>
      tpu.vector_store %arg11[%c0_138, %c0_139, %c0_140], %215 {strides = array<i32>} : memref<1x8x32xf32, #tpu.memory_space<vmem>>, vector<1x8x32xf32>,
    } else {
    }
    return
  }
  func.func @transform_0(%arg0: i32, %arg1: i32, %arg2: i32) -> (i32, i32, i32, i32) {
    %c0_i32 = arith.constant 0 : i32
    %c0_i32_0 = arith.constant 0 : i32
    %c0_i32_1 = arith.constant 0 : i32
    return %c0_i32, %arg0, %arg1, %c0_i32_0 : i32, i32, i32, i32
  }
  func.func @transform_1(%arg0: i32, %arg1: i32, %arg2: i32) -> (i32, i32, i32, i32) {
    %c1_i32 = arith.constant 1 : i32
    %c0_i32 = arith.constant 0 : i32
    %c0_i32_0 = arith.constant 0 : i32
    return %c1_i32, %arg0, %arg2, %c0_i32 : i32, i32, i32, i32
  }
  func.func @transform_2(%arg0: i32, %arg1: i32, %arg2: i32) -> (i32, i32, i32, i32) {
    %c2_i32 = arith.constant 2 : i32
    %c0_i32 = arith.constant 0 : i32
    %c0_i32_0 = arith.constant 0 : i32
    return %c2_i32, %arg0, %arg2, %c0_i32 : i32, i32, i32, i32
  }
  func.func @transform_3(%arg0: i32, %arg1: i32, %arg2: i32) -> (i32, i32, i32) {
    %c0_i32 = arith.constant 0 : i32
    %c0_i32_0 = arith.constant 0 : i32
    return %arg0, %arg1, %c0_i32 : i32, i32, i32
  }
  func.func @transform_4(%arg0: i32, %arg1: i32, %arg2: i32) -> (i32, i32) {
    %c0_i32 = arith.constant 0 : i32
    %c0_i32_0 = arith.constant 0 : i32
    %c0_i32_1 = arith.constant 0 : i32
    return %c0_i32, %c0_i32_0 : i32, i32
  }
  func.func @transform_5(%arg0: i32, %arg1: i32, %arg2: i32) -> (i32, i32) {
    %c0_i32 = arith.constant 0 : i32
    %c0_i32_0 = arith.constant 0 : i32
    %c0_i32_1 = arith.constant 0 : i32
    return %c0_i32, %c0_i32_0 : i32, i32
  }
  func.func @transform_6(%arg0: i32, %arg1: i32, %arg2: i32) -> (i32, i32) {
    %c0_i32 = arith.constant 0 : i32
    %c0_i32_0 = arith.constant 0 : i32
    %c0_i32_1 = arith.constant 0 : i32
    return %c0_i32, %c0_i32_0 : i32, i32
  }
  func.func @transform_7(%arg0: i32, %arg1: i32, %arg2: i32) -> (i32, i32) {
    %c0_i32 = arith.constant 0 : i32
    %c0_i32_0 = arith.constant 0 : i32
    %c0_i32_1 = arith.constant 0 : i32
    return %c0_i32, %c0_i32_0 : i32, i32
  }
  func.func @transform_8(%arg0: i32, %arg1: i32, %arg2: i32) -> (i32, i32, i32) {
    %c0_i32 = arith.constant 0 : i32
    %c0_i32_0 = arith.constant 0 : i32
    return %arg0, %arg1, %c0_i32 : i32, i32, i32
  }
}

module attributes {stable_mosaic.version = 11 : i64} {
  func.func @_grouped_linear_kernel(%arg0: i32, %arg1: i32, %arg2: memref<16x32xf32, #tpu.memory_space<vmem>>, %arg3: memref<1x32x32xf32, #tpu.memory_space<vmem>>, %arg4: memref<1x1x32xf32, #tpu.memory_space<vmem>>, %arg5: memref<1x16x32xbf16, #tpu.memory_space<vmem>>, %arg6: memref<1x16x32xf32, #tpu.memory_space<vmem>>) attributes {dimension_semantics = [#tpu.dimension_semantics<parallel>, #tpu.dimension_semantics<arbitrary>], iteration_bounds = array<i64: 1, 1>, scalar_prefetch = 0 : i64, scratch_operands = 1 : i64, tpu.core_type = #tpu.core_type<tc>, window_params = [{transform_indices = @transform_0, window_bounds = array<i64: 16, 32>}, {transform_indices = @transform_1, window_bounds = array<i64: 1, 32, 32>}, {pipeline_mode = #tpu.pipeline_mode<synchronous>, transform_indices = @transform_2, window_bounds = array<i64: 1, 1, 32>}, {transform_indices = @transform_3, window_bounds = array<i64: 1, 16, 32>}]} {
    %c0_i32 = arith.constant 0 : i32
    %0 = arith.cmpi eq, %arg1, %c0_i32 : i32
    %1 = arith.extui %0 : i1 to i32
    %c0_i32_0 = arith.constant 0 : i32
    %2 = arith.cmpi ne, %1, %c0_i32_0 : i32
    scf.if %2 {
      %cst_13 = arith.constant 0.000000e+00 : f32
      %18 = vector.broadcast %cst_13 : f32 to vector<1x16x32xf32>
      %c0_14 = arith.constant 0 : index
      %c0_15 = arith.constant 0 : index
      %c0_16 = arith.constant 0 : index
      %19 = vector.load %arg6[%c0_14, %c0_15, %c0_16] : memref<1x16x32xf32, #tpu.memory_space<vmem>>, vector<1x16x32xf32>
      tpu.vector_store %arg6[%c0_14, %c0_15, %c0_16], %18 {strides = array<i32>} : memref<1x16x32xf32, #tpu.memory_space<vmem>>, vector<1x16x32xf32>,
    } else {
    }
    %c0 = arith.constant 0 : index
    %c0_1 = arith.constant 0 : index
    %3 = vector.load %arg2[%c0, %c0_1] : memref<16x32xf32, #tpu.memory_space<vmem>>, vector<16x32xf32>
    %4 = arith.truncf %3 : vector<16x32xf32> to vector<16x32xbf16>
    %c0_2 = arith.constant 0 : index
    %c0_3 = arith.constant 0 : index
    %c0_4 = arith.constant 0 : index
    %5 = vector.load %arg6[%c0_2, %c0_3, %c0_4] : memref<1x16x32xf32, #tpu.memory_space<vmem>>, vector<1x16x32xf32>
    %6 = vector.shape_cast %5 : vector<1x16x32xf32> to vector<16x32xf32>
    %c0_5 = arith.constant 0 : index
    %c0_6 = arith.constant 0 : index
    %c0_7 = arith.constant 0 : index
    %7 = vector.load %arg3[%c0_5, %c0_6, %c0_7] : memref<1x32x32xf32, #tpu.memory_space<vmem>>, vector<1x32x32xf32>
    %8 = vector.shape_cast %7 : vector<1x32x32xf32> to vector<32x32xf32>
    %9 = arith.truncf %8 : vector<32x32xf32> to vector<32x32xbf16>
    %cst = arith.constant dense<0.000000e+00> : vector<16x32xf32>
    %10 = tpu.matmul %4, %9, %cst {dimension_numbers = #tpu.dot_dimension_numbers<[1], [0], [0], [1], [0, 0, 1, 1], [], []>} : vector<16x32xbf16>, vector<32x32xbf16>, vector<16x32xf32> -> vector<16x32xf32>
    %11 = arith.addf %6, %10 : vector<16x32xf32>
    %c0_8 = arith.constant 0 : index
    %c0_9 = arith.constant 0 : index
    %c0_10 = arith.constant 0 : index
    %12 = vector.load %arg6[%c0_8, %c0_9, %c0_10] : memref<1x16x32xf32, #tpu.memory_space<vmem>>, vector<1x16x32xf32>
    %13 = vector.shape_cast %12 : vector<1x16x32xf32> to vector<16x32xf32>
    %14 = vector.shape_cast %11 : vector<16x32xf32> to vector<1x16x32xf32>
    tpu.vector_store %arg6[%c0_8, %c0_9, %c0_10], %14 {strides = array<i32>} : memref<1x16x32xf32, #tpu.memory_space<vmem>>, vector<1x16x32xf32>,
    %c0_i32_11 = arith.constant 0 : i32
    %15 = arith.cmpi eq, %arg1, %c0_i32_11 : i32
    %16 = arith.extui %15 : i1 to i32
    %c0_i32_12 = arith.constant 0 : i32
    %17 = arith.cmpi ne, %16, %c0_i32_12 : i32
    scf.if %17 {
      %c0_13 = arith.constant 0 : index
      %c0_14 = arith.constant 0 : index
      %c0_15 = arith.constant 0 : index
      %18 = vector.load %arg6[%c0_13, %c0_14, %c0_15] : memref<1x16x32xf32, #tpu.memory_space<vmem>>, vector<1x16x32xf32>
      %c0_16 = arith.constant 0 : index
      %c0_17 = arith.constant 0 : index
      %c0_18 = arith.constant 0 : index
      %19 = vector.load %arg4[%c0_16, %c0_17, %c0_18] : memref<1x1x32xf32, #tpu.memory_space<vmem>>, vector<1x1x32xf32>
      %20 = vector.broadcast %19 : vector<1x1x32xf32> to vector<1x16x32xf32>
      %21 = arith.addf %18, %20 : vector<1x16x32xf32>
      %22 = arith.truncf %21 : vector<1x16x32xf32> to vector<1x16x32xbf16>
      %c0_19 = arith.constant 0 : index
      %c0_20 = arith.constant 0 : index
      %c0_21 = arith.constant 0 : index
      %23 = vector.load %arg5[%c0_19, %c0_20, %c0_21] : memref<1x16x32xbf16, #tpu.memory_space<vmem>>, vector<1x16x32xbf16>
      tpu.vector_store %arg5[%c0_19, %c0_20, %c0_21], %22 {strides = array<i32>} : memref<1x16x32xbf16, #tpu.memory_space<vmem>>, vector<1x16x32xbf16>,
    } else {
    }
    return
  }
  func.func @transform_0(%arg0: i32, %arg1: i32) -> (i32, i32) {
    %c0_i32 = arith.constant 0 : i32
    return %arg0, %arg1 : i32, i32
  }
  func.func @transform_1(%arg0: i32, %arg1: i32) -> (i32, i32, i32) {
    %c0_i32 = arith.constant 0 : i32
    %c0_i32_0 = arith.constant 0 : i32
    %c0_i32_1 = arith.constant 0 : i32
    return %c0_i32, %arg1, %c0_i32_0 : i32, i32, i32
  }
  func.func @transform_2(%arg0: i32, %arg1: i32) -> (i32, i32, i32) {
    %c0_i32 = arith.constant 0 : i32
    %c0_i32_0 = arith.constant 0 : i32
    %c0_i32_1 = arith.constant 0 : i32
    %c0_i32_2 = arith.constant 0 : i32
    return %c0_i32, %c0_i32_0, %c0_i32_1 : i32, i32, i32
  }
  func.func @transform_3(%arg0: i32, %arg1: i32) -> (i32, i32, i32) {
    %c0_i32 = arith.constant 0 : i32
    %c0_i32_0 = arith.constant 0 : i32
    %c0_i32_1 = arith.constant 0 : i32
    return %c0_i32, %arg0, %c0_i32_0 : i32, i32, i32
  }
}

module attributes {stable_mosaic.version = 11 : i64} {
  func.func @_grouped_linear_kernel(%arg0: i32, %arg1: i32, %arg2: memref<16x32xf32, #tpu.memory_space<vmem>>, %arg3: memref<2x32x32xf32, #tpu.memory_space<vmem>>, %arg4: memref<2x1x32xf32, #tpu.memory_space<vmem>>, %arg5: memref<2x16x32xbf16, #tpu.memory_space<vmem>>, %arg6: memref<2x16x32xf32, #tpu.memory_space<vmem>>) attributes {dimension_semantics = [#tpu.dimension_semantics<parallel>, #tpu.dimension_semantics<arbitrary>], iteration_bounds = array<i64: 1, 1>, scalar_prefetch = 0 : i64, scratch_operands = 1 : i64, tpu.core_type = #tpu.core_type<tc>, window_params = [{transform_indices = @transform_0, window_bounds = array<i64: 16, 32>}, {transform_indices = @transform_1, window_bounds = array<i64: 2, 32, 32>}, {pipeline_mode = #tpu.pipeline_mode<synchronous>, transform_indices = @transform_2, window_bounds = array<i64: 2, 1, 32>}, {transform_indices = @transform_3, window_bounds = array<i64: 2, 16, 32>}]} {
    %c0_i32 = arith.constant 0 : i32
    %0 = arith.cmpi eq, %arg1, %c0_i32 : i32
    %1 = arith.extui %0 : i1 to i32
    %c0_i32_0 = arith.constant 0 : i32
    %2 = arith.cmpi ne, %1, %c0_i32_0 : i32
    scf.if %2 {
      %cst_22 = arith.constant 0.000000e+00 : f32
      %28 = vector.broadcast %cst_22 : f32 to vector<2x16x32xf32>
      %c0_23 = arith.constant 0 : index
      %c0_24 = arith.constant 0 : index
      %c0_25 = arith.constant 0 : index
      %29 = vector.load %arg6[%c0_23, %c0_24, %c0_25] : memref<2x16x32xf32, #tpu.memory_space<vmem>>, vector<2x16x32xf32>
      tpu.vector_store %arg6[%c0_23, %c0_24, %c0_25], %28 {strides = array<i32>} : memref<2x16x32xf32, #tpu.memory_space<vmem>>, vector<2x16x32xf32>,
    } else {
    }
    %c0 = arith.constant 0 : index
    %c0_1 = arith.constant 0 : index
    %3 = vector.load %arg2[%c0, %c0_1] : memref<16x32xf32, #tpu.memory_space<vmem>>, vector<16x32xf32>
    %4 = arith.truncf %3 : vector<16x32xf32> to vector<16x32xbf16>
    %c0_2 = arith.constant 0 : index
    %c0_3 = arith.constant 0 : index
    %c0_4 = arith.constant 0 : index
    %5 = vector.load %arg6[%c0_2, %c0_3, %c0_4] : memref<2x16x32xf32, #tpu.memory_space<vmem>>, vector<1x16x32xf32>
    %6 = vector.shape_cast %5 : vector<1x16x32xf32> to vector<16x32xf32>
    %c0_5 = arith.constant 0 : index
    %c0_6 = arith.constant 0 : index
    %c0_7 = arith.constant 0 : index
    %7 = vector.load %arg3[%c0_5, %c0_6, %c0_7] : memref<2x32x32xf32, #tpu.memory_space<vmem>>, vector<1x32x32xf32>
    %8 = vector.shape_cast %7 : vector<1x32x32xf32> to vector<32x32xf32>
    %9 = arith.truncf %8 : vector<32x32xf32> to vector<32x32xbf16>
    %cst = arith.constant dense<0.000000e+00> : vector<16x32xf32>
    %10 = tpu.matmul %4, %9, %cst {dimension_numbers = #tpu.dot_dimension_numbers<[1], [0], [0], [1], [0, 0, 1, 1], [], []>} : vector<16x32xbf16>, vector<32x32xbf16>, vector<16x32xf32> -> vector<16x32xf32>
    %11 = arith.addf %6, %10 : vector<16x32xf32>
    %c0_8 = arith.constant 0 : index
    %c0_9 = arith.constant 0 : index
    %c0_10 = arith.constant 0 : index
    %12 = vector.load %arg6[%c0_8, %c0_9, %c0_10] : memref<2x16x32xf32, #tpu.memory_space<vmem>>, vector<1x16x32xf32>
    %13 = vector.shape_cast %12 : vector<1x16x32xf32> to vector<16x32xf32>
    %14 = vector.shape_cast %11 : vector<16x32xf32> to vector<1x16x32xf32>
    tpu.vector_store %arg6[%c0_8, %c0_9, %c0_10], %14 {strides = array<i32>} : memref<2x16x32xf32, #tpu.memory_space<vmem>>, vector<1x16x32xf32>,
    %c1 = arith.constant 1 : index
    %c0_11 = arith.constant 0 : index
    %c0_12 = arith.constant 0 : index
    %15 = vector.load %arg6[%c1, %c0_11, %c0_12] : memref<2x16x32xf32, #tpu.memory_space<vmem>>, vector<1x16x32xf32>
    %16 = vector.shape_cast %15 : vector<1x16x32xf32> to vector<16x32xf32>
    %c1_13 = arith.constant 1 : index
    %c0_14 = arith.constant 0 : index
    %c0_15 = arith.constant 0 : index
    %17 = vector.load %arg3[%c1_13, %c0_14, %c0_15] : memref<2x32x32xf32, #tpu.memory_space<vmem>>, vector<1x32x32xf32>
    %18 = vector.shape_cast %17 : vector<1x32x32xf32> to vector<32x32xf32>
    %19 = arith.truncf %18 : vector<32x32xf32> to vector<32x32xbf16>
    %cst_16 = arith.constant dense<0.000000e+00> : vector<16x32xf32>
    %20 = tpu.matmul %4, %19, %cst_16 {dimension_numbers = #tpu.dot_dimension_numbers<[1], [0], [0], [1], [0, 0, 1, 1], [], []>} : vector<16x32xbf16>, vector<32x32xbf16>, vector<16x32xf32> -> vector<16x32xf32>
    %21 = arith.addf %16, %20 : vector<16x32xf32>
    %c1_17 = arith.constant 1 : index
    %c0_18 = arith.constant 0 : index
    %c0_19 = arith.constant 0 : index
    %22 = vector.load %arg6[%c1_17, %c0_18, %c0_19] : memref<2x16x32xf32, #tpu.memory_space<vmem>>, vector<1x16x32xf32>
    %23 = vector.shape_cast %22 : vector<1x16x32xf32> to vector<16x32xf32>
    %24 = vector.shape_cast %21 : vector<16x32xf32> to vector<1x16x32xf32>
    tpu.vector_store %arg6[%c1_17, %c0_18, %c0_19], %24 {strides = array<i32>} : memref<2x16x32xf32, #tpu.memory_space<vmem>>, vector<1x16x32xf32>,
    %c0_i32_20 = arith.constant 0 : i32
    %25 = arith.cmpi eq, %arg1, %c0_i32_20 : i32
    %26 = arith.extui %25 : i1 to i32
    %c0_i32_21 = arith.constant 0 : i32
    %27 = arith.cmpi ne, %26, %c0_i32_21 : i32
    scf.if %27 {
      %c0_22 = arith.constant 0 : index
      %c0_23 = arith.constant 0 : index
      %c0_24 = arith.constant 0 : index
      %28 = vector.load %arg6[%c0_22, %c0_23, %c0_24] : memref<2x16x32xf32, #tpu.memory_space<vmem>>, vector<2x16x32xf32>
      %c0_25 = arith.constant 0 : index
      %c0_26 = arith.constant 0 : index
      %c0_27 = arith.constant 0 : index
      %29 = vector.load %arg4[%c0_25, %c0_26, %c0_27] : memref<2x1x32xf32, #tpu.memory_space<vmem>>, vector<2x1x32xf32>
      %30 = vector.broadcast %29 : vector<2x1x32xf32> to vector<2x16x32xf32>
      %31 = arith.addf %28, %30 : vector<2x16x32xf32>
      %32 = arith.truncf %31 : vector<2x16x32xf32> to vector<2x16x32xbf16>
      %c0_28 = arith.constant 0 : index
      %c0_29 = arith.constant 0 : index
      %c0_30 = arith.constant 0 : index
      %33 = vector.load %arg5[%c0_28, %c0_29, %c0_30] : memref<2x16x32xbf16, #tpu.memory_space<vmem>>, vector<2x16x32xbf16>
      tpu.vector_store %arg5[%c0_28, %c0_29, %c0_30], %32 {strides = array<i32>} : memref<2x16x32xbf16, #tpu.memory_space<vmem>>, vector<2x16x32xbf16>,
    } else {
    }
    return
  }
  func.func @transform_0(%arg0: i32, %arg1: i32) -> (i32, i32) {
    %c0_i32 = arith.constant 0 : i32
    return %arg0, %arg1 : i32, i32
  }
  func.func @transform_1(%arg0: i32, %arg1: i32) -> (i32, i32, i32) {
    %c0_i32 = arith.constant 0 : i32
    %c0_i32_0 = arith.constant 0 : i32
    %c0_i32_1 = arith.constant 0 : i32
    return %c0_i32, %arg1, %c0_i32_0 : i32, i32, i32
  }
  func.func @transform_2(%arg0: i32, %arg1: i32) -> (i32, i32, i32) {
    %c0_i32 = arith.constant 0 : i32
    %c0_i32_0 = arith.constant 0 : i32
    %c0_i32_1 = arith.constant 0 : i32
    %c0_i32_2 = arith.constant 0 : i32
    return %c0_i32, %c0_i32_0, %c0_i32_1 : i32, i32, i32
  }
  func.func @transform_3(%arg0: i32, %arg1: i32) -> (i32, i32, i32) {
    %c0_i32 = arith.constant 0 : i32
    %c0_i32_0 = arith.constant 0 : i32
    %c0_i32_1 = arith.constant 0 : i32
    return %c0_i32, %arg0, %c0_i32_0 : i32, i32, i32
  }
}

module attributes {stable_mosaic.version = 11 : i64} {
  func.func @_ffn_add_ln_kernel(%arg0: i32, %arg1: i32, %arg2: memref<16x32xf32, #tpu.memory_space<vmem>>, %arg3: memref<32x64xf32, #tpu.memory_space<vmem>>, %arg4: memref<1x64xf32, #tpu.memory_space<vmem>>, %arg5: memref<64x32xf32, #tpu.memory_space<vmem>>, %arg6: memref<1x32xf32, #tpu.memory_space<vmem>>, %arg7: memref<1x32xf32, #tpu.memory_space<vmem>>, %arg8: memref<1x32xf32, #tpu.memory_space<vmem>>, %arg9: memref<16x32xf32, #tpu.memory_space<vmem>>, %arg10: memref<16x32xf32, #tpu.memory_space<vmem>>) attributes {dimension_semantics = [#tpu.dimension_semantics<parallel>, #tpu.dimension_semantics<arbitrary>], iteration_bounds = array<i64: 1, 1>, scalar_prefetch = 0 : i64, scratch_operands = 1 : i64, tpu.core_type = #tpu.core_type<tc>, window_params = [{transform_indices = @transform_0, window_bounds = array<i64: 16, 32>}, {transform_indices = @transform_1, window_bounds = array<i64: 32, 64>}, {transform_indices = @transform_2, window_bounds = array<i64: 1, 64>}, {transform_indices = @transform_3, window_bounds = array<i64: 64, 32>}, {pipeline_mode = #tpu.pipeline_mode<synchronous>, transform_indices = @transform_4, window_bounds = array<i64: 1, 32>}, {pipeline_mode = #tpu.pipeline_mode<synchronous>, transform_indices = @transform_5, window_bounds = array<i64: 1, 32>}, {pipeline_mode = #tpu.pipeline_mode<synchronous>, transform_indices = @transform_6, window_bounds = array<i64: 1, 32>}, {transform_indices = @transform_7, window_bounds = array<i64: 16, 32>}]} {
    %c0_i32 = arith.constant 0 : i32
    %0 = arith.cmpi eq, %arg1, %c0_i32 : i32
    %1 = arith.extui %0 : i1 to i32
    %c0_i32_0 = arith.constant 0 : i32
    %2 = arith.cmpi ne, %1, %c0_i32_0 : i32
    scf.if %2 {
      %cst_16 = arith.constant 0.000000e+00 : f32
      %23 = vector.broadcast %cst_16 : f32 to vector<16x32xf32>
      %c0_17 = arith.constant 0 : index
      %c0_18 = arith.constant 0 : index
      %24 = vector.load %arg10[%c0_17, %c0_18] : memref<16x32xf32, #tpu.memory_space<vmem>>, vector<16x32xf32>
      tpu.vector_store %arg10[%c0_17, %c0_18], %23 {strides = array<i32>} : memref<16x32xf32, #tpu.memory_space<vmem>>, vector<16x32xf32>,
    } else {
    }
    %c0 = arith.constant 0 : index
    %c0_1 = arith.constant 0 : index
    %3 = vector.load %arg2[%c0, %c0_1] : memref<16x32xf32, #tpu.memory_space<vmem>>, vector<16x32xf32>
    %4 = arith.truncf %3 : vector<16x32xf32> to vector<16x32xbf16>
    %c0_2 = arith.constant 0 : index
    %c0_3 = arith.constant 0 : index
    %5 = vector.load %arg3[%c0_2, %c0_3] : memref<32x64xf32, #tpu.memory_space<vmem>>, vector<32x64xf32>
    %6 = arith.truncf %5 : vector<32x64xf32> to vector<32x64xbf16>
    %cst = arith.constant dense<0.000000e+00> : vector<16x64xf32>
    %7 = tpu.matmul %4, %6, %cst {dimension_numbers = #tpu.dot_dimension_numbers<[1], [0], [0], [1], [0, 0, 1, 1], [], []>} : vector<16x32xbf16>, vector<32x64xbf16>, vector<16x64xf32> -> vector<16x64xf32>
    %c0_4 = arith.constant 0 : index
    %c0_5 = arith.constant 0 : index
    %8 = vector.load %arg4[%c0_4, %c0_5] : memref<1x64xf32, #tpu.memory_space<vmem>>, vector<1x64xf32>
    %9 = vector.broadcast %8 : vector<1x64xf32> to vector<16x64xf32>
    %10 = arith.addf %7, %9 : vector<16x64xf32>
    %cst_6 = arith.constant 0.000000e+00 : f32
    %11 = vector.broadcast %cst_6 : f32 to vector<16x64xf32>
    %12 = arith.maximumf %10, %11 : vector<16x64xf32>
    %c0_7 = arith.constant 0 : index
    %c0_8 = arith.constant 0 : index
    %13 = vector.load %arg10[%c0_7, %c0_8] : memref<16x32xf32, #tpu.memory_space<vmem>>, vector<16x32xf32>
    %14 = arith.truncf %12 : vector<16x64xf32> to vector<16x64xbf16>
    %c0_9 = arith.constant 0 : index
    %c0_10 = arith.constant 0 : index
    %15 = vector.load %arg5[%c0_9, %c0_10] : memref<64x32xf32, #tpu.memory_space<vmem>>, vector<64x32xf32>
    %16 = arith.truncf %15 : vector<64x32xf32> to vector<64x32xbf16>
    %cst_11 = arith.constant dense<0.000000e+00> : vector<16x32xf32>
    %17 = tpu.matmul %14, %16, %cst_11 {dimension_numbers = #tpu.dot_dimension_numbers<[1], [0], [0], [1], [0, 0, 1, 1], [], []>} : vector<16x64xbf16>, vector<64x32xbf16>, vector<16x32xf32> -> vector<16x32xf32>
    %18 = arith.addf %13, %17 : vector<16x32xf32>
    %c0_12 = arith.constant 0 : index
    %c0_13 = arith.constant 0 : index
    %19 = vector.load %arg10[%c0_12, %c0_13] : memref<16x32xf32, #tpu.memory_space<vmem>>, vector<16x32xf32>
    tpu.vector_store %arg10[%c0_12, %c0_13], %18 {strides = array<i32>} : memref<16x32xf32, #tpu.memory_space<vmem>>, vector<16x32xf32>,
    %c0_i32_14 = arith.constant 0 : i32
    %20 = arith.cmpi eq, %arg1, %c0_i32_14 : i32
    %21 = arith.extui %20 : i1 to i32
    %c0_i32_15 = arith.constant 0 : i32
    %22 = arith.cmpi ne, %21, %c0_i32_15 : i32
    scf.if %22 {
      %c0_16 = arith.constant 0 : index
      %c0_17 = arith.constant 0 : index
      %23 = vector.load %arg10[%c0_16, %c0_17] : memref<16x32xf32, #tpu.memory_space<vmem>>, vector<16x32xf32>
      %24 = arith.addf %3, %23 : vector<16x32xf32>
      %c0_18 = arith.constant 0 : index
      %c0_19 = arith.constant 0 : index
      %25 = vector.load %arg6[%c0_18, %c0_19] : memref<1x32xf32, #tpu.memory_space<vmem>>, vector<1x32xf32>
      %26 = vector.broadcast %25 : vector<1x32xf32> to vector<16x32xf32>
      %27 = arith.addf %24, %26 : vector<16x32xf32>
      %cst_20 = arith.constant dense<0.000000e+00> : vector<16xf32>
      %28 = vector.multi_reduction <add>, %27, %cst_20 [1] : vector<16x32xf32> to vector<16xf32>
      %29 = vector.shape_cast %28 : vector<16xf32> to vector<16x1xf32>
      %cst_21 = arith.constant 3.200000e+01 : f32
      %30 = vector.broadcast %cst_21 : f32 to vector<16x1xf32>
      %31 = arith.divf %29, %30 : vector<16x1xf32>
      %32 = vector.broadcast %31 : vector<16x1xf32> to vector<16x32xf32>
      %33 = arith.subf %27, %32 : vector<16x32xf32>
      %34 = arith.mulf %33, %33 : vector<16x32xf32>
      %cst_22 = arith.constant dense<0.000000e+00> : vector<16xf32>
      %35 = vector.multi_reduction <add>, %34, %cst_22 [1] : vector<16x32xf32> to vector<16xf32>
      %36 = vector.shape_cast %35 : vector<16xf32> to vector<16x1xf32>
      %cst_23 = arith.constant 3.200000e+01 : f32
      %37 = vector.broadcast %cst_23 : f32 to vector<16x1xf32>
      %38 = arith.divf %36, %37 : vector<16x1xf32>
      %cst_24 = arith.constant 9.99999974E-6 : f32
      %39 = vector.broadcast %cst_24 : f32 to vector<16x1xf32>
      %40 = arith.addf %38, %39 : vector<16x1xf32>
      %41 = math.rsqrt %40 : vector<16x1xf32>
      %42 = vector.broadcast %41 : vector<16x1xf32> to vector<16x32xf32>
      %43 = arith.mulf %33, %42 : vector<16x32xf32>
      %c0_25 = arith.constant 0 : index
      %c0_26 = arith.constant 0 : index
      %44 = vector.load %arg7[%c0_25, %c0_26] : memref<1x32xf32, #tpu.memory_space<vmem>>, vector<1x32xf32>
      %45 = vector.broadcast %44 : vector<1x32xf32> to vector<16x32xf32>
      %46 = arith.mulf %43, %45 : vector<16x32xf32>
      %c0_27 = arith.constant 0 : index
      %c0_28 = arith.constant 0 : index
      %47 = vector.load %arg8[%c0_27, %c0_28] : memref<1x32xf32, #tpu.memory_space<vmem>>, vector<1x32xf32>
      %48 = vector.broadcast %47 : vector<1x32xf32> to vector<16x32xf32>
      %49 = arith.addf %46, %48 : vector<16x32xf32>
      %c0_29 = arith.constant 0 : index
      %c0_30 = arith.constant 0 : index
      %50 = vector.load %arg9[%c0_29, %c0_30] : memref<16x32xf32, #tpu.memory_space<vmem>>, vector<16x32xf32>
      tpu.vector_store %arg9[%c0_29, %c0_30], %49 {strides = array<i32>} : memref<16x32xf32, #tpu.memory_space<vmem>>, vector<16x32xf32>,
    } else {
    }
    return
  }
  func.func @transform_0(%arg0: i32, %arg1: i32) -> (i32, i32) {
    %c0_i32 = arith.constant 0 : i32
    %c0_i32_0 = arith.constant 0 : i32
    return %arg0, %c0_i32 : i32, i32
  }
  func.func @transform_1(%arg0: i32, %arg1: i32) -> (i32, i32) {
    %c0_i32 = arith.constant 0 : i32
    %c0_i32_0 = arith.constant 0 : i32
    return %c0_i32, %arg1 : i32, i32
  }
  func.func @transform_2(%arg0: i32, %arg1: i32) -> (i32, i32) {
    %c0_i32 = arith.constant 0 : i32
    %c0_i32_0 = arith.constant 0 : i32
    return %c0_i32, %arg1 : i32, i32
  }
  func.func @transform_3(%arg0: i32, %arg1: i32) -> (i32, i32) {
    %c0_i32 = arith.constant 0 : i32
    %c0_i32_0 = arith.constant 0 : i32
    return %arg1, %c0_i32 : i32, i32
  }
  func.func @transform_4(%arg0: i32, %arg1: i32) -> (i32, i32) {
    %c0_i32 = arith.constant 0 : i32
    %c0_i32_0 = arith.constant 0 : i32
    %c0_i32_1 = arith.constant 0 : i32
    return %c0_i32, %c0_i32_0 : i32, i32
  }
  func.func @transform_5(%arg0: i32, %arg1: i32) -> (i32, i32) {
    %c0_i32 = arith.constant 0 : i32
    %c0_i32_0 = arith.constant 0 : i32
    %c0_i32_1 = arith.constant 0 : i32
    return %c0_i32, %c0_i32_0 : i32, i32
  }
  func.func @transform_6(%arg0: i32, %arg1: i32) -> (i32, i32) {
    %c0_i32 = arith.constant 0 : i32
    %c0_i32_0 = arith.constant 0 : i32
    %c0_i32_1 = arith.constant 0 : i32
    return %c0_i32, %c0_i32_0 : i32, i32
  }
  func.func @transform_7(%arg0: i32, %arg1: i32) -> (i32, i32) {
    %c0_i32 = arith.constant 0 : i32
    %c0_i32_0 = arith.constant 0 : i32
    return %arg0, %c0_i32 : i32, i32
  }
}

module attributes {stable_mosaic.version = 11 : i64} {
  func.func @_attn_fused_kernel(%arg0: i32, %arg1: i32, %arg2: i32, %arg3: memref<1x1x8x32xbf16, #tpu.memory_space<vmem>>, %arg4: memref<1x1x8x32xbf16, #tpu.memory_space<vmem>>, %arg5: memref<1x1x8x32xbf16, #tpu.memory_space<vmem>>, %arg6: memref<1x8x32xf32, #tpu.memory_space<vmem>>, %arg7: memref<32x32xf32, #tpu.memory_space<vmem>>, %arg8: memref<1x32xf32, #tpu.memory_space<vmem>>, %arg9: memref<1x32xf32, #tpu.memory_space<vmem>>, %arg10: memref<1x32xf32, #tpu.memory_space<vmem>>, %arg11: memref<1x8x32xf32, #tpu.memory_space<vmem>>, %arg12: memref<4x8x1xf32, #tpu.memory_space<vmem>>, %arg13: memref<4x8x1xf32, #tpu.memory_space<vmem>>, %arg14: memref<8x32xf32, #tpu.memory_space<vmem>>) attributes {dimension_semantics = [#tpu.dimension_semantics<parallel>, #tpu.dimension_semantics<parallel>, #tpu.dimension_semantics<arbitrary>], iteration_bounds = array<i64: 2, 1, 1>, scalar_prefetch = 0 : i64, scratch_operands = 3 : i64, tpu.core_type = #tpu.core_type<tc>, window_params = [{transform_indices = @transform_0, window_bounds = array<i64: 1, 1, 8, 32>}, {transform_indices = @transform_1, window_bounds = array<i64: 1, 1, 8, 32>}, {transform_indices = @transform_2, window_bounds = array<i64: 1, 1, 8, 32>}, {transform_indices = @transform_3, window_bounds = array<i64: 1, 8, 32>}, {pipeline_mode = #tpu.pipeline_mode<synchronous>, transform_indices = @transform_4, window_bounds = array<i64: 32, 32>}, {pipeline_mode = #tpu.pipeline_mode<synchronous>, transform_indices = @transform_5, window_bounds = array<i64: 1, 32>}, {pipeline_mode = #tpu.pipeline_mode<synchronous>, transform_indices = @transform_6, window_bounds = array<i64: 1, 32>}, {pipeline_mode = #tpu.pipeline_mode<synchronous>, transform_indices = @transform_7, window_bounds = array<i64: 1, 32>}, {transform_indices = @transform_8, window_bounds = array<i64: 1, 8, 32>}]} {
    %c0_i32 = arith.constant 0 : i32
    %0 = arith.cmpi eq, %arg2, %c0_i32 : i32
    %1 = arith.extui %0 : i1 to i32
    %c0_i32_0 = arith.constant 0 : i32
    %2 = arith.cmpi ne, %1, %c0_i32_0 : i32
    scf.if %2 {
      %cst_91 = arith.constant 0xFF800000 : f32
      %152 = vector.broadcast %cst_91 : f32 to vector<4x8x1xf32>
      %c0_92 = arith.constant 0 : index
      %c0_93 = arith.constant 0 : index
      %c0_94 = arith.constant 0 : index
      %153 = vector.load %arg12[%c0_92, %c0_93, %c0_94] : memref<4x8x1xf32, #tpu.memory_space<vmem>>, vector<4x8x1xf32>
      tpu.vector_store %arg12[%c0_92, %c0_93, %c0_94], %152 {strides = array<i32>} : memref<4x8x1xf32, #tpu.memory_space<vmem>>, vector<4x8x1xf32>,
      %cst_95 = arith.constant 0.000000e+00 : f32
      %154 = vector.broadcast %cst_95 : f32 to vector<4x8x1xf32>
      %c0_96 = arith.constant 0 : index
      %c0_97 = arith.constant 0 : index
      %c0_98 = arith.constant 0 : index
      %155 = vector.load %arg13[%c0_96, %c0_97, %c0_98] : memref<4x8x1xf32, #tpu.memory_space<vmem>>, vector<4x8x1xf32>
      tpu.vector_store %arg13[%c0_96, %c0_97, %c0_98], %154 {strides = array<i32>} : memref<4x8x1xf32, #tpu.memory_space<vmem>>, vector<4x8x1xf32>,
      %cst_99 = arith.constant 0.000000e+00 : f32
      %156 = vector.broadcast %cst_99 : f32 to vector<8x32xf32>
      %c0_100 = arith.constant 0 : index
      %c0_101 = arith.constant 0 : index
      %157 = vector.load %arg14[%c0_100, %c0_101] : memref<8x32xf32, #tpu.memory_space<vmem>>, vector<8x32xf32>
      tpu.vector_store %arg14[%c0_100, %c0_101], %156 {strides = array<i32>} : memref<8x32xf32, #tpu.memory_space<vmem>>, vector<8x32xf32>,
    } else {
    }
    %c0 = arith.constant 0 : index
    %c0_1 = arith.constant 0 : index
    %c0_2 = arith.constant 0 : index
    %c0_3 = arith.constant 0 : index
    %3 = vector.load %arg3[%c0, %c0_1, %c0_2, %c0_3] : memref<1x1x8x32xbf16, #tpu.memory_space<vmem>>, vector<1x1x8x32xbf16>
    %4 = vector.shape_cast %3 : vector<1x1x8x32xbf16> to vector<8x32xbf16>
    %c0_4 = arith.constant 0 : index
    %c0_5 = arith.constant 0 : index
    %c0_6 = arith.constant 0 : index
    %c0_7 = arith.constant 0 : index
    %5 = vector.load %arg4[%c0_4, %c0_5, %c0_6, %c0_7] : memref<1x1x8x32xbf16, #tpu.memory_space<vmem>>, vector<1x1x8x32xbf16>
    %6 = vector.shape_cast %5 : vector<1x1x8x32xbf16> to vector<8x32xbf16>
    %c0_8 = arith.constant 0 : index
    %c0_9 = arith.constant 0 : index
    %c0_10 = arith.constant 0 : index
    %c0_11 = arith.constant 0 : index
    %7 = vector.load %arg5[%c0_8, %c0_9, %c0_10, %c0_11] : memref<1x1x8x32xbf16, #tpu.memory_space<vmem>>, vector<1x1x8x32xbf16>
    %8 = vector.shape_cast %7 : vector<1x1x8x32xbf16> to vector<8x32xbf16>
    %9 = vector.extract_strided_slice %4 {offsets = [0, 0], sizes = [8, 8], strides = [1, 1]} : vector<8x32xbf16> to vector<8x8xbf16>
    %10 = vector.extract_strided_slice %6 {offsets = [0, 0], sizes = [8, 8], strides = [1, 1]} : vector<8x32xbf16> to vector<8x8xbf16>
    %cst = arith.constant dense<0.000000e+00> : vector<8x8xf32>
    %11 = tpu.matmul %9, %10, %cst {dimension_numbers = #tpu.dot_dimension_numbers<[1], [1], [0], [0], [0, 0, 1, 0], [], []>} : vector<8x8xbf16>, vector<8x8xbf16>, vector<8x8xf32> -> vector<8x8xf32>
    %cst_12 = arith.constant 0.353553385 : f32
    %12 = vector.broadcast %cst_12 : f32 to vector<8x8xf32>
    %13 = arith.mulf %11, %12 : vector<8x8xf32>
    %c0_13 = arith.constant 0 : index
    %c0_14 = arith.constant 0 : index
    %c0_15 = arith.constant 0 : index
    %14 = vector.load %arg12[%c0_13, %c0_14, %c0_15] : memref<4x8x1xf32, #tpu.memory_space<vmem>>, vector<1x8x1xf32>
    %15 = vector.shape_cast %14 : vector<1x8x1xf32> to vector<8x1xf32>
    %cst_16 = arith.constant dense<0xFF800000> : vector<8xf32>
    %16 = vector.multi_reduction <maximumf>, %13, %cst_16 [1] : vector<8x8xf32> to vector<8xf32>
    %17 = vector.shape_cast %16 : vector<8xf32> to vector<8x1xf32>
    %18 = arith.maximumf %15, %17 : vector<8x1xf32>
    %19 = arith.subf %15, %18 : vector<8x1xf32>
    %20 = math.exp %19 : vector<8x1xf32>
    %21 = vector.broadcast %18 : vector<8x1xf32> to vector<8x8xf32>
    %22 = arith.subf %13, %21 : vector<8x8xf32>
    %23 = math.exp %22 : vector<8x8xf32>
    %c0_17 = arith.constant 0 : index
    %c0_18 = arith.constant 0 : index
    %c0_19 = arith.constant 0 : index
    %24 = vector.load %arg13[%c0_17, %c0_18, %c0_19] : memref<4x8x1xf32, #tpu.memory_space<vmem>>, vector<1x8x1xf32>
    %25 = vector.shape_cast %24 : vector<1x8x1xf32> to vector<8x1xf32>
    %26 = arith.mulf %20, %25 : vector<8x1xf32>
    %cst_20 = arith.constant dense<0.000000e+00> : vector<8xf32>
    %27 = vector.multi_reduction <add>, %23, %cst_20 [1] : vector<8x8xf32> to vector<8xf32>
    %28 = vector.shape_cast %27 : vector<8xf32> to vector<8x1xf32>
    %29 = arith.addf %26, %28 : vector<8x1xf32>
    %c0_21 = arith.constant 0 : index
    %c0_22 = arith.constant 0 : index
    %c0_23 = arith.constant 0 : index
    %30 = vector.load %arg13[%c0_21, %c0_22, %c0_23] : memref<4x8x1xf32, #tpu.memory_space<vmem>>, vector<1x8x1xf32>
    %31 = vector.shape_cast %30 : vector<1x8x1xf32> to vector<8x1xf32>
    %32 = vector.shape_cast %29 : vector<8x1xf32> to vector<1x8x1xf32>
    tpu.vector_store %arg13[%c0_21, %c0_22, %c0_23], %32 {strides = array<i32>} : memref<4x8x1xf32, #tpu.memory_space<vmem>>, vector<1x8x1xf32>,
    %c0_24 = arith.constant 0 : index
    %c0_25 = arith.constant 0 : index
    %c0_26 = arith.constant 0 : index
    %33 = vector.load %arg12[%c0_24, %c0_25, %c0_26] : memref<4x8x1xf32, #tpu.memory_space<vmem>>, vector<1x8x1xf32>
    %34 = vector.shape_cast %33 : vector<1x8x1xf32> to vector<8x1xf32>
    %35 = vector.shape_cast %18 : vector<8x1xf32> to vector<1x8x1xf32>
    tpu.vector_store %arg12[%c0_24, %c0_25, %c0_26], %35 {strides = array<i32>} : memref<4x8x1xf32, #tpu.memory_space<vmem>>, vector<1x8x1xf32>,
    %36 = arith.truncf %23 : vector<8x8xf32> to vector<8x8xbf16>
    %37 = vector.extract_strided_slice %8 {offsets = [0, 0], sizes = [8, 8], strides = [1, 1]} : vector<8x32xbf16> to vector<8x8xbf16>
    %cst_27 = arith.constant dense<0.000000e+00> : vector<8x8xf32>
    %38 = tpu.matmul %36, %37, %cst_27 {dimension_numbers = #tpu.dot_dimension_numbers<[1], [0], [0], [1], [0, 0, 1, 1], [], []>} : vector<8x8xbf16>, vector<8x8xbf16>, vector<8x8xf32> -> vector<8x8xf32>
    %c0_28 = arith.constant 0 : index
    %c0_29 = arith.constant 0 : index
    %39 = vector.load %arg14[%c0_28, %c0_29] : memref<8x32xf32, #tpu.memory_space<vmem>>, vector<8x8xf32>
    %40 = vector.broadcast %20 : vector<8x1xf32> to vector<8x8xf32>
    %41 = arith.mulf %40, %39 : vector<8x8xf32>
    %42 = arith.addf %41, %38 : vector<8x8xf32>
    %c0_30 = arith.constant 0 : index
    %c0_31 = arith.constant 0 : index
    %43 = vector.load %arg14[%c0_30, %c0_31] : memref<8x32xf32, #tpu.memory_space<vmem>>, vector<8x8xf32>
    tpu.vector_store %arg14[%c0_30, %c0_31], %42 {strides = array<i32>} : memref<8x32xf32, #tpu.memory_space<vmem>>, vector<8x8xf32>,
    %44 = vector.extract_strided_slice %4 {offsets = [0, 8], sizes = [8, 8], strides = [1, 1]} : vector<8x32xbf16> to vector<8x8xbf16>
    %45 = vector.extract_strided_slice %6 {offsets = [0, 8], sizes = [8, 8], strides = [1, 1]} : vector<8x32xbf16> to vector<8x8xbf16>
    %cst_32 = arith.constant dense<0.000000e+00> : vector<8x8xf32>
    %46 = tpu.matmul %44, %45, %cst_32 {dimension_numbers = #tpu.dot_dimension_numbers<[1], [1], [0], [0], [0, 0, 1, 0], [], []>} : vector<8x8xbf16>, vector<8x8xbf16>, vector<8x8xf32> -> vector<8x8xf32>
    %cst_33 = arith.constant 0.353553385 : f32
    %47 = vector.broadcast %cst_33 : f32 to vector<8x8xf32>
    %48 = arith.mulf %46, %47 : vector<8x8xf32>
    %c1 = arith.constant 1 : index
    %c0_34 = arith.constant 0 : index
    %c0_35 = arith.constant 0 : index
    %49 = vector.load %arg12[%c1, %c0_34, %c0_35] : memref<4x8x1xf32, #tpu.memory_space<vmem>>, vector<1x8x1xf32>
    %50 = vector.shape_cast %49 : vector<1x8x1xf32> to vector<8x1xf32>
    %cst_36 = arith.constant dense<0xFF800000> : vector<8xf32>
    %51 = vector.multi_reduction <maximumf>, %48, %cst_36 [1] : vector<8x8xf32> to vector<8xf32>
    %52 = vector.shape_cast %51 : vector<8xf32> to vector<8x1xf32>
    %53 = arith.maximumf %50, %52 : vector<8x1xf32>
    %54 = arith.subf %50, %53 : vector<8x1xf32>
    %55 = math.exp %54 : vector<8x1xf32>
    %56 = vector.broadcast %53 : vector<8x1xf32> to vector<8x8xf32>
    %57 = arith.subf %48, %56 : vector<8x8xf32>
    %58 = math.exp %57 : vector<8x8xf32>
    %c1_37 = arith.constant 1 : index
    %c0_38 = arith.constant 0 : index
    %c0_39 = arith.constant 0 : index
    %59 = vector.load %arg13[%c1_37, %c0_38, %c0_39] : memref<4x8x1xf32, #tpu.memory_space<vmem>>, vector<1x8x1xf32>
    %60 = vector.shape_cast %59 : vector<1x8x1xf32> to vector<8x1xf32>
    %61 = arith.mulf %55, %60 : vector<8x1xf32>
    %cst_40 = arith.constant dense<0.000000e+00> : vector<8xf32>
    %62 = vector.multi_reduction <add>, %58, %cst_40 [1] : vector<8x8xf32> to vector<8xf32>
    %63 = vector.shape_cast %62 : vector<8xf32> to vector<8x1xf32>
    %64 = arith.addf %61, %63 : vector<8x1xf32>
    %c1_41 = arith.constant 1 : index
    %c0_42 = arith.constant 0 : index
    %c0_43 = arith.constant 0 : index
    %65 = vector.load %arg13[%c1_41, %c0_42, %c0_43] : memref<4x8x1xf32, #tpu.memory_space<vmem>>, vector<1x8x1xf32>
    %66 = vector.shape_cast %65 : vector<1x8x1xf32> to vector<8x1xf32>
    %67 = vector.shape_cast %64 : vector<8x1xf32> to vector<1x8x1xf32>
    tpu.vector_store %arg13[%c1_41, %c0_42, %c0_43], %67 {strides = array<i32>} : memref<4x8x1xf32, #tpu.memory_space<vmem>>, vector<1x8x1xf32>,
    %c1_44 = arith.constant 1 : index
    %c0_45 = arith.constant 0 : index
    %c0_46 = arith.constant 0 : index
    %68 = vector.load %arg12[%c1_44, %c0_45, %c0_46] : memref<4x8x1xf32, #tpu.memory_space<vmem>>, vector<1x8x1xf32>
    %69 = vector.shape_cast %68 : vector<1x8x1xf32> to vector<8x1xf32>
    %70 = vector.shape_cast %53 : vector<8x1xf32> to vector<1x8x1xf32>
    tpu.vector_store %arg12[%c1_44, %c0_45, %c0_46], %70 {strides = array<i32>} : memref<4x8x1xf32, #tpu.memory_space<vmem>>, vector<1x8x1xf32>,
    %71 = arith.truncf %58 : vector<8x8xf32> to vector<8x8xbf16>
    %72 = vector.extract_strided_slice %8 {offsets = [0, 8], sizes = [8, 8], strides = [1, 1]} : vector<8x32xbf16> to vector<8x8xbf16>
    %cst_47 = arith.constant dense<0.000000e+00> : vector<8x8xf32>
    %73 = tpu.matmul %71, %72, %cst_47 {dimension_numbers = #tpu.dot_dimension_numbers<[1], [0], [0], [1], [0, 0, 1, 1], [], []>} : vector<8x8xbf16>, vector<8x8xbf16>, vector<8x8xf32> -> vector<8x8xf32>
    %c0_48 = arith.constant 0 : index
    %c8 = arith.constant 8 : index
    %74 = vector.load %arg14[%c0_48, %c8] : memref<8x32xf32, #tpu.memory_space<vmem>>, vector<8x8xf32>
    %75 = vector.broadcast %55 : vector<8x1xf32> to vector<8x8xf32>
    %76 = arith.mulf %75, %74 : vector<8x8xf32>
    %77 = arith.addf %76, %73 : vector<8x8xf32>
    %c0_49 = arith.constant 0 : index
    %c8_50 = arith.constant 8 : index
    %78 = vector.load %arg14[%c0_49, %c8_50] : memref<8x32xf32, #tpu.memory_space<vmem>>, vector<8x8xf32>
    tpu.vector_store %arg14[%c0_49, %c8_50], %77 {strides = array<i32>} : memref<8x32xf32, #tpu.memory_space<vmem>>, vector<8x8xf32>,
    %79 = vector.extract_strided_slice %4 {offsets = [0, 16], sizes = [8, 8], strides = [1, 1]} : vector<8x32xbf16> to vector<8x8xbf16>
    %80 = vector.extract_strided_slice %6 {offsets = [0, 16], sizes = [8, 8], strides = [1, 1]} : vector<8x32xbf16> to vector<8x8xbf16>
    %cst_51 = arith.constant dense<0.000000e+00> : vector<8x8xf32>
    %81 = tpu.matmul %79, %80, %cst_51 {dimension_numbers = #tpu.dot_dimension_numbers<[1], [1], [0], [0], [0, 0, 1, 0], [], []>} : vector<8x8xbf16>, vector<8x8xbf16>, vector<8x8xf32> -> vector<8x8xf32>
    %cst_52 = arith.constant 0.353553385 : f32
    %82 = vector.broadcast %cst_52 : f32 to vector<8x8xf32>
    %83 = arith.mulf %81, %82 : vector<8x8xf32>
    %c2 = arith.constant 2 : index
    %c0_53 = arith.constant 0 : index
    %c0_54 = arith.constant 0 : index
    %84 = vector.load %arg12[%c2, %c0_53, %c0_54] : memref<4x8x1xf32, #tpu.memory_space<vmem>>, vector<1x8x1xf32>
    %85 = vector.shape_cast %84 : vector<1x8x1xf32> to vector<8x1xf32>
    %cst_55 = arith.constant dense<0xFF800000> : vector<8xf32>
    %86 = vector.multi_reduction <maximumf>, %83, %cst_55 [1] : vector<8x8xf32> to vector<8xf32>
    %87 = vector.shape_cast %86 : vector<8xf32> to vector<8x1xf32>
    %88 = arith.maximumf %85, %87 : vector<8x1xf32>
    %89 = arith.subf %85, %88 : vector<8x1xf32>
    %90 = math.exp %89 : vector<8x1xf32>
    %91 = vector.broadcast %88 : vector<8x1xf32> to vector<8x8xf32>
    %92 = arith.subf %83, %91 : vector<8x8xf32>
    %93 = math.exp %92 : vector<8x8xf32>
    %c2_56 = arith.constant 2 : index
    %c0_57 = arith.constant 0 : index
    %c0_58 = arith.constant 0 : index
    %94 = vector.load %arg13[%c2_56, %c0_57, %c0_58] : memref<4x8x1xf32, #tpu.memory_space<vmem>>, vector<1x8x1xf32>
    %95 = vector.shape_cast %94 : vector<1x8x1xf32> to vector<8x1xf32>
    %96 = arith.mulf %90, %95 : vector<8x1xf32>
    %cst_59 = arith.constant dense<0.000000e+00> : vector<8xf32>
    %97 = vector.multi_reduction <add>, %93, %cst_59 [1] : vector<8x8xf32> to vector<8xf32>
    %98 = vector.shape_cast %97 : vector<8xf32> to vector<8x1xf32>
    %99 = arith.addf %96, %98 : vector<8x1xf32>
    %c2_60 = arith.constant 2 : index
    %c0_61 = arith.constant 0 : index
    %c0_62 = arith.constant 0 : index
    %100 = vector.load %arg13[%c2_60, %c0_61, %c0_62] : memref<4x8x1xf32, #tpu.memory_space<vmem>>, vector<1x8x1xf32>
    %101 = vector.shape_cast %100 : vector<1x8x1xf32> to vector<8x1xf32>
    %102 = vector.shape_cast %99 : vector<8x1xf32> to vector<1x8x1xf32>
    tpu.vector_store %arg13[%c2_60, %c0_61, %c0_62], %102 {strides = array<i32>} : memref<4x8x1xf32, #tpu.memory_space<vmem>>, vector<1x8x1xf32>,
    %c2_63 = arith.constant 2 : index
    %c0_64 = arith.constant 0 : index
    %c0_65 = arith.constant 0 : index
    %103 = vector.load %arg12[%c2_63, %c0_64, %c0_65] : memref<4x8x1xf32, #tpu.memory_space<vmem>>, vector<1x8x1xf32>
    %104 = vector.shape_cast %103 : vector<1x8x1xf32> to vector<8x1xf32>
    %105 = vector.shape_cast %88 : vector<8x1xf32> to vector<1x8x1xf32>
    tpu.vector_store %arg12[%c2_63, %c0_64, %c0_65], %105 {strides = array<i32>} : memref<4x8x1xf32, #tpu.memory_space<vmem>>, vector<1x8x1xf32>,
    %106 = arith.truncf %93 : vector<8x8xf32> to vector<8x8xbf16>
    %107 = vector.extract_strided_slice %8 {offsets = [0, 16], sizes = [8, 8], strides = [1, 1]} : vector<8x32xbf16> to vector<8x8xbf16>
    %cst_66 = arith.constant dense<0.000000e+00> : vector<8x8xf32>
    %108 = tpu.matmul %106, %107, %cst_66 {dimension_numbers = #tpu.dot_dimension_numbers<[1], [0], [0], [1], [0, 0, 1, 1], [], []>} : vector<8x8xbf16>, vector<8x8xbf16>, vector<8x8xf32> -> vector<8x8xf32>
    %c0_67 = arith.constant 0 : index
    %c16 = arith.constant 16 : index
    %109 = vector.load %arg14[%c0_67, %c16] : memref<8x32xf32, #tpu.memory_space<vmem>>, vector<8x8xf32>
    %110 = vector.broadcast %90 : vector<8x1xf32> to vector<8x8xf32>
    %111 = arith.mulf %110, %109 : vector<8x8xf32>
    %112 = arith.addf %111, %108 : vector<8x8xf32>
    %c0_68 = arith.constant 0 : index
    %c16_69 = arith.constant 16 : index
    %113 = vector.load %arg14[%c0_68, %c16_69] : memref<8x32xf32, #tpu.memory_space<vmem>>, vector<8x8xf32>
    tpu.vector_store %arg14[%c0_68, %c16_69], %112 {strides = array<i32>} : memref<8x32xf32, #tpu.memory_space<vmem>>, vector<8x8xf32>,
    %114 = vector.extract_strided_slice %4 {offsets = [0, 24], sizes = [8, 8], strides = [1, 1]} : vector<8x32xbf16> to vector<8x8xbf16>
    %115 = vector.extract_strided_slice %6 {offsets = [0, 24], sizes = [8, 8], strides = [1, 1]} : vector<8x32xbf16> to vector<8x8xbf16>
    %cst_70 = arith.constant dense<0.000000e+00> : vector<8x8xf32>
    %116 = tpu.matmul %114, %115, %cst_70 {dimension_numbers = #tpu.dot_dimension_numbers<[1], [1], [0], [0], [0, 0, 1, 0], [], []>} : vector<8x8xbf16>, vector<8x8xbf16>, vector<8x8xf32> -> vector<8x8xf32>
    %cst_71 = arith.constant 0.353553385 : f32
    %117 = vector.broadcast %cst_71 : f32 to vector<8x8xf32>
    %118 = arith.mulf %116, %117 : vector<8x8xf32>
    %c3 = arith.constant 3 : index
    %c0_72 = arith.constant 0 : index
    %c0_73 = arith.constant 0 : index
    %119 = vector.load %arg12[%c3, %c0_72, %c0_73] : memref<4x8x1xf32, #tpu.memory_space<vmem>>, vector<1x8x1xf32>
    %120 = vector.shape_cast %119 : vector<1x8x1xf32> to vector<8x1xf32>
    %cst_74 = arith.constant dense<0xFF800000> : vector<8xf32>
    %121 = vector.multi_reduction <maximumf>, %118, %cst_74 [1] : vector<8x8xf32> to vector<8xf32>
    %122 = vector.shape_cast %121 : vector<8xf32> to vector<8x1xf32>
    %123 = arith.maximumf %120, %122 : vector<8x1xf32>
    %124 = arith.subf %120, %123 : vector<8x1xf32>
    %125 = math.exp %124 : vector<8x1xf32>
    %126 = vector.broadcast %123 : vector<8x1xf32> to vector<8x8xf32>
    %127 = arith.subf %118, %126 : vector<8x8xf32>
    %128 = math.exp %127 : vector<8x8xf32>
    %c3_75 = arith.constant 3 : index
    %c0_76 = arith.constant 0 : index
    %c0_77 = arith.constant 0 : index
    %129 = vector.load %arg13[%c3_75, %c0_76, %c0_77] : memref<4x8x1xf32, #tpu.memory_space<vmem>>, vector<1x8x1xf32>
    %130 = vector.shape_cast %129 : vector<1x8x1xf32> to vector<8x1xf32>
    %131 = arith.mulf %125, %130 : vector<8x1xf32>
    %cst_78 = arith.constant dense<0.000000e+00> : vector<8xf32>
    %132 = vector.multi_reduction <add>, %128, %cst_78 [1] : vector<8x8xf32> to vector<8xf32>
    %133 = vector.shape_cast %132 : vector<8xf32> to vector<8x1xf32>
    %134 = arith.addf %131, %133 : vector<8x1xf32>
    %c3_79 = arith.constant 3 : index
    %c0_80 = arith.constant 0 : index
    %c0_81 = arith.constant 0 : index
    %135 = vector.load %arg13[%c3_79, %c0_80, %c0_81] : memref<4x8x1xf32, #tpu.memory_space<vmem>>, vector<1x8x1xf32>
    %136 = vector.shape_cast %135 : vector<1x8x1xf32> to vector<8x1xf32>
    %137 = vector.shape_cast %134 : vector<8x1xf32> to vector<1x8x1xf32>
    tpu.vector_store %arg13[%c3_79, %c0_80, %c0_81], %137 {strides = array<i32>} : memref<4x8x1xf32, #tpu.memory_space<vmem>>, vector<1x8x1xf32>,
    %c3_82 = arith.constant 3 : index
    %c0_83 = arith.constant 0 : index
    %c0_84 = arith.constant 0 : index
    %138 = vector.load %arg12[%c3_82, %c0_83, %c0_84] : memref<4x8x1xf32, #tpu.memory_space<vmem>>, vector<1x8x1xf32>
    %139 = vector.shape_cast %138 : vector<1x8x1xf32> to vector<8x1xf32>
    %140 = vector.shape_cast %123 : vector<8x1xf32> to vector<1x8x1xf32>
    tpu.vector_store %arg12[%c3_82, %c0_83, %c0_84], %140 {strides = array<i32>} : memref<4x8x1xf32, #tpu.memory_space<vmem>>, vector<1x8x1xf32>,
    %141 = arith.truncf %128 : vector<8x8xf32> to vector<8x8xbf16>
    %142 = vector.extract_strided_slice %8 {offsets = [0, 24], sizes = [8, 8], strides = [1, 1]} : vector<8x32xbf16> to vector<8x8xbf16>
    %cst_85 = arith.constant dense<0.000000e+00> : vector<8x8xf32>
    %143 = tpu.matmul %141, %142, %cst_85 {dimension_numbers = #tpu.dot_dimension_numbers<[1], [0], [0], [1], [0, 0, 1, 1], [], []>} : vector<8x8xbf16>, vector<8x8xbf16>, vector<8x8xf32> -> vector<8x8xf32>
    %c0_86 = arith.constant 0 : index
    %c24 = arith.constant 24 : index
    %144 = vector.load %arg14[%c0_86, %c24] : memref<8x32xf32, #tpu.memory_space<vmem>>, vector<8x8xf32>
    %145 = vector.broadcast %125 : vector<8x1xf32> to vector<8x8xf32>
    %146 = arith.mulf %145, %144 : vector<8x8xf32>
    %147 = arith.addf %146, %143 : vector<8x8xf32>
    %c0_87 = arith.constant 0 : index
    %c24_88 = arith.constant 24 : index
    %148 = vector.load %arg14[%c0_87, %c24_88] : memref<8x32xf32, #tpu.memory_space<vmem>>, vector<8x8xf32>
    tpu.vector_store %arg14[%c0_87, %c24_88], %147 {strides = array<i32>} : memref<8x32xf32, #tpu.memory_space<vmem>>, vector<8x8xf32>,
    %c0_i32_89 = arith.constant 0 : i32
    %149 = arith.cmpi eq, %arg2, %c0_i32_89 : i32
    %150 = arith.extui %149 : i1 to i32
    %c0_i32_90 = arith.constant 0 : i32
    %151 = arith.cmpi ne, %150, %c0_i32_90 : i32
    scf.if %151 {
      %c0_91 = arith.constant 0 : index
      %c0_92 = arith.constant 0 : index
      %152 = vector.load %arg14[%c0_91, %c0_92] : memref<8x32xf32, #tpu.memory_space<vmem>>, vector<8x8xf32>
      %c0_93 = arith.constant 0 : index
      %c0_94 = arith.constant 0 : index
      %c0_95 = arith.constant 0 : index
      %153 = vector.load %arg13[%c0_93, %c0_94, %c0_95] : memref<4x8x1xf32, #tpu.memory_space<vmem>>, vector<1x8x1xf32>
      %154 = vector.shape_cast %153 : vector<1x8x1xf32> to vector<8x1xf32>
      %155 = tpu.reciprocal %154 {approx = true} : vector<8x1xf32> -> vector<8x1xf32>
      %156 = vector.broadcast %155 : vector<8x1xf32> to vector<8x8xf32>
      %157 = arith.mulf %152, %156 : vector<8x8xf32>
      %c0_96 = arith.constant 0 : index
      %c0_97 = arith.constant 0 : index
      %158 = vector.load %arg14[%c0_96, %c0_97] : memref<8x32xf32, #tpu.memory_space<vmem>>, vector<8x8xf32>
      tpu.vector_store %arg14[%c0_96, %c0_97], %157 {strides = array<i32>} : memref<8x32xf32, #tpu.memory_space<vmem>>, vector<8x8xf32>,
      %c0_98 = arith.constant 0 : index
      %c8_99 = arith.constant 8 : index
      %159 = vector.load %arg14[%c0_98, %c8_99] : memref<8x32xf32, #tpu.memory_space<vmem>>, vector<8x8xf32>
      %c1_100 = arith.constant 1 : index
      %c0_101 = arith.constant 0 : index
      %c0_102 = arith.constant 0 : index
      %160 = vector.load %arg13[%c1_100, %c0_101, %c0_102] : memref<4x8x1xf32, #tpu.memory_space<vmem>>, vector<1x8x1xf32>
      %161 = vector.shape_cast %160 : vector<1x8x1xf32> to vector<8x1xf32>
      %162 = tpu.reciprocal %161 {approx = true} : vector<8x1xf32> -> vector<8x1xf32>
      %163 = vector.broadcast %162 : vector<8x1xf32> to vector<8x8xf32>
      %164 = arith.mulf %159, %163 : vector<8x8xf32>
      %c0_103 = arith.constant 0 : index
      %c8_104 = arith.constant 8 : index
      %165 = vector.load %arg14[%c0_103, %c8_104] : memref<8x32xf32, #tpu.memory_space<vmem>>, vector<8x8xf32>
      tpu.vector_store %arg14[%c0_103, %c8_104], %164 {strides = array<i32>} : memref<8x32xf32, #tpu.memory_space<vmem>>, vector<8x8xf32>,
      %c0_105 = arith.constant 0 : index
      %c16_106 = arith.constant 16 : index
      %166 = vector.load %arg14[%c0_105, %c16_106] : memref<8x32xf32, #tpu.memory_space<vmem>>, vector<8x8xf32>
      %c2_107 = arith.constant 2 : index
      %c0_108 = arith.constant 0 : index
      %c0_109 = arith.constant 0 : index
      %167 = vector.load %arg13[%c2_107, %c0_108, %c0_109] : memref<4x8x1xf32, #tpu.memory_space<vmem>>, vector<1x8x1xf32>
      %168 = vector.shape_cast %167 : vector<1x8x1xf32> to vector<8x1xf32>
      %169 = tpu.reciprocal %168 {approx = true} : vector<8x1xf32> -> vector<8x1xf32>
      %170 = vector.broadcast %169 : vector<8x1xf32> to vector<8x8xf32>
      %171 = arith.mulf %166, %170 : vector<8x8xf32>
      %c0_110 = arith.constant 0 : index
      %c16_111 = arith.constant 16 : index
      %172 = vector.load %arg14[%c0_110, %c16_111] : memref<8x32xf32, #tpu.memory_space<vmem>>, vector<8x8xf32>
      tpu.vector_store %arg14[%c0_110, %c16_111], %171 {strides = array<i32>} : memref<8x32xf32, #tpu.memory_space<vmem>>, vector<8x8xf32>,
      %c0_112 = arith.constant 0 : index
      %c24_113 = arith.constant 24 : index
      %173 = vector.load %arg14[%c0_112, %c24_113] : memref<8x32xf32, #tpu.memory_space<vmem>>, vector<8x8xf32>
      %c3_114 = arith.constant 3 : index
      %c0_115 = arith.constant 0 : index
      %c0_116 = arith.constant 0 : index
      %174 = vector.load %arg13[%c3_114, %c0_115, %c0_116] : memref<4x8x1xf32, #tpu.memory_space<vmem>>, vector<1x8x1xf32>
      %175 = vector.shape_cast %174 : vector<1x8x1xf32> to vector<8x1xf32>
      %176 = tpu.reciprocal %175 {approx = true} : vector<8x1xf32> -> vector<8x1xf32>
      %177 = vector.broadcast %176 : vector<8x1xf32> to vector<8x8xf32>
      %178 = arith.mulf %173, %177 : vector<8x8xf32>
      %c0_117 = arith.constant 0 : index
      %c24_118 = arith.constant 24 : index
      %179 = vector.load %arg14[%c0_117, %c24_118] : memref<8x32xf32, #tpu.memory_space<vmem>>, vector<8x8xf32>
      tpu.vector_store %arg14[%c0_117, %c24_118], %178 {strides = array<i32>} : memref<8x32xf32, #tpu.memory_space<vmem>>, vector<8x8xf32>,
      %c0_119 = arith.constant 0 : index
      %c0_120 = arith.constant 0 : index
      %180 = vector.load %arg14[%c0_119, %c0_120] : memref<8x32xf32, #tpu.memory_space<vmem>>, vector<8x32xf32>
      %181 = arith.truncf %180 : vector<8x32xf32> to vector<8x32xbf16>
      %c0_121 = arith.constant 0 : index
      %c0_122 = arith.constant 0 : index
      %182 = vector.load %arg7[%c0_121, %c0_122] : memref<32x32xf32, #tpu.memory_space<vmem>>, vector<32x32xf32>
      %183 = arith.truncf %182 : vector<32x32xf32> to vector<32x32xbf16>
      %cst_123 = arith.constant dense<0.000000e+00> : vector<8x32xf32>
      %184 = tpu.matmul %181, %183, %cst_123 {dimension_numbers = #tpu.dot_dimension_numbers<[1], [0], [0], [1], [0, 0, 1, 1], [], []>} : vector<8x32xbf16>, vector<32x32xbf16>, vector<8x32xf32> -> vector<8x32xf32>
      %c0_124 = arith.constant 0 : index
      %c0_125 = arith.constant 0 : index
      %185 = vector.load %arg8[%c0_124, %c0_125] : memref<1x32xf32, #tpu.memory_space<vmem>>, vector<1x32xf32>
      %186 = vector.broadcast %185 : vector<1x32xf32> to vector<8x32xf32>
      %187 = arith.addf %184, %186 : vector<8x32xf32>
      %c0_126 = arith.constant 0 : index
      %c0_127 = arith.constant 0 : index
      %c0_128 = arith.constant 0 : index
      %188 = vector.load %arg6[%c0_126, %c0_127, %c0_128] : memref<1x8x32xf32, #tpu.memory_space<vmem>>, vector<1x8x32xf32>
      %189 = vector.shape_cast %188 : vector<1x8x32xf32> to vector<8x32xf32>
      %190 = arith.addf %187, %189 : vector<8x32xf32>
      %cst_129 = arith.constant dense<0.000000e+00> : vector<8xf32>
      %191 = vector.multi_reduction <add>, %190, %cst_129 [1] : vector<8x32xf32> to vector<8xf32>
      %192 = vector.shape_cast %191 : vector<8xf32> to vector<8x1xf32>
      %cst_130 = arith.constant 3.200000e+01 : f32
      %193 = vector.broadcast %cst_130 : f32 to vector<8x1xf32>
      %194 = arith.divf %192, %193 : vector<8x1xf32>
      %195 = vector.broadcast %194 : vector<8x1xf32> to vector<8x32xf32>
      %196 = arith.subf %190, %195 : vector<8x32xf32>
      %197 = arith.mulf %196, %196 : vector<8x32xf32>
      %cst_131 = arith.constant dense<0.000000e+00> : vector<8xf32>
      %198 = vector.multi_reduction <add>, %197, %cst_131 [1] : vector<8x32xf32> to vector<8xf32>
      %199 = vector.shape_cast %198 : vector<8xf32> to vector<8x1xf32>
      %cst_132 = arith.constant 3.200000e+01 : f32
      %200 = vector.broadcast %cst_132 : f32 to vector<8x1xf32>
      %201 = arith.divf %199, %200 : vector<8x1xf32>
      %cst_133 = arith.constant 9.99999974E-6 : f32
      %202 = vector.broadcast %cst_133 : f32 to vector<8x1xf32>
      %203 = arith.addf %201, %202 : vector<8x1xf32>
      %204 = math.rsqrt %203 : vector<8x1xf32>
      %205 = vector.broadcast %204 : vector<8x1xf32> to vector<8x32xf32>
      %206 = arith.mulf %196, %205 : vector<8x32xf32>
      %c0_134 = arith.constant 0 : index
      %c0_135 = arith.constant 0 : index
      %207 = vector.load %arg9[%c0_134, %c0_135] : memref<1x32xf32, #tpu.memory_space<vmem>>, vector<1x32xf32>
      %208 = vector.broadcast %207 : vector<1x32xf32> to vector<8x32xf32>
      %209 = arith.mulf %206, %208 : vector<8x32xf32>
      %c0_136 = arith.constant 0 : index
      %c0_137 = arith.constant 0 : index
      %210 = vector.load %arg10[%c0_136, %c0_137] : memref<1x32xf32, #tpu.memory_space<vmem>>, vector<1x32xf32>
      %211 = vector.broadcast %210 : vector<1x32xf32> to vector<8x32xf32>
      %212 = arith.addf %209, %211 : vector<8x32xf32>
      %c0_138 = arith.constant 0 : index
      %c0_139 = arith.constant 0 : index
      %c0_140 = arith.constant 0 : index
      %213 = vector.load %arg11[%c0_138, %c0_139, %c0_140] : memref<1x8x32xf32, #tpu.memory_space<vmem>>, vector<1x8x32xf32>
      %214 = vector.shape_cast %213 : vector<1x8x32xf32> to vector<8x32xf32>
      %215 = vector.shape_cast %212 : vector<8x32xf32> to vector<1x8x32xf32>
      tpu.vector_store %arg11[%c0_138, %c0_139, %c0_140], %215 {strides = array<i32>} : memref<1x8x32xf32, #tpu.memory_space<vmem>>, vector<1x8x32xf32>,
    } else {
    }
    return
  }
  func.func @transform_0(%arg0: i32, %arg1: i32, %arg2: i32) -> (i32, i32, i32, i32) {
    %c0_i32 = arith.constant 0 : i32
    %c0_i32_0 = arith.constant 0 : i32
    %c0_i32_1 = arith.constant 0 : i32
    return %c0_i32, %arg0, %arg1, %c0_i32_0 : i32, i32, i32, i32
  }
  func.func @transform_1(%arg0: i32, %arg1: i32, %arg2: i32) -> (i32, i32, i32, i32) {
    %c0_i32 = arith.constant 0 : i32
    %c0_i32_0 = arith.constant 0 : i32
    %c0_i32_1 = arith.constant 0 : i32
    return %c0_i32, %arg0, %arg2, %c0_i32_0 : i32, i32, i32, i32
  }
  func.func @transform_2(%arg0: i32, %arg1: i32, %arg2: i32) -> (i32, i32, i32, i32) {
    %c1_i32 = arith.constant 1 : i32
    %c0_i32 = arith.constant 0 : i32
    %c0_i32_0 = arith.constant 0 : i32
    return %c1_i32, %arg0, %arg2, %c0_i32 : i32, i32, i32, i32
  }
  func.func @transform_3(%arg0: i32, %arg1: i32, %arg2: i32) -> (i32, i32, i32) {
    %c0_i32 = arith.constant 0 : i32
    %c0_i32_0 = arith.constant 0 : i32
    return %arg0, %arg1, %c0_i32 : i32, i32, i32
  }
  func.func @transform_4(%arg0: i32, %arg1: i32, %arg2: i32) -> (i32, i32) {
    %c0_i32 = arith.constant 0 : i32
    %c0_i32_0 = arith.constant 0 : i32
    %c0_i32_1 = arith.constant 0 : i32
    return %c0_i32, %c0_i32_0 : i32, i32
  }
  func.func @transform_5(%arg0: i32, %arg1: i32, %arg2: i32) -> (i32, i32) {
    %c0_i32 = arith.constant 0 : i32
    %c0_i32_0 = arith.constant 0 : i32
    %c0_i32_1 = arith.constant 0 : i32
    return %c0_i32, %c0_i32_0 : i32, i32
  }
  func.func @transform_6(%arg0: i32, %arg1: i32, %arg2: i32) -> (i32, i32) {
    %c0_i32 = arith.constant 0 : i32
    %c0_i32_0 = arith.constant 0 : i32
    %c0_i32_1 = arith.constant 0 : i32
    return %c0_i32, %c0_i32_0 : i32, i32
  }
  func.func @transform_7(%arg0: i32, %arg1: i32, %arg2: i32) -> (i32, i32) {
    %c0_i32 = arith.constant 0 : i32
    %c0_i32_0 = arith.constant 0 : i32
    %c0_i32_1 = arith.constant 0 : i32
    return %c0_i32, %c0_i32_0 : i32, i32
  }
  func.func @transform_8(%arg0: i32, %arg1: i32, %arg2: i32) -> (i32, i32, i32) {
    %c0_i32 = arith.constant 0 : i32
    %c0_i32_0 = arith.constant 0 : i32
    return %arg0, %arg1, %c0_i32 : i32, i32, i32
  }
}

module attributes {stable_mosaic.version = 11 : i64} {
  func.func @_attn_fused_kernel(%arg0: i32, %arg1: i32, %arg2: i32, %arg3: memref<1x1x8x32xbf16, #tpu.memory_space<vmem>>, %arg4: memref<1x1x8x32xbf16, #tpu.memory_space<vmem>>, %arg5: memref<1x1x8x32xbf16, #tpu.memory_space<vmem>>, %arg6: memref<1x8x32xf32, #tpu.memory_space<vmem>>, %arg7: memref<32x32xf32, #tpu.memory_space<vmem>>, %arg8: memref<1x32xf32, #tpu.memory_space<vmem>>, %arg9: memref<1x32xf32, #tpu.memory_space<vmem>>, %arg10: memref<1x32xf32, #tpu.memory_space<vmem>>, %arg11: memref<1x8x32xf32, #tpu.memory_space<vmem>>, %arg12: memref<4x8x1xf32, #tpu.memory_space<vmem>>, %arg13: memref<4x8x1xf32, #tpu.memory_space<vmem>>, %arg14: memref<8x32xf32, #tpu.memory_space<vmem>>) attributes {dimension_semantics = [#tpu.dimension_semantics<parallel>, #tpu.dimension_semantics<parallel>, #tpu.dimension_semantics<arbitrary>], iteration_bounds = array<i64: 2, 1, 1>, scalar_prefetch = 0 : i64, scratch_operands = 3 : i64, tpu.core_type = #tpu.core_type<tc>, window_params = [{transform_indices = @transform_0, window_bounds = array<i64: 1, 1, 8, 32>}, {transform_indices = @transform_1, window_bounds = array<i64: 1, 1, 8, 32>}, {transform_indices = @transform_2, window_bounds = array<i64: 1, 1, 8, 32>}, {transform_indices = @transform_3, window_bounds = array<i64: 1, 8, 32>}, {pipeline_mode = #tpu.pipeline_mode<synchronous>, transform_indices = @transform_4, window_bounds = array<i64: 32, 32>}, {pipeline_mode = #tpu.pipeline_mode<synchronous>, transform_indices = @transform_5, window_bounds = array<i64: 1, 32>}, {pipeline_mode = #tpu.pipeline_mode<synchronous>, transform_indices = @transform_6, window_bounds = array<i64: 1, 32>}, {pipeline_mode = #tpu.pipeline_mode<synchronous>, transform_indices = @transform_7, window_bounds = array<i64: 1, 32>}, {transform_indices = @transform_8, window_bounds = array<i64: 1, 8, 32>}]} {
    %c0_i32 = arith.constant 0 : i32
    %0 = arith.cmpi eq, %arg2, %c0_i32 : i32
    %1 = arith.extui %0 : i1 to i32
    %c0_i32_0 = arith.constant 0 : i32
    %2 = arith.cmpi ne, %1, %c0_i32_0 : i32
    scf.if %2 {
      %cst_91 = arith.constant 0xFF800000 : f32
      %152 = vector.broadcast %cst_91 : f32 to vector<4x8x1xf32>
      %c0_92 = arith.constant 0 : index
      %c0_93 = arith.constant 0 : index
      %c0_94 = arith.constant 0 : index
      %153 = vector.load %arg12[%c0_92, %c0_93, %c0_94] : memref<4x8x1xf32, #tpu.memory_space<vmem>>, vector<4x8x1xf32>
      tpu.vector_store %arg12[%c0_92, %c0_93, %c0_94], %152 {strides = array<i32>} : memref<4x8x1xf32, #tpu.memory_space<vmem>>, vector<4x8x1xf32>,
      %cst_95 = arith.constant 0.000000e+00 : f32
      %154 = vector.broadcast %cst_95 : f32 to vector<4x8x1xf32>
      %c0_96 = arith.constant 0 : index
      %c0_97 = arith.constant 0 : index
      %c0_98 = arith.constant 0 : index
      %155 = vector.load %arg13[%c0_96, %c0_97, %c0_98] : memref<4x8x1xf32, #tpu.memory_space<vmem>>, vector<4x8x1xf32>
      tpu.vector_store %arg13[%c0_96, %c0_97, %c0_98], %154 {strides = array<i32>} : memref<4x8x1xf32, #tpu.memory_space<vmem>>, vector<4x8x1xf32>,
      %cst_99 = arith.constant 0.000000e+00 : f32
      %156 = vector.broadcast %cst_99 : f32 to vector<8x32xf32>
      %c0_100 = arith.constant 0 : index
      %c0_101 = arith.constant 0 : index
      %157 = vector.load %arg14[%c0_100, %c0_101] : memref<8x32xf32, #tpu.memory_space<vmem>>, vector<8x32xf32>
      tpu.vector_store %arg14[%c0_100, %c0_101], %156 {strides = array<i32>} : memref<8x32xf32, #tpu.memory_space<vmem>>, vector<8x32xf32>,
    } else {
    }
    %c0 = arith.constant 0 : index
    %c0_1 = arith.constant 0 : index
    %c0_2 = arith.constant 0 : index
    %c0_3 = arith.constant 0 : index
    %3 = vector.load %arg3[%c0, %c0_1, %c0_2, %c0_3] : memref<1x1x8x32xbf16, #tpu.memory_space<vmem>>, vector<1x1x8x32xbf16>
    %4 = vector.shape_cast %3 : vector<1x1x8x32xbf16> to vector<8x32xbf16>
    %c0_4 = arith.constant 0 : index
    %c0_5 = arith.constant 0 : index
    %c0_6 = arith.constant 0 : index
    %c0_7 = arith.constant 0 : index
    %5 = vector.load %arg4[%c0_4, %c0_5, %c0_6, %c0_7] : memref<1x1x8x32xbf16, #tpu.memory_space<vmem>>, vector<1x1x8x32xbf16>
    %6 = vector.shape_cast %5 : vector<1x1x8x32xbf16> to vector<8x32xbf16>
    %c0_8 = arith.constant 0 : index
    %c0_9 = arith.constant 0 : index
    %c0_10 = arith.constant 0 : index
    %c0_11 = arith.constant 0 : index
    %7 = vector.load %arg5[%c0_8, %c0_9, %c0_10, %c0_11] : memref<1x1x8x32xbf16, #tpu.memory_space<vmem>>, vector<1x1x8x32xbf16>
    %8 = vector.shape_cast %7 : vector<1x1x8x32xbf16> to vector<8x32xbf16>
    %9 = vector.extract_strided_slice %4 {offsets = [0, 0], sizes = [8, 8], strides = [1, 1]} : vector<8x32xbf16> to vector<8x8xbf16>
    %10 = vector.extract_strided_slice %6 {offsets = [0, 0], sizes = [8, 8], strides = [1, 1]} : vector<8x32xbf16> to vector<8x8xbf16>
    %cst = arith.constant dense<0.000000e+00> : vector<8x8xf32>
    %11 = tpu.matmul %9, %10, %cst {dimension_numbers = #tpu.dot_dimension_numbers<[1], [1], [0], [0], [0, 0, 1, 0], [], []>} : vector<8x8xbf16>, vector<8x8xbf16>, vector<8x8xf32> -> vector<8x8xf32>
    %cst_12 = arith.constant 0.353553385 : f32
    %12 = vector.broadcast %cst_12 : f32 to vector<8x8xf32>
    %13 = arith.mulf %11, %12 : vector<8x8xf32>
    %c0_13 = arith.constant 0 : index
    %c0_14 = arith.constant 0 : index
    %c0_15 = arith.constant 0 : index
    %14 = vector.load %arg12[%c0_13, %c0_14, %c0_15] : memref<4x8x1xf32, #tpu.memory_space<vmem>>, vector<1x8x1xf32>
    %15 = vector.shape_cast %14 : vector<1x8x1xf32> to vector<8x1xf32>
    %cst_16 = arith.constant dense<0xFF800000> : vector<8xf32>
    %16 = vector.multi_reduction <maximumf>, %13, %cst_16 [1] : vector<8x8xf32> to vector<8xf32>
    %17 = vector.shape_cast %16 : vector<8xf32> to vector<8x1xf32>
    %18 = arith.maximumf %15, %17 : vector<8x1xf32>
    %19 = arith.subf %15, %18 : vector<8x1xf32>
    %20 = math.exp %19 : vector<8x1xf32>
    %21 = vector.broadcast %18 : vector<8x1xf32> to vector<8x8xf32>
    %22 = arith.subf %13, %21 : vector<8x8xf32>
    %23 = math.exp %22 : vector<8x8xf32>
    %c0_17 = arith.constant 0 : index
    %c0_18 = arith.constant 0 : index
    %c0_19 = arith.constant 0 : index
    %24 = vector.load %arg13[%c0_17, %c0_18, %c0_19] : memref<4x8x1xf32, #tpu.memory_space<vmem>>, vector<1x8x1xf32>
    %25 = vector.shape_cast %24 : vector<1x8x1xf32> to vector<8x1xf32>
    %26 = arith.mulf %20, %25 : vector<8x1xf32>
    %cst_20 = arith.constant dense<0.000000e+00> : vector<8xf32>
    %27 = vector.multi_reduction <add>, %23, %cst_20 [1] : vector<8x8xf32> to vector<8xf32>
    %28 = vector.shape_cast %27 : vector<8xf32> to vector<8x1xf32>
    %29 = arith.addf %26, %28 : vector<8x1xf32>
    %c0_21 = arith.constant 0 : index
    %c0_22 = arith.constant 0 : index
    %c0_23 = arith.constant 0 : index
    %30 = vector.load %arg13[%c0_21, %c0_22, %c0_23] : memref<4x8x1xf32, #tpu.memory_space<vmem>>, vector<1x8x1xf32>
    %31 = vector.shape_cast %30 : vector<1x8x1xf32> to vector<8x1xf32>
    %32 = vector.shape_cast %29 : vector<8x1xf32> to vector<1x8x1xf32>
    tpu.vector_store %arg13[%c0_21, %c0_22, %c0_23], %32 {strides = array<i32>} : memref<4x8x1xf32, #tpu.memory_space<vmem>>, vector<1x8x1xf32>,
    %c0_24 = arith.constant 0 : index
    %c0_25 = arith.constant 0 : index
    %c0_26 = arith.constant 0 : index
    %33 = vector.load %arg12[%c0_24, %c0_25, %c0_26] : memref<4x8x1xf32, #tpu.memory_space<vmem>>, vector<1x8x1xf32>
    %34 = vector.shape_cast %33 : vector<1x8x1xf32> to vector<8x1xf32>
    %35 = vector.shape_cast %18 : vector<8x1xf32> to vector<1x8x1xf32>
    tpu.vector_store %arg12[%c0_24, %c0_25, %c0_26], %35 {strides = array<i32>} : memref<4x8x1xf32, #tpu.memory_space<vmem>>, vector<1x8x1xf32>,
    %36 = arith.truncf %23 : vector<8x8xf32> to vector<8x8xbf16>
    %37 = vector.extract_strided_slice %8 {offsets = [0, 0], sizes = [8, 8], strides = [1, 1]} : vector<8x32xbf16> to vector<8x8xbf16>
    %cst_27 = arith.constant dense<0.000000e+00> : vector<8x8xf32>
    %38 = tpu.matmul %36, %37, %cst_27 {dimension_numbers = #tpu.dot_dimension_numbers<[1], [0], [0], [1], [0, 0, 1, 1], [], []>} : vector<8x8xbf16>, vector<8x8xbf16>, vector<8x8xf32> -> vector<8x8xf32>
    %c0_28 = arith.constant 0 : index
    %c0_29 = arith.constant 0 : index
    %39 = vector.load %arg14[%c0_28, %c0_29] : memref<8x32xf32, #tpu.memory_space<vmem>>, vector<8x8xf32>
    %40 = vector.broadcast %20 : vector<8x1xf32> to vector<8x8xf32>
    %41 = arith.mulf %40, %39 : vector<8x8xf32>
    %42 = arith.addf %41, %38 : vector<8x8xf32>
    %c0_30 = arith.constant 0 : index
    %c0_31 = arith.constant 0 : index
    %43 = vector.load %arg14[%c0_30, %c0_31] : memref<8x32xf32, #tpu.memory_space<vmem>>, vector<8x8xf32>
    tpu.vector_store %arg14[%c0_30, %c0_31], %42 {strides = array<i32>} : memref<8x32xf32, #tpu.memory_space<vmem>>, vector<8x8xf32>,
    %44 = vector.extract_strided_slice %4 {offsets = [0, 8], sizes = [8, 8], strides = [1, 1]} : vector<8x32xbf16> to vector<8x8xbf16>
    %45 = vector.extract_strided_slice %6 {offsets = [0, 8], sizes = [8, 8], strides = [1, 1]} : vector<8x32xbf16> to vector<8x8xbf16>
    %cst_32 = arith.constant dense<0.000000e+00> : vector<8x8xf32>
    %46 = tpu.matmul %44, %45, %cst_32 {dimension_numbers = #tpu.dot_dimension_numbers<[1], [1], [0], [0], [0, 0, 1, 0], [], []>} : vector<8x8xbf16>, vector<8x8xbf16>, vector<8x8xf32> -> vector<8x8xf32>
    %cst_33 = arith.constant 0.353553385 : f32
    %47 = vector.broadcast %cst_33 : f32 to vector<8x8xf32>
    %48 = arith.mulf %46, %47 : vector<8x8xf32>
    %c1 = arith.constant 1 : index
    %c0_34 = arith.constant 0 : index
    %c0_35 = arith.constant 0 : index
    %49 = vector.load %arg12[%c1, %c0_34, %c0_35] : memref<4x8x1xf32, #tpu.memory_space<vmem>>, vector<1x8x1xf32>
    %50 = vector.shape_cast %49 : vector<1x8x1xf32> to vector<8x1xf32>
    %cst_36 = arith.constant dense<0xFF800000> : vector<8xf32>
    %51 = vector.multi_reduction <maximumf>, %48, %cst_36 [1] : vector<8x8xf32> to vector<8xf32>
    %52 = vector.shape_cast %51 : vector<8xf32> to vector<8x1xf32>
    %53 = arith.maximumf %50, %52 : vector<8x1xf32>
    %54 = arith.subf %50, %53 : vector<8x1xf32>
    %55 = math.exp %54 : vector<8x1xf32>
    %56 = vector.broadcast %53 : vector<8x1xf32> to vector<8x8xf32>
    %57 = arith.subf %48, %56 : vector<8x8xf32>
    %58 = math.exp %57 : vector<8x8xf32>
    %c1_37 = arith.constant 1 : index
    %c0_38 = arith.constant 0 : index
    %c0_39 = arith.constant 0 : index
    %59 = vector.load %arg13[%c1_37, %c0_38, %c0_39] : memref<4x8x1xf32, #tpu.memory_space<vmem>>, vector<1x8x1xf32>
    %60 = vector.shape_cast %59 : vector<1x8x1xf32> to vector<8x1xf32>
    %61 = arith.mulf %55, %60 : vector<8x1xf32>
    %cst_40 = arith.constant dense<0.000000e+00> : vector<8xf32>
    %62 = vector.multi_reduction <add>, %58, %cst_40 [1] : vector<8x8xf32> to vector<8xf32>
    %63 = vector.shape_cast %62 : vector<8xf32> to vector<8x1xf32>
    %64 = arith.addf %61, %63 : vector<8x1xf32>
    %c1_41 = arith.constant 1 : index
    %c0_42 = arith.constant 0 : index
    %c0_43 = arith.constant 0 : index
    %65 = vector.load %arg13[%c1_41, %c0_42, %c0_43] : memref<4x8x1xf32, #tpu.memory_space<vmem>>, vector<1x8x1xf32>
    %66 = vector.shape_cast %65 : vector<1x8x1xf32> to vector<8x1xf32>
    %67 = vector.shape_cast %64 : vector<8x1xf32> to vector<1x8x1xf32>
    tpu.vector_store %arg13[%c1_41, %c0_42, %c0_43], %67 {strides = array<i32>} : memref<4x8x1xf32, #tpu.memory_space<vmem>>, vector<1x8x1xf32>,
    %c1_44 = arith.constant 1 : index
    %c0_45 = arith.constant 0 : index
    %c0_46 = arith.constant 0 : index
    %68 = vector.load %arg12[%c1_44, %c0_45, %c0_46] : memref<4x8x1xf32, #tpu.memory_space<vmem>>, vector<1x8x1xf32>
    %69 = vector.shape_cast %68 : vector<1x8x1xf32> to vector<8x1xf32>
    %70 = vector.shape_cast %53 : vector<8x1xf32> to vector<1x8x1xf32>
    tpu.vector_store %arg12[%c1_44, %c0_45, %c0_46], %70 {strides = array<i32>} : memref<4x8x1xf32, #tpu.memory_space<vmem>>, vector<1x8x1xf32>,
    %71 = arith.truncf %58 : vector<8x8xf32> to vector<8x8xbf16>
    %72 = vector.extract_strided_slice %8 {offsets = [0, 8], sizes = [8, 8], strides = [1, 1]} : vector<8x32xbf16> to vector<8x8xbf16>
    %cst_47 = arith.constant dense<0.000000e+00> : vector<8x8xf32>
    %73 = tpu.matmul %71, %72, %cst_47 {dimension_numbers = #tpu.dot_dimension_numbers<[1], [0], [0], [1], [0, 0, 1, 1], [], []>} : vector<8x8xbf16>, vector<8x8xbf16>, vector<8x8xf32> -> vector<8x8xf32>
    %c0_48 = arith.constant 0 : index
    %c8 = arith.constant 8 : index
    %74 = vector.load %arg14[%c0_48, %c8] : memref<8x32xf32, #tpu.memory_space<vmem>>, vector<8x8xf32>
    %75 = vector.broadcast %55 : vector<8x1xf32> to vector<8x8xf32>
    %76 = arith.mulf %75, %74 : vector<8x8xf32>
    %77 = arith.addf %76, %73 : vector<8x8xf32>
    %c0_49 = arith.constant 0 : index
    %c8_50 = arith.constant 8 : index
    %78 = vector.load %arg14[%c0_49, %c8_50] : memref<8x32xf32, #tpu.memory_space<vmem>>, vector<8x8xf32>
    tpu.vector_store %arg14[%c0_49, %c8_50], %77 {strides = array<i32>} : memref<8x32xf32, #tpu.memory_space<vmem>>, vector<8x8xf32>,
    %79 = vector.extract_strided_slice %4 {offsets = [0, 16], sizes = [8, 8], strides = [1, 1]} : vector<8x32xbf16> to vector<8x8xbf16>
    %80 = vector.extract_strided_slice %6 {offsets = [0, 16], sizes = [8, 8], strides = [1, 1]} : vector<8x32xbf16> to vector<8x8xbf16>
    %cst_51 = arith.constant dense<0.000000e+00> : vector<8x8xf32>
    %81 = tpu.matmul %79, %80, %cst_51 {dimension_numbers = #tpu.dot_dimension_numbers<[1], [1], [0], [0], [0, 0, 1, 0], [], []>} : vector<8x8xbf16>, vector<8x8xbf16>, vector<8x8xf32> -> vector<8x8xf32>
    %cst_52 = arith.constant 0.353553385 : f32
    %82 = vector.broadcast %cst_52 : f32 to vector<8x8xf32>
    %83 = arith.mulf %81, %82 : vector<8x8xf32>
    %c2 = arith.constant 2 : index
    %c0_53 = arith.constant 0 : index
    %c0_54 = arith.constant 0 : index
    %84 = vector.load %arg12[%c2, %c0_53, %c0_54] : memref<4x8x1xf32, #tpu.memory_space<vmem>>, vector<1x8x1xf32>
    %85 = vector.shape_cast %84 : vector<1x8x1xf32> to vector<8x1xf32>
    %cst_55 = arith.constant dense<0xFF800000> : vector<8xf32>
    %86 = vector.multi_reduction <maximumf>, %83, %cst_55 [1] : vector<8x8xf32> to vector<8xf32>
    %87 = vector.shape_cast %86 : vector<8xf32> to vector<8x1xf32>
    %88 = arith.maximumf %85, %87 : vector<8x1xf32>
    %89 = arith.subf %85, %88 : vector<8x1xf32>
    %90 = math.exp %89 : vector<8x1xf32>
    %91 = vector.broadcast %88 : vector<8x1xf32> to vector<8x8xf32>
    %92 = arith.subf %83, %91 : vector<8x8xf32>
    %93 = math.exp %92 : vector<8x8xf32>
    %c2_56 = arith.constant 2 : index
    %c0_57 = arith.constant 0 : index
    %c0_58 = arith.constant 0 : index
    %94 = vector.load %arg13[%c2_56, %c0_57, %c0_58] : memref<4x8x1xf32, #tpu.memory_space<vmem>>, vector<1x8x1xf32>
    %95 = vector.shape_cast %94 : vector<1x8x1xf32> to vector<8x1xf32>
    %96 = arith.mulf %90, %95 : vector<8x1xf32>
    %cst_59 = arith.constant dense<0.000000e+00> : vector<8xf32>
    %97 = vector.multi_reduction <add>, %93, %cst_59 [1] : vector<8x8xf32> to vector<8xf32>
    %98 = vector.shape_cast %97 : vector<8xf32> to vector<8x1xf32>
    %99 = arith.addf %96, %98 : vector<8x1xf32>
    %c2_60 = arith.constant 2 : index
    %c0_61 = arith.constant 0 : index
    %c0_62 = arith.constant 0 : index
    %100 = vector.load %arg13[%c2_60, %c0_61, %c0_62] : memref<4x8x1xf32, #tpu.memory_space<vmem>>, vector<1x8x1xf32>
    %101 = vector.shape_cast %100 : vector<1x8x1xf32> to vector<8x1xf32>
    %102 = vector.shape_cast %99 : vector<8x1xf32> to vector<1x8x1xf32>
    tpu.vector_store %arg13[%c2_60, %c0_61, %c0_62], %102 {strides = array<i32>} : memref<4x8x1xf32, #tpu.memory_space<vmem>>, vector<1x8x1xf32>,
    %c2_63 = arith.constant 2 : index
    %c0_64 = arith.constant 0 : index
    %c0_65 = arith.constant 0 : index
    %103 = vector.load %arg12[%c2_63, %c0_64, %c0_65] : memref<4x8x1xf32, #tpu.memory_space<vmem>>, vector<1x8x1xf32>
    %104 = vector.shape_cast %103 : vector<1x8x1xf32> to vector<8x1xf32>
    %105 = vector.shape_cast %88 : vector<8x1xf32> to vector<1x8x1xf32>
    tpu.vector_store %arg12[%c2_63, %c0_64, %c0_65], %105 {strides = array<i32>} : memref<4x8x1xf32, #tpu.memory_space<vmem>>, vector<1x8x1xf32>,
    %106 = arith.truncf %93 : vector<8x8xf32> to vector<8x8xbf16>
    %107 = vector.extract_strided_slice %8 {offsets = [0, 16], sizes = [8, 8], strides = [1, 1]} : vector<8x32xbf16> to vector<8x8xbf16>
    %cst_66 = arith.constant dense<0.000000e+00> : vector<8x8xf32>
    %108 = tpu.matmul %106, %107, %cst_66 {dimension_numbers = #tpu.dot_dimension_numbers<[1], [0], [0], [1], [0, 0, 1, 1], [], []>} : vector<8x8xbf16>, vector<8x8xbf16>, vector<8x8xf32> -> vector<8x8xf32>
    %c0_67 = arith.constant 0 : index
    %c16 = arith.constant 16 : index
    %109 = vector.load %arg14[%c0_67, %c16] : memref<8x32xf32, #tpu.memory_space<vmem>>, vector<8x8xf32>
    %110 = vector.broadcast %90 : vector<8x1xf32> to vector<8x8xf32>
    %111 = arith.mulf %110, %109 : vector<8x8xf32>
    %112 = arith.addf %111, %108 : vector<8x8xf32>
    %c0_68 = arith.constant 0 : index
    %c16_69 = arith.constant 16 : index
    %113 = vector.load %arg14[%c0_68, %c16_69] : memref<8x32xf32, #tpu.memory_space<vmem>>, vector<8x8xf32>
    tpu.vector_store %arg14[%c0_68, %c16_69], %112 {strides = array<i32>} : memref<8x32xf32, #tpu.memory_space<vmem>>, vector<8x8xf32>,
    %114 = vector.extract_strided_slice %4 {offsets = [0, 24], sizes = [8, 8], strides = [1, 1]} : vector<8x32xbf16> to vector<8x8xbf16>
    %115 = vector.extract_strided_slice %6 {offsets = [0, 24], sizes = [8, 8], strides = [1, 1]} : vector<8x32xbf16> to vector<8x8xbf16>
    %cst_70 = arith.constant dense<0.000000e+00> : vector<8x8xf32>
    %116 = tpu.matmul %114, %115, %cst_70 {dimension_numbers = #tpu.dot_dimension_numbers<[1], [1], [0], [0], [0, 0, 1, 0], [], []>} : vector<8x8xbf16>, vector<8x8xbf16>, vector<8x8xf32> -> vector<8x8xf32>
    %cst_71 = arith.constant 0.353553385 : f32
    %117 = vector.broadcast %cst_71 : f32 to vector<8x8xf32>
    %118 = arith.mulf %116, %117 : vector<8x8xf32>
    %c3 = arith.constant 3 : index
    %c0_72 = arith.constant 0 : index
    %c0_73 = arith.constant 0 : index
    %119 = vector.load %arg12[%c3, %c0_72, %c0_73] : memref<4x8x1xf32, #tpu.memory_space<vmem>>, vector<1x8x1xf32>
    %120 = vector.shape_cast %119 : vector<1x8x1xf32> to vector<8x1xf32>
    %cst_74 = arith.constant dense<0xFF800000> : vector<8xf32>
    %121 = vector.multi_reduction <maximumf>, %118, %cst_74 [1] : vector<8x8xf32> to vector<8xf32>
    %122 = vector.shape_cast %121 : vector<8xf32> to vector<8x1xf32>
    %123 = arith.maximumf %120, %122 : vector<8x1xf32>
    %124 = arith.subf %120, %123 : vector<8x1xf32>
    %125 = math.exp %124 : vector<8x1xf32>
    %126 = vector.broadcast %123 : vector<8x1xf32> to vector<8x8xf32>
    %127 = arith.subf %118, %126 : vector<8x8xf32>
    %128 = math.exp %127 : vector<8x8xf32>
    %c3_75 = arith.constant 3 : index
    %c0_76 = arith.constant 0 : index
    %c0_77 = arith.constant 0 : index
    %129 = vector.load %arg13[%c3_75, %c0_76, %c0_77] : memref<4x8x1xf32, #tpu.memory_space<vmem>>, vector<1x8x1xf32>
    %130 = vector.shape_cast %129 : vector<1x8x1xf32> to vector<8x1xf32>
    %131 = arith.mulf %125, %130 : vector<8x1xf32>
    %cst_78 = arith.constant dense<0.000000e+00> : vector<8xf32>
    %132 = vector.multi_reduction <add>, %128, %cst_78 [1] : vector<8x8xf32> to vector<8xf32>
    %133 = vector.shape_cast %132 : vector<8xf32> to vector<8x1xf32>
    %134 = arith.addf %131, %133 : vector<8x1xf32>
    %c3_79 = arith.constant 3 : index
    %c0_80 = arith.constant 0 : index
    %c0_81 = arith.constant 0 : index
    %135 = vector.load %arg13[%c3_79, %c0_80, %c0_81] : memref<4x8x1xf32, #tpu.memory_space<vmem>>, vector<1x8x1xf32>
    %136 = vector.shape_cast %135 : vector<1x8x1xf32> to vector<8x1xf32>
    %137 = vector.shape_cast %134 : vector<8x1xf32> to vector<1x8x1xf32>
    tpu.vector_store %arg13[%c3_79, %c0_80, %c0_81], %137 {strides = array<i32>} : memref<4x8x1xf32, #tpu.memory_space<vmem>>, vector<1x8x1xf32>,
    %c3_82 = arith.constant 3 : index
    %c0_83 = arith.constant 0 : index
    %c0_84 = arith.constant 0 : index
    %138 = vector.load %arg12[%c3_82, %c0_83, %c0_84] : memref<4x8x1xf32, #tpu.memory_space<vmem>>, vector<1x8x1xf32>
    %139 = vector.shape_cast %138 : vector<1x8x1xf32> to vector<8x1xf32>
    %140 = vector.shape_cast %123 : vector<8x1xf32> to vector<1x8x1xf32>
    tpu.vector_store %arg12[%c3_82, %c0_83, %c0_84], %140 {strides = array<i32>} : memref<4x8x1xf32, #tpu.memory_space<vmem>>, vector<1x8x1xf32>,
    %141 = arith.truncf %128 : vector<8x8xf32> to vector<8x8xbf16>
    %142 = vector.extract_strided_slice %8 {offsets = [0, 24], sizes = [8, 8], strides = [1, 1]} : vector<8x32xbf16> to vector<8x8xbf16>
    %cst_85 = arith.constant dense<0.000000e+00> : vector<8x8xf32>
    %143 = tpu.matmul %141, %142, %cst_85 {dimension_numbers = #tpu.dot_dimension_numbers<[1], [0], [0], [1], [0, 0, 1, 1], [], []>} : vector<8x8xbf16>, vector<8x8xbf16>, vector<8x8xf32> -> vector<8x8xf32>
    %c0_86 = arith.constant 0 : index
    %c24 = arith.constant 24 : index
    %144 = vector.load %arg14[%c0_86, %c24] : memref<8x32xf32, #tpu.memory_space<vmem>>, vector<8x8xf32>
    %145 = vector.broadcast %125 : vector<8x1xf32> to vector<8x8xf32>
    %146 = arith.mulf %145, %144 : vector<8x8xf32>
    %147 = arith.addf %146, %143 : vector<8x8xf32>
    %c0_87 = arith.constant 0 : index
    %c24_88 = arith.constant 24 : index
    %148 = vector.load %arg14[%c0_87, %c24_88] : memref<8x32xf32, #tpu.memory_space<vmem>>, vector<8x8xf32>
    tpu.vector_store %arg14[%c0_87, %c24_88], %147 {strides = array<i32>} : memref<8x32xf32, #tpu.memory_space<vmem>>, vector<8x8xf32>,
    %c0_i32_89 = arith.constant 0 : i32
    %149 = arith.cmpi eq, %arg2, %c0_i32_89 : i32
    %150 = arith.extui %149 : i1 to i32
    %c0_i32_90 = arith.constant 0 : i32
    %151 = arith.cmpi ne, %150, %c0_i32_90 : i32
    scf.if %151 {
      %c0_91 = arith.constant 0 : index
      %c0_92 = arith.constant 0 : index
      %152 = vector.load %arg14[%c0_91, %c0_92] : memref<8x32xf32, #tpu.memory_space<vmem>>, vector<8x8xf32>
      %c0_93 = arith.constant 0 : index
      %c0_94 = arith.constant 0 : index
      %c0_95 = arith.constant 0 : index
      %153 = vector.load %arg13[%c0_93, %c0_94, %c0_95] : memref<4x8x1xf32, #tpu.memory_space<vmem>>, vector<1x8x1xf32>
      %154 = vector.shape_cast %153 : vector<1x8x1xf32> to vector<8x1xf32>
      %155 = tpu.reciprocal %154 {approx = true} : vector<8x1xf32> -> vector<8x1xf32>
      %156 = vector.broadcast %155 : vector<8x1xf32> to vector<8x8xf32>
      %157 = arith.mulf %152, %156 : vector<8x8xf32>
      %c0_96 = arith.constant 0 : index
      %c0_97 = arith.constant 0 : index
      %158 = vector.load %arg14[%c0_96, %c0_97] : memref<8x32xf32, #tpu.memory_space<vmem>>, vector<8x8xf32>
      tpu.vector_store %arg14[%c0_96, %c0_97], %157 {strides = array<i32>} : memref<8x32xf32, #tpu.memory_space<vmem>>, vector<8x8xf32>,
      %c0_98 = arith.constant 0 : index
      %c8_99 = arith.constant 8 : index
      %159 = vector.load %arg14[%c0_98, %c8_99] : memref<8x32xf32, #tpu.memory_space<vmem>>, vector<8x8xf32>
      %c1_100 = arith.constant 1 : index
      %c0_101 = arith.constant 0 : index
      %c0_102 = arith.constant 0 : index
      %160 = vector.load %arg13[%c1_100, %c0_101, %c0_102] : memref<4x8x1xf32, #tpu.memory_space<vmem>>, vector<1x8x1xf32>
      %161 = vector.shape_cast %160 : vector<1x8x1xf32> to vector<8x1xf32>
      %162 = tpu.reciprocal %161 {approx = true} : vector<8x1xf32> -> vector<8x1xf32>
      %163 = vector.broadcast %162 : vector<8x1xf32> to vector<8x8xf32>
      %164 = arith.mulf %159, %163 : vector<8x8xf32>
      %c0_103 = arith.constant 0 : index
      %c8_104 = arith.constant 8 : index
      %165 = vector.load %arg14[%c0_103, %c8_104] : memref<8x32xf32, #tpu.memory_space<vmem>>, vector<8x8xf32>
      tpu.vector_store %arg14[%c0_103, %c8_104], %164 {strides = array<i32>} : memref<8x32xf32, #tpu.memory_space<vmem>>, vector<8x8xf32>,
      %c0_105 = arith.constant 0 : index
      %c16_106 = arith.constant 16 : index
      %166 = vector.load %arg14[%c0_105, %c16_106] : memref<8x32xf32, #tpu.memory_space<vmem>>, vector<8x8xf32>
      %c2_107 = arith.constant 2 : index
      %c0_108 = arith.constant 0 : index
      %c0_109 = arith.constant 0 : index
      %167 = vector.load %arg13[%c2_107, %c0_108, %c0_109] : memref<4x8x1xf32, #tpu.memory_space<vmem>>, vector<1x8x1xf32>
      %168 = vector.shape_cast %167 : vector<1x8x1xf32> to vector<8x1xf32>
      %169 = tpu.reciprocal %168 {approx = true} : vector<8x1xf32> -> vector<8x1xf32>
      %170 = vector.broadcast %169 : vector<8x1xf32> to vector<8x8xf32>
      %171 = arith.mulf %166, %170 : vector<8x8xf32>
      %c0_110 = arith.constant 0 : index
      %c16_111 = arith.constant 16 : index
      %172 = vector.load %arg14[%c0_110, %c16_111] : memref<8x32xf32, #tpu.memory_space<vmem>>, vector<8x8xf32>
      tpu.vector_store %arg14[%c0_110, %c16_111], %171 {strides = array<i32>} : memref<8x32xf32, #tpu.memory_space<vmem>>, vector<8x8xf32>,
      %c0_112 = arith.constant 0 : index
      %c24_113 = arith.constant 24 : index
      %173 = vector.load %arg14[%c0_112, %c24_113] : memref<8x32xf32, #tpu.memory_space<vmem>>, vector<8x8xf32>
      %c3_114 = arith.constant 3 : index
      %c0_115 = arith.constant 0 : index
      %c0_116 = arith.constant 0 : index
      %174 = vector.load %arg13[%c3_114, %c0_115, %c0_116] : memref<4x8x1xf32, #tpu.memory_space<vmem>>, vector<1x8x1xf32>
      %175 = vector.shape_cast %174 : vector<1x8x1xf32> to vector<8x1xf32>
      %176 = tpu.reciprocal %175 {approx = true} : vector<8x1xf32> -> vector<8x1xf32>
      %177 = vector.broadcast %176 : vector<8x1xf32> to vector<8x8xf32>
      %178 = arith.mulf %173, %177 : vector<8x8xf32>
      %c0_117 = arith.constant 0 : index
      %c24_118 = arith.constant 24 : index
      %179 = vector.load %arg14[%c0_117, %c24_118] : memref<8x32xf32, #tpu.memory_space<vmem>>, vector<8x8xf32>
      tpu.vector_store %arg14[%c0_117, %c24_118], %178 {strides = array<i32>} : memref<8x32xf32, #tpu.memory_space<vmem>>, vector<8x8xf32>,
      %c0_119 = arith.constant 0 : index
      %c0_120 = arith.constant 0 : index
      %180 = vector.load %arg14[%c0_119, %c0_120] : memref<8x32xf32, #tpu.memory_space<vmem>>, vector<8x32xf32>
      %181 = arith.truncf %180 : vector<8x32xf32> to vector<8x32xbf16>
      %c0_121 = arith.constant 0 : index
      %c0_122 = arith.constant 0 : index
      %182 = vector.load %arg7[%c0_121, %c0_122] : memref<32x32xf32, #tpu.memory_space<vmem>>, vector<32x32xf32>
      %183 = arith.truncf %182 : vector<32x32xf32> to vector<32x32xbf16>
      %cst_123 = arith.constant dense<0.000000e+00> : vector<8x32xf32>
      %184 = tpu.matmul %181, %183, %cst_123 {dimension_numbers = #tpu.dot_dimension_numbers<[1], [0], [0], [1], [0, 0, 1, 1], [], []>} : vector<8x32xbf16>, vector<32x32xbf16>, vector<8x32xf32> -> vector<8x32xf32>
      %c0_124 = arith.constant 0 : index
      %c0_125 = arith.constant 0 : index
      %185 = vector.load %arg8[%c0_124, %c0_125] : memref<1x32xf32, #tpu.memory_space<vmem>>, vector<1x32xf32>
      %186 = vector.broadcast %185 : vector<1x32xf32> to vector<8x32xf32>
      %187 = arith.addf %184, %186 : vector<8x32xf32>
      %c0_126 = arith.constant 0 : index
      %c0_127 = arith.constant 0 : index
      %c0_128 = arith.constant 0 : index
      %188 = vector.load %arg6[%c0_126, %c0_127, %c0_128] : memref<1x8x32xf32, #tpu.memory_space<vmem>>, vector<1x8x32xf32>
      %189 = vector.shape_cast %188 : vector<1x8x32xf32> to vector<8x32xf32>
      %190 = arith.addf %187, %189 : vector<8x32xf32>
      %cst_129 = arith.constant dense<0.000000e+00> : vector<8xf32>
      %191 = vector.multi_reduction <add>, %190, %cst_129 [1] : vector<8x32xf32> to vector<8xf32>
      %192 = vector.shape_cast %191 : vector<8xf32> to vector<8x1xf32>
      %cst_130 = arith.constant 3.200000e+01 : f32
      %193 = vector.broadcast %cst_130 : f32 to vector<8x1xf32>
      %194 = arith.divf %192, %193 : vector<8x1xf32>
      %195 = vector.broadcast %194 : vector<8x1xf32> to vector<8x32xf32>
      %196 = arith.subf %190, %195 : vector<8x32xf32>
      %197 = arith.mulf %196, %196 : vector<8x32xf32>
      %cst_131 = arith.constant dense<0.000000e+00> : vector<8xf32>
      %198 = vector.multi_reduction <add>, %197, %cst_131 [1] : vector<8x32xf32> to vector<8xf32>
      %199 = vector.shape_cast %198 : vector<8xf32> to vector<8x1xf32>
      %cst_132 = arith.constant 3.200000e+01 : f32
      %200 = vector.broadcast %cst_132 : f32 to vector<8x1xf32>
      %201 = arith.divf %199, %200 : vector<8x1xf32>
      %cst_133 = arith.constant 9.99999974E-6 : f32
      %202 = vector.broadcast %cst_133 : f32 to vector<8x1xf32>
      %203 = arith.addf %201, %202 : vector<8x1xf32>
      %204 = math.rsqrt %203 : vector<8x1xf32>
      %205 = vector.broadcast %204 : vector<8x1xf32> to vector<8x32xf32>
      %206 = arith.mulf %196, %205 : vector<8x32xf32>
      %c0_134 = arith.constant 0 : index
      %c0_135 = arith.constant 0 : index
      %207 = vector.load %arg9[%c0_134, %c0_135] : memref<1x32xf32, #tpu.memory_space<vmem>>, vector<1x32xf32>
      %208 = vector.broadcast %207 : vector<1x32xf32> to vector<8x32xf32>
      %209 = arith.mulf %206, %208 : vector<8x32xf32>
      %c0_136 = arith.constant 0 : index
      %c0_137 = arith.constant 0 : index
      %210 = vector.load %arg10[%c0_136, %c0_137] : memref<1x32xf32, #tpu.memory_space<vmem>>, vector<1x32xf32>
      %211 = vector.broadcast %210 : vector<1x32xf32> to vector<8x32xf32>
      %212 = arith.addf %209, %211 : vector<8x32xf32>
      %c0_138 = arith.constant 0 : index
      %c0_139 = arith.constant 0 : index
      %c0_140 = arith.constant 0 : index
      %213 = vector.load %arg11[%c0_138, %c0_139, %c0_140] : memref<1x8x32xf32, #tpu.memory_space<vmem>>, vector<1x8x32xf32>
      %214 = vector.shape_cast %213 : vector<1x8x32xf32> to vector<8x32xf32>
      %215 = vector.shape_cast %212 : vector<8x32xf32> to vector<1x8x32xf32>
      tpu.vector_store %arg11[%c0_138, %c0_139, %c0_140], %215 {strides = array<i32>} : memref<1x8x32xf32, #tpu.memory_space<vmem>>, vector<1x8x32xf32>,
    } else {
    }
    return
  }
  func.func @transform_0(%arg0: i32, %arg1: i32, %arg2: i32) -> (i32, i32, i32, i32) {
    %c0_i32 = arith.constant 0 : i32
    %c0_i32_0 = arith.constant 0 : i32
    %c0_i32_1 = arith.constant 0 : i32
    return %c0_i32, %arg0, %arg1, %c0_i32_0 : i32, i32, i32, i32
  }
  func.func @transform_1(%arg0: i32, %arg1: i32, %arg2: i32) -> (i32, i32, i32, i32) {
    %c1_i32 = arith.constant 1 : i32
    %c0_i32 = arith.constant 0 : i32
    %c0_i32_0 = arith.constant 0 : i32
    return %c1_i32, %arg0, %arg2, %c0_i32 : i32, i32, i32, i32
  }
  func.func @transform_2(%arg0: i32, %arg1: i32, %arg2: i32) -> (i32, i32, i32, i32) {
    %c2_i32 = arith.constant 2 : i32
    %c0_i32 = arith.constant 0 : i32
    %c0_i32_0 = arith.constant 0 : i32
    return %c2_i32, %arg0, %arg2, %c0_i32 : i32, i32, i32, i32
  }
  func.func @transform_3(%arg0: i32, %arg1: i32, %arg2: i32) -> (i32, i32, i32) {
    %c0_i32 = arith.constant 0 : i32
    %c0_i32_0 = arith.constant 0 : i32
    return %arg0, %arg1, %c0_i32 : i32, i32, i32
  }
  func.func @transform_4(%arg0: i32, %arg1: i32, %arg2: i32) -> (i32, i32) {
    %c0_i32 = arith.constant 0 : i32
    %c0_i32_0 = arith.constant 0 : i32
    %c0_i32_1 = arith.constant 0 : i32
    return %c0_i32, %c0_i32_0 : i32, i32
  }
  func.func @transform_5(%arg0: i32, %arg1: i32, %arg2: i32) -> (i32, i32) {
    %c0_i32 = arith.constant 0 : i32
    %c0_i32_0 = arith.constant 0 : i32
    %c0_i32_1 = arith.constant 0 : i32
    return %c0_i32, %c0_i32_0 : i32, i32
  }
  func.func @transform_6(%arg0: i32, %arg1: i32, %arg2: i32) -> (i32, i32) {
    %c0_i32 = arith.constant 0 : i32
    %c0_i32_0 = arith.constant 0 : i32
    %c0_i32_1 = arith.constant 0 : i32
    return %c0_i32, %c0_i32_0 : i32, i32
  }
  func.func @transform_7(%arg0: i32, %arg1: i32, %arg2: i32) -> (i32, i32) {
    %c0_i32 = arith.constant 0 : i32
    %c0_i32_0 = arith.constant 0 : i32
    %c0_i32_1 = arith.constant 0 : i32
    return %c0_i32, %c0_i32_0 : i32, i32
  }
  func.func @transform_8(%arg0: i32, %arg1: i32, %arg2: i32) -> (i32, i32, i32) {
    %c0_i32 = arith.constant 0 : i32
    %c0_i32_0 = arith.constant 0 : i32
    return %arg0, %arg1, %c0_i32 : i32, i32, i32
  }
}

module attributes {stable_mosaic.version = 11 : i64} {
  func.func @_grouped_linear_kernel(%arg0: i32, %arg1: i32, %arg2: memref<16x32xf32, #tpu.memory_space<vmem>>, %arg3: memref<1x32x32xf32, #tpu.memory_space<vmem>>, %arg4: memref<1x1x32xf32, #tpu.memory_space<vmem>>, %arg5: memref<1x16x32xbf16, #tpu.memory_space<vmem>>, %arg6: memref<1x16x32xf32, #tpu.memory_space<vmem>>) attributes {dimension_semantics = [#tpu.dimension_semantics<parallel>, #tpu.dimension_semantics<arbitrary>], iteration_bounds = array<i64: 1, 1>, scalar_prefetch = 0 : i64, scratch_operands = 1 : i64, tpu.core_type = #tpu.core_type<tc>, window_params = [{transform_indices = @transform_0, window_bounds = array<i64: 16, 32>}, {transform_indices = @transform_1, window_bounds = array<i64: 1, 32, 32>}, {pipeline_mode = #tpu.pipeline_mode<synchronous>, transform_indices = @transform_2, window_bounds = array<i64: 1, 1, 32>}, {transform_indices = @transform_3, window_bounds = array<i64: 1, 16, 32>}]} {
    %c0_i32 = arith.constant 0 : i32
    %0 = arith.cmpi eq, %arg1, %c0_i32 : i32
    %1 = arith.extui %0 : i1 to i32
    %c0_i32_0 = arith.constant 0 : i32
    %2 = arith.cmpi ne, %1, %c0_i32_0 : i32
    scf.if %2 {
      %cst_13 = arith.constant 0.000000e+00 : f32
      %18 = vector.broadcast %cst_13 : f32 to vector<1x16x32xf32>
      %c0_14 = arith.constant 0 : index
      %c0_15 = arith.constant 0 : index
      %c0_16 = arith.constant 0 : index
      %19 = vector.load %arg6[%c0_14, %c0_15, %c0_16] : memref<1x16x32xf32, #tpu.memory_space<vmem>>, vector<1x16x32xf32>
      tpu.vector_store %arg6[%c0_14, %c0_15, %c0_16], %18 {strides = array<i32>} : memref<1x16x32xf32, #tpu.memory_space<vmem>>, vector<1x16x32xf32>,
    } else {
    }
    %c0 = arith.constant 0 : index
    %c0_1 = arith.constant 0 : index
    %3 = vector.load %arg2[%c0, %c0_1] : memref<16x32xf32, #tpu.memory_space<vmem>>, vector<16x32xf32>
    %4 = arith.truncf %3 : vector<16x32xf32> to vector<16x32xbf16>
    %c0_2 = arith.constant 0 : index
    %c0_3 = arith.constant 0 : index
    %c0_4 = arith.constant 0 : index
    %5 = vector.load %arg6[%c0_2, %c0_3, %c0_4] : memref<1x16x32xf32, #tpu.memory_space<vmem>>, vector<1x16x32xf32>
    %6 = vector.shape_cast %5 : vector<1x16x32xf32> to vector<16x32xf32>
    %c0_5 = arith.constant 0 : index
    %c0_6 = arith.constant 0 : index
    %c0_7 = arith.constant 0 : index
    %7 = vector.load %arg3[%c0_5, %c0_6, %c0_7] : memref<1x32x32xf32, #tpu.memory_space<vmem>>, vector<1x32x32xf32>
    %8 = vector.shape_cast %7 : vector<1x32x32xf32> to vector<32x32xf32>
    %9 = arith.truncf %8 : vector<32x32xf32> to vector<32x32xbf16>
    %cst = arith.constant dense<0.000000e+00> : vector<16x32xf32>
    %10 = tpu.matmul %4, %9, %cst {dimension_numbers = #tpu.dot_dimension_numbers<[1], [0], [0], [1], [0, 0, 1, 1], [], []>} : vector<16x32xbf16>, vector<32x32xbf16>, vector<16x32xf32> -> vector<16x32xf32>
    %11 = arith.addf %6, %10 : vector<16x32xf32>
    %c0_8 = arith.constant 0 : index
    %c0_9 = arith.constant 0 : index
    %c0_10 = arith.constant 0 : index
    %12 = vector.load %arg6[%c0_8, %c0_9, %c0_10] : memref<1x16x32xf32, #tpu.memory_space<vmem>>, vector<1x16x32xf32>
    %13 = vector.shape_cast %12 : vector<1x16x32xf32> to vector<16x32xf32>
    %14 = vector.shape_cast %11 : vector<16x32xf32> to vector<1x16x32xf32>
    tpu.vector_store %arg6[%c0_8, %c0_9, %c0_10], %14 {strides = array<i32>} : memref<1x16x32xf32, #tpu.memory_space<vmem>>, vector<1x16x32xf32>,
    %c0_i32_11 = arith.constant 0 : i32
    %15 = arith.cmpi eq, %arg1, %c0_i32_11 : i32
    %16 = arith.extui %15 : i1 to i32
    %c0_i32_12 = arith.constant 0 : i32
    %17 = arith.cmpi ne, %16, %c0_i32_12 : i32
    scf.if %17 {
      %c0_13 = arith.constant 0 : index
      %c0_14 = arith.constant 0 : index
      %c0_15 = arith.constant 0 : index
      %18 = vector.load %arg6[%c0_13, %c0_14, %c0_15] : memref<1x16x32xf32, #tpu.memory_space<vmem>>, vector<1x16x32xf32>
      %c0_16 = arith.constant 0 : index
      %c0_17 = arith.constant 0 : index
      %c0_18 = arith.constant 0 : index
      %19 = vector.load %arg4[%c0_16, %c0_17, %c0_18] : memref<1x1x32xf32, #tpu.memory_space<vmem>>, vector<1x1x32xf32>
      %20 = vector.broadcast %19 : vector<1x1x32xf32> to vector<1x16x32xf32>
      %21 = arith.addf %18, %20 : vector<1x16x32xf32>
      %22 = arith.truncf %21 : vector<1x16x32xf32> to vector<1x16x32xbf16>
      %c0_19 = arith.constant 0 : index
      %c0_20 = arith.constant 0 : index
      %c0_21 = arith.constant 0 : index
      %23 = vector.load %arg5[%c0_19, %c0_20, %c0_21] : memref<1x16x32xbf16, #tpu.memory_space<vmem>>, vector<1x16x32xbf16>
      tpu.vector_store %arg5[%c0_19, %c0_20, %c0_21], %22 {strides = array<i32>} : memref<1x16x32xbf16, #tpu.memory_space<vmem>>, vector<1x16x32xbf16>,
    } else {
    }
    return
  }
  func.func @transform_0(%arg0: i32, %arg1: i32) -> (i32, i32) {
    %c0_i32 = arith.constant 0 : i32
    return %arg0, %arg1 : i32, i32
  }
  func.func @transform_1(%arg0: i32, %arg1: i32) -> (i32, i32, i32) {
    %c0_i32 = arith.constant 0 : i32
    %c0_i32_0 = arith.constant 0 : i32
    %c0_i32_1 = arith.constant 0 : i32
    return %c0_i32, %arg1, %c0_i32_0 : i32, i32, i32
  }
  func.func @transform_2(%arg0: i32, %arg1: i32) -> (i32, i32, i32) {
    %c0_i32 = arith.constant 0 : i32
    %c0_i32_0 = arith.constant 0 : i32
    %c0_i32_1 = arith.constant 0 : i32
    %c0_i32_2 = arith.constant 0 : i32
    return %c0_i32, %c0_i32_0, %c0_i32_1 : i32, i32, i32
  }
  func.func @transform_3(%arg0: i32, %arg1: i32) -> (i32, i32, i32) {
    %c0_i32 = arith.constant 0 : i32
    %c0_i32_0 = arith.constant 0 : i32
    %c0_i32_1 = arith.constant 0 : i32
    return %c0_i32, %arg0, %c0_i32_0 : i32, i32, i32
  }
}

module attributes {stable_mosaic.version = 11 : i64} {
  func.func @_grouped_linear_kernel(%arg0: i32, %arg1: i32, %arg2: memref<16x32xf32, #tpu.memory_space<vmem>>, %arg3: memref<2x32x32xf32, #tpu.memory_space<vmem>>, %arg4: memref<2x1x32xf32, #tpu.memory_space<vmem>>, %arg5: memref<2x16x32xbf16, #tpu.memory_space<vmem>>, %arg6: memref<2x16x32xf32, #tpu.memory_space<vmem>>) attributes {dimension_semantics = [#tpu.dimension_semantics<parallel>, #tpu.dimension_semantics<arbitrary>], iteration_bounds = array<i64: 1, 1>, scalar_prefetch = 0 : i64, scratch_operands = 1 : i64, tpu.core_type = #tpu.core_type<tc>, window_params = [{transform_indices = @transform_0, window_bounds = array<i64: 16, 32>}, {transform_indices = @transform_1, window_bounds = array<i64: 2, 32, 32>}, {pipeline_mode = #tpu.pipeline_mode<synchronous>, transform_indices = @transform_2, window_bounds = array<i64: 2, 1, 32>}, {transform_indices = @transform_3, window_bounds = array<i64: 2, 16, 32>}]} {
    %c0_i32 = arith.constant 0 : i32
    %0 = arith.cmpi eq, %arg1, %c0_i32 : i32
    %1 = arith.extui %0 : i1 to i32
    %c0_i32_0 = arith.constant 0 : i32
    %2 = arith.cmpi ne, %1, %c0_i32_0 : i32
    scf.if %2 {
      %cst_22 = arith.constant 0.000000e+00 : f32
      %28 = vector.broadcast %cst_22 : f32 to vector<2x16x32xf32>
      %c0_23 = arith.constant 0 : index
      %c0_24 = arith.constant 0 : index
      %c0_25 = arith.constant 0 : index
      %29 = vector.load %arg6[%c0_23, %c0_24, %c0_25] : memref<2x16x32xf32, #tpu.memory_space<vmem>>, vector<2x16x32xf32>
      tpu.vector_store %arg6[%c0_23, %c0_24, %c0_25], %28 {strides = array<i32>} : memref<2x16x32xf32, #tpu.memory_space<vmem>>, vector<2x16x32xf32>,
    } else {
    }
    %c0 = arith.constant 0 : index
    %c0_1 = arith.constant 0 : index
    %3 = vector.load %arg2[%c0, %c0_1] : memref<16x32xf32, #tpu.memory_space<vmem>>, vector<16x32xf32>
    %4 = arith.truncf %3 : vector<16x32xf32> to vector<16x32xbf16>
    %c0_2 = arith.constant 0 : index
    %c0_3 = arith.constant 0 : index
    %c0_4 = arith.constant 0 : index
    %5 = vector.load %arg6[%c0_2, %c0_3, %c0_4] : memref<2x16x32xf32, #tpu.memory_space<vmem>>, vector<1x16x32xf32>
    %6 = vector.shape_cast %5 : vector<1x16x32xf32> to vector<16x32xf32>
    %c0_5 = arith.constant 0 : index
    %c0_6 = arith.constant 0 : index
    %c0_7 = arith.constant 0 : index
    %7 = vector.load %arg3[%c0_5, %c0_6, %c0_7] : memref<2x32x32xf32, #tpu.memory_space<vmem>>, vector<1x32x32xf32>
    %8 = vector.shape_cast %7 : vector<1x32x32xf32> to vector<32x32xf32>
    %9 = arith.truncf %8 : vector<32x32xf32> to vector<32x32xbf16>
    %cst = arith.constant dense<0.000000e+00> : vector<16x32xf32>
    %10 = tpu.matmul %4, %9, %cst {dimension_numbers = #tpu.dot_dimension_numbers<[1], [0], [0], [1], [0, 0, 1, 1], [], []>} : vector<16x32xbf16>, vector<32x32xbf16>, vector<16x32xf32> -> vector<16x32xf32>
    %11 = arith.addf %6, %10 : vector<16x32xf32>
    %c0_8 = arith.constant 0 : index
    %c0_9 = arith.constant 0 : index
    %c0_10 = arith.constant 0 : index
    %12 = vector.load %arg6[%c0_8, %c0_9, %c0_10] : memref<2x16x32xf32, #tpu.memory_space<vmem>>, vector<1x16x32xf32>
    %13 = vector.shape_cast %12 : vector<1x16x32xf32> to vector<16x32xf32>
    %14 = vector.shape_cast %11 : vector<16x32xf32> to vector<1x16x32xf32>
    tpu.vector_store %arg6[%c0_8, %c0_9, %c0_10], %14 {strides = array<i32>} : memref<2x16x32xf32, #tpu.memory_space<vmem>>, vector<1x16x32xf32>,
    %c1 = arith.constant 1 : index
    %c0_11 = arith.constant 0 : index
    %c0_12 = arith.constant 0 : index
    %15 = vector.load %arg6[%c1, %c0_11, %c0_12] : memref<2x16x32xf32, #tpu.memory_space<vmem>>, vector<1x16x32xf32>
    %16 = vector.shape_cast %15 : vector<1x16x32xf32> to vector<16x32xf32>
    %c1_13 = arith.constant 1 : index
    %c0_14 = arith.constant 0 : index
    %c0_15 = arith.constant 0 : index
    %17 = vector.load %arg3[%c1_13, %c0_14, %c0_15] : memref<2x32x32xf32, #tpu.memory_space<vmem>>, vector<1x32x32xf32>
    %18 = vector.shape_cast %17 : vector<1x32x32xf32> to vector<32x32xf32>
    %19 = arith.truncf %18 : vector<32x32xf32> to vector<32x32xbf16>
    %cst_16 = arith.constant dense<0.000000e+00> : vector<16x32xf32>
    %20 = tpu.matmul %4, %19, %cst_16 {dimension_numbers = #tpu.dot_dimension_numbers<[1], [0], [0], [1], [0, 0, 1, 1], [], []>} : vector<16x32xbf16>, vector<32x32xbf16>, vector<16x32xf32> -> vector<16x32xf32>
    %21 = arith.addf %16, %20 : vector<16x32xf32>
    %c1_17 = arith.constant 1 : index
    %c0_18 = arith.constant 0 : index
    %c0_19 = arith.constant 0 : index
    %22 = vector.load %arg6[%c1_17, %c0_18, %c0_19] : memref<2x16x32xf32, #tpu.memory_space<vmem>>, vector<1x16x32xf32>
    %23 = vector.shape_cast %22 : vector<1x16x32xf32> to vector<16x32xf32>
    %24 = vector.shape_cast %21 : vector<16x32xf32> to vector<1x16x32xf32>
    tpu.vector_store %arg6[%c1_17, %c0_18, %c0_19], %24 {strides = array<i32>} : memref<2x16x32xf32, #tpu.memory_space<vmem>>, vector<1x16x32xf32>,
    %c0_i32_20 = arith.constant 0 : i32
    %25 = arith.cmpi eq, %arg1, %c0_i32_20 : i32
    %26 = arith.extui %25 : i1 to i32
    %c0_i32_21 = arith.constant 0 : i32
    %27 = arith.cmpi ne, %26, %c0_i32_21 : i32
    scf.if %27 {
      %c0_22 = arith.constant 0 : index
      %c0_23 = arith.constant 0 : index
      %c0_24 = arith.constant 0 : index
      %28 = vector.load %arg6[%c0_22, %c0_23, %c0_24] : memref<2x16x32xf32, #tpu.memory_space<vmem>>, vector<2x16x32xf32>
      %c0_25 = arith.constant 0 : index
      %c0_26 = arith.constant 0 : index
      %c0_27 = arith.constant 0 : index
      %29 = vector.load %arg4[%c0_25, %c0_26, %c0_27] : memref<2x1x32xf32, #tpu.memory_space<vmem>>, vector<2x1x32xf32>
      %30 = vector.broadcast %29 : vector<2x1x32xf32> to vector<2x16x32xf32>
      %31 = arith.addf %28, %30 : vector<2x16x32xf32>
      %32 = arith.truncf %31 : vector<2x16x32xf32> to vector<2x16x32xbf16>
      %c0_28 = arith.constant 0 : index
      %c0_29 = arith.constant 0 : index
      %c0_30 = arith.constant 0 : index
      %33 = vector.load %arg5[%c0_28, %c0_29, %c0_30] : memref<2x16x32xbf16, #tpu.memory_space<vmem>>, vector<2x16x32xbf16>
      tpu.vector_store %arg5[%c0_28, %c0_29, %c0_30], %32 {strides = array<i32>} : memref<2x16x32xbf16, #tpu.memory_space<vmem>>, vector<2x16x32xbf16>,
    } else {
    }
    return
  }
  func.func @transform_0(%arg0: i32, %arg1: i32) -> (i32, i32) {
    %c0_i32 = arith.constant 0 : i32
    return %arg0, %arg1 : i32, i32
  }
  func.func @transform_1(%arg0: i32, %arg1: i32) -> (i32, i32, i32) {
    %c0_i32 = arith.constant 0 : i32
    %c0_i32_0 = arith.constant 0 : i32
    %c0_i32_1 = arith.constant 0 : i32
    return %c0_i32, %arg1, %c0_i32_0 : i32, i32, i32
  }
  func.func @transform_2(%arg0: i32, %arg1: i32) -> (i32, i32, i32) {
    %c0_i32 = arith.constant 0 : i32
    %c0_i32_0 = arith.constant 0 : i32
    %c0_i32_1 = arith.constant 0 : i32
    %c0_i32_2 = arith.constant 0 : i32
    return %c0_i32, %c0_i32_0, %c0_i32_1 : i32, i32, i32
  }
  func.func @transform_3(%arg0: i32, %arg1: i32) -> (i32, i32, i32) {
    %c0_i32 = arith.constant 0 : i32
    %c0_i32_0 = arith.constant 0 : i32
    %c0_i32_1 = arith.constant 0 : i32
    return %c0_i32, %arg0, %c0_i32_0 : i32, i32, i32
  }
}

module attributes {stable_mosaic.version = 11 : i64} {
  func.func @_attn_fused_kernel(%arg0: i32, %arg1: i32, %arg2: i32, %arg3: memref<1x1x8x32xbf16, #tpu.memory_space<vmem>>, %arg4: memref<1x1x8x32xbf16, #tpu.memory_space<vmem>>, %arg5: memref<1x1x8x32xbf16, #tpu.memory_space<vmem>>, %arg6: memref<1x8x32xf32, #tpu.memory_space<vmem>>, %arg7: memref<32x32xf32, #tpu.memory_space<vmem>>, %arg8: memref<1x32xf32, #tpu.memory_space<vmem>>, %arg9: memref<1x32xf32, #tpu.memory_space<vmem>>, %arg10: memref<1x32xf32, #tpu.memory_space<vmem>>, %arg11: memref<1x8x32xf32, #tpu.memory_space<vmem>>, %arg12: memref<4x8x1xf32, #tpu.memory_space<vmem>>, %arg13: memref<4x8x1xf32, #tpu.memory_space<vmem>>, %arg14: memref<8x32xf32, #tpu.memory_space<vmem>>) attributes {dimension_semantics = [#tpu.dimension_semantics<parallel>, #tpu.dimension_semantics<parallel>, #tpu.dimension_semantics<arbitrary>], iteration_bounds = array<i64: 2, 1, 1>, scalar_prefetch = 0 : i64, scratch_operands = 3 : i64, tpu.core_type = #tpu.core_type<tc>, window_params = [{transform_indices = @transform_0, window_bounds = array<i64: 1, 1, 8, 32>}, {transform_indices = @transform_1, window_bounds = array<i64: 1, 1, 8, 32>}, {transform_indices = @transform_2, window_bounds = array<i64: 1, 1, 8, 32>}, {transform_indices = @transform_3, window_bounds = array<i64: 1, 8, 32>}, {pipeline_mode = #tpu.pipeline_mode<synchronous>, transform_indices = @transform_4, window_bounds = array<i64: 32, 32>}, {pipeline_mode = #tpu.pipeline_mode<synchronous>, transform_indices = @transform_5, window_bounds = array<i64: 1, 32>}, {pipeline_mode = #tpu.pipeline_mode<synchronous>, transform_indices = @transform_6, window_bounds = array<i64: 1, 32>}, {pipeline_mode = #tpu.pipeline_mode<synchronous>, transform_indices = @transform_7, window_bounds = array<i64: 1, 32>}, {transform_indices = @transform_8, window_bounds = array<i64: 1, 8, 32>}]} {
    %c0_i32 = arith.constant 0 : i32
    %0 = arith.cmpi eq, %arg2, %c0_i32 : i32
    %1 = arith.extui %0 : i1 to i32
    %c0_i32_0 = arith.constant 0 : i32
    %2 = arith.cmpi ne, %1, %c0_i32_0 : i32
    scf.if %2 {
      %cst_91 = arith.constant 0xFF800000 : f32
      %152 = vector.broadcast %cst_91 : f32 to vector<4x8x1xf32>
      %c0_92 = arith.constant 0 : index
      %c0_93 = arith.constant 0 : index
      %c0_94 = arith.constant 0 : index
      %153 = vector.load %arg12[%c0_92, %c0_93, %c0_94] : memref<4x8x1xf32, #tpu.memory_space<vmem>>, vector<4x8x1xf32>
      tpu.vector_store %arg12[%c0_92, %c0_93, %c0_94], %152 {strides = array<i32>} : memref<4x8x1xf32, #tpu.memory_space<vmem>>, vector<4x8x1xf32>,
      %cst_95 = arith.constant 0.000000e+00 : f32
      %154 = vector.broadcast %cst_95 : f32 to vector<4x8x1xf32>
      %c0_96 = arith.constant 0 : index
      %c0_97 = arith.constant 0 : index
      %c0_98 = arith.constant 0 : index
      %155 = vector.load %arg13[%c0_96, %c0_97, %c0_98] : memref<4x8x1xf32, #tpu.memory_space<vmem>>, vector<4x8x1xf32>
      tpu.vector_store %arg13[%c0_96, %c0_97, %c0_98], %154 {strides = array<i32>} : memref<4x8x1xf32, #tpu.memory_space<vmem>>, vector<4x8x1xf32>,
      %cst_99 = arith.constant 0.000000e+00 : f32
      %156 = vector.broadcast %cst_99 : f32 to vector<8x32xf32>
      %c0_100 = arith.constant 0 : index
      %c0_101 = arith.constant 0 : index
      %157 = vector.load %arg14[%c0_100, %c0_101] : memref<8x32xf32, #tpu.memory_space<vmem>>, vector<8x32xf32>
      tpu.vector_store %arg14[%c0_100, %c0_101], %156 {strides = array<i32>} : memref<8x32xf32, #tpu.memory_space<vmem>>, vector<8x32xf32>,
    } else {
    }
    %c0 = arith.constant 0 : index
    %c0_1 = arith.constant 0 : index
    %c0_2 = arith.constant 0 : index
    %c0_3 = arith.constant 0 : index
    %3 = vector.load %arg3[%c0, %c0_1, %c0_2, %c0_3] : memref<1x1x8x32xbf16, #tpu.memory_space<vmem>>, vector<1x1x8x32xbf16>
    %4 = vector.shape_cast %3 : vector<1x1x8x32xbf16> to vector<8x32xbf16>
    %c0_4 = arith.constant 0 : index
    %c0_5 = arith.constant 0 : index
    %c0_6 = arith.constant 0 : index
    %c0_7 = arith.constant 0 : index
    %5 = vector.load %arg4[%c0_4, %c0_5, %c0_6, %c0_7] : memref<1x1x8x32xbf16, #tpu.memory_space<vmem>>, vector<1x1x8x32xbf16>
    %6 = vector.shape_cast %5 : vector<1x1x8x32xbf16> to vector<8x32xbf16>
    %c0_8 = arith.constant 0 : index
    %c0_9 = arith.constant 0 : index
    %c0_10 = arith.constant 0 : index
    %c0_11 = arith.constant 0 : index
    %7 = vector.load %arg5[%c0_8, %c0_9, %c0_10, %c0_11] : memref<1x1x8x32xbf16, #tpu.memory_space<vmem>>, vector<1x1x8x32xbf16>
    %8 = vector.shape_cast %7 : vector<1x1x8x32xbf16> to vector<8x32xbf16>
    %9 = vector.extract_strided_slice %4 {offsets = [0, 0], sizes = [8, 8], strides = [1, 1]} : vector<8x32xbf16> to vector<8x8xbf16>
    %10 = vector.extract_strided_slice %6 {offsets = [0, 0], sizes = [8, 8], strides = [1, 1]} : vector<8x32xbf16> to vector<8x8xbf16>
    %cst = arith.constant dense<0.000000e+00> : vector<8x8xf32>
    %11 = tpu.matmul %9, %10, %cst {dimension_numbers = #tpu.dot_dimension_numbers<[1], [1], [0], [0], [0, 0, 1, 0], [], []>} : vector<8x8xbf16>, vector<8x8xbf16>, vector<8x8xf32> -> vector<8x8xf32>
    %cst_12 = arith.constant 0.353553385 : f32
    %12 = vector.broadcast %cst_12 : f32 to vector<8x8xf32>
    %13 = arith.mulf %11, %12 : vector<8x8xf32>
    %c0_13 = arith.constant 0 : index
    %c0_14 = arith.constant 0 : index
    %c0_15 = arith.constant 0 : index
    %14 = vector.load %arg12[%c0_13, %c0_14, %c0_15] : memref<4x8x1xf32, #tpu.memory_space<vmem>>, vector<1x8x1xf32>
    %15 = vector.shape_cast %14 : vector<1x8x1xf32> to vector<8x1xf32>
    %cst_16 = arith.constant dense<0xFF800000> : vector<8xf32>
    %16 = vector.multi_reduction <maximumf>, %13, %cst_16 [1] : vector<8x8xf32> to vector<8xf32>
    %17 = vector.shape_cast %16 : vector<8xf32> to vector<8x1xf32>
    %18 = arith.maximumf %15, %17 : vector<8x1xf32>
    %19 = arith.subf %15, %18 : vector<8x1xf32>
    %20 = math.exp %19 : vector<8x1xf32>
    %21 = vector.broadcast %18 : vector<8x1xf32> to vector<8x8xf32>
    %22 = arith.subf %13, %21 : vector<8x8xf32>
    %23 = math.exp %22 : vector<8x8xf32>
    %c0_17 = arith.constant 0 : index
    %c0_18 = arith.constant 0 : index
    %c0_19 = arith.constant 0 : index
    %24 = vector.load %arg13[%c0_17, %c0_18, %c0_19] : memref<4x8x1xf32, #tpu.memory_space<vmem>>, vector<1x8x1xf32>
    %25 = vector.shape_cast %24 : vector<1x8x1xf32> to vector<8x1xf32>
    %26 = arith.mulf %20, %25 : vector<8x1xf32>
    %cst_20 = arith.constant dense<0.000000e+00> : vector<8xf32>
    %27 = vector.multi_reduction <add>, %23, %cst_20 [1] : vector<8x8xf32> to vector<8xf32>
    %28 = vector.shape_cast %27 : vector<8xf32> to vector<8x1xf32>
    %29 = arith.addf %26, %28 : vector<8x1xf32>
    %c0_21 = arith.constant 0 : index
    %c0_22 = arith.constant 0 : index
    %c0_23 = arith.constant 0 : index
    %30 = vector.load %arg13[%c0_21, %c0_22, %c0_23] : memref<4x8x1xf32, #tpu.memory_space<vmem>>, vector<1x8x1xf32>
    %31 = vector.shape_cast %30 : vector<1x8x1xf32> to vector<8x1xf32>
    %32 = vector.shape_cast %29 : vector<8x1xf32> to vector<1x8x1xf32>
    tpu.vector_store %arg13[%c0_21, %c0_22, %c0_23], %32 {strides = array<i32>} : memref<4x8x1xf32, #tpu.memory_space<vmem>>, vector<1x8x1xf32>,
    %c0_24 = arith.constant 0 : index
    %c0_25 = arith.constant 0 : index
    %c0_26 = arith.constant 0 : index
    %33 = vector.load %arg12[%c0_24, %c0_25, %c0_26] : memref<4x8x1xf32, #tpu.memory_space<vmem>>, vector<1x8x1xf32>
    %34 = vector.shape_cast %33 : vector<1x8x1xf32> to vector<8x1xf32>
    %35 = vector.shape_cast %18 : vector<8x1xf32> to vector<1x8x1xf32>
    tpu.vector_store %arg12[%c0_24, %c0_25, %c0_26], %35 {strides = array<i32>} : memref<4x8x1xf32, #tpu.memory_space<vmem>>, vector<1x8x1xf32>,
    %36 = arith.truncf %23 : vector<8x8xf32> to vector<8x8xbf16>
    %37 = vector.extract_strided_slice %8 {offsets = [0, 0], sizes = [8, 8], strides = [1, 1]} : vector<8x32xbf16> to vector<8x8xbf16>
    %cst_27 = arith.constant dense<0.000000e+00> : vector<8x8xf32>
    %38 = tpu.matmul %36, %37, %cst_27 {dimension_numbers = #tpu.dot_dimension_numbers<[1], [0], [0], [1], [0, 0, 1, 1], [], []>} : vector<8x8xbf16>, vector<8x8xbf16>, vector<8x8xf32> -> vector<8x8xf32>
    %c0_28 = arith.constant 0 : index
    %c0_29 = arith.constant 0 : index
    %39 = vector.load %arg14[%c0_28, %c0_29] : memref<8x32xf32, #tpu.memory_space<vmem>>, vector<8x8xf32>
    %40 = vector.broadcast %20 : vector<8x1xf32> to vector<8x8xf32>
    %41 = arith.mulf %40, %39 : vector<8x8xf32>
    %42 = arith.addf %41, %38 : vector<8x8xf32>
    %c0_30 = arith.constant 0 : index
    %c0_31 = arith.constant 0 : index
    %43 = vector.load %arg14[%c0_30, %c0_31] : memref<8x32xf32, #tpu.memory_space<vmem>>, vector<8x8xf32>
    tpu.vector_store %arg14[%c0_30, %c0_31], %42 {strides = array<i32>} : memref<8x32xf32, #tpu.memory_space<vmem>>, vector<8x8xf32>,
    %44 = vector.extract_strided_slice %4 {offsets = [0, 8], sizes = [8, 8], strides = [1, 1]} : vector<8x32xbf16> to vector<8x8xbf16>
    %45 = vector.extract_strided_slice %6 {offsets = [0, 8], sizes = [8, 8], strides = [1, 1]} : vector<8x32xbf16> to vector<8x8xbf16>
    %cst_32 = arith.constant dense<0.000000e+00> : vector<8x8xf32>
    %46 = tpu.matmul %44, %45, %cst_32 {dimension_numbers = #tpu.dot_dimension_numbers<[1], [1], [0], [0], [0, 0, 1, 0], [], []>} : vector<8x8xbf16>, vector<8x8xbf16>, vector<8x8xf32> -> vector<8x8xf32>
    %cst_33 = arith.constant 0.353553385 : f32
    %47 = vector.broadcast %cst_33 : f32 to vector<8x8xf32>
    %48 = arith.mulf %46, %47 : vector<8x8xf32>
    %c1 = arith.constant 1 : index
    %c0_34 = arith.constant 0 : index
    %c0_35 = arith.constant 0 : index
    %49 = vector.load %arg12[%c1, %c0_34, %c0_35] : memref<4x8x1xf32, #tpu.memory_space<vmem>>, vector<1x8x1xf32>
    %50 = vector.shape_cast %49 : vector<1x8x1xf32> to vector<8x1xf32>
    %cst_36 = arith.constant dense<0xFF800000> : vector<8xf32>
    %51 = vector.multi_reduction <maximumf>, %48, %cst_36 [1] : vector<8x8xf32> to vector<8xf32>
    %52 = vector.shape_cast %51 : vector<8xf32> to vector<8x1xf32>
    %53 = arith.maximumf %50, %52 : vector<8x1xf32>
    %54 = arith.subf %50, %53 : vector<8x1xf32>
    %55 = math.exp %54 : vector<8x1xf32>
    %56 = vector.broadcast %53 : vector<8x1xf32> to vector<8x8xf32>
    %57 = arith.subf %48, %56 : vector<8x8xf32>
    %58 = math.exp %57 : vector<8x8xf32>
    %c1_37 = arith.constant 1 : index
    %c0_38 = arith.constant 0 : index
    %c0_39 = arith.constant 0 : index
    %59 = vector.load %arg13[%c1_37, %c0_38, %c0_39] : memref<4x8x1xf32, #tpu.memory_space<vmem>>, vector<1x8x1xf32>
    %60 = vector.shape_cast %59 : vector<1x8x1xf32> to vector<8x1xf32>
    %61 = arith.mulf %55, %60 : vector<8x1xf32>
    %cst_40 = arith.constant dense<0.000000e+00> : vector<8xf32>
    %62 = vector.multi_reduction <add>, %58, %cst_40 [1] : vector<8x8xf32> to vector<8xf32>
    %63 = vector.shape_cast %62 : vector<8xf32> to vector<8x1xf32>
    %64 = arith.addf %61, %63 : vector<8x1xf32>
    %c1_41 = arith.constant 1 : index
    %c0_42 = arith.constant 0 : index
    %c0_43 = arith.constant 0 : index
    %65 = vector.load %arg13[%c1_41, %c0_42, %c0_43] : memref<4x8x1xf32, #tpu.memory_space<vmem>>, vector<1x8x1xf32>
    %66 = vector.shape_cast %65 : vector<1x8x1xf32> to vector<8x1xf32>
    %67 = vector.shape_cast %64 : vector<8x1xf32> to vector<1x8x1xf32>
    tpu.vector_store %arg13[%c1_41, %c0_42, %c0_43], %67 {strides = array<i32>} : memref<4x8x1xf32, #tpu.memory_space<vmem>>, vector<1x8x1xf32>,
    %c1_44 = arith.constant 1 : index
    %c0_45 = arith.constant 0 : index
    %c0_46 = arith.constant 0 : index
    %68 = vector.load %arg12[%c1_44, %c0_45, %c0_46] : memref<4x8x1xf32, #tpu.memory_space<vmem>>, vector<1x8x1xf32>
    %69 = vector.shape_cast %68 : vector<1x8x1xf32> to vector<8x1xf32>
    %70 = vector.shape_cast %53 : vector<8x1xf32> to vector<1x8x1xf32>
    tpu.vector_store %arg12[%c1_44, %c0_45, %c0_46], %70 {strides = array<i32>} : memref<4x8x1xf32, #tpu.memory_space<vmem>>, vector<1x8x1xf32>,
    %71 = arith.truncf %58 : vector<8x8xf32> to vector<8x8xbf16>
    %72 = vector.extract_strided_slice %8 {offsets = [0, 8], sizes = [8, 8], strides = [1, 1]} : vector<8x32xbf16> to vector<8x8xbf16>
    %cst_47 = arith.constant dense<0.000000e+00> : vector<8x8xf32>
    %73 = tpu.matmul %71, %72, %cst_47 {dimension_numbers = #tpu.dot_dimension_numbers<[1], [0], [0], [1], [0, 0, 1, 1], [], []>} : vector<8x8xbf16>, vector<8x8xbf16>, vector<8x8xf32> -> vector<8x8xf32>
    %c0_48 = arith.constant 0 : index
    %c8 = arith.constant 8 : index
    %74 = vector.load %arg14[%c0_48, %c8] : memref<8x32xf32, #tpu.memory_space<vmem>>, vector<8x8xf32>
    %75 = vector.broadcast %55 : vector<8x1xf32> to vector<8x8xf32>
    %76 = arith.mulf %75, %74 : vector<8x8xf32>
    %77 = arith.addf %76, %73 : vector<8x8xf32>
    %c0_49 = arith.constant 0 : index
    %c8_50 = arith.constant 8 : index
    %78 = vector.load %arg14[%c0_49, %c8_50] : memref<8x32xf32, #tpu.memory_space<vmem>>, vector<8x8xf32>
    tpu.vector_store %arg14[%c0_49, %c8_50], %77 {strides = array<i32>} : memref<8x32xf32, #tpu.memory_space<vmem>>, vector<8x8xf32>,
    %79 = vector.extract_strided_slice %4 {offsets = [0, 16], sizes = [8, 8], strides = [1, 1]} : vector<8x32xbf16> to vector<8x8xbf16>
    %80 = vector.extract_strided_slice %6 {offsets = [0, 16], sizes = [8, 8], strides = [1, 1]} : vector<8x32xbf16> to vector<8x8xbf16>
    %cst_51 = arith.constant dense<0.000000e+00> : vector<8x8xf32>
    %81 = tpu.matmul %79, %80, %cst_51 {dimension_numbers = #tpu.dot_dimension_numbers<[1], [1], [0], [0], [0, 0, 1, 0], [], []>} : vector<8x8xbf16>, vector<8x8xbf16>, vector<8x8xf32> -> vector<8x8xf32>
    %cst_52 = arith.constant 0.353553385 : f32
    %82 = vector.broadcast %cst_52 : f32 to vector<8x8xf32>
    %83 = arith.mulf %81, %82 : vector<8x8xf32>
    %c2 = arith.constant 2 : index
    %c0_53 = arith.constant 0 : index
    %c0_54 = arith.constant 0 : index
    %84 = vector.load %arg12[%c2, %c0_53, %c0_54] : memref<4x8x1xf32, #tpu.memory_space<vmem>>, vector<1x8x1xf32>
    %85 = vector.shape_cast %84 : vector<1x8x1xf32> to vector<8x1xf32>
    %cst_55 = arith.constant dense<0xFF800000> : vector<8xf32>
    %86 = vector.multi_reduction <maximumf>, %83, %cst_55 [1] : vector<8x8xf32> to vector<8xf32>
    %87 = vector.shape_cast %86 : vector<8xf32> to vector<8x1xf32>
    %88 = arith.maximumf %85, %87 : vector<8x1xf32>
    %89 = arith.subf %85, %88 : vector<8x1xf32>
    %90 = math.exp %89 : vector<8x1xf32>
    %91 = vector.broadcast %88 : vector<8x1xf32> to vector<8x8xf32>
    %92 = arith.subf %83, %91 : vector<8x8xf32>
    %93 = math.exp %92 : vector<8x8xf32>
    %c2_56 = arith.constant 2 : index
    %c0_57 = arith.constant 0 : index
    %c0_58 = arith.constant 0 : index
    %94 = vector.load %arg13[%c2_56, %c0_57, %c0_58] : memref<4x8x1xf32, #tpu.memory_space<vmem>>, vector<1x8x1xf32>
    %95 = vector.shape_cast %94 : vector<1x8x1xf32> to vector<8x1xf32>
    %96 = arith.mulf %90, %95 : vector<8x1xf32>
    %cst_59 = arith.constant dense<0.000000e+00> : vector<8xf32>
    %97 = vector.multi_reduction <add>, %93, %cst_59 [1] : vector<8x8xf32> to vector<8xf32>
    %98 = vector.shape_cast %97 : vector<8xf32> to vector<8x1xf32>
    %99 = arith.addf %96, %98 : vector<8x1xf32>
    %c2_60 = arith.constant 2 : index
    %c0_61 = arith.constant 0 : index
    %c0_62 = arith.constant 0 : index
    %100 = vector.load %arg13[%c2_60, %c0_61, %c0_62] : memref<4x8x1xf32, #tpu.memory_space<vmem>>, vector<1x8x1xf32>
    %101 = vector.shape_cast %100 : vector<1x8x1xf32> to vector<8x1xf32>
    %102 = vector.shape_cast %99 : vector<8x1xf32> to vector<1x8x1xf32>
    tpu.vector_store %arg13[%c2_60, %c0_61, %c0_62], %102 {strides = array<i32>} : memref<4x8x1xf32, #tpu.memory_space<vmem>>, vector<1x8x1xf32>,
    %c2_63 = arith.constant 2 : index
    %c0_64 = arith.constant 0 : index
    %c0_65 = arith.constant 0 : index
    %103 = vector.load %arg12[%c2_63, %c0_64, %c0_65] : memref<4x8x1xf32, #tpu.memory_space<vmem>>, vector<1x8x1xf32>
    %104 = vector.shape_cast %103 : vector<1x8x1xf32> to vector<8x1xf32>
    %105 = vector.shape_cast %88 : vector<8x1xf32> to vector<1x8x1xf32>
    tpu.vector_store %arg12[%c2_63, %c0_64, %c0_65], %105 {strides = array<i32>} : memref<4x8x1xf32, #tpu.memory_space<vmem>>, vector<1x8x1xf32>,
    %106 = arith.truncf %93 : vector<8x8xf32> to vector<8x8xbf16>
    %107 = vector.extract_strided_slice %8 {offsets = [0, 16], sizes = [8, 8], strides = [1, 1]} : vector<8x32xbf16> to vector<8x8xbf16>
    %cst_66 = arith.constant dense<0.000000e+00> : vector<8x8xf32>
    %108 = tpu.matmul %106, %107, %cst_66 {dimension_numbers = #tpu.dot_dimension_numbers<[1], [0], [0], [1], [0, 0, 1, 1], [], []>} : vector<8x8xbf16>, vector<8x8xbf16>, vector<8x8xf32> -> vector<8x8xf32>
    %c0_67 = arith.constant 0 : index
    %c16 = arith.constant 16 : index
    %109 = vector.load %arg14[%c0_67, %c16] : memref<8x32xf32, #tpu.memory_space<vmem>>, vector<8x8xf32>
    %110 = vector.broadcast %90 : vector<8x1xf32> to vector<8x8xf32>
    %111 = arith.mulf %110, %109 : vector<8x8xf32>
    %112 = arith.addf %111, %108 : vector<8x8xf32>
    %c0_68 = arith.constant 0 : index
    %c16_69 = arith.constant 16 : index
    %113 = vector.load %arg14[%c0_68, %c16_69] : memref<8x32xf32, #tpu.memory_space<vmem>>, vector<8x8xf32>
    tpu.vector_store %arg14[%c0_68, %c16_69], %112 {strides = array<i32>} : memref<8x32xf32, #tpu.memory_space<vmem>>, vector<8x8xf32>,
    %114 = vector.extract_strided_slice %4 {offsets = [0, 24], sizes = [8, 8], strides = [1, 1]} : vector<8x32xbf16> to vector<8x8xbf16>
    %115 = vector.extract_strided_slice %6 {offsets = [0, 24], sizes = [8, 8], strides = [1, 1]} : vector<8x32xbf16> to vector<8x8xbf16>
    %cst_70 = arith.constant dense<0.000000e+00> : vector<8x8xf32>
    %116 = tpu.matmul %114, %115, %cst_70 {dimension_numbers = #tpu.dot_dimension_numbers<[1], [1], [0], [0], [0, 0, 1, 0], [], []>} : vector<8x8xbf16>, vector<8x8xbf16>, vector<8x8xf32> -> vector<8x8xf32>
    %cst_71 = arith.constant 0.353553385 : f32
    %117 = vector.broadcast %cst_71 : f32 to vector<8x8xf32>
    %118 = arith.mulf %116, %117 : vector<8x8xf32>
    %c3 = arith.constant 3 : index
    %c0_72 = arith.constant 0 : index
    %c0_73 = arith.constant 0 : index
    %119 = vector.load %arg12[%c3, %c0_72, %c0_73] : memref<4x8x1xf32, #tpu.memory_space<vmem>>, vector<1x8x1xf32>
    %120 = vector.shape_cast %119 : vector<1x8x1xf32> to vector<8x1xf32>
    %cst_74 = arith.constant dense<0xFF800000> : vector<8xf32>
    %121 = vector.multi_reduction <maximumf>, %118, %cst_74 [1] : vector<8x8xf32> to vector<8xf32>
    %122 = vector.shape_cast %121 : vector<8xf32> to vector<8x1xf32>
    %123 = arith.maximumf %120, %122 : vector<8x1xf32>
    %124 = arith.subf %120, %123 : vector<8x1xf32>
    %125 = math.exp %124 : vector<8x1xf32>
    %126 = vector.broadcast %123 : vector<8x1xf32> to vector<8x8xf32>
    %127 = arith.subf %118, %126 : vector<8x8xf32>
    %128 = math.exp %127 : vector<8x8xf32>
    %c3_75 = arith.constant 3 : index
    %c0_76 = arith.constant 0 : index
    %c0_77 = arith.constant 0 : index
    %129 = vector.load %arg13[%c3_75, %c0_76, %c0_77] : memref<4x8x1xf32, #tpu.memory_space<vmem>>, vector<1x8x1xf32>
    %130 = vector.shape_cast %129 : vector<1x8x1xf32> to vector<8x1xf32>
    %131 = arith.mulf %125, %130 : vector<8x1xf32>
    %cst_78 = arith.constant dense<0.000000e+00> : vector<8xf32>
    %132 = vector.multi_reduction <add>, %128, %cst_78 [1] : vector<8x8xf32> to vector<8xf32>
    %133 = vector.shape_cast %132 : vector<8xf32> to vector<8x1xf32>
    %134 = arith.addf %131, %133 : vector<8x1xf32>
    %c3_79 = arith.constant 3 : index
    %c0_80 = arith.constant 0 : index
    %c0_81 = arith.constant 0 : index
    %135 = vector.load %arg13[%c3_79, %c0_80, %c0_81] : memref<4x8x1xf32, #tpu.memory_space<vmem>>, vector<1x8x1xf32>
    %136 = vector.shape_cast %135 : vector<1x8x1xf32> to vector<8x1xf32>
    %137 = vector.shape_cast %134 : vector<8x1xf32> to vector<1x8x1xf32>
    tpu.vector_store %arg13[%c3_79, %c0_80, %c0_81], %137 {strides = array<i32>} : memref<4x8x1xf32, #tpu.memory_space<vmem>>, vector<1x8x1xf32>,
    %c3_82 = arith.constant 3 : index
    %c0_83 = arith.constant 0 : index
    %c0_84 = arith.constant 0 : index
    %138 = vector.load %arg12[%c3_82, %c0_83, %c0_84] : memref<4x8x1xf32, #tpu.memory_space<vmem>>, vector<1x8x1xf32>
    %139 = vector.shape_cast %138 : vector<1x8x1xf32> to vector<8x1xf32>
    %140 = vector.shape_cast %123 : vector<8x1xf32> to vector<1x8x1xf32>
    tpu.vector_store %arg12[%c3_82, %c0_83, %c0_84], %140 {strides = array<i32>} : memref<4x8x1xf32, #tpu.memory_space<vmem>>, vector<1x8x1xf32>,
    %141 = arith.truncf %128 : vector<8x8xf32> to vector<8x8xbf16>
    %142 = vector.extract_strided_slice %8 {offsets = [0, 24], sizes = [8, 8], strides = [1, 1]} : vector<8x32xbf16> to vector<8x8xbf16>
    %cst_85 = arith.constant dense<0.000000e+00> : vector<8x8xf32>
    %143 = tpu.matmul %141, %142, %cst_85 {dimension_numbers = #tpu.dot_dimension_numbers<[1], [0], [0], [1], [0, 0, 1, 1], [], []>} : vector<8x8xbf16>, vector<8x8xbf16>, vector<8x8xf32> -> vector<8x8xf32>
    %c0_86 = arith.constant 0 : index
    %c24 = arith.constant 24 : index
    %144 = vector.load %arg14[%c0_86, %c24] : memref<8x32xf32, #tpu.memory_space<vmem>>, vector<8x8xf32>
    %145 = vector.broadcast %125 : vector<8x1xf32> to vector<8x8xf32>
    %146 = arith.mulf %145, %144 : vector<8x8xf32>
    %147 = arith.addf %146, %143 : vector<8x8xf32>
    %c0_87 = arith.constant 0 : index
    %c24_88 = arith.constant 24 : index
    %148 = vector.load %arg14[%c0_87, %c24_88] : memref<8x32xf32, #tpu.memory_space<vmem>>, vector<8x8xf32>
    tpu.vector_store %arg14[%c0_87, %c24_88], %147 {strides = array<i32>} : memref<8x32xf32, #tpu.memory_space<vmem>>, vector<8x8xf32>,
    %c0_i32_89 = arith.constant 0 : i32
    %149 = arith.cmpi eq, %arg2, %c0_i32_89 : i32
    %150 = arith.extui %149 : i1 to i32
    %c0_i32_90 = arith.constant 0 : i32
    %151 = arith.cmpi ne, %150, %c0_i32_90 : i32
    scf.if %151 {
      %c0_91 = arith.constant 0 : index
      %c0_92 = arith.constant 0 : index
      %152 = vector.load %arg14[%c0_91, %c0_92] : memref<8x32xf32, #tpu.memory_space<vmem>>, vector<8x8xf32>
      %c0_93 = arith.constant 0 : index
      %c0_94 = arith.constant 0 : index
      %c0_95 = arith.constant 0 : index
      %153 = vector.load %arg13[%c0_93, %c0_94, %c0_95] : memref<4x8x1xf32, #tpu.memory_space<vmem>>, vector<1x8x1xf32>
      %154 = vector.shape_cast %153 : vector<1x8x1xf32> to vector<8x1xf32>
      %155 = tpu.reciprocal %154 {approx = true} : vector<8x1xf32> -> vector<8x1xf32>
      %156 = vector.broadcast %155 : vector<8x1xf32> to vector<8x8xf32>
      %157 = arith.mulf %152, %156 : vector<8x8xf32>
      %c0_96 = arith.constant 0 : index
      %c0_97 = arith.constant 0 : index
      %158 = vector.load %arg14[%c0_96, %c0_97] : memref<8x32xf32, #tpu.memory_space<vmem>>, vector<8x8xf32>
      tpu.vector_store %arg14[%c0_96, %c0_97], %157 {strides = array<i32>} : memref<8x32xf32, #tpu.memory_space<vmem>>, vector<8x8xf32>,
      %c0_98 = arith.constant 0 : index
      %c8_99 = arith.constant 8 : index
      %159 = vector.load %arg14[%c0_98, %c8_99] : memref<8x32xf32, #tpu.memory_space<vmem>>, vector<8x8xf32>
      %c1_100 = arith.constant 1 : index
      %c0_101 = arith.constant 0 : index
      %c0_102 = arith.constant 0 : index
      %160 = vector.load %arg13[%c1_100, %c0_101, %c0_102] : memref<4x8x1xf32, #tpu.memory_space<vmem>>, vector<1x8x1xf32>
      %161 = vector.shape_cast %160 : vector<1x8x1xf32> to vector<8x1xf32>
      %162 = tpu.reciprocal %161 {approx = true} : vector<8x1xf32> -> vector<8x1xf32>
      %163 = vector.broadcast %162 : vector<8x1xf32> to vector<8x8xf32>
      %164 = arith.mulf %159, %163 : vector<8x8xf32>
      %c0_103 = arith.constant 0 : index
      %c8_104 = arith.constant 8 : index
      %165 = vector.load %arg14[%c0_103, %c8_104] : memref<8x32xf32, #tpu.memory_space<vmem>>, vector<8x8xf32>
      tpu.vector_store %arg14[%c0_103, %c8_104], %164 {strides = array<i32>} : memref<8x32xf32, #tpu.memory_space<vmem>>, vector<8x8xf32>,
      %c0_105 = arith.constant 0 : index
      %c16_106 = arith.constant 16 : index
      %166 = vector.load %arg14[%c0_105, %c16_106] : memref<8x32xf32, #tpu.memory_space<vmem>>, vector<8x8xf32>
      %c2_107 = arith.constant 2 : index
      %c0_108 = arith.constant 0 : index
      %c0_109 = arith.constant 0 : index
      %167 = vector.load %arg13[%c2_107, %c0_108, %c0_109] : memref<4x8x1xf32, #tpu.memory_space<vmem>>, vector<1x8x1xf32>
      %168 = vector.shape_cast %167 : vector<1x8x1xf32> to vector<8x1xf32>
      %169 = tpu.reciprocal %168 {approx = true} : vector<8x1xf32> -> vector<8x1xf32>
      %170 = vector.broadcast %169 : vector<8x1xf32> to vector<8x8xf32>
      %171 = arith.mulf %166, %170 : vector<8x8xf32>
      %c0_110 = arith.constant 0 : index
      %c16_111 = arith.constant 16 : index
      %172 = vector.load %arg14[%c0_110, %c16_111] : memref<8x32xf32, #tpu.memory_space<vmem>>, vector<8x8xf32>
      tpu.vector_store %arg14[%c0_110, %c16_111], %171 {strides = array<i32>} : memref<8x32xf32, #tpu.memory_space<vmem>>, vector<8x8xf32>,
      %c0_112 = arith.constant 0 : index
      %c24_113 = arith.constant 24 : index
      %173 = vector.load %arg14[%c0_112, %c24_113] : memref<8x32xf32, #tpu.memory_space<vmem>>, vector<8x8xf32>
      %c3_114 = arith.constant 3 : index
      %c0_115 = arith.constant 0 : index
      %c0_116 = arith.constant 0 : index
      %174 = vector.load %arg13[%c3_114, %c0_115, %c0_116] : memref<4x8x1xf32, #tpu.memory_space<vmem>>, vector<1x8x1xf32>
      %175 = vector.shape_cast %174 : vector<1x8x1xf32> to vector<8x1xf32>
      %176 = tpu.reciprocal %175 {approx = true} : vector<8x1xf32> -> vector<8x1xf32>
      %177 = vector.broadcast %176 : vector<8x1xf32> to vector<8x8xf32>
      %178 = arith.mulf %173, %177 : vector<8x8xf32>
      %c0_117 = arith.constant 0 : index
      %c24_118 = arith.constant 24 : index
      %179 = vector.load %arg14[%c0_117, %c24_118] : memref<8x32xf32, #tpu.memory_space<vmem>>, vector<8x8xf32>
      tpu.vector_store %arg14[%c0_117, %c24_118], %178 {strides = array<i32>} : memref<8x32xf32, #tpu.memory_space<vmem>>, vector<8x8xf32>,
      %c0_119 = arith.constant 0 : index
      %c0_120 = arith.constant 0 : index
      %180 = vector.load %arg14[%c0_119, %c0_120] : memref<8x32xf32, #tpu.memory_space<vmem>>, vector<8x32xf32>
      %181 = arith.truncf %180 : vector<8x32xf32> to vector<8x32xbf16>
      %c0_121 = arith.constant 0 : index
      %c0_122 = arith.constant 0 : index
      %182 = vector.load %arg7[%c0_121, %c0_122] : memref<32x32xf32, #tpu.memory_space<vmem>>, vector<32x32xf32>
      %183 = arith.truncf %182 : vector<32x32xf32> to vector<32x32xbf16>
      %cst_123 = arith.constant dense<0.000000e+00> : vector<8x32xf32>
      %184 = tpu.matmul %181, %183, %cst_123 {dimension_numbers = #tpu.dot_dimension_numbers<[1], [0], [0], [1], [0, 0, 1, 1], [], []>} : vector<8x32xbf16>, vector<32x32xbf16>, vector<8x32xf32> -> vector<8x32xf32>
      %c0_124 = arith.constant 0 : index
      %c0_125 = arith.constant 0 : index
      %185 = vector.load %arg8[%c0_124, %c0_125] : memref<1x32xf32, #tpu.memory_space<vmem>>, vector<1x32xf32>
      %186 = vector.broadcast %185 : vector<1x32xf32> to vector<8x32xf32>
      %187 = arith.addf %184, %186 : vector<8x32xf32>
      %c0_126 = arith.constant 0 : index
      %c0_127 = arith.constant 0 : index
      %c0_128 = arith.constant 0 : index
      %188 = vector.load %arg6[%c0_126, %c0_127, %c0_128] : memref<1x8x32xf32, #tpu.memory_space<vmem>>, vector<1x8x32xf32>
      %189 = vector.shape_cast %188 : vector<1x8x32xf32> to vector<8x32xf32>
      %190 = arith.addf %187, %189 : vector<8x32xf32>
      %cst_129 = arith.constant dense<0.000000e+00> : vector<8xf32>
      %191 = vector.multi_reduction <add>, %190, %cst_129 [1] : vector<8x32xf32> to vector<8xf32>
      %192 = vector.shape_cast %191 : vector<8xf32> to vector<8x1xf32>
      %cst_130 = arith.constant 3.200000e+01 : f32
      %193 = vector.broadcast %cst_130 : f32 to vector<8x1xf32>
      %194 = arith.divf %192, %193 : vector<8x1xf32>
      %195 = vector.broadcast %194 : vector<8x1xf32> to vector<8x32xf32>
      %196 = arith.subf %190, %195 : vector<8x32xf32>
      %197 = arith.mulf %196, %196 : vector<8x32xf32>
      %cst_131 = arith.constant dense<0.000000e+00> : vector<8xf32>
      %198 = vector.multi_reduction <add>, %197, %cst_131 [1] : vector<8x32xf32> to vector<8xf32>
      %199 = vector.shape_cast %198 : vector<8xf32> to vector<8x1xf32>
      %cst_132 = arith.constant 3.200000e+01 : f32
      %200 = vector.broadcast %cst_132 : f32 to vector<8x1xf32>
      %201 = arith.divf %199, %200 : vector<8x1xf32>
      %cst_133 = arith.constant 9.99999974E-6 : f32
      %202 = vector.broadcast %cst_133 : f32 to vector<8x1xf32>
      %203 = arith.addf %201, %202 : vector<8x1xf32>
      %204 = math.rsqrt %203 : vector<8x1xf32>
      %205 = vector.broadcast %204 : vector<8x1xf32> to vector<8x32xf32>
      %206 = arith.mulf %196, %205 : vector<8x32xf32>
      %c0_134 = arith.constant 0 : index
      %c0_135 = arith.constant 0 : index
      %207 = vector.load %arg9[%c0_134, %c0_135] : memref<1x32xf32, #tpu.memory_space<vmem>>, vector<1x32xf32>
      %208 = vector.broadcast %207 : vector<1x32xf32> to vector<8x32xf32>
      %209 = arith.mulf %206, %208 : vector<8x32xf32>
      %c0_136 = arith.constant 0 : index
      %c0_137 = arith.constant 0 : index
      %210 = vector.load %arg10[%c0_136, %c0_137] : memref<1x32xf32, #tpu.memory_space<vmem>>, vector<1x32xf32>
      %211 = vector.broadcast %210 : vector<1x32xf32> to vector<8x32xf32>
      %212 = arith.addf %209, %211 : vector<8x32xf32>
      %c0_138 = arith.constant 0 : index
      %c0_139 = arith.constant 0 : index
      %c0_140 = arith.constant 0 : index
      %213 = vector.load %arg11[%c0_138, %c0_139, %c0_140] : memref<1x8x32xf32, #tpu.memory_space<vmem>>, vector<1x8x32xf32>
      %214 = vector.shape_cast %213 : vector<1x8x32xf32> to vector<8x32xf32>
      %215 = vector.shape_cast %212 : vector<8x32xf32> to vector<1x8x32xf32>
      tpu.vector_store %arg11[%c0_138, %c0_139, %c0_140], %215 {strides = array<i32>} : memref<1x8x32xf32, #tpu.memory_space<vmem>>, vector<1x8x32xf32>,
    } else {
    }
    return
  }
  func.func @transform_0(%arg0: i32, %arg1: i32, %arg2: i32) -> (i32, i32, i32, i32) {
    %c0_i32 = arith.constant 0 : i32
    %c0_i32_0 = arith.constant 0 : i32
    %c0_i32_1 = arith.constant 0 : i32
    return %c0_i32, %arg0, %arg1, %c0_i32_0 : i32, i32, i32, i32
  }
  func.func @transform_1(%arg0: i32, %arg1: i32, %arg2: i32) -> (i32, i32, i32, i32) {
    %c0_i32 = arith.constant 0 : i32
    %c0_i32_0 = arith.constant 0 : i32
    %c0_i32_1 = arith.constant 0 : i32
    return %c0_i32, %arg0, %arg2, %c0_i32_0 : i32, i32, i32, i32
  }
  func.func @transform_2(%arg0: i32, %arg1: i32, %arg2: i32) -> (i32, i32, i32, i32) {
    %c1_i32 = arith.constant 1 : i32
    %c0_i32 = arith.constant 0 : i32
    %c0_i32_0 = arith.constant 0 : i32
    return %c1_i32, %arg0, %arg2, %c0_i32 : i32, i32, i32, i32
  }
  func.func @transform_3(%arg0: i32, %arg1: i32, %arg2: i32) -> (i32, i32, i32) {
    %c0_i32 = arith.constant 0 : i32
    %c0_i32_0 = arith.constant 0 : i32
    return %arg0, %arg1, %c0_i32 : i32, i32, i32
  }
  func.func @transform_4(%arg0: i32, %arg1: i32, %arg2: i32) -> (i32, i32) {
    %c0_i32 = arith.constant 0 : i32
    %c0_i32_0 = arith.constant 0 : i32
    %c0_i32_1 = arith.constant 0 : i32
    return %c0_i32, %c0_i32_0 : i32, i32
  }
  func.func @transform_5(%arg0: i32, %arg1: i32, %arg2: i32) -> (i32, i32) {
    %c0_i32 = arith.constant 0 : i32
    %c0_i32_0 = arith.constant 0 : i32
    %c0_i32_1 = arith.constant 0 : i32
    return %c0_i32, %c0_i32_0 : i32, i32
  }
  func.func @transform_6(%arg0: i32, %arg1: i32, %arg2: i32) -> (i32, i32) {
    %c0_i32 = arith.constant 0 : i32
    %c0_i32_0 = arith.constant 0 : i32
    %c0_i32_1 = arith.constant 0 : i32
    return %c0_i32, %c0_i32_0 : i32, i32
  }
  func.func @transform_7(%arg0: i32, %arg1: i32, %arg2: i32) -> (i32, i32) {
    %c0_i32 = arith.constant 0 : i32
    %c0_i32_0 = arith.constant 0 : i32
    %c0_i32_1 = arith.constant 0 : i32
    return %c0_i32, %c0_i32_0 : i32, i32
  }
  func.func @transform_8(%arg0: i32, %arg1: i32, %arg2: i32) -> (i32, i32, i32) {
    %c0_i32 = arith.constant 0 : i32
    %c0_i32_0 = arith.constant 0 : i32
    return %arg0, %arg1, %c0_i32 : i32, i32, i32
  }
}

module attributes {stable_mosaic.version = 11 : i64} {
  func.func @_ffn_add_ln_kernel(%arg0: i32, %arg1: i32, %arg2: memref<16x32xf32, #tpu.memory_space<vmem>>, %arg3: memref<32x64xf32, #tpu.memory_space<vmem>>, %arg4: memref<1x64xf32, #tpu.memory_space<vmem>>, %arg5: memref<64x32xf32, #tpu.memory_space<vmem>>, %arg6: memref<1x32xf32, #tpu.memory_space<vmem>>, %arg7: memref<1x32xf32, #tpu.memory_space<vmem>>, %arg8: memref<1x32xf32, #tpu.memory_space<vmem>>, %arg9: memref<16x32xf32, #tpu.memory_space<vmem>>, %arg10: memref<16x32xf32, #tpu.memory_space<vmem>>) attributes {dimension_semantics = [#tpu.dimension_semantics<parallel>, #tpu.dimension_semantics<arbitrary>], iteration_bounds = array<i64: 1, 1>, scalar_prefetch = 0 : i64, scratch_operands = 1 : i64, tpu.core_type = #tpu.core_type<tc>, window_params = [{transform_indices = @transform_0, window_bounds = array<i64: 16, 32>}, {transform_indices = @transform_1, window_bounds = array<i64: 32, 64>}, {transform_indices = @transform_2, window_bounds = array<i64: 1, 64>}, {transform_indices = @transform_3, window_bounds = array<i64: 64, 32>}, {pipeline_mode = #tpu.pipeline_mode<synchronous>, transform_indices = @transform_4, window_bounds = array<i64: 1, 32>}, {pipeline_mode = #tpu.pipeline_mode<synchronous>, transform_indices = @transform_5, window_bounds = array<i64: 1, 32>}, {pipeline_mode = #tpu.pipeline_mode<synchronous>, transform_indices = @transform_6, window_bounds = array<i64: 1, 32>}, {transform_indices = @transform_7, window_bounds = array<i64: 16, 32>}]} {
    %c0_i32 = arith.constant 0 : i32
    %0 = arith.cmpi eq, %arg1, %c0_i32 : i32
    %1 = arith.extui %0 : i1 to i32
    %c0_i32_0 = arith.constant 0 : i32
    %2 = arith.cmpi ne, %1, %c0_i32_0 : i32
    scf.if %2 {
      %cst_16 = arith.constant 0.000000e+00 : f32
      %23 = vector.broadcast %cst_16 : f32 to vector<16x32xf32>
      %c0_17 = arith.constant 0 : index
      %c0_18 = arith.constant 0 : index
      %24 = vector.load %arg10[%c0_17, %c0_18] : memref<16x32xf32, #tpu.memory_space<vmem>>, vector<16x32xf32>
      tpu.vector_store %arg10[%c0_17, %c0_18], %23 {strides = array<i32>} : memref<16x32xf32, #tpu.memory_space<vmem>>, vector<16x32xf32>,
    } else {
    }
    %c0 = arith.constant 0 : index
    %c0_1 = arith.constant 0 : index
    %3 = vector.load %arg2[%c0, %c0_1] : memref<16x32xf32, #tpu.memory_space<vmem>>, vector<16x32xf32>
    %4 = arith.truncf %3 : vector<16x32xf32> to vector<16x32xbf16>
    %c0_2 = arith.constant 0 : index
    %c0_3 = arith.constant 0 : index
    %5 = vector.load %arg3[%c0_2, %c0_3] : memref<32x64xf32, #tpu.memory_space<vmem>>, vector<32x64xf32>
    %6 = arith.truncf %5 : vector<32x64xf32> to vector<32x64xbf16>
    %cst = arith.constant dense<0.000000e+00> : vector<16x64xf32>
    %7 = tpu.matmul %4, %6, %cst {dimension_numbers = #tpu.dot_dimension_numbers<[1], [0], [0], [1], [0, 0, 1, 1], [], []>} : vector<16x32xbf16>, vector<32x64xbf16>, vector<16x64xf32> -> vector<16x64xf32>
    %c0_4 = arith.constant 0 : index
    %c0_5 = arith.constant 0 : index
    %8 = vector.load %arg4[%c0_4, %c0_5] : memref<1x64xf32, #tpu.memory_space<vmem>>, vector<1x64xf32>
    %9 = vector.broadcast %8 : vector<1x64xf32> to vector<16x64xf32>
    %10 = arith.addf %7, %9 : vector<16x64xf32>
    %cst_6 = arith.constant 0.000000e+00 : f32
    %11 = vector.broadcast %cst_6 : f32 to vector<16x64xf32>
    %12 = arith.maximumf %10, %11 : vector<16x64xf32>
    %c0_7 = arith.constant 0 : index
    %c0_8 = arith.constant 0 : index
    %13 = vector.load %arg10[%c0_7, %c0_8] : memref<16x32xf32, #tpu.memory_space<vmem>>, vector<16x32xf32>
    %14 = arith.truncf %12 : vector<16x64xf32> to vector<16x64xbf16>
    %c0_9 = arith.constant 0 : index
    %c0_10 = arith.constant 0 : index
    %15 = vector.load %arg5[%c0_9, %c0_10] : memref<64x32xf32, #tpu.memory_space<vmem>>, vector<64x32xf32>
    %16 = arith.truncf %15 : vector<64x32xf32> to vector<64x32xbf16>
    %cst_11 = arith.constant dense<0.000000e+00> : vector<16x32xf32>
    %17 = tpu.matmul %14, %16, %cst_11 {dimension_numbers = #tpu.dot_dimension_numbers<[1], [0], [0], [1], [0, 0, 1, 1], [], []>} : vector<16x64xbf16>, vector<64x32xbf16>, vector<16x32xf32> -> vector<16x32xf32>
    %18 = arith.addf %13, %17 : vector<16x32xf32>
    %c0_12 = arith.constant 0 : index
    %c0_13 = arith.constant 0 : index
    %19 = vector.load %arg10[%c0_12, %c0_13] : memref<16x32xf32, #tpu.memory_space<vmem>>, vector<16x32xf32>
    tpu.vector_store %arg10[%c0_12, %c0_13], %18 {strides = array<i32>} : memref<16x32xf32, #tpu.memory_space<vmem>>, vector<16x32xf32>,
    %c0_i32_14 = arith.constant 0 : i32
    %20 = arith.cmpi eq, %arg1, %c0_i32_14 : i32
    %21 = arith.extui %20 : i1 to i32
    %c0_i32_15 = arith.constant 0 : i32
    %22 = arith.cmpi ne, %21, %c0_i32_15 : i32
    scf.if %22 {
      %c0_16 = arith.constant 0 : index
      %c0_17 = arith.constant 0 : index
      %23 = vector.load %arg10[%c0_16, %c0_17] : memref<16x32xf32, #tpu.memory_space<vmem>>, vector<16x32xf32>
      %24 = arith.addf %3, %23 : vector<16x32xf32>
      %c0_18 = arith.constant 0 : index
      %c0_19 = arith.constant 0 : index
      %25 = vector.load %arg6[%c0_18, %c0_19] : memref<1x32xf32, #tpu.memory_space<vmem>>, vector<1x32xf32>
      %26 = vector.broadcast %25 : vector<1x32xf32> to vector<16x32xf32>
      %27 = arith.addf %24, %26 : vector<16x32xf32>
      %cst_20 = arith.constant dense<0.000000e+00> : vector<16xf32>
      %28 = vector.multi_reduction <add>, %27, %cst_20 [1] : vector<16x32xf32> to vector<16xf32>
      %29 = vector.shape_cast %28 : vector<16xf32> to vector<16x1xf32>
      %cst_21 = arith.constant 3.200000e+01 : f32
      %30 = vector.broadcast %cst_21 : f32 to vector<16x1xf32>
      %31 = arith.divf %29, %30 : vector<16x1xf32>
      %32 = vector.broadcast %31 : vector<16x1xf32> to vector<16x32xf32>
      %33 = arith.subf %27, %32 : vector<16x32xf32>
      %34 = arith.mulf %33, %33 : vector<16x32xf32>
      %cst_22 = arith.constant dense<0.000000e+00> : vector<16xf32>
      %35 = vector.multi_reduction <add>, %34, %cst_22 [1] : vector<16x32xf32> to vector<16xf32>
      %36 = vector.shape_cast %35 : vector<16xf32> to vector<16x1xf32>
      %cst_23 = arith.constant 3.200000e+01 : f32
      %37 = vector.broadcast %cst_23 : f32 to vector<16x1xf32>
      %38 = arith.divf %36, %37 : vector<16x1xf32>
      %cst_24 = arith.constant 9.99999974E-6 : f32
      %39 = vector.broadcast %cst_24 : f32 to vector<16x1xf32>
      %40 = arith.addf %38, %39 : vector<16x1xf32>
      %41 = math.rsqrt %40 : vector<16x1xf32>
      %42 = vector.broadcast %41 : vector<16x1xf32> to vector<16x32xf32>
      %43 = arith.mulf %33, %42 : vector<16x32xf32>
      %c0_25 = arith.constant 0 : index
      %c0_26 = arith.constant 0 : index
      %44 = vector.load %arg7[%c0_25, %c0_26] : memref<1x32xf32, #tpu.memory_space<vmem>>, vector<1x32xf32>
      %45 = vector.broadcast %44 : vector<1x32xf32> to vector<16x32xf32>
      %46 = arith.mulf %43, %45 : vector<16x32xf32>
      %c0_27 = arith.constant 0 : index
      %c0_28 = arith.constant 0 : index
      %47 = vector.load %arg8[%c0_27, %c0_28] : memref<1x32xf32, #tpu.memory_space<vmem>>, vector<1x32xf32>
      %48 = vector.broadcast %47 : vector<1x32xf32> to vector<16x32xf32>
      %49 = arith.addf %46, %48 : vector<16x32xf32>
      %c0_29 = arith.constant 0 : index
      %c0_30 = arith.constant 0 : index
      %50 = vector.load %arg9[%c0_29, %c0_30] : memref<16x32xf32, #tpu.memory_space<vmem>>, vector<16x32xf32>
      tpu.vector_store %arg9[%c0_29, %c0_30], %49 {strides = array<i32>} : memref<16x32xf32, #tpu.memory_space<vmem>>, vector<16x32xf32>,
    } else {
    }
    return
  }
  func.func @transform_0(%arg0: i32, %arg1: i32) -> (i32, i32) {
    %c0_i32 = arith.constant 0 : i32
    %c0_i32_0 = arith.constant 0 : i32
    return %arg0, %c0_i32 : i32, i32
  }
  func.func @transform_1(%arg0: i32, %arg1: i32) -> (i32, i32) {
    %c0_i32 = arith.constant 0 : i32
    %c0_i32_0 = arith.constant 0 : i32
    return %c0_i32, %arg1 : i32, i32
  }
  func.func @transform_2(%arg0: i32, %arg1: i32) -> (i32, i32) {
    %c0_i32 = arith.constant 0 : i32
    %c0_i32_0 = arith.constant 0 : i32
    return %c0_i32, %arg1 : i32, i32
  }
  func.func @transform_3(%arg0: i32, %arg1: i32) -> (i32, i32) {
    %c0_i32 = arith.constant 0 : i32
    %c0_i32_0 = arith.constant 0 : i32
    return %arg1, %c0_i32 : i32, i32
  }
  func.func @transform_4(%arg0: i32, %arg1: i32) -> (i32, i32) {
    %c0_i32 = arith.constant 0 : i32
    %c0_i32_0 = arith.constant 0 : i32
    %c0_i32_1 = arith.constant 0 : i32
    return %c0_i32, %c0_i32_0 : i32, i32
  }
  func.func @transform_5(%arg0: i32, %arg1: i32) -> (i32, i32) {
    %c0_i32 = arith.constant 0 : i32
    %c0_i32_0 = arith.constant 0 : i32
    %c0_i32_1 = arith.constant 0 : i32
    return %c0_i32, %c0_i32_0 : i32, i32
  }
  func.func @transform_6(%arg0: i32, %arg1: i32) -> (i32, i32) {
    %c0_i32 = arith.constant 0 : i32
    %c0_i32_0 = arith.constant 0 : i32
    %c0_i32_1 = arith.constant 0 : i32
    return %c0_i32, %c0_i32_0 : i32, i32
  }
  func.func @transform_7(%arg0: i32, %arg1: i32) -> (i32, i32) {
    %c0_i32 = arith.constant 0 : i32
    %c0_i32_0 = arith.constant 0 : i32
    return %arg0, %c0_i32 : i32, i32
  }
}

module attributes {stable_mosaic.version = 11 : i64} {
  func.func @_ln_kernel(%arg0: i32, %arg1: memref<16x32xf32, #tpu.memory_space<vmem>>, %arg2: memref<1x32xf32, #tpu.memory_space<vmem>>, %arg3: memref<1x32xf32, #tpu.memory_space<vmem>>, %arg4: memref<16x32xf32, #tpu.memory_space<vmem>>) attributes {dimension_semantics = [#tpu.dimension_semantics<parallel>], iteration_bounds = array<i64: 1>, scalar_prefetch = 0 : i64, scratch_operands = 0 : i64, tpu.core_type = #tpu.core_type<tc>, window_params = [{transform_indices = @transform_0, window_bounds = array<i64: 16, 32>}, {pipeline_mode = #tpu.pipeline_mode<synchronous>, transform_indices = @transform_1, window_bounds = array<i64: 1, 32>}, {pipeline_mode = #tpu.pipeline_mode<synchronous>, transform_indices = @transform_2, window_bounds = array<i64: 1, 32>}, {transform_indices = @transform_3, window_bounds = array<i64: 16, 32>}]} {
    %c0 = arith.constant 0 : index
    %c0_0 = arith.constant 0 : index
    %0 = vector.load %arg1[%c0, %c0_0] : memref<16x32xf32, #tpu.memory_space<vmem>>, vector<16x32xf32>
    %cst = arith.constant dense<0.000000e+00> : vector<16xf32>
    %1 = vector.multi_reduction <add>, %0, %cst [1] : vector<16x32xf32> to vector<16xf32>
    %2 = vector.shape_cast %1 : vector<16xf32> to vector<16x1xf32>
    %cst_1 = arith.constant 3.200000e+01 : f32
    %3 = vector.broadcast %cst_1 : f32 to vector<16x1xf32>
    %4 = arith.divf %2, %3 : vector<16x1xf32>
    %5 = vector.broadcast %4 : vector<16x1xf32> to vector<16x32xf32>
    %6 = arith.subf %0, %5 : vector<16x32xf32>
    %7 = arith.mulf %6, %6 : vector<16x32xf32>
    %cst_2 = arith.constant dense<0.000000e+00> : vector<16xf32>
    %8 = vector.multi_reduction <add>, %7, %cst_2 [1] : vector<16x32xf32> to vector<16xf32>
    %9 = vector.shape_cast %8 : vector<16xf32> to vector<16x1xf32>
    %cst_3 = arith.constant 3.200000e+01 : f32
    %10 = vector.broadcast %cst_3 : f32 to vector<16x1xf32>
    %11 = arith.divf %9, %10 : vector<16x1xf32>
    %cst_4 = arith.constant 9.99999974E-6 : f32
    %12 = vector.broadcast %cst_4 : f32 to vector<16x1xf32>
    %13 = arith.addf %11, %12 : vector<16x1xf32>
    %14 = math.rsqrt %13 : vector<16x1xf32>
    %15 = vector.broadcast %14 : vector<16x1xf32> to vector<16x32xf32>
    %16 = arith.mulf %6, %15 : vector<16x32xf32>
    %c0_5 = arith.constant 0 : index
    %c0_6 = arith.constant 0 : index
    %17 = vector.load %arg2[%c0_5, %c0_6] : memref<1x32xf32, #tpu.memory_space<vmem>>, vector<1x32xf32>
    %18 = vector.broadcast %17 : vector<1x32xf32> to vector<16x32xf32>
    %19 = arith.mulf %16, %18 : vector<16x32xf32>
    %c0_7 = arith.constant 0 : index
    %c0_8 = arith.constant 0 : index
    %20 = vector.load %arg3[%c0_7, %c0_8] : memref<1x32xf32, #tpu.memory_space<vmem>>, vector<1x32xf32>
    %21 = vector.broadcast %20 : vector<1x32xf32> to vector<16x32xf32>
    %22 = arith.addf %19, %21 : vector<16x32xf32>
    %c0_9 = arith.constant 0 : index
    %c0_10 = arith.constant 0 : index
    %23 = vector.load %arg4[%c0_9, %c0_10] : memref<16x32xf32, #tpu.memory_space<vmem>>, vector<16x32xf32>
    tpu.vector_store %arg4[%c0_9, %c0_10], %22 {strides = array<i32>} : memref<16x32xf32, #tpu.memory_space<vmem>>, vector<16x32xf32>,
    return
  }
  func.func @transform_0(%arg0: i32) -> (i32, i32) {
    %c0_i32 = arith.constant 0 : i32
    %c0_i32_0 = arith.constant 0 : i32
    return %arg0, %c0_i32 : i32, i32
  }
  func.func @transform_1(%arg0: i32) -> (i32, i32) {
    %c0_i32 = arith.constant 0 : i32
    %c0_i32_0 = arith.constant 0 : i32
    %c0_i32_1 = arith.constant 0 : i32
    return %c0_i32, %c0_i32_0 : i32, i32
  }
  func.func @transform_2(%arg0: i32) -> (i32, i32) {
    %c0_i32 = arith.constant 0 : i32
    %c0_i32_0 = arith.constant 0 : i32
    %c0_i32_1 = arith.constant 0 : i32
    return %c0_i32, %c0_i32_0 : i32, i32
  }
  func.func @transform_3(%arg0: i32) -> (i32, i32) {
    %c0_i32 = arith.constant 0 : i32
    %c0_i32_0 = arith.constant 0 : i32
    return %arg0, %c0_i32 : i32, i32
  }
}

</mosaic_0001>

<llo_original>
// kernel: decoder_forward.13
$region0: #{decoder_forward.13}
  #allocation0 [shape = 'u32[]', space=smem, size = 0x4, offset = 0x4, fixed_abs, tag = 'smem constant byte address 0x4 - core index']
  #allocation1 [shape = 'u32[72,128]{1,0:T(1,128)}', space=vmem, size = 0x9000, scoped, tag = 'internal scratch']
  #allocation2 [shape = 'f32[3,16,32]{2,1,0:T(8,128)}', space=vmem, size = 0x6000, scoped, tag = 'scratch operand']
  %s0 = inlined_call_operand.vmem [shape: f32[16,32], index: 0, kind: input, shape index: {}]
  %s1 = inlined_call_operand.hbm [shape: f32[3,32,32], index: 1, kind: input, shape index: {}]
  %s2 = inlined_call_operand.vmem [shape: f32[3,1,32], index: 2, kind: input, shape index: {}]
  %s3 = inlined_call_operand.vmem [shape: bf16[3,16,32], index: 3, kind: output, shape index: {}]
  %s4 = sld [smem:[#allocation0]]
  $region34: #{decoder_forward.13} parent=0
    _
  %s6 = ssub.s32 1, %s4
  %s7 = scalar_select 0, %s6, %s4
  $region1: #{decoder_forward.13} parent=0
    #allocation3 [shape = 'u8[49152]{0}', space=vmem, size = 0xc000, scoped, tag = 'input window, operand 1, single buffered']
    #allocation4 [shape = 's32[1]{0}', space=sflag, size = 0x4, scoped, tag = 'scoped memory for decoder_forward.13']
    %8 = vsyncpa [#allocation4], 0
    // Predicated region
    $region2: #{decoder_forward.13} parent=1 // pred_check
      _
    $region3: #{decoder_forward.13} parent=1 // pred_check_branch
      %10 = sbr.rel (0) target = $region5
    $region4: #{decoder_forward.13} parent=1 // pred_region
      _
    $region5: #{decoder_forward.13} parent=1 // pred_fallthru
      _
    // Predicated region
    $region6: #{decoder_forward.13} parent=1 // pred_check
      _
    $region7: #{decoder_forward.13} parent=1 // pred_check_branch
      %12 = sbr.rel (0) target = $region9
    $region8: #{decoder_forward.13} parent=1 // pred_region
      %14 = vsyncadd [#allocation4], 0
      %s15 = sshll.u32 %s1, 4
      %s16 = int_to_ptr.hbm [resolvable:$true] %s15
      %s17 = sshll.u32 [#allocation3], 4
      %s18 = int_to_ptr.vmem [resolvable:$true] %s17
      %23 = dma.hbm_to_vmem [thread:$0]  %s16, 1536, %s18, [#allocation4], 128, 128, 8
    $region9: #{decoder_forward.13} parent=1 // pred_fallthru
      _
    // Predicated region
    $region10: #{decoder_forward.13} parent=1 // pred_check
      _
    $region11: #{decoder_forward.13} parent=1 // pred_check_branch
      %25 = sbr.rel (0) target = $region13
    $region12: #{decoder_forward.13} parent=1 // pred_region
      _
    $region13: #{decoder_forward.13} parent=1 // pred_fallthru
      _
    // Predicated region
    $region14: #{decoder_forward.13} parent=1 // pred_check
      _
    $region15: #{decoder_forward.13} parent=1 // pred_check_branch
      %27 = sbr.rel (0) target = $region17
    $region16: #{decoder_forward.13} parent=1 // pred_region
      %29 = dma.done [#allocation4], 1536
    $region17: #{decoder_forward.13} parent=1 // pred_fallthru
      _
    %p31 = scmp.eq.s32.totalorder 0, 0
    // Predicated region
    $region18: #{decoder_forward.13} parent=1 // pred_check
      %p32 = pneg %p31
    $region19: #{decoder_forward.13} parent=1 // pred_check_branch
      %34 = sbr.rel (%p32) target = $region21
    $region20: #{decoder_forward.13} parent=1 // pred_region
      %vm35 = vcmask 261120
      %36 = vst.msk [vmem:[#allocation2] sm:$0xff] %vm35, 0.0
      %37 = vst.msk [vmem:[#allocation2 + $0x8] sm:$0xff] %vm35, 0.0
      %38 = vst.msk [vmem:[#allocation2 + $0x10] sm:$0xff] %vm35, 0.0
      %39 = vst.msk [vmem:[#allocation2 + $0x18] sm:$0xff] %vm35, 0.0
      %40 = vst.msk [vmem:[#allocation2 + $0x20] sm:$0xff] %vm35, 0.0
      %41 = vst.msk [vmem:[#allocation2 + $0x28] sm:$0xff] %vm35, 0.0
    $region21: #{decoder_forward.13} parent=1 // pred_fallthru
      _
    %v42 = vld [vmem:[%s0] sm:$0xff]
    %v43 = vld [vmem:[%s0 + $0x8] sm:$0xff]
    %v44 = vpack.c.bf16 %v43, %v42
    %v45 = vld [vmem:[#allocation2] sm:$0xff]
    %v46 = vld [vmem:[#allocation2 + $0x8] sm:$0xff]
    %v47 = vld [vmem:[#allocation3] sm:$0xff]
    %v48 = vld [vmem:[#allocation3 + $0x8] sm:$0xff]
    %v49 = vld [vmem:[#allocation3 + $0x10] sm:$0xff]
    %v50 = vld [vmem:[#allocation3 + $0x18] sm:$0xff]
    %v51 = vpack.c.bf16 %v48, %v47
    %v52 = vpack.c.bf16 %v50, %v49
    %vm53 = vcmask 261120
    %v55 = vsel %vm53, %v44, 0
    %57 = vmatpush.bf16.msra.mxu0 0
    %58 = vmatpush.bf16.msra.mxu0 0
    %59 = vmatpush.bf16.msra.mxu0 0
    %60 = vmatpush.bf16.msra.mxu0 0
    %61 = vmatpush.bf16.msra.mxu0 0
    %62 = vmatpush.bf16.msra.mxu0 0
    %63 = vmatpush.bf16.msra.mxu0 %v52
    %64 = vmatpush.bf16.msra.mxu0 %v51
    %65 = vmatmul.bf16.gmra.mxu0 %v55
    %v66 = vpop.f32.mrf.mxu0
    %v67 = vadd.f32 0.0, %v66
    %v68 = vpop.f32.mrf.mxu0
    %v69 = vadd.f32 0.0, %v68
    %70 = vdwg.mxu0
    %v71 = vadd.f32 %v45, %v67
    %v72 = vadd.f32 %v46, %v69
    %73 = vst.msk [vmem:[#allocation2] sm:$0xff] %vm53, %v71
    %74 = vst.msk [vmem:[#allocation2 + $0x8] sm:$0xff] %vm53, %v72
    %s75 = scalar_lea.vmem [#allocation2], 16
    %v76 = vld [vmem:[%s75] sm:$0xff]
    %v77 = vld [vmem:[%s75 + $0x8] sm:$0xff]
    %s78 = scalar_lea.vmem [#allocation3], 32
    %v79 = vld [vmem:[%s78] sm:$0xff]
    %v80 = vld [vmem:[%s78 + $0x8] sm:$0xff]
    %v81 = vld [vmem:[%s78 + $0x10] sm:$0xff]
    %v82 = vld [vmem:[%s78 + $0x18] sm:$0xff]
    %v83 = vpack.c.bf16 %v80, %v79
    %v84 = vpack.c.bf16 %v82, %v81
    %85 = vmatpush.bf16.msra.mxu0 0
    %86 = vmatpush.bf16.msra.mxu0 0
    %87 = vmatpush.bf16.msra.mxu0 0
    %88 = vmatpush.bf16.msra.mxu0 0
    %89 = vmatpush.bf16.msra.mxu0 0
    %90 = vmatpush.bf16.msra.mxu0 0
    %91 = vmatpush.bf16.msra.mxu0 %v84
    %92 = vmatpush.bf16.msra.mxu0 %v83
    %93 = vmatmul.bf16.gmra.mxu0 %v55
    %v94 = vpop.f32.mrf.mxu0
    %v95 = vadd.f32 0.0, %v94
    %v96 = vpop.f32.mrf.mxu0
    %v97 = vadd.f32 0.0, %v96
    %98 = vdwg.mxu0
    %v99 = vadd.f32 %v76, %v95
    %v100 = vadd.f32 %v77, %v97
    %101 = vst.msk [vmem:[%s75] sm:$0xff] %vm53, %v99
    %102 = vst.msk [vmem:[%s75 + $0x8] sm:$0xff] %vm53, %v100
    %s103 = scalar_lea.vmem [#allocation2], 32
    %v104 = vld [vmem:[%s103] sm:$0xff]
    %v105 = vld [vmem:[%s103 + $0x8] sm:$0xff]
    %s106 = scalar_lea.vmem [#allocation3], 64
    %v107 = vld [vmem:[%s106] sm:$0xff]
    %v108 = vld [vmem:[%s106 + $0x8] sm:$0xff]
    %v109 = vld [vmem:[%s106 + $0x10] sm:$0xff]
    %v110 = vld [vmem:[%s106 + $0x18] sm:$0xff]
    %v111 = vpack.c.bf16 %v108, %v107
    %v112 = vpack.c.bf16 %v110, %v109
    %113 = vmatpush.bf16.msra.mxu0 0
    %114 = vmatpush.bf16.msra.mxu0 0
    %115 = vmatpush.bf16.msra.mxu0 0
    %116 = vmatpush.bf16.msra.mxu0 0
    %117 = vmatpush.bf16.msra.mxu0 0
    %118 = vmatpush.bf16.msra.mxu0 0
    %119 = vmatpush.bf16.msra.mxu0 %v112
    %120 = vmatpush.bf16.msra.mxu0 %v111
    %121 = vmatmul.bf16.gmra.mxu0 %v55
    %v122 = vpop.f32.mrf.mxu0
    %v123 = vadd.f32 0.0, %v122
    %v124 = vpop.f32.mrf.mxu0
    %v125 = vadd.f32 0.0, %v124
    %126 = vdwg.mxu0
    %v127 = vadd.f32 %v104, %v123
    %v128 = vadd.f32 %v105, %v125
    %129 = vst.msk [vmem:[%s103] sm:$0xff] %vm53, %v127
    %130 = vst.msk [vmem:[%s103 + $0x8] sm:$0xff] %vm53, %v128
    // Predicated region
    $region22: #{decoder_forward.13} parent=1 // pred_check
      %p131 = pneg %p31
    $region23: #{decoder_forward.13} parent=1 // pred_check_branch
      %133 = sbr.rel (%p131) target = $region25
    $region24: #{decoder_forward.13} parent=1 // pred_region
      %v134 = vld [vmem:[#allocation2] sm:$0xff]
      %v135 = vld [vmem:[#allocation2 + $0x8] sm:$0xff]
      %v136 = vld [vmem:[#allocation2 + $0x10] sm:$0xff]
      %v137 = vld [vmem:[#allocation2 + $0x18] sm:$0xff]
      %v138 = vld [vmem:[#allocation2 + $0x20] sm:$0xff]
      %v139 = vld [vmem:[#allocation2 + $0x28] sm:$0xff]
      %v140 = vld [vmem:[%s2] sm:$0x1]
      %v141 = vld [vmem:[%s2 + $0x1] sm:$0x1]
      %v142 = vld [vmem:[%s2 + $0x2] sm:$0x1]
      %v146 = vperm.slane %v140, 0
      %v147 = vperm.slane %v141, 0
      %v148 = vperm.slane %v142, 0
      %v152 = vadd.f32 %v134, %v146
      %v153 = vadd.f32 %v135, %v146
      %v154 = vadd.f32 %v136, %v147
      %v155 = vadd.f32 %v137, %v147
      %v156 = vadd.f32 %v138, %v148
      %v157 = vadd.f32 %v139, %v148
      %v158 = vpack.c.bf16 %v152, %v152
      %v159 = vpack.c.bf16 %v153, %v153
      %v160 = vpack.c.bf16 %v154, %v154
      %v161 = vpack.c.bf16 %v155, %v155
      %v162 = vpack.c.bf16 %v156, %v156
      %v163 = vpack.c.bf16 %v157, %v157
      %vm164 = vcmask 257024
      %165 = vst.msk [vmem:[%s3] sm:$0xf] %vm164, %v158
      %166 = vst.msk [vmem:[%s3 + $0x4] sm:$0xf] %vm164, %v159
      %167 = vst.msk [vmem:[%s3 + $0x8] sm:$0xf] %vm164, %v160
      %168 = vst.msk [vmem:[%s3 + $0xc] sm:$0xf] %vm164, %v161
      %169 = vst.msk [vmem:[%s3 + $0x10] sm:$0xf] %vm164, %v162
      %170 = vst.msk [vmem:[%s3 + $0x14] sm:$0xf] %vm164, %v163
    $region25: #{decoder_forward.13} parent=1 // pred_fallthru
      _
    // Predicated region
    $region26: #{decoder_forward.13} parent=1 // pred_check
      _
    $region27: #{decoder_forward.13} parent=1 // pred_check_branch
      %172 = sbr.rel (0) target = $region29
    $region28: #{decoder_forward.13} parent=1 // pred_region
      _
    $region29: #{decoder_forward.13} parent=1 // pred_fallthru
      _
    // Predicated region
    $region30: #{decoder_forward.13} parent=1 // pred_check
      _
    $region31: #{decoder_forward.13} parent=1 // pred_check_branch
      %174 = sbr.rel (0) target = $region33
    $region32: #{decoder_forward.13} parent=1 // pred_region
      _
    $region33: #{decoder_forward.13} parent=1 // pred_fallthru
      _
    %175 = vsyncpa [#allocation4], 1

// kernel: decoder_forward.15
$region0: #{decoder_forward.15}
  #allocation0 [shape = 'u32[]', space=smem, size = 0x4, offset = 0x4, fixed_abs, tag = 'smem constant byte address 0x4 - core index']
  #allocation1 [shape = 'u32[72,128]{1,0:T(1,128)}', space=vmem, size = 0x9000, scoped, tag = 'internal scratch']
  #allocation2 [shape = 'f32[1,16,32]{2,1,0:T(8,128)}', space=vmem, size = 0x2000, scoped, tag = 'scratch operand']
  %s0 = inlined_call_operand.vmem [shape: f32[16,32], index: 0, kind: input, shape index: {}]
  %s1 = inlined_call_operand.hbm [shape: f32[1,32,32], index: 1, kind: input, shape index: {}]
  %s2 = inlined_call_operand.vmem [shape: f32[1,1,32], index: 2, kind: input, shape index: {}]
  %s3 = inlined_call_operand.vmem [shape: bf16[1,16,32], index: 3, kind: output, shape index: {}]
  %s4 = sld [smem:[#allocation0]]
  $region34: #{decoder_forward.15} parent=0
    _
  %s6 = ssub.s32 1, %s4
  %s7 = scalar_select 0, %s6, %s4
  $region1: #{decoder_forward.15} parent=0
    #allocation3 [shape = 'u8[16384]{0}', space=vmem, size = 0x4000, scoped, tag = 'input window, operand 1, single buffered']
    #allocation4 [shape = 's32[1]{0}', space=sflag, size = 0x4, scoped, tag = 'scoped memory for decoder_forward.15']
    %8 = vsyncpa [#allocation4], 0
    // Predicated region
    $region2: #{decoder_forward.15} parent=1 // pred_check
      _
    $region3: #{decoder_forward.15} parent=1 // pred_check_branch
      %10 = sbr.rel (0) target = $region5
    $region4: #{decoder_forward.15} parent=1 // pred_region
      _
    $region5: #{decoder_forward.15} parent=1 // pred_fallthru
      _
    // Predicated region
    $region6: #{decoder_forward.15} parent=1 // pred_check
      _
    $region7: #{decoder_forward.15} parent=1 // pred_check_branch
      %12 = sbr.rel (0) target = $region9
    $region8: #{decoder_forward.15} parent=1 // pred_region
      %14 = vsyncadd [#allocation4], 0
      %s15 = sshll.u32 %s1, 4
      %s16 = int_to_ptr.hbm [resolvable:$true] %s15
      %s17 = sshll.u32 [#allocation3], 4
      %s18 = int_to_ptr.vmem [resolvable:$true] %s17
      %23 = dma.hbm_to_vmem [thread:$0]  %s16, 512, %s18, [#allocation4], 128, 128, 8
    $region9: #{decoder_forward.15} parent=1 // pred_fallthru
      _
    // Predicated region
    $region10: #{decoder_forward.15} parent=1 // pred_check
      _
    $region11: #{decoder_forward.15} parent=1 // pred_check_branch
      %25 = sbr.rel (0) target = $region13
    $region12: #{decoder_forward.15} parent=1 // pred_region
      _
    $region13: #{decoder_forward.15} parent=1 // pred_fallthru
      _
    // Predicated region
    $region14: #{decoder_forward.15} parent=1 // pred_check
      _
    $region15: #{decoder_forward.15} parent=1 // pred_check_branch
      %27 = sbr.rel (0) target = $region17
    $region16: #{decoder_forward.15} parent=1 // pred_region
      %29 = dma.done [#allocation4], 512
    $region17: #{decoder_forward.15} parent=1 // pred_fallthru
      _
    %p31 = scmp.eq.s32.totalorder 0, 0
    // Predicated region
    $region18: #{decoder_forward.15} parent=1 // pred_check
      %p32 = pneg %p31
    $region19: #{decoder_forward.15} parent=1 // pred_check_branch
      %34 = sbr.rel (%p32) target = $region21
    $region20: #{decoder_forward.15} parent=1 // pred_region
      %vm35 = vcmask 261120
      %36 = vst.msk [vmem:[#allocation2] sm:$0xff] %vm35, 0.0
      %37 = vst.msk [vmem:[#allocation2 + $0x8] sm:$0xff] %vm35, 0.0
    $region21: #{decoder_forward.15} parent=1 // pred_fallthru
      _
    %v38 = vld [vmem:[%s0] sm:$0xff]
    %v39 = vld [vmem:[%s0 + $0x8] sm:$0xff]
    %v40 = vpack.c.bf16 %v39, %v38
    %v41 = vld [vmem:[#allocation2] sm:$0xff]
    %v42 = vld [vmem:[#allocation2 + $0x8] sm:$0xff]
    %v43 = vld [vmem:[#allocation3] sm:$0xff]
    %v44 = vld [vmem:[#allocation3 + $0x8] sm:$0xff]
    %v45 = vld [vmem:[#allocation3 + $0x10] sm:$0xff]
    %v46 = vld [vmem:[#allocation3 + $0x18] sm:$0xff]
    %v47 = vpack.c.bf16 %v44, %v43
    %v48 = vpack.c.bf16 %v46, %v45
    %vm49 = vcmask 261120
    %v51 = vsel %vm49, %v40, 0
    %53 = vmatpush.bf16.msra.mxu0 0
    %54 = vmatpush.bf16.msra.mxu0 0
    %55 = vmatpush.bf16.msra.mxu0 0
    %56 = vmatpush.bf16.msra.mxu0 0
    %57 = vmatpush.bf16.msra.mxu0 0
    %58 = vmatpush.bf16.msra.mxu0 0
    %59 = vmatpush.bf16.msra.mxu0 %v48
    %60 = vmatpush.bf16.msra.mxu0 %v47
    %61 = vmatmul.bf16.gmra.mxu0 %v51
    %v62 = vpop.f32.mrf.mxu0
    %v63 = vadd.f32 0.0, %v62
    %v64 = vpop.f32.mrf.mxu0
    %v65 = vadd.f32 0.0, %v64
    %66 = vdwg.mxu0
    %v67 = vadd.f32 %v41, %v63
    %v68 = vadd.f32 %v42, %v65
    %69 = vst.msk [vmem:[#allocation2] sm:$0xff] %vm49, %v67
    %70 = vst.msk [vmem:[#allocation2 + $0x8] sm:$0xff] %vm49, %v68
    // Predicated region
    $region22: #{decoder_forward.15} parent=1 // pred_check
      %p71 = pneg %p31
    $region23: #{decoder_forward.15} parent=1 // pred_check_branch
      %73 = sbr.rel (%p71) target = $region25
    $region24: #{decoder_forward.15} parent=1 // pred_region
      %v74 = vld [vmem:[#allocation2] sm:$0xff]
      %v75 = vld [vmem:[#allocation2 + $0x8] sm:$0xff]
      %v76 = vld [vmem:[%s2] sm:$0x1]
      %v78 = vperm.slane %v76, 0
      %v80 = vadd.f32 %v74, %v78
      %v81 = vadd.f32 %v75, %v78
      %v82 = vpack.c.bf16 %v80, %v80
      %v83 = vpack.c.bf16 %v81, %v81
      %vm84 = vcmask 257024
      %85 = vst.msk [vmem:[%s3] sm:$0xf] %vm84, %v82
      %86 = vst.msk [vmem:[%s3 + $0x4] sm:$0xf] %vm84, %v83
    $region25: #{decoder_forward.15} parent=1 // pred_fallthru
      _
    // Predicated region
    $region26: #{decoder_forward.15} parent=1 // pred_check
      _
    $region27: #{decoder_forward.15} parent=1 // pred_check_branch
      %88 = sbr.rel (0) target = $region29
    $region28: #{decoder_forward.15} parent=1 // pred_region
      _
    $region29: #{decoder_forward.15} parent=1 // pred_fallthru
      _
    // Predicated region
    $region30: #{decoder_forward.15} parent=1 // pred_check
      _
    $region31: #{decoder_forward.15} parent=1 // pred_check_branch
      %90 = sbr.rel (0) target = $region33
    $region32: #{decoder_forward.15} parent=1 // pred_region
      _
    $region33: #{decoder_forward.15} parent=1 // pred_fallthru
      _
    %91 = vsyncpa [#allocation4], 1

// kernel: decoder_forward.16
$region0: #{decoder_forward.16}
  #allocation0 [shape = 'u32[]', space=smem, size = 0x4, offset = 0x4, fixed_abs, tag = 'smem constant byte address 0x4 - core index']
  #allocation1 [shape = 'u32[72,128]{1,0:T(1,128)}', space=vmem, size = 0x9000, scoped, tag = 'internal scratch']
  #allocation2 [shape = 'f32[2,16,32]{2,1,0:T(8,128)}', space=vmem, size = 0x4000, scoped, tag = 'scratch operand']
  %s0 = inlined_call_operand.hbm [shape: f32[16,32], index: 0, kind: input, shape index: {}]
  %s1 = inlined_call_operand.hbm [shape: f32[2,32,32], index: 1, kind: input, shape index: {}]
  %s2 = inlined_call_operand.vmem [shape: f32[2,1,32], index: 2, kind: input, shape index: {}]
  %s3 = inlined_call_operand.vmem [shape: bf16[2,16,32], index: 3, kind: output, shape index: {}]
  %s4 = sld [smem:[#allocation0]]
  $region38: #{decoder_forward.16} parent=0
    _
  %s6 = ssub.s32 1, %s4
  %s7 = scalar_select 0, %s6, %s4
  $region1: #{decoder_forward.16} parent=0
    #allocation3 [shape = 'u8[8192]{0}', space=vmem, size = 0x2000, scoped, tag = 'input window, operand 0, single buffered']
    #allocation4 [shape = 's32[1]{0}', space=sflag, size = 0x4, scoped, tag = 'scoped memory for decoder_forward.16']
    #allocation5 [shape = 'u8[32768]{0}', space=vmem, size = 0x8000, scoped, tag = 'input window, operand 1, single buffered']
    #allocation6 [shape = 's32[1]{0}', space=sflag, size = 0x4, scoped, tag = 'scoped memory for decoder_forward.16']
    %8 = vsyncpa [#allocation4], 0
    %9 = vsyncpa [#allocation6], 0
    // Predicated region
    $region2: #{decoder_forward.16} parent=1 // pred_check
      _
    $region3: #{decoder_forward.16} parent=1 // pred_check_branch
      %11 = sbr.rel (0) target = $region5
    $region4: #{decoder_forward.16} parent=1 // pred_region
      %13 = vsyncadd [#allocation4], 0
      %s14 = sshll.u32 %s0, 4
      %s15 = int_to_ptr.hbm [resolvable:$true] %s14
      %s16 = sshll.u32 [#allocation3], 4
      %s17 = int_to_ptr.vmem [resolvable:$true] %s16
      %22 = dma.hbm_to_vmem [thread:$0]  %s15, 256, %s17, [#allocation4], 128, 128, 8
    $region5: #{decoder_forward.16} parent=1 // pred_fallthru
      _
    // Predicated region
    $region6: #{decoder_forward.16} parent=1 // pred_check
      _
    $region7: #{decoder_forward.16} parent=1 // pred_check_branch
      %24 = sbr.rel (0) target = $region9
    $region8: #{decoder_forward.16} parent=1 // pred_region
      %26 = vsyncadd [#allocation6], 0
      %s27 = sshll.u32 %s1, 4
      %s28 = int_to_ptr.hbm [resolvable:$true] %s27
      %s29 = sshll.u32 [#allocation5], 4
      %s30 = int_to_ptr.vmem [resolvable:$true] %s29
      %35 = dma.hbm_to_vmem [thread:$0]  %s28, 1024, %s30, [#allocation6], 128, 128, 8
    $region9: #{decoder_forward.16} parent=1 // pred_fallthru
      _
    // Predicated region
    $region10: #{decoder_forward.16} parent=1 // pred_check
      _
    $region11: #{decoder_forward.16} parent=1 // pred_check_branch
      %37 = sbr.rel (0) target = $region13
    $region12: #{decoder_forward.16} parent=1 // pred_region
      _
    $region13: #{decoder_forward.16} parent=1 // pred_fallthru
      _
    // Predicated region
    $region14: #{decoder_forward.16} parent=1 // pred_check
      _
    $region15: #{decoder_forward.16} parent=1 // pred_check_branch
      %39 = sbr.rel (0) target = $region17
    $region16: #{decoder_forward.16} parent=1 // pred_region
      %41 = dma.done [#allocation4], 256
    $region17: #{decoder_forward.16} parent=1 // pred_fallthru
      _
    // Predicated region
    $region18: #{decoder_forward.16} parent=1 // pred_check
      _
    $region19: #{decoder_forward.16} parent=1 // pred_check_branch
      %43 = sbr.rel (0) target = $region21
    $region20: #{decoder_forward.16} parent=1 // pred_region
      %45 = dma.done [#allocation6], 1024
    $region21: #{decoder_forward.16} parent=1 // pred_fallthru
      _
    %p47 = scmp.eq.s32.totalorder 0, 0
    // Predicated region
    $region22: #{decoder_forward.16} parent=1 // pred_check
      %p48 = pneg %p47
    $region23: #{decoder_forward.16} parent=1 // pred_check_branch
      %50 = sbr.rel (%p48) target = $region25
    $region24: #{decoder_forward.16} parent=1 // pred_region
      %vm51 = vcmask 261120
      %52 = vst.msk [vmem:[#allocation2] sm:$0xff] %vm51, 0.0
      %53 = vst.msk [vmem:[#allocation2 + $0x8] sm:$0xff] %vm51, 0.0
      %54 = vst.msk [vmem:[#allocation2 + $0x10] sm:$0xff] %vm51, 0.0
      %55 = vst.msk [vmem:[#allocation2 + $0x18] sm:$0xff] %vm51, 0.0
    $region25: #{decoder_forward.16} parent=1 // pred_fallthru
      _
    %v56 = vld [vmem:[#allocation3] sm:$0xff]
    %v57 = vld [vmem:[#allocation3 + $0x8] sm:$0xff]
    %v58 = vpack.c.bf16 %v57, %v56
    %v59 = vld [vmem:[#allocation2] sm:$0xff]
    %v60 = vld [vmem:[#allocation2 + $0x8] sm:$0xff]
    %v61 = vld [vmem:[#allocation5] sm:$0xff]
    %v62 = vld [vmem:[#allocation5 + $0x8] sm:$0xff]
    %v63 = vld [vmem:[#allocation5 + $0x10] sm:$0xff]
    %v64 = vld [vmem:[#allocation5 + $0x18] sm:$0xff]
    %v65 = vpack.c.bf16 %v62, %v61
    %v66 = vpack.c.bf16 %v64, %v63
    %vm67 = vcmask 261120
    %v69 = vsel %vm67, %v58, 0
    %71 = vmatpush.bf16.msra.mxu0 0
    %72 = vmatpush.bf16.msra.mxu0 0
    %73 = vmatpush.bf16.msra.mxu0 0
    %74 = vmatpush.bf16.msra.mxu0 0
    %75 = vmatpush.bf16.msra.mxu0 0
    %76 = vmatpush.bf16.msra.mxu0 0
    %77 = vmatpush.bf16.msra.mxu0 %v66
    %78 = vmatpush.bf16.msra.mxu0 %v65
    %79 = vmatmul.bf16.gmra.mxu0 %v69
    %v80 = vpop.f32.mrf.mxu0
    %v81 = vadd.f32 0.0, %v80
    %v82 = vpop.f32.mrf.mxu0
    %v83 = vadd.f32 0.0, %v82
    %84 = vdwg.mxu0
    %v85 = vadd.f32 %v59, %v81
    %v86 = vadd.f32 %v60, %v83
    %87 = vst.msk [vmem:[#allocation2] sm:$0xff] %vm67, %v85
    %88 = vst.msk [vmem:[#allocation2 + $0x8] sm:$0xff] %vm67, %v86
    %s89 = scalar_lea.vmem [#allocation2], 16
    %v90 = vld [vmem:[%s89] sm:$0xff]
    %v91 = vld [vmem:[%s89 + $0x8] sm:$0xff]
    %s92 = scalar_lea.vmem [#allocation5], 32
    %v93 = vld [vmem:[%s92] sm:$0xff]
    %v94 = vld [vmem:[%s92 + $0x8] sm:$0xff]
    %v95 = vld [vmem:[%s92 + $0x10] sm:$0xff]
    %v96 = vld [vmem:[%s92 + $0x18] sm:$0xff]
    %v97 = vpack.c.bf16 %v94, %v93
    %v98 = vpack.c.bf16 %v96, %v95
    %99 = vmatpush.bf16.msra.mxu0 0
    %100 = vmatpush.bf16.msra.mxu0 0
    %101 = vmatpush.bf16.msra.mxu0 0
    %102 = vmatpush.bf16.msra.mxu0 0
    %103 = vmatpush.bf16.msra.mxu0 0
    %104 = vmatpush.bf16.msra.mxu0 0
    %105 = vmatpush.bf16.msra.mxu0 %v98
    %106 = vmatpush.bf16.msra.mxu0 %v97
    %107 = vmatmul.bf16.gmra.mxu0 %v69
    %v108 = vpop.f32.mrf.mxu0
    %v109 = vadd.f32 0.0, %v108
    %v110 = vpop.f32.mrf.mxu0
    %v111 = vadd.f32 0.0, %v110
    %112 = vdwg.mxu0
    %v113 = vadd.f32 %v90, %v109
    %v114 = vadd.f32 %v91, %v111
    %115 = vst.msk [vmem:[%s89] sm:$0xff] %vm67, %v113
    %116 = vst.msk [vmem:[%s89 + $0x8] sm:$0xff] %vm67, %v114
    // Predicated region
    $region26: #{decoder_forward.16} parent=1 // pred_check
      %p117 = pneg %p47
    $region27: #{decoder_forward.16} parent=1 // pred_check_branch
      %119 = sbr.rel (%p117) target = $region29
    $region28: #{decoder_forward.16} parent=1 // pred_region
      %v120 = vld [vmem:[#allocation2] sm:$0xff]
      %v121 = vld [vmem:[#allocation2 + $0x8] sm:$0xff]
      %v122 = vld [vmem:[#allocation2 + $0x10] sm:$0xff]
      %v123 = vld [vmem:[#allocation2 + $0x18] sm:$0xff]
      %v124 = vld [vmem:[%s2] sm:$0x1]
      %v125 = vld [vmem:[%s2 + $0x1] sm:$0x1]
      %v128 = vperm.slane %v124, 0
      %v129 = vperm.slane %v125, 0
      %v132 = vadd.f32 %v120, %v128
      %v133 = vadd.f32 %v121, %v128
      %v134 = vadd.f32 %v122, %v129
      %v135 = vadd.f32 %v123, %v129
      %v136 = vpack.c.bf16 %v132, %v132
      %v137 = vpack.c.bf16 %v133, %v133
      %v138 = vpack.c.bf16 %v134, %v134
      %v139 = vpack.c.bf16 %v135, %v135
      %vm140 = vcmask 257024
      %141 = vst.msk [vmem:[%s3] sm:$0xf] %vm140, %v136
      %142 = vst.msk [vmem:[%s3 + $0x4] sm:$0xf] %vm140, %v137
      %143 = vst.msk [vmem:[%s3 + $0x8] sm:$0xf] %vm140, %v138
      %144 = vst.msk [vmem:[%s3 + $0xc] sm:$0xf] %vm140, %v139
    $region29: #{decoder_forward.16} parent=1 // pred_fallthru
      _
    // Predicated region
    $region30: #{decoder_forward.16} parent=1 // pred_check
      _
    $region31: #{decoder_forward.16} parent=1 // pred_check_branch
      %146 = sbr.rel (0) target = $region33
    $region32: #{decoder_forward.16} parent=1 // pred_region
      _
    $region33: #{decoder_forward.16} parent=1 // pred_fallthru
      _
    // Predicated region
    $region34: #{decoder_forward.16} parent=1 // pred_check
      _
    $region35: #{decoder_forward.16} parent=1 // pred_check_branch
      %148 = sbr.rel (0) target = $region37
    $region36: #{decoder_forward.16} parent=1 // pred_region
      _
    $region37: #{decoder_forward.16} parent=1 // pred_fallthru
      _
    %149 = vsyncpa [#allocation4], 1
    %150 = vsyncpa [#allocation6], 1

// kernel: decoder_forward.14
$region0: #{decoder_forward.14}
  #allocation0 [shape = 'u32[]', space=smem, size = 0x4, offset = 0x4, fixed_abs, tag = 'smem constant byte address 0x4 - core index']
  #allocation1 [shape = 'u32[72,128]{1,0:T(1,128)}', space=vmem, size = 0x9000, scoped, tag = 'internal scratch']
  #allocation2 [shape = 'f32[4,8,1]{2,1,0:T(8,128)}', space=vmem, size = 0x4000, scoped, tag = 'scratch operand']
  #allocation3 [shape = 'f32[4,8,1]{2,1,0:T(8,128)}', space=vmem, size = 0x4000, scoped, tag = 'scratch operand']
  #allocation4 [shape = 'f32[8,32]{1,0:T(8,128)}', space=vmem, size = 0x1000, scoped, tag = 'scratch operand']
  %s0 = inlined_call_operand.vmem [shape: bf16[3,2,8,32], index: 0, kind: input, shape index: {}, may-alias: {0,1,2}]
  %s1 = inlined_call_operand.vmem [shape: bf16[3,2,8,32], index: 1, kind: input, shape index: {}, may-alias: {0,1,2}]
  %s2 = inlined_call_operand.vmem [shape: bf16[3,2,8,32], index: 2, kind: input, shape index: {}, may-alias: {0,1,2}]
  %s3 = inlined_call_operand.vmem [shape: f32[2,8,32], index: 3, kind: input, shape index: {}]
  %s4 = inlined_call_operand.hbm [shape: f32[32,32], index: 4, kind: input, shape index: {}]
  %s5 = inlined_call_operand.vmem [shape: f32[1,32], index: 5, kind: input, shape index: {}]
  %s6 = inlined_call_operand.vmem [shape: f32[1,32], index: 6, kind: input, shape index: {}]
  %s7 = inlined_call_operand.vmem [shape: f32[1,32], index: 7, kind: input, shape index: {}]
  %s8 = inlined_call_operand.vmem [shape: f32[2,8,32], index: 8, kind: output, shape index: {}]
  %s9 = sld [smem:[#allocation0]]
  $region77: #{decoder_forward.14} parent=0
    _
  %s11 = ssub.s32 1, %s9
  %s12 = scalar_select 0, %s11, %s9
  $region1: #{decoder_forward.14} parent=0
    #allocation5 [shape = 'u8[16384]{0}', space=vmem, size = 0x4000, scoped, tag = 'input window, operand 4, single buffered']
    #allocation6 [shape = 's32[2]{0}', space=sflag, size = 0x8, scoped, tag = 'scoped memory for decoder_forward.14']
    %13 = vsyncpa [#allocation6], 0
    loop: start=0, step=1, limit=4
    $region2: #{decoder_forward.14} parent=1 // loop_pre_header
      _
    $region3: #{decoder_forward.14} parent=1 // loop_header
      %s15 = sphi 0, %s19
      %p16 = scmp.ge.s32.totalorder %s15, 4
      %s22 = sphi 0, %s41
      %s23 = sphi 0, %s37
      %s24 = sphi 0, %s33
      %s25 = sphi 0, %s22
      %s26 = sphi 0, %s23
      %s27 = sphi 0, %s24
      %s28 = sphi 0, %s25
      %s29 = sphi 0, %s26
      %s30 = sphi 0, %s27
      %s46 = sphi 0, %s48
      %s49 = sphi 0, %s46
      %s50 = sphi 0, %s49
      %s66 = sphi 0, %s50
      %s74 = sphi 0, %s76
      %s77 = sphi 0, %s74
      %s78 = sphi 0, %s77
      %s94 = sphi 0, %s78
      %s102 = sphi 0, %s104
      %s105 = sphi 0, %s102
      %s106 = sphi 0, %s105
      %s122 = sphi 0, %s106
      %s130 = sphi 0, %s132
      %s133 = sphi 0, %s130
      %s134 = sphi 0, %s133
      %s150 = sphi 0, %s134
      %s154 = sphi 0, %s154
      %s156 = sphi 0, %s154
      %s157 = sphi 0, %s156
      %s171 = sphi 0, %s157
      %s175 = sphi 0, %s175
      %s177 = sphi 0, %s175
      %s178 = sphi 0, %s177
      %s192 = sphi 0, %s178
      %s196 = sphi 0, %s196
      %s198 = sphi 0, %s196
      %s199 = sphi 0, %s198
      %s213 = sphi 0, %s199
      %s217 = sphi 0, %s217
      %s219 = sphi 0, %s217
      %s220 = sphi 0, %s219
      %s234 = sphi 0, %s220
      %s242 = sphi 0, %s244
      %s245 = sphi 0, %s242
      %s246 = sphi 0, %s245
      %s262 = sphi 0, %s246
    $region4: #{decoder_forward.14} parent=1 // loop_header_branch
      %18 = sbr.rel (%p16) target = $region8
    $region5: #{decoder_forward.14} parent=1 // loop_body
      %s20 = ssub.s32 %s15, 1
      %s21 = ssub.s32 %s15, 2
      %s31 = sadd.s32 1, %s24
      %p32 = scmp.ge.s32.totalorder %s31, 1
      %s33 = scalar_select %p32, 0, %s31
      %s34 = sadd.s32 1, %s23
      %s35 = scalar_select %p32, %s34, %s23
      %p36 = scmp.ge.s32.totalorder %s35, 1
      %s37 = scalar_select %p36, 0, %s35
      %s38 = sadd.s32 1, %s22
      %s39 = scalar_select %p36, %s38, %s22
      %p40 = scmp.ge.s32.totalorder %s39, 2
      %s41 = scalar_select %p40, 0, %s39
      %s42 = ssub.s32 %s22, %s41
      %s43 = ssub.s32 %s23, %s37
      %s44 = sor.u32 %s42, %s43
      %p45 = scmp.eq.s32.totalorder %s44, 0
      %s47 = sadd.s32 %s46, 1
      %s48 = scalar_select %p45, %s46, %s47
      %p51 = pneg %p45
      %p52 = scmp.eq.s32.totalorder %s15, 1
      %p53 = por %p51, %p52
      %p54 = scmp.ne.s32.totalorder %s46, %s49
      %p55 = scmp.eq.s32.totalorder %s15, 0
      %p56 = por %p54, %p55
      %p57 = scmp.ne.s32.totalorder %s46, %s49
      %p58 = scmp.eq.s32.totalorder %s20, 1
      %p59 = por %p57, %p58
      %p60 = scmp.ne.s32.totalorder %s49, %s50
      %p61 = scmp.eq.s32.totalorder %s20, 0
      %p62 = por %p60, %p61
      %p63 = scmp.ne.s32.totalorder %s49, %s50
      %p64 = scmp.eq.s32.totalorder %s21, 1
      %p65 = por %p63, %p64
      %p67 = scmp.ne.s32.totalorder %s50, %s66
      %p68 = scmp.eq.s32.totalorder %s21, 0
      %p69 = por %p67, %p68
      %s70 = ssub.s32 %s22, %s41
      %s71 = ssub.s32 %s24, %s33
      %s72 = sor.u32 %s70, %s71
      %p73 = scmp.eq.s32.totalorder %s72, 0
      %s75 = sadd.s32 %s74, 1
      %s76 = scalar_select %p73, %s74, %s75
      %p79 = pneg %p73
      %p80 = scmp.eq.s32.totalorder %s15, 1
      %p81 = por %p79, %p80
      %p82 = scmp.ne.s32.totalorder %s74, %s77
      %p83 = scmp.eq.s32.totalorder %s15, 0
      %p84 = por %p82, %p83
      %p85 = scmp.ne.s32.totalorder %s74, %s77
      %p86 = scmp.eq.s32.totalorder %s20, 1
      %p87 = por %p85, %p86
      %p88 = scmp.ne.s32.totalorder %s77, %s78
      %p89 = scmp.eq.s32.totalorder %s20, 0
      %p90 = por %p88, %p89
      %p91 = scmp.ne.s32.totalorder %s77, %s78
      %p92 = scmp.eq.s32.totalorder %s21, 1
      %p93 = por %p91, %p92
      %p95 = scmp.ne.s32.totalorder %s78, %s94
      %p96 = scmp.eq.s32.totalorder %s21, 0
      %p97 = por %p95, %p96
      %s98 = ssub.s32 %s22, %s41
      %s99 = ssub.s32 %s24, %s33
      %s100 = sor.u32 %s98, %s99
      %p101 = scmp.eq.s32.totalorder %s100, 0
      %s103 = sadd.s32 %s102, 1
      %s104 = scalar_select %p101, %s102, %s103
      %p107 = pneg %p101
      %p108 = scmp.eq.s32.totalorder %s15, 1
      %p109 = por %p107, %p108
      %p110 = scmp.ne.s32.totalorder %s102, %s105
      %p111 = scmp.eq.s32.totalorder %s15, 0
      %p112 = por %p110, %p111
      %p113 = scmp.ne.s32.totalorder %s102, %s105
      %p114 = scmp.eq.s32.totalorder %s20, 1
      %p115 = por %p113, %p114
      %p116 = scmp.ne.s32.totalorder %s105, %s106
      %p117 = scmp.eq.s32.totalorder %s20, 0
      %p118 = por %p116, %p117
      %p119 = scmp.ne.s32.totalorder %s105, %s106
      %p120 = scmp.eq.s32.totalorder %s21, 1
      %p121 = por %p119, %p120
      %p123 = scmp.ne.s32.totalorder %s106, %s122
      %p124 = scmp.eq.s32.totalorder %s21, 0
      %p125 = por %p123, %p124
      %s126 = ssub.s32 %s22, %s41
      %s127 = ssub.s32 %s23, %s37
      %s128 = sor.u32 %s126, %s127
      %p129 = scmp.eq.s32.totalorder %s128, 0
      %s131 = sadd.s32 %s130, 1
      %s132 = scalar_select %p129, %s130, %s131
      %p135 = pneg %p129
      %p136 = scmp.eq.s32.totalorder %s15, 1
      %p137 = por %p135, %p136
      %p138 = scmp.ne.s32.totalorder %s130, %s133
      %p139 = scmp.eq.s32.totalorder %s15, 0
      %p140 = por %p138, %p139
      %p141 = scmp.ne.s32.totalorder %s130, %s133
      %p142 = scmp.eq.s32.totalorder %s20, 1
      %p143 = por %p141, %p142
      %p144 = scmp.ne.s32.totalorder %s133, %s134
      %p145 = scmp.eq.s32.totalorder %s20, 0
      %p146 = por %p144, %p145
      %p147 = scmp.ne.s32.totalorder %s133, %s134
      %p148 = scmp.eq.s32.totalorder %s21, 1
      %p149 = por %p147, %p148
      %p151 = scmp.ne.s32.totalorder %s134, %s150
      %p152 = scmp.eq.s32.totalorder %s21, 0
      %p153 = por %p151, %p152
      %s155 = sadd.s32 %s154, 1
      %p158 = scmp.eq.s32.totalorder %s15, 1
      %p159 = scmp.ne.s32.totalorder %s154, %s156
      %p160 = scmp.eq.s32.totalorder %s15, 0
      %p161 = por %p159, %p160
      %p162 = scmp.ne.s32.totalorder %s154, %s156
      %p163 = scmp.eq.s32.totalorder %s20, 1
      %p164 = por %p162, %p163
      %p165 = scmp.ne.s32.totalorder %s156, %s157
      %p166 = scmp.eq.s32.totalorder %s20, 0
      %p167 = por %p165, %p166
      %p168 = scmp.ne.s32.totalorder %s156, %s157
      %p169 = scmp.eq.s32.totalorder %s21, 1
      %p170 = por %p168, %p169
      %p172 = scmp.ne.s32.totalorder %s157, %s171
      %p173 = scmp.eq.s32.totalorder %s21, 0
      %p174 = por %p172, %p173
      %s176 = sadd.s32 %s175, 1
      %p179 = scmp.eq.s32.totalorder %s15, 1
      %p180 = scmp.ne.s32.totalorder %s175, %s177
      %p181 = scmp.eq.s32.totalorder %s15, 0
      %p182 = por %p180, %p181
      %p183 = scmp.ne.s32.totalorder %s175, %s177
      %p184 = scmp.eq.s32.totalorder %s20, 1
      %p185 = por %p183, %p184
      %p186 = scmp.ne.s32.totalorder %s177, %s178
      %p187 = scmp.eq.s32.totalorder %s20, 0
      %p188 = por %p186, %p187
      %p189 = scmp.ne.s32.totalorder %s177, %s178
      %p190 = scmp.eq.s32.totalorder %s21, 1
      %p191 = por %p189, %p190
      %p193 = scmp.ne.s32.totalorder %s178, %s192
      %p194 = scmp.eq.s32.totalorder %s21, 0
      %p195 = por %p193, %p194
      %s197 = sadd.s32 %s196, 1
      %p200 = scmp.eq.s32.totalorder %s15, 1
      %p201 = scmp.ne.s32.totalorder %s196, %s198
      %p202 = scmp.eq.s32.totalorder %s15, 0
      %p203 = por %p201, %p202
      %p204 = scmp.ne.s32.totalorder %s196, %s198
      %p205 = scmp.eq.s32.totalorder %s20, 1
      %p206 = por %p204, %p205
      %p207 = scmp.ne.s32.totalorder %s198, %s199
      %p208 = scmp.eq.s32.totalorder %s20, 0
      %p209 = por %p207, %p208
      %p210 = scmp.ne.s32.totalorder %s198, %s199
      %p211 = scmp.eq.s32.totalorder %s21, 1
      %p212 = por %p210, %p211
      %p214 = scmp.ne.s32.totalorder %s199, %s213
      %p215 = scmp.eq.s32.totalorder %s21, 0
      %p216 = por %p214, %p215
      %s218 = sadd.s32 %s217, 1
      %p221 = scmp.eq.s32.totalorder %s15, 1
      %p222 = scmp.ne.s32.totalorder %s217, %s219
      %p223 = scmp.eq.s32.totalorder %s15, 0
      %p224 = por %p222, %p223
      %p225 = scmp.ne.s32.totalorder %s217, %s219
      %p226 = scmp.eq.s32.totalorder %s20, 1
      %p227 = por %p225, %p226
      %p228 = scmp.ne.s32.totalorder %s219, %s220
      %p229 = scmp.eq.s32.totalorder %s20, 0
      %p230 = por %p228, %p229
      %p231 = scmp.ne.s32.totalorder %s219, %s220
      %p232 = scmp.eq.s32.totalorder %s21, 1
      %p233 = por %p231, %p232
      %p235 = scmp.ne.s32.totalorder %s220, %s234
      %p236 = scmp.eq.s32.totalorder %s21, 0
      %p237 = por %p235, %p236
      %s238 = ssub.s32 %s22, %s41
      %s239 = ssub.s32 %s23, %s37
      %s240 = sor.u32 %s238, %s239
      %p241 = scmp.eq.s32.totalorder %s240, 0
      %s243 = sadd.s32 %s242, 1
      %s244 = scalar_select %p241, %s242, %s243
      %p247 = pneg %p241
      %p248 = scmp.eq.s32.totalorder %s15, 1
      %p249 = por %p247, %p248
      %p250 = scmp.ne.s32.totalorder %s242, %s245
      %p251 = scmp.eq.s32.totalorder %s15, 0
      %p252 = por %p250, %p251
      %p253 = scmp.ne.s32.totalorder %s242, %s245
      %p254 = scmp.eq.s32.totalorder %s20, 1
      %p255 = por %p253, %p254
      %p256 = scmp.ne.s32.totalorder %s245, %s246
      %p257 = scmp.eq.s32.totalorder %s20, 0
      %p258 = por %p256, %p257
      %p259 = scmp.ne.s32.totalorder %s245, %s246
      %p260 = scmp.eq.s32.totalorder %s21, 1
      %p261 = por %p259, %p260
      %p263 = scmp.ne.s32.totalorder %s246, %s262
      %p264 = scmp.eq.s32.totalorder %s21, 0
      %p265 = por %p263, %p264
      %p266 = scmp.le.s32.totalorder 1, %s15
      %p267 = scmp.lt.s32.totalorder %s15, 3
      %p268 = pnand %p266, %p267
      %p269 = pneg %p268
      // Predicated region
      $region9: #{decoder_forward.14} parent=5 // pred_check
        _
      $region10: #{decoder_forward.14} parent=5 // pred_check_branch
        %271 = sbr.rel (%p268) target = $region12
      $region11: #{decoder_forward.14} parent=5 // pred_region
        %s272 = ssub.s32 %s15, 1
        // Predicated region
        $region13: #{decoder_forward.14} parent=11 // pred_check
          %p273 = pneg %p167
        $region14: #{decoder_forward.14} parent=11 // pred_check_branch
          %275 = sbr.rel (%p273) target = $region16
        $region15: #{decoder_forward.14} parent=11 // pred_region
          %277 = vsyncadd [#allocation6], 0
          %s278 = sshll.u32 %s4, 4
          %s279 = int_to_ptr.hbm [resolvable:$true] %s278
          %s280 = sshll.u32 [#allocation5], 4
          %s281 = int_to_ptr.vmem [resolvable:$true] %s280
          %286 = dma.hbm_to_vmem [thread:$0]  %s279, 512, %s281, [#allocation6], 128, 128, 8
        $region16: #{decoder_forward.14} parent=11 // pred_fallthru
          _
        // Predicated region
        $region17: #{decoder_forward.14} parent=11 // pred_check
          %p287 = pneg %p188
        $region18: #{decoder_forward.14} parent=11 // pred_check_branch
          %289 = sbr.rel (%p287) target = $region20
        $region19: #{decoder_forward.14} parent=11 // pred_region
          _
        $region20: #{decoder_forward.14} parent=11 // pred_fallthru
          _
        // Predicated region
        $region21: #{decoder_forward.14} parent=11 // pred_check
          %p290 = pneg %p209
        $region22: #{decoder_forward.14} parent=11 // pred_check_branch
          %292 = sbr.rel (%p290) target = $region24
        $region23: #{decoder_forward.14} parent=11 // pred_region
          _
        $region24: #{decoder_forward.14} parent=11 // pred_fallthru
          _
        // Predicated region
        $region25: #{decoder_forward.14} parent=11 // pred_check
          %p293 = pneg %p230
        $region26: #{decoder_forward.14} parent=11 // pred_check_branch
          %295 = sbr.rel (%p293) target = $region28
        $region27: #{decoder_forward.14} parent=11 // pred_region
          _
        $region28: #{decoder_forward.14} parent=11 // pred_fallthru
          _
      $region12: #{decoder_forward.14} parent=5 // pred_fallthru
        _
      %p296 = scmp.lt.s32.totalorder %s15, 2
      // Predicated region
      $region29: #{decoder_forward.14} parent=5 // pred_check
        %p297 = pneg %p296
      $region30: #{decoder_forward.14} parent=5 // pred_check_branch
        %299 = sbr.rel (%p297) target = $region32
      $region31: #{decoder_forward.14} parent=5 // pred_region
        // Predicated region
        $region33: #{decoder_forward.14} parent=31 // pred_check
          %p300 = pneg %p56
        $region34: #{decoder_forward.14} parent=31 // pred_check_branch
          %302 = sbr.rel (%p300) target = $region36
        $region35: #{decoder_forward.14} parent=31 // pred_region
          %p303 = scmp.lt.s32.totalorder %s22, 1
          %s304 = scalar_select %p303, %s22, 1
          %p305 = scmp.lt.s32.totalorder %s23, 0
          %s306 = scalar_select %p305, %s23, 0
          %s307 = sadd.s32 %s306, %s304
          %s308 = smul.addr %s307, 4
          %s309 = scalar_lea.vmem %s0, %s308
        $region36: #{decoder_forward.14} parent=31 // pred_fallthru
          _
        // Predicated region
        $region37: #{decoder_forward.14} parent=31 // pred_check
          %p310 = pneg %p84
        $region38: #{decoder_forward.14} parent=31 // pred_check_branch
          %312 = sbr.rel (%p310) target = $region40
        $region39: #{decoder_forward.14} parent=31 // pred_region
          %p313 = scmp.lt.s32.totalorder %s22, 1
          %s314 = scalar_select %p313, %s22, 1
          %p315 = scmp.lt.s32.totalorder %s24, 0
          %s316 = scalar_select %p315, %s24, 0
          %s317 = sadd.s32 %s316, %s314
          %s318 = sadd.s32 %s317, 2
          %s319 = smul.addr %s318, 4
          %s320 = scalar_lea.vmem %s1, %s319
        $region40: #{decoder_forward.14} parent=31 // pred_fallthru
          _
        // Predicated region
        $region41: #{decoder_forward.14} parent=31 // pred_check
          %p321 = pneg %p112
        $region42: #{decoder_forward.14} parent=31 // pred_check_branch
          %323 = sbr.rel (%p321) target = $region44
        $region43: #{decoder_forward.14} parent=31 // pred_region
          %p324 = scmp.lt.s32.totalorder %s22, 1
          %s325 = scalar_select %p324, %s22, 1
          %p326 = scmp.lt.s32.totalorder %s24, 0
          %s327 = scalar_select %p326, %s24, 0
          %s328 = sadd.s32 %s327, %s325
          %s329 = sadd.s32 %s328, 4
          %s330 = smul.addr %s329, 4
          %s331 = scalar_lea.vmem %s2, %s330
        $region44: #{decoder_forward.14} parent=31 // pred_fallthru
          _
        // Predicated region
        $region45: #{decoder_forward.14} parent=31 // pred_check
          %p332 = pneg %p140
        $region46: #{decoder_forward.14} parent=31 // pred_check_branch
          %334 = sbr.rel (%p332) target = $region48
        $region47: #{decoder_forward.14} parent=31 // pred_region
          %p335 = scmp.lt.s32.totalorder %s22, 1
          %s336 = scalar_select %p335, %s22, 1
          %p337 = scmp.lt.s32.totalorder %s23, 0
          %s338 = scalar_select %p337, %s23, 0
          %s339 = sadd.s32 %s338, %s336
          %s340 = smul.addr %s339, 8
          %s341 = scalar_lea.vmem %s3, %s340
        $region48: #{decoder_forward.14} parent=31 // pred_fallthru
          _
      $region32: #{decoder_forward.14} parent=5 // pred_fallthru
        _
      %p342 = scmp.le.s32.totalorder 1, %s15
      %p343 = scmp.lt.s32.totalorder %s15, 3
      %p344 = pnand %p342, %p343
      %p345 = pneg %p344
      // Predicated region
      $region49: #{decoder_forward.14} parent=5 // pred_check
        _
      $region50: #{decoder_forward.14} parent=5 // pred_check_branch
        %347 = sbr.rel (%p344) target = $region52
      $region51: #{decoder_forward.14} parent=5 // pred_region
        %s348 = ssub.s32 %s15, 1
        // Predicated region
        $region53: #{decoder_forward.14} parent=51 // pred_check
          %p349 = pneg %p167
        $region54: #{decoder_forward.14} parent=51 // pred_check_branch
          %351 = sbr.rel (%p349) target = $region56
        $region55: #{decoder_forward.14} parent=51 // pred_region
          %353 = dma.done [#allocation6], 512
        $region56: #{decoder_forward.14} parent=51 // pred_fallthru
          _
        %p354 = scmp.lt.s32.totalorder %s25, 1
        %s355 = scalar_select %p354, %s25, 1
        %p356 = scmp.lt.s32.totalorder %s26, 0
        %s357 = scalar_select %p356, %s26, 0
        %s358 = sadd.s32 %s357, %s355
        %s359 = smul.addr %s358, 4
        %s360 = scalar_lea.vmem %s0, %s359
        %p361 = pneg %p62
        %p362 = pneg %p59
        %p363 = scmp.lt.s32.totalorder %s25, 1
        %s364 = scalar_select %p363, %s25, 1
        %p365 = scmp.lt.s32.totalorder %s27, 0
        %s366 = scalar_select %p365, %s27, 0
        %s367 = sadd.s32 %s366, %s364
        %s368 = sadd.s32 %s367, 2
        %s369 = smul.addr %s368, 4
        %s370 = scalar_lea.vmem %s1, %s369
        %p371 = pneg %p90
        %p372 = pneg %p87
        %p373 = scmp.lt.s32.totalorder %s25, 1
        %s374 = scalar_select %p373, %s25, 1
        %p375 = scmp.lt.s32.totalorder %s27, 0
        %s376 = scalar_select %p375, %s27, 0
        %s377 = sadd.s32 %s376, %s374
        %s378 = sadd.s32 %s377, 4
        %s379 = smul.addr %s378, 4
        %s380 = scalar_lea.vmem %s2, %s379
        %p381 = pneg %p118
        %p382 = pneg %p115
        %p383 = scmp.lt.s32.totalorder %s25, 1
        %s384 = scalar_select %p383, %s25, 1
        %p385 = scmp.lt.s32.totalorder %s26, 0
        %s386 = scalar_select %p385, %s26, 0
        %s387 = sadd.s32 %s386, %s384
        %s388 = smul.addr %s387, 8
        %s389 = scalar_lea.vmem %s3, %s388
        %p390 = pneg %p146
        %p391 = pneg %p143
        %p392 = pneg %p167
        %p393 = pneg %p164
        %p394 = pneg %p188
        %p395 = pneg %p185
        %p396 = pneg %p209
        %p397 = pneg %p206
        %p398 = pneg %p230
        %p399 = pneg %p227
        %p400 = pneg %p258
        %p401 = pneg %p255
        %p402 = scmp.lt.s32.totalorder %s25, 1
        %s403 = scalar_select %p402, %s25, 1
        %p404 = scmp.lt.s32.totalorder %s26, 0
        %s405 = scalar_select %p404, %s26, 0
        %s406 = sadd.s32 %s405, %s403
        %s407 = smul.addr %s406, 8
        %s408 = scalar_lea.vmem %s8, %s407
        %p409 = scmp.lt.s32.totalorder %s25, 1
        %s410 = scalar_select %p409, %s25, 1
        %p411 = scmp.lt.s32.totalorder %s26, 0
        %s412 = scalar_select %p411, %s26, 0
        %s413 = sadd.s32 %s412, %s410
        %s414 = smul.addr %s413, 4
        %s415 = scalar_lea.vmem %s0, %s414
        %p416 = scmp.lt.s32.totalorder %s25, 1
        %s417 = scalar_select %p416, %s25, 1
        %p418 = scmp.lt.s32.totalorder %s27, 0
        %s419 = scalar_select %p418, %s27, 0
        %s420 = sadd.s32 %s419, %s417
        %s421 = sadd.s32 %s420, 2
        %s422 = smul.addr %s421, 4
        %s423 = scalar_lea.vmem %s1, %s422
        %p424 = scmp.lt.s32.totalorder %s25, 1
        %s425 = scalar_select %p424, %s25, 1
        %p426 = scmp.lt.s32.totalorder %s27, 0
        %s427 = scalar_select %p426, %s27, 0
        %s428 = sadd.s32 %s427, %s425
        %s429 = sadd.s32 %s428, 4
        %s430 = smul.addr %s429, 4
        %s431 = scalar_lea.vmem %s2, %s430
        %p432 = scmp.lt.s32.totalorder %s25, 1
        %s433 = scalar_select %p432, %s25, 1
        %p434 = scmp.lt.s32.totalorder %s26, 0
        %s435 = scalar_select %p434, %s26, 0
        %s436 = sadd.s32 %s435, %s433
        %s437 = smul.addr %s436, 8
        %s438 = scalar_lea.vmem %s3, %s437
        %p439 = scmp.lt.s32.totalorder %s25, 1
        %s440 = scalar_select %p439, %s25, 1
        %p441 = scmp.lt.s32.totalorder %s26, 0
        %s442 = scalar_select %p441, %s26, 0
        %s443 = sadd.s32 %s442, %s440
        %s444 = smul.addr %s443, 8
        %s445 = scalar_lea.vmem %s8, %s444
        %p447 = scmp.eq.s32.totalorder %s27, 0
        // Predicated region
        $region57: #{decoder_forward.14} parent=51 // pred_check
          %p448 = pneg %p447
        $region58: #{decoder_forward.14} parent=51 // pred_check_branch
          %450 = sbr.rel (%p448) target = $region60
        $region59: #{decoder_forward.14} parent=51 // pred_region
          %vm451 = vcmask 7168
          %452 = vst.msk [vmem:[#allocation2] sm:$0xff] %vm451, -inf
          %453 = vst.msk [vmem:[#allocation2 + $0x8] sm:$0xff] %vm451, -inf
          %454 = vst.msk [vmem:[#allocation2 + $0x10] sm:$0xff] %vm451, -inf
          %455 = vst.msk [vmem:[#allocation2 + $0x18] sm:$0xff] %vm451, -inf
          %456 = vst.msk [vmem:[#allocation3] sm:$0xff] %vm451, 0.0
          %457 = vst.msk [vmem:[#allocation3 + $0x8] sm:$0xff] %vm451, 0.0
          %458 = vst.msk [vmem:[#allocation3 + $0x10] sm:$0xff] %vm451, 0.0
          %459 = vst.msk [vmem:[#allocation3 + $0x18] sm:$0xff] %vm451, 0.0
          %vm460 = vcmask 261120
          %461 = vst.msk [vmem:[#allocation4] sm:$0xff] %vm460, 0.0
        $region60: #{decoder_forward.14} parent=51 // pred_fallthru
          _
        %v462 = vld [vmem:[%s415] sm:$0xf]
        %v463 = vld [vmem:[%s423] sm:$0xf]
        %v464 = vld [vmem:[%s431] sm:$0xf]
        %vm465 = vcmask 64512
        %v467 = vsel %vm465, %v462, 0
        %v470 = vsel %vm465, %v463, 0
        %472 = vmatpush.bf16.xpose.msra.mxu0 0
        %473 = vmatpush.bf16.xpose.msra.mxu0 0
        %474 = vmatpush.bf16.xpose.msra.mxu0 0
        %475 = vmatpush.bf16.xpose.msra.mxu0 0
        %476 = vmatpush.bf16.xpose.msra.mxu0 0
        %477 = vmatpush.bf16.xpose.msra.mxu0 0
        %478 = vmatpush.bf16.xpose.msra.mxu0 0
        %479 = vmatpush.bf16.xpose.msra.mxu0 %v470
        %480 = vmatmul.bf16.gmra.mxu0 %v467
        %v481 = vpop.f32.mrf.mxu0
        %v482 = vadd.f32 0.0, %v481
        %v483 = vpop.f32.mrf.mxu0
        %484 = vdwg.mxu0
        %v485 = vmul.f32 %v482, 0.35355338
        %v486 = vld [vmem:[#allocation2] sm:$0xff]
        %v487 = vsel %vm465, %v485, -inf
        %488 = vmax.xlane.f32.xlu0 %v487
        %v489 = vpop.xlane.xlu0 %488
        %v490 = vmax.f32 %v486, %v489
        %v491 = vsub.f32 %v486, %v490
        %v492 = vmul.f32 %v491, 1.442695
        %v493 = vpow.pop %v492
        %495 = vset.pattern.permute.xlu0 0
        %496 = vperm.xlu0 %495, %v490
        %v497 = vpop.permute.xlu0 %496
        %v499 = vsub.f32 %v485, %v497
        %v500 = vmul.f32 %v499, 1.442695
        %v501 = vpow.pop %v500
        %v502 = vld [vmem:[#allocation3] sm:$0xff]
        %v503 = vmul.f32 %v493, %v502
        %v504 = vsel %vm465, %v501, 0.0
        %505 = vadd.xlane.f32.xlu0 %v504
        %v506 = vpop.xlane.xlu0 %505
        %v507 = vadd.f32 %v503, %v506
        %vm508 = vcmask 7168
        %509 = vst.msk [vmem:[#allocation3] sm:$0xff] %vm508, %v507
        %510 = vst.msk [vmem:[#allocation2] sm:$0xff] %vm508, %v490
        %v511 = vpack.c.bf16 %v501, %v501
        %v513 = vsel %vm465, %v511, 0
        %vm515 = vcmask 1043456
        %v517 = vsel %vm515, %v464, 0
        %519 = vmatpush.bf16.msra.mxu0 0
        %520 = vmatpush.bf16.msra.mxu0 0
        %521 = vmatpush.bf16.msra.mxu0 0
        %522 = vmatpush.bf16.msra.mxu0 0
        %523 = vmatpush.bf16.msra.mxu0 0
        %524 = vmatpush.bf16.msra.mxu0 0
        %525 = vmatpush.bf16.msra.mxu0 0
        %526 = vmatpush.bf16.msra.mxu0 %v517
        %527 = vmatmul.bf16.gmra.mxu0 %v513
        %v528 = vpop.f32.mrf.mxu0
        %v529 = vadd.f32 0.0, %v528
        %v530 = vpop.f32.mrf.mxu0
        %531 = vdwg.mxu0
        %v532 = vld [vmem:[#allocation4] sm:$0xff]
        %534 = vset.pattern.permute.xlu0 0
        %535 = vperm.xlu0 %534, %v493
        %v536 = vpop.permute.xlu0 %535
        %v538 = vmul.f32 %v536, %v532
        %v539 = vadd.f32 %v538, %v529
        %540 = vst.msk [vmem:[#allocation4] sm:$0xff] %vm465, %v539
        %v542 = vunpack.c.l.b16 %v462
        %v543 = vpack.c.b16 %v542, %v542
        %544 = vrot.lane.b32.xlu0 %v543, 120
        %v545 = vpop.permute.xlu0 %544
        %v547 = vunpack.c.l.b16 %v463
        %v548 = vpack.c.b16 %v547, %v547
        %549 = vrot.lane.b32.xlu0 %v548, 120
        %v550 = vpop.permute.xlu0 %549
        %v552 = vsel %vm465, %v545, 0
        %v555 = vsel %vm465, %v550, 0
        %557 = vmatpush.bf16.xpose.msra.mxu0 0
        %558 = vmatpush.bf16.xpose.msra.mxu0 0
        %559 = vmatpush.bf16.xpose.msra.mxu0 0
        %560 = vmatpush.bf16.xpose.msra.mxu0 0
        %561 = vmatpush.bf16.xpose.msra.mxu0 0
        %562 = vmatpush.bf16.xpose.msra.mxu0 0
        %563 = vmatpush.bf16.xpose.msra.mxu0 0
        %564 = vmatpush.bf16.xpose.msra.mxu0 %v555
        %565 = vmatmul.bf16.gmra.mxu0 %v552
        %v566 = vpop.f32.mrf.mxu0
        %v567 = vadd.f32 0.0, %v566
        %v568 = vpop.f32.mrf.mxu0
        %569 = vdwg.mxu0
        %v570 = vmul.f32 %v567, 0.35355338
        %s571 = scalar_lea.vmem [#allocation2], 8
        %v572 = vld [vmem:[%s571] sm:$0xff]
        %v573 = vsel %vm465, %v570, -inf
        %574 = vmax.xlane.f32.xlu0 %v573
        %v575 = vpop.xlane.xlu0 %574
        %v576 = vmax.f32 %v572, %v575
        %v577 = vsub.f32 %v572, %v576
        %v578 = vmul.f32 %v577, 1.442695
        %v579 = vpow.pop %v578
        %581 = vset.pattern.permute.xlu0 0
        %582 = vperm.xlu0 %581, %v576
        %v583 = vpop.permute.xlu0 %582
        %v585 = vsub.f32 %v570, %v583
        %v586 = vmul.f32 %v585, 1.442695
        %v587 = vpow.pop %v586
        %s588 = scalar_lea.vmem [#allocation3], 8
        %v589 = vld [vmem:[%s588] sm:$0xff]
        %v590 = vmul.f32 %v579, %v589
        %v591 = vsel %vm465, %v587, 0.0
        %592 = vadd.xlane.f32.xlu0 %v591
        %v593 = vpop.xlane.xlu0 %592
        %v594 = vadd.f32 %v590, %v593
        %595 = vst.msk [vmem:[%s588] sm:$0xff] %vm508, %v594
        %596 = vst.msk [vmem:[%s571] sm:$0xff] %vm508, %v576
        %v597 = vpack.c.bf16 %v587, %v587
        %v599 = vunpack.c.l.b16 %v464
        %v600 = vpack.c.b16 %v599, %v599
        %601 = vrot.lane.b32.xlu0 %v600, 120
        %v602 = vpop.permute.xlu0 %601
        %v604 = vsel %vm465, %v597, 0
        %v607 = vsel %vm515, %v602, 0
        %609 = vmatpush.bf16.msra.mxu0 0
        %610 = vmatpush.bf16.msra.mxu0 0
        %611 = vmatpush.bf16.msra.mxu0 0
        %612 = vmatpush.bf16.msra.mxu0 0
        %613 = vmatpush.bf16.msra.mxu0 0
        %614 = vmatpush.bf16.msra.mxu0 0
        %615 = vmatpush.bf16.msra.mxu0 0
        %616 = vmatpush.bf16.msra.mxu0 %v607
        %617 = vmatmul.bf16.gmra.mxu0 %v604
        %v618 = vpop.f32.mrf.mxu0
        %v619 = vadd.f32 0.0, %v618
        %v620 = vpop.f32.mrf.mxu0
        %621 = vdwg.mxu0
        %v622 = vld [vmem:[#allocation4] sm:$0xff]
        %624 = vset.pattern.permute.xlu0 0
        %625 = vperm.xlu0 %624, %v579
        %v626 = vpop.permute.xlu0 %625
        %v628 = vmul.f32 %v626, %v622
        %630 = vrot.lane.b32.xlu0 %v619, 8
        %v631 = vpop.permute.xlu0 %630
        %v633 = vadd.f32 %v628, %v631
        %vm634 = vcmask 130112
        %635 = vst.msk [vmem:[#allocation4] sm:$0xff] %vm634, %v633
        %636 = vrot.lane.b32.xlu0 %v543, 112
        %v637 = vpop.permute.xlu0 %636
        %638 = vrot.lane.b32.xlu0 %v548, 112
        %v639 = vpop.permute.xlu0 %638
        %v641 = vsel %vm465, %v637, 0
        %v644 = vsel %vm465, %v639, 0
        %646 = vmatpush.bf16.xpose.msra.mxu0 0
        %647 = vmatpush.bf16.xpose.msra.mxu0 0
        %648 = vmatpush.bf16.xpose.msra.mxu0 0
        %649 = vmatpush.bf16.xpose.msra.mxu0 0
        %650 = vmatpush.bf16.xpose.msra.mxu0 0
        %651 = vmatpush.bf16.xpose.msra.mxu0 0
        %652 = vmatpush.bf16.xpose.msra.mxu0 0
        %653 = vmatpush.bf16.xpose.msra.mxu0 %v644
        %654 = vmatmul.bf16.gmra.mxu0 %v641
        %v655 = vpop.f32.mrf.mxu0
        %v656 = vadd.f32 0.0, %v655
        %v657 = vpop.f32.mrf.mxu0
        %658 = vdwg.mxu0
        %v659 = vmul.f32 %v656, 0.35355338
        %s660 = scalar_lea.vmem [#allocation2], 16
        %v661 = vld [vmem:[%s660] sm:$0xff]
        %v662 = vsel %vm465, %v659, -inf
        %663 = vmax.xlane.f32.xlu0 %v662
        %v664 = vpop.xlane.xlu0 %663
        %v665 = vmax.f32 %v661, %v664
        %v666 = vsub.f32 %v661, %v665
        %v667 = vmul.f32 %v666, 1.442695
        %v668 = vpow.pop %v667
        %670 = vset.pattern.permute.xlu0 0
        %671 = vperm.xlu0 %670, %v665
        %v672 = vpop.permute.xlu0 %671
        %v674 = vsub.f32 %v659, %v672
        %v675 = vmul.f32 %v674, 1.442695
        %v676 = vpow.pop %v675
        %s677 = scalar_lea.vmem [#allocation3], 16
        %v678 = vld [vmem:[%s677] sm:$0xff]
        %v679 = vmul.f32 %v668, %v678
        %v680 = vsel %vm465, %v676, 0.0
        %681 = vadd.xlane.f32.xlu0 %v680
        %v682 = vpop.xlane.xlu0 %681
        %v683 = vadd.f32 %v679, %v682
        %684 = vst.msk [vmem:[%s677] sm:$0xff] %vm508, %v683
        %685 = vst.msk [vmem:[%s660] sm:$0xff] %vm508, %v665
        %v686 = vpack.c.bf16 %v676, %v676
        %687 = vrot.lane.b32.xlu0 %v600, 112
        %v688 = vpop.permute.xlu0 %687
        %v690 = vsel %vm465, %v686, 0
        %v693 = vsel %vm515, %v688, 0
        %695 = vmatpush.bf16.msra.mxu0 0
        %696 = vmatpush.bf16.msra.mxu0 0
        %697 = vmatpush.bf16.msra.mxu0 0
        %698 = vmatpush.bf16.msra.mxu0 0
        %699 = vmatpush.bf16.msra.mxu0 0
        %700 = vmatpush.bf16.msra.mxu0 0
        %701 = vmatpush.bf16.msra.mxu0 0
        %702 = vmatpush.bf16.msra.mxu0 %v693
        %703 = vmatmul.bf16.gmra.mxu0 %v690
        %v704 = vpop.f32.mrf.mxu0
        %v705 = vadd.f32 0.0, %v704
        %v706 = vpop.f32.mrf.mxu0
        %707 = vdwg.mxu0
        %v708 = vld [vmem:[#allocation4] sm:$0xff]
        %710 = vset.pattern.permute.xlu0 0
        %711 = vperm.xlu0 %710, %v668
        %v712 = vpop.permute.xlu0 %711
        %v714 = vmul.f32 %v712, %v708
        %716 = vrot.lane.b32.xlu0 %v705, 16
        %v717 = vpop.permute.xlu0 %716
        %v719 = vadd.f32 %v714, %v717
        %vm720 = vcmask 195712
        %721 = vst.msk [vmem:[#allocation4] sm:$0xff] %vm720, %v719
        %722 = vrot.lane.b32.xlu0 %v543, 104
        %v723 = vpop.permute.xlu0 %722
        %724 = vrot.lane.b32.xlu0 %v548, 104
        %v725 = vpop.permute.xlu0 %724
        %v727 = vsel %vm465, %v723, 0
        %v730 = vsel %vm465, %v725, 0
        %732 = vmatpush.bf16.xpose.msra.mxu0 0
        %733 = vmatpush.bf16.xpose.msra.mxu0 0
        %734 = vmatpush.bf16.xpose.msra.mxu0 0
        %735 = vmatpush.bf16.xpose.msra.mxu0 0
        %736 = vmatpush.bf16.xpose.msra.mxu0 0
        %737 = vmatpush.bf16.xpose.msra.mxu0 0
        %738 = vmatpush.bf16.xpose.msra.mxu0 0
        %739 = vmatpush.bf16.xpose.msra.mxu0 %v730
        %740 = vmatmul.bf16.gmra.mxu0 %v727
        %v741 = vpop.f32.mrf.mxu0
        %v742 = vadd.f32 0.0, %v741
        %v743 = vpop.f32.mrf.mxu0
        %744 = vdwg.mxu0
        %v745 = vmul.f32 %v742, 0.35355338
        %s746 = scalar_lea.vmem [#allocation2], 24
        %v747 = vld [vmem:[%s746] sm:$0xff]
        %v748 = vsel %vm465, %v745, -inf
        %749 = vmax.xlane.f32.xlu0 %v748
        %v750 = vpop.xlane.xlu0 %749
        %v751 = vmax.f32 %v747, %v750
        %v752 = vsub.f32 %v747, %v751
        %v753 = vmul.f32 %v752, 1.442695
        %v754 = vpow.pop %v753
        %756 = vset.pattern.permute.xlu0 0
        %757 = vperm.xlu0 %756, %v751
        %v758 = vpop.permute.xlu0 %757
        %v760 = vsub.f32 %v745, %v758
        %v761 = vmul.f32 %v760, 1.442695
        %v762 = vpow.pop %v761
        %s763 = scalar_lea.vmem [#allocation3], 24
        %v764 = vld [vmem:[%s763] sm:$0xff]
        %v765 = vmul.f32 %v754, %v764
        %v766 = vsel %vm465, %v762, 0.0
        %767 = vadd.xlane.f32.xlu0 %v766
        %v768 = vpop.xlane.xlu0 %767
        %v769 = vadd.f32 %v765, %v768
        %770 = vst.msk [vmem:[%s763] sm:$0xff] %vm508, %v769
        %771 = vst.msk [vmem:[%s746] sm:$0xff] %vm508, %v751
        %v772 = vpack.c.bf16 %v762, %v762
        %773 = vrot.lane.b32.xlu0 %v600, 104
        %v774 = vpop.permute.xlu0 %773
        %v776 = vsel %vm465, %v772, 0
        %v779 = vsel %vm515, %v774, 0
        %781 = vmatpush.bf16.msra.mxu0 0
        %782 = vmatpush.bf16.msra.mxu0 0
        %783 = vmatpush.bf16.msra.mxu0 0
        %784 = vmatpush.bf16.msra.mxu0 0
        %785 = vmatpush.bf16.msra.mxu0 0
        %786 = vmatpush.bf16.msra.mxu0 0
        %787 = vmatpush.bf16.msra.mxu0 0
        %788 = vmatpush.bf16.msra.mxu0 %v779
        %789 = vmatmul.bf16.gmra.mxu0 %v776
        %v790 = vpop.f32.mrf.mxu0
        %v791 = vadd.f32 0.0, %v790
        %v792 = vpop.f32.mrf.mxu0
        %793 = vdwg.mxu0
        %v794 = vld [vmem:[#allocation4] sm:$0xff]
        %796 = vset.pattern.permute.xlu0 0
        %797 = vperm.xlu0 %796, %v754
        %v798 = vpop.permute.xlu0 %797
        %v800 = vmul.f32 %v798, %v794
        %802 = vrot.lane.b32.xlu0 %v791, 24
        %v803 = vpop.permute.xlu0 %802
        %v805 = vadd.f32 %v800, %v803
        %vm806 = vcmask 261312
        %807 = vst.msk [vmem:[#allocation4] sm:$0xff] %vm806, %v805
        // Predicated region
        $region61: #{decoder_forward.14} parent=51 // pred_check
          %p808 = pneg %p447
        $region62: #{decoder_forward.14} parent=51 // pred_check_branch
          %810 = sbr.rel (%p808) target = $region64
        $region63: #{decoder_forward.14} parent=51 // pred_region
          %v811 = vld [vmem:[#allocation4] sm:$0xff]
          %v812 = vld [vmem:[#allocation3] sm:$0xff]
          %v813 = vrcp.pop %v812
          %815 = vset.pattern.permute.xlu0 0
          %816 = vperm.xlu0 %815, %v813
          %v817 = vpop.permute.xlu0 %816
          %v819 = vmul.f32 %v811, %v817
          %820 = vst.msk [vmem:[#allocation4] sm:$0xff] %vm465, %v819
          %v821 = vld [vmem:[#allocation4] sm:$0xff]
          %v822 = vld [vmem:[%s588] sm:$0xff]
          %v823 = vrcp.pop %v822
          %825 = vset.pattern.permute.xlu0 0
          %826 = vperm.xlu0 %825, %v823
          %v827 = vpop.permute.xlu0 %826
          %v829 = vmul.f32 %v821, %v827
          %830 = vst.msk [vmem:[#allocation4] sm:$0xff] %vm634, %v829
          %v831 = vld [vmem:[#allocation4] sm:$0xff]
          %v832 = vld [vmem:[%s677] sm:$0xff]
          %v833 = vrcp.pop %v832
          %835 = vset.pattern.permute.xlu0 0
          %836 = vperm.xlu0 %835, %v833
          %v837 = vpop.permute.xlu0 %836
          %v839 = vmul.f32 %v831, %v837
          %840 = vst.msk [vmem:[#allocation4] sm:$0xff] %vm720, %v839
          %v841 = vld [vmem:[#allocation4] sm:$0xff]
          %v842 = vld [vmem:[%s763] sm:$0xff]
          %v843 = vrcp.pop %v842
          %845 = vset.pattern.permute.xlu0 0
          %846 = vperm.xlu0 %845, %v843
          %v847 = vpop.permute.xlu0 %846
          %v849 = vmul.f32 %v841, %v847
          %850 = vst.msk [vmem:[#allocation4] sm:$0xff] %vm806, %v849
          %v851 = vld [vmem:[#allocation4] sm:$0xff]
          %v852 = vpack.c.bf16 %v851, %v851
          %v853 = vld [vmem:[#allocation5] sm:$0xff]
          %v854 = vld [vmem:[#allocation5 + $0x8] sm:$0xff]
          %v855 = vld [vmem:[#allocation5 + $0x10] sm:$0xff]
          %v856 = vld [vmem:[#allocation5 + $0x18] sm:$0xff]
          %v857 = vpack.c.bf16 %v854, %v853
          %v858 = vpack.c.bf16 %v856, %v855
          %v859 = vld [vmem:[%s5] sm:$0x1]
          %v861 = vperm.slane %v859, 0
          %vm863 = vcmask 261120
          %v865 = vsel %vm863, %v852, 0
          %867 = vmatpush.bf16.msra.mxu0 0
          %868 = vmatpush.bf16.msra.mxu0 0
          %869 = vmatpush.bf16.msra.mxu0 0
          %870 = vmatpush.bf16.msra.mxu0 0
          %871 = vmatpush.bf16.msra.mxu0 0
          %872 = vmatpush.bf16.msra.mxu0 0
          %873 = vmatpush.bf16.msra.mxu0 %v858
          %874 = vmatpush.bf16.msra.mxu0 %v857
          %875 = vmatmul.bf16.gmra.mxu0 %v865
          %v876 = vpop.f32.mrf.mxu0
          %v877 = vadd.f32 %v861, %v876
          %v878 = vpop.f32.mrf.mxu0
          %879 = vdwg.mxu0
          %v880 = vld [vmem:[%s438] sm:$0xff]
          %v881 = vadd.f32 %v877, %v880
          %v882 = vsel %vm863, %v881, 0.0
          %883 = vadd.xlane.f32.xlu0 %v882
          %v884 = vpop.xlane.xlu0 %883
          %v885 = vrcp.pop 32.0
          %v886 = vmul.f32 32.0, %v885
          %v887 = vsub.f32 1.0, %v886
          %v888 = vmul.f32 %v885, %v887
          %v889 = vadd.f32 %v885, %v888
          %vm890 = vweird.f32 %v885
          %v891 = vsel %vm890, %v885, %v889
          %v892 = vmul.f32 %v884, %v891
          %v893 = vsub.f32 %v881, %v892
          %v894 = vmul.f32 %v893, %v893
          %v895 = vsel %vm863, %v894, 0.0
          %896 = vadd.xlane.f32.xlu0 %v895
          %v897 = vpop.xlane.xlu0 %896
          %v898 = vmul.f32 %v897, %v891
          %v899 = vadd.f32 %v898, 1e-05
          %v900 = vrsqrt.pop %v899
          %v901 = vmul.f32 %v900, %v899
          %v902 = vmul.f32 %v901, %v900
          %v903 = vmul.f32 0.5, %v902
          %v904 = vsub.f32 1.5, %v903
          %v905 = vmul.f32 %v900, %v904
          %vm906 = vweird.f32 %v899
          %vm907 = vweird.f32 %v900
          %vm908 = vmor %vm906, %vm907
          %v909 = vsel %vm908, %v900, %v905
          %v910 = vmul.f32 %v893, %v909
          %v911 = vld [vmem:[%s6] sm:$0x1]
          %v913 = vperm.slane %v911, 0
          %v915 = vmul.f32 %v910, %v913
          %v916 = vld [vmem:[%s7] sm:$0x1]
          %v918 = vperm.slane %v916, 0
          %v920 = vadd.f32 %v915, %v918
          %921 = vst.msk [vmem:[%s445] sm:$0xff] %vm863, %v920
        $region64: #{decoder_forward.14} parent=51 // pred_fallthru
          _
        %p922 = scmp.lt.s32.totalorder %s25, 1
        %s923 = scalar_select %p922, %s25, 1
        %p924 = scmp.lt.s32.totalorder %s26, 0
        %s925 = scalar_select %p924, %s26, 0
        %s926 = sadd.s32 %s925, %s923
        %s927 = smul.addr %s926, 8
        %s928 = scalar_lea.vmem %s8, %s927
        // Predicated region
        $region65: #{decoder_forward.14} parent=51 // pred_check
          %p929 = pneg %p255
        $region66: #{decoder_forward.14} parent=51 // pred_check_branch
          %931 = sbr.rel (%p929) target = $region68
        $region67: #{decoder_forward.14} parent=51 // pred_region
          _
        $region68: #{decoder_forward.14} parent=51 // pred_fallthru
          _
      $region52: #{decoder_forward.14} parent=5 // pred_fallthru
        _
      %p932 = scmp.le.s32.totalorder 2, %s15
      // Predicated region
      $region69: #{decoder_forward.14} parent=5 // pred_check
        %p933 = pneg %p932
      $region70: #{decoder_forward.14} parent=5 // pred_check_branch
        %935 = sbr.rel (%p933) target = $region72
      $region71: #{decoder_forward.14} parent=5 // pred_region
        %s936 = ssub.s32 %s15, 2
        // Predicated region
        $region73: #{decoder_forward.14} parent=71 // pred_check
          %p937 = pneg %p261
        $region74: #{decoder_forward.14} parent=71 // pred_check_branch
          %939 = sbr.rel (%p937) target = $region76
        $region75: #{decoder_forward.14} parent=71 // pred_region
          %p940 = scmp.lt.s32.totalorder %s28, 1
          %s941 = scalar_select %p940, %s28, 1
          %p942 = scmp.lt.s32.totalorder %s29, 0
          %s943 = scalar_select %p942, %s29, 0
          %s944 = sadd.s32 %s943, %s941
          %s945 = smul.addr %s944, 8
          %s946 = scalar_lea.vmem %s8, %s945
        $region76: #{decoder_forward.14} parent=71 // pred_fallthru
          _
      $region72: #{decoder_forward.14} parent=5 // pred_fallthru
        _
    $region6: #{decoder_forward.14} parent=1 // loop_footer
      %s19 = sadd.s32 1, %s15
    $region7: #{decoder_forward.14} parent=1 // loop_footer_branch
      %14 = sbr.rel target = $region3
    $region8: #{decoder_forward.14} parent=1 // loop_exit
      _
    %947 = vsyncpa [#allocation6], 1
    %s948 = scalar_lea.sflag [#allocation6], 1
    %949 = vsyncpa %s948, 1

// kernel: decoder_forward.18
$region0: #{decoder_forward.18}
  #allocation0 [shape = 'u32[]', space=smem, size = 0x4, offset = 0x4, fixed_abs, tag = 'smem constant byte address 0x4 - core index']
  #allocation1 [shape = 'u32[72,128]{1,0:T(1,128)}', space=vmem, size = 0x9000, scoped, tag = 'internal scratch']
  #allocation2 [shape = 'f32[16,32]{1,0:T(8,128)}', space=vmem, size = 0x2000, scoped, tag = 'scratch operand']
  %s0 = inlined_call_operand.vmem [shape: f32[16,32], index: 0, kind: input, shape index: {}]
  %s1 = inlined_call_operand.hbm [shape: f32[32,64], index: 1, kind: input, shape index: {}]
  %s2 = inlined_call_operand.vmem [shape: f32[1,64], index: 2, kind: input, shape index: {}]
  %s3 = inlined_call_operand.vmem [shape: f32[64,32], index: 3, kind: input, shape index: {}]
  %s4 = inlined_call_operand.hbm [shape: f32[1,32], index: 4, kind: input, shape index: {}]
  %s5 = inlined_call_operand.hbm [shape: f32[1,32], index: 5, kind: input, shape index: {}]
  %s6 = inlined_call_operand.hbm [shape: f32[1,32], index: 6, kind: input, shape index: {}]
  %s7 = inlined_call_operand.vmem [shape: f32[16,32], index: 7, kind: output, shape index: {}]
  %s8 = sld [smem:[#allocation0]]
  $region62: #{decoder_forward.18} parent=0
    _
  %s10 = ssub.s32 1, %s8
  %s11 = scalar_select 0, %s10, %s8
  $region1: #{decoder_forward.18} parent=0
    #allocation3 [shape = 'u8[16384]{0}', space=vmem, size = 0x4000, scoped, tag = 'input window, operand 1, single buffered']
    #allocation4 [shape = 's32[1]{0}', space=sflag, size = 0x4, scoped, tag = 'scoped memory for decoder_forward.18']
    #allocation5 [shape = 'u8[512]{0}', space=vmem, size = 0x400, scoped, tag = 'input window, operand 4, single buffered']
    #allocation6 [shape = 's32[1]{0}', space=sflag, size = 0x4, scoped, tag = 'scoped memory for decoder_forward.18']
    #allocation7 [shape = 'u8[512]{0}', space=vmem, size = 0x400, scoped, tag = 'input window, operand 5, single buffered']
    #allocation8 [shape = 'u8[512]{0}', space=vmem, size = 0x400, scoped, tag = 'input window, operand 6, single buffered']
    #allocation9 [shape = 's32[1]{0}', space=sflag, size = 0x4, scoped, tag = 'scoped memory for decoder_forward.18']
    %12 = vsyncpa [#allocation4], 0
    %13 = vsyncpa [#allocation6], 0
    %14 = vsyncpa [#allocation9], 0
    // Predicated region
    $region2: #{decoder_forward.18} parent=1 // pred_check
      _
    $region3: #{decoder_forward.18} parent=1 // pred_check_branch
      %16 = sbr.rel (0) target = $region5
    $region4: #{decoder_forward.18} parent=1 // pred_region
      _
    $region5: #{decoder_forward.18} parent=1 // pred_fallthru
      _
    // Predicated region
    $region6: #{decoder_forward.18} parent=1 // pred_check
      _
    $region7: #{decoder_forward.18} parent=1 // pred_check_branch
      %18 = sbr.rel (0) target = $region9
    $region8: #{decoder_forward.18} parent=1 // pred_region
      %20 = vsyncadd [#allocation4], 0
      %s21 = sshll.u32 %s1, 4
      %s22 = int_to_ptr.hbm [resolvable:$true] %s21
      %s23 = sshll.u32 [#allocation3], 4
      %s24 = int_to_ptr.vmem [resolvable:$true] %s23
      %29 = dma.hbm_to_vmem [thread:$0]  %s22, 512, %s24, [#allocation4], 128, 128, 8
    $region9: #{decoder_forward.18} parent=1 // pred_fallthru
      _
    // Predicated region
    $region10: #{decoder_forward.18} parent=1 // pred_check
      _
    $region11: #{decoder_forward.18} parent=1 // pred_check_branch
      %31 = sbr.rel (0) target = $region13
    $region12: #{decoder_forward.18} parent=1 // pred_region
      _
    $region13: #{decoder_forward.18} parent=1 // pred_fallthru
      _
    // Predicated region
    $region14: #{decoder_forward.18} parent=1 // pred_check
      _
    $region15: #{decoder_forward.18} parent=1 // pred_check_branch
      %33 = sbr.rel (0) target = $region17
    $region16: #{decoder_forward.18} parent=1 // pred_region
      _
    $region17: #{decoder_forward.18} parent=1 // pred_fallthru
      _
    // Predicated region
    $region18: #{decoder_forward.18} parent=1 // pred_check
      _
    $region19: #{decoder_forward.18} parent=1 // pred_check_branch
      %35 = sbr.rel (0) target = $region21
    $region20: #{decoder_forward.18} parent=1 // pred_region
      %37 = vsyncadd [#allocation6], 0
      %s39 = sshll.u32 %s4, 4
      %s40 = int_to_ptr.hbm [resolvable:$true] %s39
      %s41 = sshll.u32 [#allocation5], 4
      %s42 = int_to_ptr.vmem [resolvable:$true] %s41
      %44 = dma.hbm_to_vmem [thread:$0]  %s40, 16, %s42, [#allocation6]
    $region21: #{decoder_forward.18} parent=1 // pred_fallthru
      _
    // Predicated region
    $region22: #{decoder_forward.18} parent=1 // pred_check
      _
    $region23: #{decoder_forward.18} parent=1 // pred_check_branch
      %46 = sbr.rel (0) target = $region25
    $region24: #{decoder_forward.18} parent=1 // pred_region
      %48 = vsyncadd [#allocation6], 0
      %s50 = sshll.u32 %s5, 4
      %s51 = int_to_ptr.hbm [resolvable:$true] %s50
      %s52 = sshll.u32 [#allocation7], 4
      %s53 = int_to_ptr.vmem [resolvable:$true] %s52
      %55 = dma.hbm_to_vmem [thread:$0]  %s51, 16, %s53, [#allocation6]
    $region25: #{decoder_forward.18} parent=1 // pred_fallthru
      _
    // Predicated region
    $region26: #{decoder_forward.18} parent=1 // pred_check
      _
    $region27: #{decoder_forward.18} parent=1 // pred_check_branch
      %57 = sbr.rel (0) target = $region29
    $region28: #{decoder_forward.18} parent=1 // pred_region
      %59 = vsyncadd [#allocation9], 0
      %s61 = sshll.u32 %s6, 4
      %s62 = int_to_ptr.hbm [resolvable:$true] %s61
      %s63 = sshll.u32 [#allocation8], 4
      %s64 = int_to_ptr.vmem [resolvable:$true] %s63
      %66 = dma.hbm_to_vmem [thread:$0]  %s62, 16, %s64, [#allocation9]
    $region29: #{decoder_forward.18} parent=1 // pred_fallthru
      _
    // Predicated region
    $region30: #{decoder_forward.18} parent=1 // pred_check
      _
    $region31: #{decoder_forward.18} parent=1 // pred_check_branch
      %68 = sbr.rel (0) target = $region33
    $region32: #{decoder_forward.18} parent=1 // pred_region
      %70 = dma.done [#allocation4], 512
    $region33: #{decoder_forward.18} parent=1 // pred_fallthru
      _
    // Predicated region
    $region34: #{decoder_forward.18} parent=1 // pred_check
      _
    $region35: #{decoder_forward.18} parent=1 // pred_check_branch
      %72 = sbr.rel (0) target = $region37
    $region36: #{decoder_forward.18} parent=1 // pred_region
      %74 = dma.done [#allocation6], 16
    $region37: #{decoder_forward.18} parent=1 // pred_fallthru
      _
    // Predicated region
    $region38: #{decoder_forward.18} parent=1 // pred_check
      _
    $region39: #{decoder_forward.18} parent=1 // pred_check_branch
      %76 = sbr.rel (0) target = $region41
    $region40: #{decoder_forward.18} parent=1 // pred_region
      %78 = dma.done [#allocation6], 16
    $region41: #{decoder_forward.18} parent=1 // pred_fallthru
      _
    // Predicated region
    $region42: #{decoder_forward.18} parent=1 // pred_check
      _
    $region43: #{decoder_forward.18} parent=1 // pred_check_branch
      %80 = sbr.rel (0) target = $region45
    $region44: #{decoder_forward.18} parent=1 // pred_region
      %82 = dma.done [#allocation9], 16
    $region45: #{decoder_forward.18} parent=1 // pred_fallthru
      _
    %p84 = scmp.eq.s32.totalorder 0, 0
    // Predicated region
    $region46: #{decoder_forward.18} parent=1 // pred_check
      %p85 = pneg %p84
    $region47: #{decoder_forward.18} parent=1 // pred_check_branch
      %87 = sbr.rel (%p85) target = $region49
    $region48: #{decoder_forward.18} parent=1 // pred_region
      %vm88 = vcmask 261120
      %89 = vst.msk [vmem:[#allocation2] sm:$0xff] %vm88, 0.0
      %90 = vst.msk [vmem:[#allocation2 + $0x8] sm:$0xff] %vm88, 0.0
    $region49: #{decoder_forward.18} parent=1 // pred_fallthru
      _
    %v91 = vld [vmem:[%s0] sm:$0xff]
    %v92 = vld [vmem:[%s0 + $0x8] sm:$0xff]
    %v93 = vpack.c.bf16 %v92, %v91
    %v94 = vld [vmem:[#allocation3] sm:$0xff]
    %v95 = vld [vmem:[#allocation3 + $0x8] sm:$0xff]
    %v96 = vld [vmem:[#allocation3 + $0x10] sm:$0xff]
    %v97 = vld [vmem:[#allocation3 + $0x18] sm:$0xff]
    %v98 = vpack.c.bf16 %v95, %v94
    %v99 = vpack.c.bf16 %v97, %v96
    %v100 = vld [vmem:[%s2] sm:$0x1]
    %v102 = vperm.slane %v100, 0
    %vm104 = vcmask 261120
    %v106 = vsel %vm104, %v93, 0
    %108 = vmatpush.bf16.msra.mxu0 0
    %109 = vmatpush.bf16.msra.mxu0 0
    %110 = vmatpush.bf16.msra.mxu0 0
    %111 = vmatpush.bf16.msra.mxu0 0
    %112 = vmatpush.bf16.msra.mxu0 0
    %113 = vmatpush.bf16.msra.mxu0 0
    %114 = vmatpush.bf16.msra.mxu0 %v99
    %115 = vmatpush.bf16.msra.mxu0 %v98
    %116 = vmatmul.bf16.gmra.mxu0 %v106
    %v117 = vpop.f32.mrf.mxu0
    %v118 = vadd.f32 %v102, %v117
    %v119 = vpop.f32.mrf.mxu0
    %v120 = vadd.f32 %v102, %v119
    %121 = vdwg.mxu0
    %v122 = vmax.f32 %v118, 0.0
    %v123 = vmax.f32 %v120, 0.0
    %v124 = vld [vmem:[#allocation2] sm:$0xff]
    %v125 = vld [vmem:[#allocation2 + $0x8] sm:$0xff]
    %v126 = vpack.c.bf16 %v123, %v122
    %v127 = vld [vmem:[%s3] sm:$0xff]
    %v128 = vld [vmem:[%s3 + $0x8] sm:$0xff]
    %v129 = vld [vmem:[%s3 + $0x10] sm:$0xff]
    %v130 = vld [vmem:[%s3 + $0x18] sm:$0xff]
    %v131 = vld [vmem:[%s3 + $0x20] sm:$0xff]
    %v132 = vld [vmem:[%s3 + $0x28] sm:$0xff]
    %v133 = vld [vmem:[%s3 + $0x30] sm:$0xff]
    %v134 = vld [vmem:[%s3 + $0x38] sm:$0xff]
    %v135 = vpack.c.bf16 %v128, %v127
    %v136 = vpack.c.bf16 %v130, %v129
    %v137 = vpack.c.bf16 %v132, %v131
    %v138 = vpack.c.bf16 %v134, %v133
    %vm139 = vcmask 523264
    %v141 = vsel %vm139, %v126, 0
    %143 = vmatpush.bf16.msra.mxu0 0
    %144 = vmatpush.bf16.msra.mxu0 0
    %145 = vmatpush.bf16.msra.mxu0 0
    %146 = vmatpush.bf16.msra.mxu0 0
    %147 = vmatpush.bf16.msra.mxu0 %v138
    %148 = vmatpush.bf16.msra.mxu0 %v137
    %149 = vmatpush.bf16.msra.mxu0 %v136
    %150 = vmatpush.bf16.msra.mxu0 %v135
    %151 = vmatmul.bf16.gmra.mxu0 %v141
    %v152 = vpop.f32.mrf.mxu0
    %v153 = vadd.f32 0.0, %v152
    %v154 = vpop.f32.mrf.mxu0
    %v155 = vadd.f32 0.0, %v154
    %156 = vdwg.mxu0
    %v157 = vadd.f32 %v124, %v153
    %v158 = vadd.f32 %v125, %v155
    %159 = vst.msk [vmem:[#allocation2] sm:$0xff] %vm104, %v157
    %160 = vst.msk [vmem:[#allocation2 + $0x8] sm:$0xff] %vm104, %v158
    // Predicated region
    $region50: #{decoder_forward.18} parent=1 // pred_check
      %p161 = pneg %p84
    $region51: #{decoder_forward.18} parent=1 // pred_check_branch
      %163 = sbr.rel (%p161) target = $region53
    $region52: #{decoder_forward.18} parent=1 // pred_region
      %v164 = vld [vmem:[#allocation2] sm:$0xff]
      %v165 = vld [vmem:[#allocation2 + $0x8] sm:$0xff]
      %v166 = vadd.f32 %v91, %v164
      %v167 = vadd.f32 %v92, %v165
      %v168 = vld [vmem:[#allocation5] sm:$0x1]
      %v170 = vperm.slane %v168, 0
      %v172 = vadd.f32 %v166, %v170
      %v173 = vadd.f32 %v167, %v170
      %v174 = vsel %vm104, %v172, 0.0
      %175 = vadd.xlane.f32.xlu0 %v174
      %v176 = vpop.xlane.xlu0 %175
      %v177 = vsel %vm104, %v173, 0.0
      %178 = vadd.xlane.f32.xlu0 %v177
      %v179 = vpop.xlane.xlu0 %178
      %v180 = vrcp.pop 32.0
      %v181 = vmul.f32 32.0, %v180
      %v182 = vsub.f32 1.0, %v181
      %v183 = vmul.f32 %v180, %v182
      %v184 = vadd.f32 %v180, %v183
      %vm185 = vweird.f32 %v180
      %v186 = vsel %vm185, %v180, %v184
      %v187 = vmul.f32 %v176, %v186
      %v188 = vmul.f32 %v179, %v186
      %v189 = vsub.f32 %v172, %v187
      %v190 = vsub.f32 %v173, %v188
      %v191 = vmul.f32 %v189, %v189
      %v192 = vmul.f32 %v190, %v190
      %v193 = vsel %vm104, %v191, 0.0
      %194 = vadd.xlane.f32.xlu0 %v193
      %v195 = vpop.xlane.xlu0 %194
      %v196 = vsel %vm104, %v192, 0.0
      %197 = vadd.xlane.f32.xlu0 %v196
      %v198 = vpop.xlane.xlu0 %197
      %v199 = vmul.f32 %v195, %v186
      %v200 = vmul.f32 %v198, %v186
      %v201 = vadd.f32 %v199, 1e-05
      %v202 = vadd.f32 %v200, 1e-05
      %v203 = vrsqrt.pop %v201
      %v204 = vmul.f32 %v203, %v201
      %v205 = vmul.f32 %v204, %v203
      %v206 = vmul.f32 0.5, %v205
      %v207 = vsub.f32 1.5, %v206
      %v208 = vmul.f32 %v203, %v207
      %vm209 = vweird.f32 %v201
      %vm210 = vweird.f32 %v203
      %vm211 = vmor %vm209, %vm210
      %v212 = vsel %vm211, %v203, %v208
      %v213 = vrsqrt.pop %v202
      %v214 = vmul.f32 %v213, %v202
      %v215 = vmul.f32 %v214, %v213
      %v216 = vmul.f32 0.5, %v215
      %v217 = vsub.f32 1.5, %v216
      %v218 = vmul.f32 %v213, %v217
      %vm219 = vweird.f32 %v202
      %vm220 = vweird.f32 %v213
      %vm221 = vmor %vm219, %vm220
      %v222 = vsel %vm221, %v213, %v218
      %v223 = vmul.f32 %v189, %v212
      %v224 = vmul.f32 %v190, %v222
      %v225 = vld [vmem:[#allocation7] sm:$0x1]
      %v227 = vperm.slane %v225, 0
      %v229 = vmul.f32 %v223, %v227
      %v230 = vmul.f32 %v224, %v227
      %v231 = vld [vmem:[#allocation8] sm:$0x1]
      %v233 = vperm.slane %v231, 0
      %v235 = vadd.f32 %v229, %v233
      %v236 = vadd.f32 %v230, %v233
      %237 = vst.msk [vmem:[%s7] sm:$0xff] %vm104, %v235
      %238 = vst.msk [vmem:[%s7 + $0x8] sm:$0xff] %vm104, %v236
    $region53: #{decoder_forward.18} parent=1 // pred_fallthru
      _
    // Predicated region
    $region54: #{decoder_forward.18} parent=1 // pred_check
      _
    $region55: #{decoder_forward.18} parent=1 // pred_check_branch
      %240 = sbr.rel (0) target = $region57
    $region56: #{decoder_forward.18} parent=1 // pred_region
      _
    $region57: #{decoder_forward.18} parent=1 // pred_fallthru
      _
    // Predicated region
    $region58: #{decoder_forward.18} parent=1 // pred_check
      _
    $region59: #{decoder_forward.18} parent=1 // pred_check_branch
      %242 = sbr.rel (0) target = $region61
    $region60: #{decoder_forward.18} parent=1 // pred_region
      _
    $region61: #{decoder_forward.18} parent=1 // pred_fallthru
      _
    %243 = vsyncpa [#allocation4], 1
    %244 = vsyncpa [#allocation6], 1
    %245 = vsyncpa [#allocation9], 1

// kernel: decoder_forward.21
$region0: #{decoder_forward.21}
  #allocation0 [shape = 'u32[]', space=smem, size = 0x4, offset = 0x4, fixed_abs, tag = 'smem constant byte address 0x4 - core index']
  #allocation1 [shape = 'u32[72,128]{1,0:T(1,128)}', space=vmem, size = 0x9000, scoped, tag = 'internal scratch']
  #allocation2 [shape = 'f32[1,16,32]{2,1,0:T(8,128)}', space=vmem, size = 0x2000, scoped, tag = 'scratch operand']
  %s0 = inlined_call_operand.vmem [shape: f32[16,32], index: 0, kind: input, shape index: {}]
  %s1 = inlined_call_operand.hbm [shape: f32[1,32,32], index: 1, kind: input, shape index: {}]
  %s2 = inlined_call_operand.hbm [shape: f32[1,1,32], index: 2, kind: input, shape index: {}]
  %s3 = inlined_call_operand.vmem [shape: bf16[1,16,32], index: 3, kind: output, shape index: {}]
  %s4 = sld [smem:[#allocation0]]
  $region38: #{decoder_forward.21} parent=0
    _
  %s6 = ssub.s32 1, %s4
  %s7 = scalar_select 0, %s6, %s4
  $region1: #{decoder_forward.21} parent=0
    #allocation3 [shape = 'u8[16384]{0}', space=vmem, size = 0x4000, scoped, tag = 'input window, operand 1, single buffered']
    #allocation4 [shape = 's32[1]{0}', space=sflag, size = 0x4, scoped, tag = 'scoped memory for decoder_forward.21']
    #allocation5 [shape = 'u8[512]{0}', space=vmem, size = 0x400, scoped, tag = 'input window, operand 2, single buffered']
    #allocation6 [shape = 's32[1]{0}', space=sflag, size = 0x4, scoped, tag = 'scoped memory for decoder_forward.21']
    %8 = vsyncpa [#allocation4], 0
    %9 = vsyncpa [#allocation6], 0
    // Predicated region
    $region2: #{decoder_forward.21} parent=1 // pred_check
      _
    $region3: #{decoder_forward.21} parent=1 // pred_check_branch
      %11 = sbr.rel (0) target = $region5
    $region4: #{decoder_forward.21} parent=1 // pred_region
      _
    $region5: #{decoder_forward.21} parent=1 // pred_fallthru
      _
    // Predicated region
    $region6: #{decoder_forward.21} parent=1 // pred_check
      _
    $region7: #{decoder_forward.21} parent=1 // pred_check_branch
      %13 = sbr.rel (0) target = $region9
    $region8: #{decoder_forward.21} parent=1 // pred_region
      %15 = vsyncadd [#allocation4], 0
      %s16 = sshll.u32 %s1, 4
      %s17 = int_to_ptr.hbm [resolvable:$true] %s16
      %s18 = sshll.u32 [#allocation3], 4
      %s19 = int_to_ptr.vmem [resolvable:$true] %s18
      %24 = dma.hbm_to_vmem [thread:$0]  %s17, 512, %s19, [#allocation4], 128, 128, 8
    $region9: #{decoder_forward.21} parent=1 // pred_fallthru
      _
    // Predicated region
    $region10: #{decoder_forward.21} parent=1 // pred_check
      _
    $region11: #{decoder_forward.21} parent=1 // pred_check_branch
      %26 = sbr.rel (0) target = $region13
    $region12: #{decoder_forward.21} parent=1 // pred_region
      %28 = vsyncadd [#allocation6], 0
      %s30 = sshll.u32 %s2, 4
      %s31 = int_to_ptr.hbm [resolvable:$true] %s30
      %s32 = sshll.u32 [#allocation5], 4
      %s33 = int_to_ptr.vmem [resolvable:$true] %s32
      %35 = dma.hbm_to_vmem [thread:$0]  %s31, 16, %s33, [#allocation6]
    $region13: #{decoder_forward.21} parent=1 // pred_fallthru
      _
    // Predicated region
    $region14: #{decoder_forward.21} parent=1 // pred_check
      _
    $region15: #{decoder_forward.21} parent=1 // pred_check_branch
      %37 = sbr.rel (0) target = $region17
    $region16: #{decoder_forward.21} parent=1 // pred_region
      %39 = dma.done [#allocation4], 512
    $region17: #{decoder_forward.21} parent=1 // pred_fallthru
      _
    // Predicated region
    $region18: #{decoder_forward.21} parent=1 // pred_check
      _
    $region19: #{decoder_forward.21} parent=1 // pred_check_branch
      %41 = sbr.rel (0) target = $region21
    $region20: #{decoder_forward.21} parent=1 // pred_region
      %43 = dma.done [#allocation6], 16
    $region21: #{decoder_forward.21} parent=1 // pred_fallthru
      _
    %p45 = scmp.eq.s32.totalorder 0, 0
    // Predicated region
    $region22: #{decoder_forward.21} parent=1 // pred_check
      %p46 = pneg %p45
    $region23: #{decoder_forward.21} parent=1 // pred_check_branch
      %48 = sbr.rel (%p46) target = $region25
    $region24: #{decoder_forward.21} parent=1 // pred_region
      %vm49 = vcmask 261120
      %50 = vst.msk [vmem:[#allocation2] sm:$0xff] %vm49, 0.0
      %51 = vst.msk [vmem:[#allocation2 + $0x8] sm:$0xff] %vm49, 0.0
    $region25: #{decoder_forward.21} parent=1 // pred_fallthru
      _
    %v52 = vld [vmem:[%s0] sm:$0xff]
    %v53 = vld [vmem:[%s0 + $0x8] sm:$0xff]
    %v54 = vpack.c.bf16 %v53, %v52
    %v55 = vld [vmem:[#allocation2] sm:$0xff]
    %v56 = vld [vmem:[#allocation2 + $0x8] sm:$0xff]
    %v57 = vld [vmem:[#allocation3] sm:$0xff]
    %v58 = vld [vmem:[#allocation3 + $0x8] sm:$0xff]
    %v59 = vld [vmem:[#allocation3 + $0x10] sm:$0xff]
    %v60 = vld [vmem:[#allocation3 + $0x18] sm:$0xff]
    %v61 = vpack.c.bf16 %v58, %v57
    %v62 = vpack.c.bf16 %v60, %v59
    %vm63 = vcmask 261120
    %v65 = vsel %vm63, %v54, 0
    %67 = vmatpush.bf16.msra.mxu0 0
    %68 = vmatpush.bf16.msra.mxu0 0
    %69 = vmatpush.bf16.msra.mxu0 0
    %70 = vmatpush.bf16.msra.mxu0 0
    %71 = vmatpush.bf16.msra.mxu0 0
    %72 = vmatpush.bf16.msra.mxu0 0
    %73 = vmatpush.bf16.msra.mxu0 %v62
    %74 = vmatpush.bf16.msra.mxu0 %v61
    %75 = vmatmul.bf16.gmra.mxu0 %v65
    %v76 = vpop.f32.mrf.mxu0
    %v77 = vadd.f32 0.0, %v76
    %v78 = vpop.f32.mrf.mxu0
    %v79 = vadd.f32 0.0, %v78
    %80 = vdwg.mxu0
    %v81 = vadd.f32 %v55, %v77
    %v82 = vadd.f32 %v56, %v79
    %83 = vst.msk [vmem:[#allocation2] sm:$0xff] %vm63, %v81
    %84 = vst.msk [vmem:[#allocation2 + $0x8] sm:$0xff] %vm63, %v82
    // Predicated region
    $region26: #{decoder_forward.21} parent=1 // pred_check
      %p85 = pneg %p45
    $region27: #{decoder_forward.21} parent=1 // pred_check_branch
      %87 = sbr.rel (%p85) target = $region29
    $region28: #{decoder_forward.21} parent=1 // pred_region
      %v88 = vld [vmem:[#allocation2] sm:$0xff]
      %v89 = vld [vmem:[#allocation2 + $0x8] sm:$0xff]
      %v90 = vld [vmem:[#allocation5] sm:$0x1]
      %v92 = vperm.slane %v90, 0
      %v94 = vadd.f32 %v88, %v92
      %v95 = vadd.f32 %v89, %v92
      %v96 = vpack.c.bf16 %v94, %v94
      %v97 = vpack.c.bf16 %v95, %v95
      %vm98 = vcmask 257024
      %99 = vst.msk [vmem:[%s3] sm:$0xf] %vm98, %v96
      %100 = vst.msk [vmem:[%s3 + $0x4] sm:$0xf] %vm98, %v97
    $region29: #{decoder_forward.21} parent=1 // pred_fallthru
      _
    // Predicated region
    $region30: #{decoder_forward.21} parent=1 // pred_check
      _
    $region31: #{decoder_forward.21} parent=1 // pred_check_branch
      %102 = sbr.rel (0) target = $region33
    $region32: #{decoder_forward.21} parent=1 // pred_region
      _
    $region33: #{decoder_forward.21} parent=1 // pred_fallthru
      _
    // Predicated region
    $region34: #{decoder_forward.21} parent=1 // pred_check
      _
    $region35: #{decoder_forward.21} parent=1 // pred_check_branch
      %104 = sbr.rel (0) target = $region37
    $region36: #{decoder_forward.21} parent=1 // pred_region
      _
    $region37: #{decoder_forward.21} parent=1 // pred_fallthru
      _
    %105 = vsyncpa [#allocation4], 1
    %106 = vsyncpa [#allocation6], 1

// kernel: decoder_forward.17
$region0: #{decoder_forward.17}
  #allocation0 [shape = 'u32[]', space=smem, size = 0x4, offset = 0x4, fixed_abs, tag = 'smem constant byte address 0x4 - core index']
  #allocation1 [shape = 'u32[72,128]{1,0:T(1,128)}', space=vmem, size = 0x9000, scoped, tag = 'internal scratch']
  #allocation2 [shape = 'f32[4,8,1]{2,1,0:T(8,128)}', space=vmem, size = 0x4000, scoped, tag = 'scratch operand']
  #allocation3 [shape = 'f32[4,8,1]{2,1,0:T(8,128)}', space=vmem, size = 0x4000, scoped, tag = 'scratch operand']
  #allocation4 [shape = 'f32[8,32]{1,0:T(8,128)}', space=vmem, size = 0x1000, scoped, tag = 'scratch operand']
  %s0 = inlined_call_operand.vmem [shape: bf16[1,2,8,32], index: 0, kind: input, shape index: {}]
  %s1 = inlined_call_operand.vmem [shape: bf16[2,2,8,32], index: 1, kind: input, shape index: {}, may-alias: {1,2}]
  %s2 = inlined_call_operand.vmem [shape: bf16[2,2,8,32], index: 2, kind: input, shape index: {}, may-alias: {1,2}]
  %s3 = inlined_call_operand.vmem [shape: f32[2,8,32], index: 3, kind: input, shape index: {}]
  %s4 = inlined_call_operand.hbm [shape: f32[32,32], index: 4, kind: input, shape index: {}]
  %s5 = inlined_call_operand.hbm [shape: f32[1,32], index: 5, kind: input, shape index: {}]
  %s6 = inlined_call_operand.hbm [shape: f32[1,32], index: 6, kind: input, shape index: {}]
  %s7 = inlined_call_operand.hbm [shape: f32[1,32], index: 7, kind: input, shape index: {}]
  %s8 = inlined_call_operand.vmem [shape: f32[2,8,32], index: 8, kind: output, shape index: {}]
  %s9 = sld [smem:[#allocation0]]
  $region89: #{decoder_forward.17} parent=0
    _
  %s11 = ssub.s32 1, %s9
  %s12 = scalar_select 0, %s11, %s9
  $region1: #{decoder_forward.17} parent=0
    #allocation5 [shape = 'u8[16384]{0}', space=vmem, size = 0x4000, scoped, tag = 'input window, operand 4, single buffered']
    #allocation6 [shape = 's32[2]{0}', space=sflag, size = 0x8, scoped, tag = 'scoped memory for decoder_forward.17']
    #allocation7 [shape = 'u8[512]{0}', space=vmem, size = 0x400, scoped, tag = 'input window, operand 5, single buffered']
    #allocation8 [shape = 's32[1]{0}', space=sflag, size = 0x4, scoped, tag = 'scoped memory for decoder_forward.17']
    #allocation9 [shape = 'u8[512]{0}', space=vmem, size = 0x400, scoped, tag = 'input window, operand 6, single buffered']
    #allocation10 [shape = 'u8[512]{0}', space=vmem, size = 0x400, scoped, tag = 'input window, operand 7, single buffered']
    #allocation11 [shape = 's32[1]{0}', space=sflag, size = 0x4, scoped, tag = 'scoped memory for decoder_forward.17']
    %13 = vsyncpa [#allocation6], 0
    %14 = vsyncpa [#allocation8], 0
    %15 = vsyncpa [#allocation11], 0
    loop: start=0, step=1, limit=4
    $region2: #{decoder_forward.17} parent=1 // loop_pre_header
      _
    $region3: #{decoder_forward.17} parent=1 // loop_header
      %s17 = sphi 0, %s21
      %p18 = scmp.ge.s32.totalorder %s17, 4
      %s24 = sphi 0, %s43
      %s25 = sphi 0, %s39
      %s26 = sphi 0, %s35
      %s27 = sphi 0, %s24
      %s28 = sphi 0, %s25
      %s29 = sphi 0, %s26
      %s30 = sphi 0, %s27
      %s31 = sphi 0, %s28
      %s32 = sphi 0, %s29
      %s48 = sphi 0, %s50
      %s51 = sphi 0, %s48
      %s52 = sphi 0, %s51
      %s68 = sphi 0, %s52
      %s76 = sphi 0, %s78
      %s79 = sphi 0, %s76
      %s80 = sphi 0, %s79
      %s96 = sphi 0, %s80
      %s104 = sphi 0, %s106
      %s107 = sphi 0, %s104
      %s108 = sphi 0, %s107
      %s124 = sphi 0, %s108
      %s132 = sphi 0, %s134
      %s135 = sphi 0, %s132
      %s136 = sphi 0, %s135
      %s152 = sphi 0, %s136
      %s156 = sphi 0, %s156
      %s158 = sphi 0, %s156
      %s159 = sphi 0, %s158
      %s173 = sphi 0, %s159
      %s177 = sphi 0, %s177
      %s179 = sphi 0, %s177
      %s180 = sphi 0, %s179
      %s194 = sphi 0, %s180
      %s198 = sphi 0, %s198
      %s200 = sphi 0, %s198
      %s201 = sphi 0, %s200
      %s215 = sphi 0, %s201
      %s219 = sphi 0, %s219
      %s221 = sphi 0, %s219
      %s222 = sphi 0, %s221
      %s236 = sphi 0, %s222
      %s244 = sphi 0, %s246
      %s247 = sphi 0, %s244
      %s248 = sphi 0, %s247
      %s264 = sphi 0, %s248
    $region4: #{decoder_forward.17} parent=1 // loop_header_branch
      %20 = sbr.rel (%p18) target = $region8
    $region5: #{decoder_forward.17} parent=1 // loop_body
      %s22 = ssub.s32 %s17, 1
      %s23 = ssub.s32 %s17, 2
      %s33 = sadd.s32 1, %s26
      %p34 = scmp.ge.s32.totalorder %s33, 1
      %s35 = scalar_select %p34, 0, %s33
      %s36 = sadd.s32 1, %s25
      %s37 = scalar_select %p34, %s36, %s25
      %p38 = scmp.ge.s32.totalorder %s37, 1
      %s39 = scalar_select %p38, 0, %s37
      %s40 = sadd.s32 1, %s24
      %s41 = scalar_select %p38, %s40, %s24
      %p42 = scmp.ge.s32.totalorder %s41, 2
      %s43 = scalar_select %p42, 0, %s41
      %s44 = ssub.s32 %s24, %s43
      %s45 = ssub.s32 %s25, %s39
      %s46 = sor.u32 %s44, %s45
      %p47 = scmp.eq.s32.totalorder %s46, 0
      %s49 = sadd.s32 %s48, 1
      %s50 = scalar_select %p47, %s48, %s49
      %p53 = pneg %p47
      %p54 = scmp.eq.s32.totalorder %s17, 1
      %p55 = por %p53, %p54
      %p56 = scmp.ne.s32.totalorder %s48, %s51
      %p57 = scmp.eq.s32.totalorder %s17, 0
      %p58 = por %p56, %p57
      %p59 = scmp.ne.s32.totalorder %s48, %s51
      %p60 = scmp.eq.s32.totalorder %s22, 1
      %p61 = por %p59, %p60
      %p62 = scmp.ne.s32.totalorder %s51, %s52
      %p63 = scmp.eq.s32.totalorder %s22, 0
      %p64 = por %p62, %p63
      %p65 = scmp.ne.s32.totalorder %s51, %s52
      %p66 = scmp.eq.s32.totalorder %s23, 1
      %p67 = por %p65, %p66
      %p69 = scmp.ne.s32.totalorder %s52, %s68
      %p70 = scmp.eq.s32.totalorder %s23, 0
      %p71 = por %p69, %p70
      %s72 = ssub.s32 %s24, %s43
      %s73 = ssub.s32 %s26, %s35
      %s74 = sor.u32 %s72, %s73
      %p75 = scmp.eq.s32.totalorder %s74, 0
      %s77 = sadd.s32 %s76, 1
      %s78 = scalar_select %p75, %s76, %s77
      %p81 = pneg %p75
      %p82 = scmp.eq.s32.totalorder %s17, 1
      %p83 = por %p81, %p82
      %p84 = scmp.ne.s32.totalorder %s76, %s79
      %p85 = scmp.eq.s32.totalorder %s17, 0
      %p86 = por %p84, %p85
      %p87 = scmp.ne.s32.totalorder %s76, %s79
      %p88 = scmp.eq.s32.totalorder %s22, 1
      %p89 = por %p87, %p88
      %p90 = scmp.ne.s32.totalorder %s79, %s80
      %p91 = scmp.eq.s32.totalorder %s22, 0
      %p92 = por %p90, %p91
      %p93 = scmp.ne.s32.totalorder %s79, %s80
      %p94 = scmp.eq.s32.totalorder %s23, 1
      %p95 = por %p93, %p94
      %p97 = scmp.ne.s32.totalorder %s80, %s96
      %p98 = scmp.eq.s32.totalorder %s23, 0
      %p99 = por %p97, %p98
      %s100 = ssub.s32 %s24, %s43
      %s101 = ssub.s32 %s26, %s35
      %s102 = sor.u32 %s100, %s101
      %p103 = scmp.eq.s32.totalorder %s102, 0
      %s105 = sadd.s32 %s104, 1
      %s106 = scalar_select %p103, %s104, %s105
      %p109 = pneg %p103
      %p110 = scmp.eq.s32.totalorder %s17, 1
      %p111 = por %p109, %p110
      %p112 = scmp.ne.s32.totalorder %s104, %s107
      %p113 = scmp.eq.s32.totalorder %s17, 0
      %p114 = por %p112, %p113
      %p115 = scmp.ne.s32.totalorder %s104, %s107
      %p116 = scmp.eq.s32.totalorder %s22, 1
      %p117 = por %p115, %p116
      %p118 = scmp.ne.s32.totalorder %s107, %s108
      %p119 = scmp.eq.s32.totalorder %s22, 0
      %p120 = por %p118, %p119
      %p121 = scmp.ne.s32.totalorder %s107, %s108
      %p122 = scmp.eq.s32.totalorder %s23, 1
      %p123 = por %p121, %p122
      %p125 = scmp.ne.s32.totalorder %s108, %s124
      %p126 = scmp.eq.s32.totalorder %s23, 0
      %p127 = por %p125, %p126
      %s128 = ssub.s32 %s24, %s43
      %s129 = ssub.s32 %s25, %s39
      %s130 = sor.u32 %s128, %s129
      %p131 = scmp.eq.s32.totalorder %s130, 0
      %s133 = sadd.s32 %s132, 1
      %s134 = scalar_select %p131, %s132, %s133
      %p137 = pneg %p131
      %p138 = scmp.eq.s32.totalorder %s17, 1
      %p139 = por %p137, %p138
      %p140 = scmp.ne.s32.totalorder %s132, %s135
      %p141 = scmp.eq.s32.totalorder %s17, 0
      %p142 = por %p140, %p141
      %p143 = scmp.ne.s32.totalorder %s132, %s135
      %p144 = scmp.eq.s32.totalorder %s22, 1
      %p145 = por %p143, %p144
      %p146 = scmp.ne.s32.totalorder %s135, %s136
      %p147 = scmp.eq.s32.totalorder %s22, 0
      %p148 = por %p146, %p147
      %p149 = scmp.ne.s32.totalorder %s135, %s136
      %p150 = scmp.eq.s32.totalorder %s23, 1
      %p151 = por %p149, %p150
      %p153 = scmp.ne.s32.totalorder %s136, %s152
      %p154 = scmp.eq.s32.totalorder %s23, 0
      %p155 = por %p153, %p154
      %s157 = sadd.s32 %s156, 1
      %p160 = scmp.eq.s32.totalorder %s17, 1
      %p161 = scmp.ne.s32.totalorder %s156, %s158
      %p162 = scmp.eq.s32.totalorder %s17, 0
      %p163 = por %p161, %p162
      %p164 = scmp.ne.s32.totalorder %s156, %s158
      %p165 = scmp.eq.s32.totalorder %s22, 1
      %p166 = por %p164, %p165
      %p167 = scmp.ne.s32.totalorder %s158, %s159
      %p168 = scmp.eq.s32.totalorder %s22, 0
      %p169 = por %p167, %p168
      %p170 = scmp.ne.s32.totalorder %s158, %s159
      %p171 = scmp.eq.s32.totalorder %s23, 1
      %p172 = por %p170, %p171
      %p174 = scmp.ne.s32.totalorder %s159, %s173
      %p175 = scmp.eq.s32.totalorder %s23, 0
      %p176 = por %p174, %p175
      %s178 = sadd.s32 %s177, 1
      %p181 = scmp.eq.s32.totalorder %s17, 1
      %p182 = scmp.ne.s32.totalorder %s177, %s179
      %p183 = scmp.eq.s32.totalorder %s17, 0
      %p184 = por %p182, %p183
      %p185 = scmp.ne.s32.totalorder %s177, %s179
      %p186 = scmp.eq.s32.totalorder %s22, 1
      %p187 = por %p185, %p186
      %p188 = scmp.ne.s32.totalorder %s179, %s180
      %p189 = scmp.eq.s32.totalorder %s22, 0
      %p190 = por %p188, %p189
      %p191 = scmp.ne.s32.totalorder %s179, %s180
      %p192 = scmp.eq.s32.totalorder %s23, 1
      %p193 = por %p191, %p192
      %p195 = scmp.ne.s32.totalorder %s180, %s194
      %p196 = scmp.eq.s32.totalorder %s23, 0
      %p197 = por %p195, %p196
      %s199 = sadd.s32 %s198, 1
      %p202 = scmp.eq.s32.totalorder %s17, 1
      %p203 = scmp.ne.s32.totalorder %s198, %s200
      %p204 = scmp.eq.s32.totalorder %s17, 0
      %p205 = por %p203, %p204
      %p206 = scmp.ne.s32.totalorder %s198, %s200
      %p207 = scmp.eq.s32.totalorder %s22, 1
      %p208 = por %p206, %p207
      %p209 = scmp.ne.s32.totalorder %s200, %s201
      %p210 = scmp.eq.s32.totalorder %s22, 0
      %p211 = por %p209, %p210
      %p212 = scmp.ne.s32.totalorder %s200, %s201
      %p213 = scmp.eq.s32.totalorder %s23, 1
      %p214 = por %p212, %p213
      %p216 = scmp.ne.s32.totalorder %s201, %s215
      %p217 = scmp.eq.s32.totalorder %s23, 0
      %p218 = por %p216, %p217
      %s220 = sadd.s32 %s219, 1
      %p223 = scmp.eq.s32.totalorder %s17, 1
      %p224 = scmp.ne.s32.totalorder %s219, %s221
      %p225 = scmp.eq.s32.totalorder %s17, 0
      %p226 = por %p224, %p225
      %p227 = scmp.ne.s32.totalorder %s219, %s221
      %p228 = scmp.eq.s32.totalorder %s22, 1
      %p229 = por %p227, %p228
      %p230 = scmp.ne.s32.totalorder %s221, %s222
      %p231 = scmp.eq.s32.totalorder %s22, 0
      %p232 = por %p230, %p231
      %p233 = scmp.ne.s32.totalorder %s221, %s222
      %p234 = scmp.eq.s32.totalorder %s23, 1
      %p235 = por %p233, %p234
      %p237 = scmp.ne.s32.totalorder %s222, %s236
      %p238 = scmp.eq.s32.totalorder %s23, 0
      %p239 = por %p237, %p238
      %s240 = ssub.s32 %s24, %s43
      %s241 = ssub.s32 %s25, %s39
      %s242 = sor.u32 %s240, %s241
      %p243 = scmp.eq.s32.totalorder %s242, 0
      %s245 = sadd.s32 %s244, 1
      %s246 = scalar_select %p243, %s244, %s245
      %p249 = pneg %p243
      %p250 = scmp.eq.s32.totalorder %s17, 1
      %p251 = por %p249, %p250
      %p252 = scmp.ne.s32.totalorder %s244, %s247
      %p253 = scmp.eq.s32.totalorder %s17, 0
      %p254 = por %p252, %p253
      %p255 = scmp.ne.s32.totalorder %s244, %s247
      %p256 = scmp.eq.s32.totalorder %s22, 1
      %p257 = por %p255, %p256
      %p258 = scmp.ne.s32.totalorder %s247, %s248
      %p259 = scmp.eq.s32.totalorder %s22, 0
      %p260 = por %p258, %p259
      %p261 = scmp.ne.s32.totalorder %s247, %s248
      %p262 = scmp.eq.s32.totalorder %s23, 1
      %p263 = por %p261, %p262
      %p265 = scmp.ne.s32.totalorder %s248, %s264
      %p266 = scmp.eq.s32.totalorder %s23, 0
      %p267 = por %p265, %p266
      %p268 = scmp.le.s32.totalorder 1, %s17
      %p269 = scmp.lt.s32.totalorder %s17, 3
      %p270 = pnand %p268, %p269
      %p271 = pneg %p270
      // Predicated region
      $region9: #{decoder_forward.17} parent=5 // pred_check
        _
      $region10: #{decoder_forward.17} parent=5 // pred_check_branch
        %273 = sbr.rel (%p270) target = $region12
      $region11: #{decoder_forward.17} parent=5 // pred_region
        %s274 = ssub.s32 %s17, 1
        // Predicated region
        $region13: #{decoder_forward.17} parent=11 // pred_check
          %p275 = pneg %p169
        $region14: #{decoder_forward.17} parent=11 // pred_check_branch
          %277 = sbr.rel (%p275) target = $region16
        $region15: #{decoder_forward.17} parent=11 // pred_region
          %279 = vsyncadd [#allocation6], 0
          %s280 = sshll.u32 %s4, 4
          %s281 = int_to_ptr.hbm [resolvable:$true] %s280
          %s282 = sshll.u32 [#allocation5], 4
          %s283 = int_to_ptr.vmem [resolvable:$true] %s282
          %288 = dma.hbm_to_vmem [thread:$0]  %s281, 512, %s283, [#allocation6], 128, 128, 8
        $region16: #{decoder_forward.17} parent=11 // pred_fallthru
          _
        // Predicated region
        $region17: #{decoder_forward.17} parent=11 // pred_check
          %p289 = pneg %p190
        $region18: #{decoder_forward.17} parent=11 // pred_check_branch
          %291 = sbr.rel (%p289) target = $region20
        $region19: #{decoder_forward.17} parent=11 // pred_region
          %293 = vsyncadd [#allocation8], 0
          %s295 = sshll.u32 %s5, 4
          %s296 = int_to_ptr.hbm [resolvable:$true] %s295
          %s297 = sshll.u32 [#allocation7], 4
          %s298 = int_to_ptr.vmem [resolvable:$true] %s297
          %300 = dma.hbm_to_vmem [thread:$0]  %s296, 16, %s298, [#allocation8]
        $region20: #{decoder_forward.17} parent=11 // pred_fallthru
          _
        // Predicated region
        $region21: #{decoder_forward.17} parent=11 // pred_check
          %p301 = pneg %p211
        $region22: #{decoder_forward.17} parent=11 // pred_check_branch
          %303 = sbr.rel (%p301) target = $region24
        $region23: #{decoder_forward.17} parent=11 // pred_region
          %305 = vsyncadd [#allocation8], 0
          %s307 = sshll.u32 %s6, 4
          %s308 = int_to_ptr.hbm [resolvable:$true] %s307
          %s309 = sshll.u32 [#allocation9], 4
          %s310 = int_to_ptr.vmem [resolvable:$true] %s309
          %312 = dma.hbm_to_vmem [thread:$0]  %s308, 16, %s310, [#allocation8]
        $region24: #{decoder_forward.17} parent=11 // pred_fallthru
          _
        // Predicated region
        $region25: #{decoder_forward.17} parent=11 // pred_check
          %p313 = pneg %p232
        $region26: #{decoder_forward.17} parent=11 // pred_check_branch
          %315 = sbr.rel (%p313) target = $region28
        $region27: #{decoder_forward.17} parent=11 // pred_region
          %317 = vsyncadd [#allocation11], 0
          %s319 = sshll.u32 %s7, 4
          %s320 = int_to_ptr.hbm [resolvable:$true] %s319
          %s321 = sshll.u32 [#allocation10], 4
          %s322 = int_to_ptr.vmem [resolvable:$true] %s321
          %324 = dma.hbm_to_vmem [thread:$0]  %s320, 16, %s322, [#allocation11]
        $region28: #{decoder_forward.17} parent=11 // pred_fallthru
          _
      $region12: #{decoder_forward.17} parent=5 // pred_fallthru
        _
      %p325 = scmp.lt.s32.totalorder %s17, 2
      // Predicated region
      $region29: #{decoder_forward.17} parent=5 // pred_check
        %p326 = pneg %p325
      $region30: #{decoder_forward.17} parent=5 // pred_check_branch
        %328 = sbr.rel (%p326) target = $region32
      $region31: #{decoder_forward.17} parent=5 // pred_region
        // Predicated region
        $region33: #{decoder_forward.17} parent=31 // pred_check
          %p329 = pneg %p58
        $region34: #{decoder_forward.17} parent=31 // pred_check_branch
          %331 = sbr.rel (%p329) target = $region36
        $region35: #{decoder_forward.17} parent=31 // pred_region
          %p332 = scmp.lt.s32.totalorder %s24, 1
          %s333 = scalar_select %p332, %s24, 1
          %p334 = scmp.lt.s32.totalorder %s25, 0
          %s335 = scalar_select %p334, %s25, 0
          %s336 = sadd.s32 %s335, %s333
          %s337 = smul.addr %s336, 4
          %s338 = scalar_lea.vmem %s0, %s337
        $region36: #{decoder_forward.17} parent=31 // pred_fallthru
          _
        // Predicated region
        $region37: #{decoder_forward.17} parent=31 // pred_check
          %p339 = pneg %p86
        $region38: #{decoder_forward.17} parent=31 // pred_check_branch
          %341 = sbr.rel (%p339) target = $region40
        $region39: #{decoder_forward.17} parent=31 // pred_region
          %p342 = scmp.lt.s32.totalorder %s24, 1
          %s343 = scalar_select %p342, %s24, 1
          %p344 = scmp.lt.s32.totalorder %s26, 0
          %s345 = scalar_select %p344, %s26, 0
          %s346 = sadd.s32 %s345, %s343
          %s347 = smul.addr %s346, 4
          %s348 = scalar_lea.vmem %s1, %s347
        $region40: #{decoder_forward.17} parent=31 // pred_fallthru
          _
        // Predicated region
        $region41: #{decoder_forward.17} parent=31 // pred_check
          %p349 = pneg %p114
        $region42: #{decoder_forward.17} parent=31 // pred_check_branch
          %351 = sbr.rel (%p349) target = $region44
        $region43: #{decoder_forward.17} parent=31 // pred_region
          %p352 = scmp.lt.s32.totalorder %s24, 1
          %s353 = scalar_select %p352, %s24, 1
          %p354 = scmp.lt.s32.totalorder %s26, 0
          %s355 = scalar_select %p354, %s26, 0
          %s356 = sadd.s32 %s355, %s353
          %s357 = sadd.s32 %s356, 2
          %s358 = smul.addr %s357, 4
          %s359 = scalar_lea.vmem %s2, %s358
        $region44: #{decoder_forward.17} parent=31 // pred_fallthru
          _
        // Predicated region
        $region45: #{decoder_forward.17} parent=31 // pred_check
          %p360 = pneg %p142
        $region46: #{decoder_forward.17} parent=31 // pred_check_branch
          %362 = sbr.rel (%p360) target = $region48
        $region47: #{decoder_forward.17} parent=31 // pred_region
          %p363 = scmp.lt.s32.totalorder %s24, 1
          %s364 = scalar_select %p363, %s24, 1
          %p365 = scmp.lt.s32.totalorder %s25, 0
          %s366 = scalar_select %p365, %s25, 0
          %s367 = sadd.s32 %s366, %s364
          %s368 = smul.addr %s367, 8
          %s369 = scalar_lea.vmem %s3, %s368
        $region48: #{decoder_forward.17} parent=31 // pred_fallthru
          _
      $region32: #{decoder_forward.17} parent=5 // pred_fallthru
        _
      %p370 = scmp.le.s32.totalorder 1, %s17
      %p371 = scmp.lt.s32.totalorder %s17, 3
      %p372 = pnand %p370, %p371
      %p373 = pneg %p372
      // Predicated region
      $region49: #{decoder_forward.17} parent=5 // pred_check
        _
      $region50: #{decoder_forward.17} parent=5 // pred_check_branch
        %375 = sbr.rel (%p372) target = $region52
      $region51: #{decoder_forward.17} parent=5 // pred_region
        %s376 = ssub.s32 %s17, 1
        // Predicated region
        $region53: #{decoder_forward.17} parent=51 // pred_check
          %p377 = pneg %p169
        $region54: #{decoder_forward.17} parent=51 // pred_check_branch
          %379 = sbr.rel (%p377) target = $region56
        $region55: #{decoder_forward.17} parent=51 // pred_region
          %381 = dma.done [#allocation6], 512
        $region56: #{decoder_forward.17} parent=51 // pred_fallthru
          _
        // Predicated region
        $region57: #{decoder_forward.17} parent=51 // pred_check
          %p382 = pneg %p190
        $region58: #{decoder_forward.17} parent=51 // pred_check_branch
          %384 = sbr.rel (%p382) target = $region60
        $region59: #{decoder_forward.17} parent=51 // pred_region
          %386 = dma.done [#allocation8], 16
        $region60: #{decoder_forward.17} parent=51 // pred_fallthru
          _
        // Predicated region
        $region61: #{decoder_forward.17} parent=51 // pred_check
          %p387 = pneg %p211
        $region62: #{decoder_forward.17} parent=51 // pred_check_branch
          %389 = sbr.rel (%p387) target = $region64
        $region63: #{decoder_forward.17} parent=51 // pred_region
          %391 = dma.done [#allocation8], 16
        $region64: #{decoder_forward.17} parent=51 // pred_fallthru
          _
        // Predicated region
        $region65: #{decoder_forward.17} parent=51 // pred_check
          %p392 = pneg %p232
        $region66: #{decoder_forward.17} parent=51 // pred_check_branch
          %394 = sbr.rel (%p392) target = $region68
        $region67: #{decoder_forward.17} parent=51 // pred_region
          %396 = dma.done [#allocation11], 16
        $region68: #{decoder_forward.17} parent=51 // pred_fallthru
          _
        %p397 = scmp.lt.s32.totalorder %s27, 1
        %s398 = scalar_select %p397, %s27, 1
        %p399 = scmp.lt.s32.totalorder %s28, 0
        %s400 = scalar_select %p399, %s28, 0
        %s401 = sadd.s32 %s400, %s398
        %s402 = smul.addr %s401, 4
        %s403 = scalar_lea.vmem %s0, %s402
        %p404 = pneg %p64
        %p405 = pneg %p61
        %p406 = scmp.lt.s32.totalorder %s27, 1
        %s407 = scalar_select %p406, %s27, 1
        %p408 = scmp.lt.s32.totalorder %s29, 0
        %s409 = scalar_select %p408, %s29, 0
        %s410 = sadd.s32 %s409, %s407
        %s411 = smul.addr %s410, 4
        %s412 = scalar_lea.vmem %s1, %s411
        %p413 = pneg %p92
        %p414 = pneg %p89
        %p415 = scmp.lt.s32.totalorder %s27, 1
        %s416 = scalar_select %p415, %s27, 1
        %p417 = scmp.lt.s32.totalorder %s29, 0
        %s418 = scalar_select %p417, %s29, 0
        %s419 = sadd.s32 %s418, %s416
        %s420 = sadd.s32 %s419, 2
        %s421 = smul.addr %s420, 4
        %s422 = scalar_lea.vmem %s2, %s421
        %p423 = pneg %p120
        %p424 = pneg %p117
        %p425 = scmp.lt.s32.totalorder %s27, 1
        %s426 = scalar_select %p425, %s27, 1
        %p427 = scmp.lt.s32.totalorder %s28, 0
        %s428 = scalar_select %p427, %s28, 0
        %s429 = sadd.s32 %s428, %s426
        %s430 = smul.addr %s429, 8
        %s431 = scalar_lea.vmem %s3, %s430
        %p432 = pneg %p148
        %p433 = pneg %p145
        %p434 = pneg %p169
        %p435 = pneg %p166
        %p436 = pneg %p190
        %p437 = pneg %p187
        %p438 = pneg %p211
        %p439 = pneg %p208
        %p440 = pneg %p232
        %p441 = pneg %p229
        %p442 = pneg %p260
        %p443 = pneg %p257
        %p444 = scmp.lt.s32.totalorder %s27, 1
        %s445 = scalar_select %p444, %s27, 1
        %p446 = scmp.lt.s32.totalorder %s28, 0
        %s447 = scalar_select %p446, %s28, 0
        %s448 = sadd.s32 %s447, %s445
        %s449 = smul.addr %s448, 8
        %s450 = scalar_lea.vmem %s8, %s449
        %p451 = scmp.lt.s32.totalorder %s27, 1
        %s452 = scalar_select %p451, %s27, 1
        %p453 = scmp.lt.s32.totalorder %s28, 0
        %s454 = scalar_select %p453, %s28, 0
        %s455 = sadd.s32 %s454, %s452
        %s456 = smul.addr %s455, 4
        %s457 = scalar_lea.vmem %s0, %s456
        %p458 = scmp.lt.s32.totalorder %s27, 1
        %s459 = scalar_select %p458, %s27, 1
        %p460 = scmp.lt.s32.totalorder %s29, 0
        %s461 = scalar_select %p460, %s29, 0
        %s462 = sadd.s32 %s461, %s459
        %s463 = smul.addr %s462, 4
        %s464 = scalar_lea.vmem %s1, %s463
        %p465 = scmp.lt.s32.totalorder %s27, 1
        %s466 = scalar_select %p465, %s27, 1
        %p467 = scmp.lt.s32.totalorder %s29, 0
        %s468 = scalar_select %p467, %s29, 0
        %s469 = sadd.s32 %s468, %s466
        %s470 = sadd.s32 %s469, 2
        %s471 = smul.addr %s470, 4
        %s472 = scalar_lea.vmem %s2, %s471
        %p473 = scmp.lt.s32.totalorder %s27, 1
        %s474 = scalar_select %p473, %s27, 1
        %p475 = scmp.lt.s32.totalorder %s28, 0
        %s476 = scalar_select %p475, %s28, 0
        %s477 = sadd.s32 %s476, %s474
        %s478 = smul.addr %s477, 8
        %s479 = scalar_lea.vmem %s3, %s478
        %p480 = scmp.lt.s32.totalorder %s27, 1
        %s481 = scalar_select %p480, %s27, 1
        %p482 = scmp.lt.s32.totalorder %s28, 0
        %s483 = scalar_select %p482, %s28, 0
        %s484 = sadd.s32 %s483, %s481
        %s485 = smul.addr %s484, 8
        %s486 = scalar_lea.vmem %s8, %s485
        %p488 = scmp.eq.s32.totalorder %s29, 0
        // Predicated region
        $region69: #{decoder_forward.17} parent=51 // pred_check
          %p489 = pneg %p488
        $region70: #{decoder_forward.17} parent=51 // pred_check_branch
          %491 = sbr.rel (%p489) target = $region72
        $region71: #{decoder_forward.17} parent=51 // pred_region
          %vm492 = vcmask 7168
          %493 = vst.msk [vmem:[#allocation2] sm:$0xff] %vm492, -inf
          %494 = vst.msk [vmem:[#allocation2 + $0x8] sm:$0xff] %vm492, -inf
          %495 = vst.msk [vmem:[#allocation2 + $0x10] sm:$0xff] %vm492, -inf
          %496 = vst.msk [vmem:[#allocation2 + $0x18] sm:$0xff] %vm492, -inf
          %497 = vst.msk [vmem:[#allocation3] sm:$0xff] %vm492, 0.0
          %498 = vst.msk [vmem:[#allocation3 + $0x8] sm:$0xff] %vm492, 0.0
          %499 = vst.msk [vmem:[#allocation3 + $0x10] sm:$0xff] %vm492, 0.0
          %500 = vst.msk [vmem:[#allocation3 + $0x18] sm:$0xff] %vm492, 0.0
          %vm501 = vcmask 261120
          %502 = vst.msk [vmem:[#allocation4] sm:$0xff] %vm501, 0.0
        $region72: #{decoder_forward.17} parent=51 // pred_fallthru
          _
        %v503 = vld [vmem:[%s457] sm:$0xf]
        %v504 = vld [vmem:[%s464] sm:$0xf]
        %v505 = vld [vmem:[%s472] sm:$0xf]
        %vm506 = vcmask 64512
        %v508 = vsel %vm506, %v503, 0
        %v511 = vsel %vm506, %v504, 0
        %513 = vmatpush.bf16.xpose.msra.mxu0 0
        %514 = vmatpush.bf16.xpose.msra.mxu0 0
        %515 = vmatpush.bf16.xpose.msra.mxu0 0
        %516 = vmatpush.bf16.xpose.msra.mxu0 0
        %517 = vmatpush.bf16.xpose.msra.mxu0 0
        %518 = vmatpush.bf16.xpose.msra.mxu0 0
        %519 = vmatpush.bf16.xpose.msra.mxu0 0
        %520 = vmatpush.bf16.xpose.msra.mxu0 %v511
        %521 = vmatmul.bf16.gmra.mxu0 %v508
        %v522 = vpop.f32.mrf.mxu0
        %v523 = vadd.f32 0.0, %v522
        %v524 = vpop.f32.mrf.mxu0
        %525 = vdwg.mxu0
        %v526 = vmul.f32 %v523, 0.35355338
        %v527 = vld [vmem:[#allocation2] sm:$0xff]
        %v528 = vsel %vm506, %v526, -inf
        %529 = vmax.xlane.f32.xlu0 %v528
        %v530 = vpop.xlane.xlu0 %529
        %v531 = vmax.f32 %v527, %v530
        %v532 = vsub.f32 %v527, %v531
        %v533 = vmul.f32 %v532, 1.442695
        %v534 = vpow.pop %v533
        %536 = vset.pattern.permute.xlu0 0
        %537 = vperm.xlu0 %536, %v531
        %v538 = vpop.permute.xlu0 %537
        %v540 = vsub.f32 %v526, %v538
        %v541 = vmul.f32 %v540, 1.442695
        %v542 = vpow.pop %v541
        %v543 = vld [vmem:[#allocation3] sm:$0xff]
        %v544 = vmul.f32 %v534, %v543
        %v545 = vsel %vm506, %v542, 0.0
        %546 = vadd.xlane.f32.xlu0 %v545
        %v547 = vpop.xlane.xlu0 %546
        %v548 = vadd.f32 %v544, %v547
        %vm549 = vcmask 7168
        %550 = vst.msk [vmem:[#allocation3] sm:$0xff] %vm549, %v548
        %551 = vst.msk [vmem:[#allocation2] sm:$0xff] %vm549, %v531
        %v552 = vpack.c.bf16 %v542, %v542
        %v554 = vsel %vm506, %v552, 0
        %vm556 = vcmask 1043456
        %v558 = vsel %vm556, %v505, 0
        %560 = vmatpush.bf16.msra.mxu0 0
        %561 = vmatpush.bf16.msra.mxu0 0
        %562 = vmatpush.bf16.msra.mxu0 0
        %563 = vmatpush.bf16.msra.mxu0 0
        %564 = vmatpush.bf16.msra.mxu0 0
        %565 = vmatpush.bf16.msra.mxu0 0
        %566 = vmatpush.bf16.msra.mxu0 0
        %567 = vmatpush.bf16.msra.mxu0 %v558
        %568 = vmatmul.bf16.gmra.mxu0 %v554
        %v569 = vpop.f32.mrf.mxu0
        %v570 = vadd.f32 0.0, %v569
        %v571 = vpop.f32.mrf.mxu0
        %572 = vdwg.mxu0
        %v573 = vld [vmem:[#allocation4] sm:$0xff]
        %575 = vset.pattern.permute.xlu0 0
        %576 = vperm.xlu0 %575, %v534
        %v577 = vpop.permute.xlu0 %576
        %v579 = vmul.f32 %v577, %v573
        %v580 = vadd.f32 %v579, %v570
        %581 = vst.msk [vmem:[#allocation4] sm:$0xff] %vm506, %v580
        %v583 = vunpack.c.l.b16 %v503
        %v584 = vpack.c.b16 %v583, %v583
        %585 = vrot.lane.b32.xlu0 %v584, 120
        %v586 = vpop.permute.xlu0 %585
        %v588 = vunpack.c.l.b16 %v504
        %v589 = vpack.c.b16 %v588, %v588
        %590 = vrot.lane.b32.xlu0 %v589, 120
        %v591 = vpop.permute.xlu0 %590
        %v593 = vsel %vm506, %v586, 0
        %v596 = vsel %vm506, %v591, 0
        %598 = vmatpush.bf16.xpose.msra.mxu0 0
        %599 = vmatpush.bf16.xpose.msra.mxu0 0
        %600 = vmatpush.bf16.xpose.msra.mxu0 0
        %601 = vmatpush.bf16.xpose.msra.mxu0 0
        %602 = vmatpush.bf16.xpose.msra.mxu0 0
        %603 = vmatpush.bf16.xpose.msra.mxu0 0
        %604 = vmatpush.bf16.xpose.msra.mxu0 0
        %605 = vmatpush.bf16.xpose.msra.mxu0 %v596
        %606 = vmatmul.bf16.gmra.mxu0 %v593
        %v607 = vpop.f32.mrf.mxu0
        %v608 = vadd.f32 0.0, %v607
        %v609 = vpop.f32.mrf.mxu0
        %610 = vdwg.mxu0
        %v611 = vmul.f32 %v608, 0.35355338
        %s612 = scalar_lea.vmem [#allocation2], 8
        %v613 = vld [vmem:[%s612] sm:$0xff]
        %v614 = vsel %vm506, %v611, -inf
        %615 = vmax.xlane.f32.xlu0 %v614
        %v616 = vpop.xlane.xlu0 %615
        %v617 = vmax.f32 %v613, %v616
        %v618 = vsub.f32 %v613, %v617
        %v619 = vmul.f32 %v618, 1.442695
        %v620 = vpow.pop %v619
        %622 = vset.pattern.permute.xlu0 0
        %623 = vperm.xlu0 %622, %v617
        %v624 = vpop.permute.xlu0 %623
        %v626 = vsub.f32 %v611, %v624
        %v627 = vmul.f32 %v626, 1.442695
        %v628 = vpow.pop %v627
        %s629 = scalar_lea.vmem [#allocation3], 8
        %v630 = vld [vmem:[%s629] sm:$0xff]
        %v631 = vmul.f32 %v620, %v630
        %v632 = vsel %vm506, %v628, 0.0
        %633 = vadd.xlane.f32.xlu0 %v632
        %v634 = vpop.xlane.xlu0 %633
        %v635 = vadd.f32 %v631, %v634
        %636 = vst.msk [vmem:[%s629] sm:$0xff] %vm549, %v635
        %637 = vst.msk [vmem:[%s612] sm:$0xff] %vm549, %v617
        %v638 = vpack.c.bf16 %v628, %v628
        %v640 = vunpack.c.l.b16 %v505
        %v641 = vpack.c.b16 %v640, %v640
        %642 = vrot.lane.b32.xlu0 %v641, 120
        %v643 = vpop.permute.xlu0 %642
        %v645 = vsel %vm506, %v638, 0
        %v648 = vsel %vm556, %v643, 0
        %650 = vmatpush.bf16.msra.mxu0 0
        %651 = vmatpush.bf16.msra.mxu0 0
        %652 = vmatpush.bf16.msra.mxu0 0
        %653 = vmatpush.bf16.msra.mxu0 0
        %654 = vmatpush.bf16.msra.mxu0 0
        %655 = vmatpush.bf16.msra.mxu0 0
        %656 = vmatpush.bf16.msra.mxu0 0
        %657 = vmatpush.bf16.msra.mxu0 %v648
        %658 = vmatmul.bf16.gmra.mxu0 %v645
        %v659 = vpop.f32.mrf.mxu0
        %v660 = vadd.f32 0.0, %v659
        %v661 = vpop.f32.mrf.mxu0
        %662 = vdwg.mxu0
        %v663 = vld [vmem:[#allocation4] sm:$0xff]
        %665 = vset.pattern.permute.xlu0 0
        %666 = vperm.xlu0 %665, %v620
        %v667 = vpop.permute.xlu0 %666
        %v669 = vmul.f32 %v667, %v663
        %671 = vrot.lane.b32.xlu0 %v660, 8
        %v672 = vpop.permute.xlu0 %671
        %v674 = vadd.f32 %v669, %v672
        %vm675 = vcmask 130112
        %676 = vst.msk [vmem:[#allocation4] sm:$0xff] %vm675, %v674
        %677 = vrot.lane.b32.xlu0 %v584, 112
        %v678 = vpop.permute.xlu0 %677
        %679 = vrot.lane.b32.xlu0 %v589, 112
        %v680 = vpop.permute.xlu0 %679
        %v682 = vsel %vm506, %v678, 0
        %v685 = vsel %vm506, %v680, 0
        %687 = vmatpush.bf16.xpose.msra.mxu0 0
        %688 = vmatpush.bf16.xpose.msra.mxu0 0
        %689 = vmatpush.bf16.xpose.msra.mxu0 0
        %690 = vmatpush.bf16.xpose.msra.mxu0 0
        %691 = vmatpush.bf16.xpose.msra.mxu0 0
        %692 = vmatpush.bf16.xpose.msra.mxu0 0
        %693 = vmatpush.bf16.xpose.msra.mxu0 0
        %694 = vmatpush.bf16.xpose.msra.mxu0 %v685
        %695 = vmatmul.bf16.gmra.mxu0 %v682
        %v696 = vpop.f32.mrf.mxu0
        %v697 = vadd.f32 0.0, %v696
        %v698 = vpop.f32.mrf.mxu0
        %699 = vdwg.mxu0
        %v700 = vmul.f32 %v697, 0.35355338
        %s701 = scalar_lea.vmem [#allocation2], 16
        %v702 = vld [vmem:[%s701] sm:$0xff]
        %v703 = vsel %vm506, %v700, -inf
        %704 = vmax.xlane.f32.xlu0 %v703
        %v705 = vpop.xlane.xlu0 %704
        %v706 = vmax.f32 %v702, %v705
        %v707 = vsub.f32 %v702, %v706
        %v708 = vmul.f32 %v707, 1.442695
        %v709 = vpow.pop %v708
        %711 = vset.pattern.permute.xlu0 0
        %712 = vperm.xlu0 %711, %v706
        %v713 = vpop.permute.xlu0 %712
        %v715 = vsub.f32 %v700, %v713
        %v716 = vmul.f32 %v715, 1.442695
        %v717 = vpow.pop %v716
        %s718 = scalar_lea.vmem [#allocation3], 16
        %v719 = vld [vmem:[%s718] sm:$0xff]
        %v720 = vmul.f32 %v709, %v719
        %v721 = vsel %vm506, %v717, 0.0
        %722 = vadd.xlane.f32.xlu0 %v721
        %v723 = vpop.xlane.xlu0 %722
        %v724 = vadd.f32 %v720, %v723
        %725 = vst.msk [vmem:[%s718] sm:$0xff] %vm549, %v724
        %726 = vst.msk [vmem:[%s701] sm:$0xff] %vm549, %v706
        %v727 = vpack.c.bf16 %v717, %v717
        %728 = vrot.lane.b32.xlu0 %v641, 112
        %v729 = vpop.permute.xlu0 %728
        %v731 = vsel %vm506, %v727, 0
        %v734 = vsel %vm556, %v729, 0
        %736 = vmatpush.bf16.msra.mxu0 0
        %737 = vmatpush.bf16.msra.mxu0 0
        %738 = vmatpush.bf16.msra.mxu0 0
        %739 = vmatpush.bf16.msra.mxu0 0
        %740 = vmatpush.bf16.msra.mxu0 0
        %741 = vmatpush.bf16.msra.mxu0 0
        %742 = vmatpush.bf16.msra.mxu0 0
        %743 = vmatpush.bf16.msra.mxu0 %v734
        %744 = vmatmul.bf16.gmra.mxu0 %v731
        %v745 = vpop.f32.mrf.mxu0
        %v746 = vadd.f32 0.0, %v745
        %v747 = vpop.f32.mrf.mxu0
        %748 = vdwg.mxu0
        %v749 = vld [vmem:[#allocation4] sm:$0xff]
        %751 = vset.pattern.permute.xlu0 0
        %752 = vperm.xlu0 %751, %v709
        %v753 = vpop.permute.xlu0 %752
        %v755 = vmul.f32 %v753, %v749
        %757 = vrot.lane.b32.xlu0 %v746, 16
        %v758 = vpop.permute.xlu0 %757
        %v760 = vadd.f32 %v755, %v758
        %vm761 = vcmask 195712
        %762 = vst.msk [vmem:[#allocation4] sm:$0xff] %vm761, %v760
        %763 = vrot.lane.b32.xlu0 %v584, 104
        %v764 = vpop.permute.xlu0 %763
        %765 = vrot.lane.b32.xlu0 %v589, 104
        %v766 = vpop.permute.xlu0 %765
        %v768 = vsel %vm506, %v764, 0
        %v771 = vsel %vm506, %v766, 0
        %773 = vmatpush.bf16.xpose.msra.mxu0 0
        %774 = vmatpush.bf16.xpose.msra.mxu0 0
        %775 = vmatpush.bf16.xpose.msra.mxu0 0
        %776 = vmatpush.bf16.xpose.msra.mxu0 0
        %777 = vmatpush.bf16.xpose.msra.mxu0 0
        %778 = vmatpush.bf16.xpose.msra.mxu0 0
        %779 = vmatpush.bf16.xpose.msra.mxu0 0
        %780 = vmatpush.bf16.xpose.msra.mxu0 %v771
        %781 = vmatmul.bf16.gmra.mxu0 %v768
        %v782 = vpop.f32.mrf.mxu0
        %v783 = vadd.f32 0.0, %v782
        %v784 = vpop.f32.mrf.mxu0
        %785 = vdwg.mxu0
        %v786 = vmul.f32 %v783, 0.35355338
        %s787 = scalar_lea.vmem [#allocation2], 24
        %v788 = vld [vmem:[%s787] sm:$0xff]
        %v789 = vsel %vm506, %v786, -inf
        %790 = vmax.xlane.f32.xlu0 %v789
        %v791 = vpop.xlane.xlu0 %790
        %v792 = vmax.f32 %v788, %v791
        %v793 = vsub.f32 %v788, %v792
        %v794 = vmul.f32 %v793, 1.442695
        %v795 = vpow.pop %v794
        %797 = vset.pattern.permute.xlu0 0
        %798 = vperm.xlu0 %797, %v792
        %v799 = vpop.permute.xlu0 %798
        %v801 = vsub.f32 %v786, %v799
        %v802 = vmul.f32 %v801, 1.442695
        %v803 = vpow.pop %v802
        %s804 = scalar_lea.vmem [#allocation3], 24
        %v805 = vld [vmem:[%s804] sm:$0xff]
        %v806 = vmul.f32 %v795, %v805
        %v807 = vsel %vm506, %v803, 0.0
        %808 = vadd.xlane.f32.xlu0 %v807
        %v809 = vpop.xlane.xlu0 %808
        %v810 = vadd.f32 %v806, %v809
        %811 = vst.msk [vmem:[%s804] sm:$0xff] %vm549, %v810
        %812 = vst.msk [vmem:[%s787] sm:$0xff] %vm549, %v792
        %v813 = vpack.c.bf16 %v803, %v803
        %814 = vrot.lane.b32.xlu0 %v641, 104
        %v815 = vpop.permute.xlu0 %814
        %v817 = vsel %vm506, %v813, 0
        %v820 = vsel %vm556, %v815, 0
        %822 = vmatpush.bf16.msra.mxu0 0
        %823 = vmatpush.bf16.msra.mxu0 0
        %824 = vmatpush.bf16.msra.mxu0 0
        %825 = vmatpush.bf16.msra.mxu0 0
        %826 = vmatpush.bf16.msra.mxu0 0
        %827 = vmatpush.bf16.msra.mxu0 0
        %828 = vmatpush.bf16.msra.mxu0 0
        %829 = vmatpush.bf16.msra.mxu0 %v820
        %830 = vmatmul.bf16.gmra.mxu0 %v817
        %v831 = vpop.f32.mrf.mxu0
        %v832 = vadd.f32 0.0, %v831
        %v833 = vpop.f32.mrf.mxu0
        %834 = vdwg.mxu0
        %v835 = vld [vmem:[#allocation4] sm:$0xff]
        %837 = vset.pattern.permute.xlu0 0
        %838 = vperm.xlu0 %837, %v795
        %v839 = vpop.permute.xlu0 %838
        %v841 = vmul.f32 %v839, %v835
        %843 = vrot.lane.b32.xlu0 %v832, 24
        %v844 = vpop.permute.xlu0 %843
        %v846 = vadd.f32 %v841, %v844
        %vm847 = vcmask 261312
        %848 = vst.msk [vmem:[#allocation4] sm:$0xff] %vm847, %v846
        // Predicated region
        $region73: #{decoder_forward.17} parent=51 // pred_check
          %p849 = pneg %p488
        $region74: #{decoder_forward.17} parent=51 // pred_check_branch
          %851 = sbr.rel (%p849) target = $region76
        $region75: #{decoder_forward.17} parent=51 // pred_region
          %v852 = vld [vmem:[#allocation4] sm:$0xff]
          %v853 = vld [vmem:[#allocation3] sm:$0xff]
          %v854 = vrcp.pop %v853
          %856 = vset.pattern.permute.xlu0 0
          %857 = vperm.xlu0 %856, %v854
          %v858 = vpop.permute.xlu0 %857
          %v860 = vmul.f32 %v852, %v858
          %861 = vst.msk [vmem:[#allocation4] sm:$0xff] %vm506, %v860
          %v862 = vld [vmem:[#allocation4] sm:$0xff]
          %v863 = vld [vmem:[%s629] sm:$0xff]
          %v864 = vrcp.pop %v863
          %866 = vset.pattern.permute.xlu0 0
          %867 = vperm.xlu0 %866, %v864
          %v868 = vpop.permute.xlu0 %867
          %v870 = vmul.f32 %v862, %v868
          %871 = vst.msk [vmem:[#allocation4] sm:$0xff] %vm675, %v870
          %v872 = vld [vmem:[#allocation4] sm:$0xff]
          %v873 = vld [vmem:[%s718] sm:$0xff]
          %v874 = vrcp.pop %v873
          %876 = vset.pattern.permute.xlu0 0
          %877 = vperm.xlu0 %876, %v874
          %v878 = vpop.permute.xlu0 %877
          %v880 = vmul.f32 %v872, %v878
          %881 = vst.msk [vmem:[#allocation4] sm:$0xff] %vm761, %v880
          %v882 = vld [vmem:[#allocation4] sm:$0xff]
          %v883 = vld [vmem:[%s804] sm:$0xff]
          %v884 = vrcp.pop %v883
          %886 = vset.pattern.permute.xlu0 0
          %887 = vperm.xlu0 %886, %v884
          %v888 = vpop.permute.xlu0 %887
          %v890 = vmul.f32 %v882, %v888
          %891 = vst.msk [vmem:[#allocation4] sm:$0xff] %vm847, %v890
          %v892 = vld [vmem:[#allocation4] sm:$0xff]
          %v893 = vpack.c.bf16 %v892, %v892
          %v894 = vld [vmem:[#allocation5] sm:$0xff]
          %v895 = vld [vmem:[#allocation5 + $0x8] sm:$0xff]
          %v896 = vld [vmem:[#allocation5 + $0x10] sm:$0xff]
          %v897 = vld [vmem:[#allocation5 + $0x18] sm:$0xff]
          %v898 = vpack.c.bf16 %v895, %v894
          %v899 = vpack.c.bf16 %v897, %v896
          %v900 = vld [vmem:[#allocation7] sm:$0x1]
          %v902 = vperm.slane %v900, 0
          %vm904 = vcmask 261120
          %v906 = vsel %vm904, %v893, 0
          %908 = vmatpush.bf16.msra.mxu0 0
          %909 = vmatpush.bf16.msra.mxu0 0
          %910 = vmatpush.bf16.msra.mxu0 0
          %911 = vmatpush.bf16.msra.mxu0 0
          %912 = vmatpush.bf16.msra.mxu0 0
          %913 = vmatpush.bf16.msra.mxu0 0
          %914 = vmatpush.bf16.msra.mxu0 %v899
          %915 = vmatpush.bf16.msra.mxu0 %v898
          %916 = vmatmul.bf16.gmra.mxu0 %v906
          %v917 = vpop.f32.mrf.mxu0
          %v918 = vadd.f32 %v902, %v917
          %v919 = vpop.f32.mrf.mxu0
          %920 = vdwg.mxu0
          %v921 = vld [vmem:[%s479] sm:$0xff]
          %v922 = vadd.f32 %v918, %v921
          %v923 = vsel %vm904, %v922, 0.0
          %924 = vadd.xlane.f32.xlu0 %v923
          %v925 = vpop.xlane.xlu0 %924
          %v926 = vrcp.pop 32.0
          %v927 = vmul.f32 32.0, %v926
          %v928 = vsub.f32 1.0, %v927
          %v929 = vmul.f32 %v926, %v928
          %v930 = vadd.f32 %v926, %v929
          %vm931 = vweird.f32 %v926
          %v932 = vsel %vm931, %v926, %v930
          %v933 = vmul.f32 %v925, %v932
          %v934 = vsub.f32 %v922, %v933
          %v935 = vmul.f32 %v934, %v934
          %v936 = vsel %vm904, %v935, 0.0
          %937 = vadd.xlane.f32.xlu0 %v936
          %v938 = vpop.xlane.xlu0 %937
          %v939 = vmul.f32 %v938, %v932
          %v940 = vadd.f32 %v939, 1e-05
          %v941 = vrsqrt.pop %v940
          %v942 = vmul.f32 %v941, %v940
          %v943 = vmul.f32 %v942, %v941
          %v944 = vmul.f32 0.5, %v943
          %v945 = vsub.f32 1.5, %v944
          %v946 = vmul.f32 %v941, %v945
          %vm947 = vweird.f32 %v940
          %vm948 = vweird.f32 %v941
          %vm949 = vmor %vm947, %vm948
          %v950 = vsel %vm949, %v941, %v946
          %v951 = vmul.f32 %v934, %v950
          %v952 = vld [vmem:[#allocation9] sm:$0x1]
          %v954 = vperm.slane %v952, 0
          %v956 = vmul.f32 %v951, %v954
          %v957 = vld [vmem:[#allocation10] sm:$0x1]
          %v959 = vperm.slane %v957, 0
          %v961 = vadd.f32 %v956, %v959
          %962 = vst.msk [vmem:[%s486] sm:$0xff] %vm904, %v961
        $region76: #{decoder_forward.17} parent=51 // pred_fallthru
          _
        %p963 = scmp.lt.s32.totalorder %s27, 1
        %s964 = scalar_select %p963, %s27, 1
        %p965 = scmp.lt.s32.totalorder %s28, 0
        %s966 = scalar_select %p965, %s28, 0
        %s967 = sadd.s32 %s966, %s964
        %s968 = smul.addr %s967, 8
        %s969 = scalar_lea.vmem %s8, %s968
        // Predicated region
        $region77: #{decoder_forward.17} parent=51 // pred_check
          %p970 = pneg %p257
        $region78: #{decoder_forward.17} parent=51 // pred_check_branch
          %972 = sbr.rel (%p970) target = $region80
        $region79: #{decoder_forward.17} parent=51 // pred_region
          _
        $region80: #{decoder_forward.17} parent=51 // pred_fallthru
          _
      $region52: #{decoder_forward.17} parent=5 // pred_fallthru
        _
      %p973 = scmp.le.s32.totalorder 2, %s17
      // Predicated region
      $region81: #{decoder_forward.17} parent=5 // pred_check
        %p974 = pneg %p973
      $region82: #{decoder_forward.17} parent=5 // pred_check_branch
        %976 = sbr.rel (%p974) target = $region84
      $region83: #{decoder_forward.17} parent=5 // pred_region
        %s977 = ssub.s32 %s17, 2
        // Predicated region
        $region85: #{decoder_forward.17} parent=83 // pred_check
          %p978 = pneg %p263
        $region86: #{decoder_forward.17} parent=83 // pred_check_branch
          %980 = sbr.rel (%p978) target = $region88
        $region87: #{decoder_forward.17} parent=83 // pred_region
          %p981 = scmp.lt.s32.totalorder %s30, 1
          %s982 = scalar_select %p981, %s30, 1
          %p983 = scmp.lt.s32.totalorder %s31, 0
          %s984 = scalar_select %p983, %s31, 0
          %s985 = sadd.s32 %s984, %s982
          %s986 = smul.addr %s985, 8
          %s987 = scalar_lea.vmem %s8, %s986
        $region88: #{decoder_forward.17} parent=83 // pred_fallthru
          _
      $region84: #{decoder_forward.17} parent=5 // pred_fallthru
        _
    $region6: #{decoder_forward.17} parent=1 // loop_footer
      %s21 = sadd.s32 1, %s17
    $region7: #{decoder_forward.17} parent=1 // loop_footer_branch
      %16 = sbr.rel target = $region3
    $region8: #{decoder_forward.17} parent=1 // loop_exit
      _
    %988 = vsyncpa [#allocation6], 1
    %s989 = scalar_lea.sflag [#allocation6], 1
    %990 = vsyncpa %s989, 1
    %991 = vsyncpa [#allocation8], 1
    %992 = vsyncpa [#allocation11], 1

// kernel: decoder_forward.20
$region0: #{decoder_forward.20}
  #allocation0 [shape = 'u32[]', space=smem, size = 0x4, offset = 0x4, fixed_abs, tag = 'smem constant byte address 0x4 - core index']
  #allocation1 [shape = 'u32[72,128]{1,0:T(1,128)}', space=vmem, size = 0x9000, scoped, tag = 'internal scratch']
  #allocation2 [shape = 'f32[4,8,1]{2,1,0:T(8,128)}', space=vmem, size = 0x4000, scoped, tag = 'scratch operand']
  #allocation3 [shape = 'f32[4,8,1]{2,1,0:T(8,128)}', space=vmem, size = 0x4000, scoped, tag = 'scratch operand']
  #allocation4 [shape = 'f32[8,32]{1,0:T(8,128)}', space=vmem, size = 0x1000, scoped, tag = 'scratch operand']
  %s0 = inlined_call_operand.vmem [shape: bf16[3,2,8,32], index: 0, kind: input, shape index: {}, may-alias: {0,1,2}]
  %s1 = inlined_call_operand.vmem [shape: bf16[3,2,8,32], index: 1, kind: input, shape index: {}, may-alias: {0,1,2}]
  %s2 = inlined_call_operand.vmem [shape: bf16[3,2,8,32], index: 2, kind: input, shape index: {}, may-alias: {0,1,2}]
  %s3 = inlined_call_operand.vmem [shape: f32[2,8,32], index: 3, kind: input, shape index: {}]
  %s4 = inlined_call_operand.hbm [shape: f32[32,32], index: 4, kind: input, shape index: {}]
  %s5 = inlined_call_operand.hbm [shape: f32[1,32], index: 5, kind: input, shape index: {}]
  %s6 = inlined_call_operand.hbm [shape: f32[1,32], index: 6, kind: input, shape index: {}]
  %s7 = inlined_call_operand.hbm [shape: f32[1,32], index: 7, kind: input, shape index: {}]
  %s8 = inlined_call_operand.vmem [shape: f32[2,8,32], index: 8, kind: output, shape index: {}]
  %s9 = sld [smem:[#allocation0]]
  $region89: #{decoder_forward.20} parent=0
    _
  %s11 = ssub.s32 1, %s9
  %s12 = scalar_select 0, %s11, %s9
  $region1: #{decoder_forward.20} parent=0
    #allocation5 [shape = 'u8[16384]{0}', space=vmem, size = 0x4000, scoped, tag = 'input window, operand 4, single buffered']
    #allocation6 [shape = 's32[2]{0}', space=sflag, size = 0x8, scoped, tag = 'scoped memory for decoder_forward.20']
    #allocation7 [shape = 'u8[512]{0}', space=vmem, size = 0x400, scoped, tag = 'input window, operand 5, single buffered']
    #allocation8 [shape = 's32[1]{0}', space=sflag, size = 0x4, scoped, tag = 'scoped memory for decoder_forward.20']
    #allocation9 [shape = 'u8[512]{0}', space=vmem, size = 0x400, scoped, tag = 'input window, operand 6, single buffered']
    #allocation10 [shape = 'u8[512]{0}', space=vmem, size = 0x400, scoped, tag = 'input window, operand 7, single buffered']
    #allocation11 [shape = 's32[1]{0}', space=sflag, size = 0x4, scoped, tag = 'scoped memory for decoder_forward.20']
    %13 = vsyncpa [#allocation6], 0
    %14 = vsyncpa [#allocation8], 0
    %15 = vsyncpa [#allocation11], 0
    loop: start=0, step=1, limit=4
    $region2: #{decoder_forward.20} parent=1 // loop_pre_header
      _
    $region3: #{decoder_forward.20} parent=1 // loop_header
      %s17 = sphi 0, %s21
      %p18 = scmp.ge.s32.totalorder %s17, 4
      %s24 = sphi 0, %s43
      %s25 = sphi 0, %s39
      %s26 = sphi 0, %s35
      %s27 = sphi 0, %s24
      %s28 = sphi 0, %s25
      %s29 = sphi 0, %s26
      %s30 = sphi 0, %s27
      %s31 = sphi 0, %s28
      %s32 = sphi 0, %s29
      %s48 = sphi 0, %s50
      %s51 = sphi 0, %s48
      %s52 = sphi 0, %s51
      %s68 = sphi 0, %s52
      %s76 = sphi 0, %s78
      %s79 = sphi 0, %s76
      %s80 = sphi 0, %s79
      %s96 = sphi 0, %s80
      %s104 = sphi 0, %s106
      %s107 = sphi 0, %s104
      %s108 = sphi 0, %s107
      %s124 = sphi 0, %s108
      %s132 = sphi 0, %s134
      %s135 = sphi 0, %s132
      %s136 = sphi 0, %s135
      %s152 = sphi 0, %s136
      %s156 = sphi 0, %s156
      %s158 = sphi 0, %s156
      %s159 = sphi 0, %s158
      %s173 = sphi 0, %s159
      %s177 = sphi 0, %s177
      %s179 = sphi 0, %s177
      %s180 = sphi 0, %s179
      %s194 = sphi 0, %s180
      %s198 = sphi 0, %s198
      %s200 = sphi 0, %s198
      %s201 = sphi 0, %s200
      %s215 = sphi 0, %s201
      %s219 = sphi 0, %s219
      %s221 = sphi 0, %s219
      %s222 = sphi 0, %s221
      %s236 = sphi 0, %s222
      %s244 = sphi 0, %s246
      %s247 = sphi 0, %s244
      %s248 = sphi 0, %s247
      %s264 = sphi 0, %s248
    $region4: #{decoder_forward.20} parent=1 // loop_header_branch
      %20 = sbr.rel (%p18) target = $region8
    $region5: #{decoder_forward.20} parent=1 // loop_body
      %s22 = ssub.s32 %s17, 1
      %s23 = ssub.s32 %s17, 2
      %s33 = sadd.s32 1, %s26
      %p34 = scmp.ge.s32.totalorder %s33, 1
      %s35 = scalar_select %p34, 0, %s33
      %s36 = sadd.s32 1, %s25
      %s37 = scalar_select %p34, %s36, %s25
      %p38 = scmp.ge.s32.totalorder %s37, 1
      %s39 = scalar_select %p38, 0, %s37
      %s40 = sadd.s32 1, %s24
      %s41 = scalar_select %p38, %s40, %s24
      %p42 = scmp.ge.s32.totalorder %s41, 2
      %s43 = scalar_select %p42, 0, %s41
      %s44 = ssub.s32 %s24, %s43
      %s45 = ssub.s32 %s25, %s39
      %s46 = sor.u32 %s44, %s45
      %p47 = scmp.eq.s32.totalorder %s46, 0
      %s49 = sadd.s32 %s48, 1
      %s50 = scalar_select %p47, %s48, %s49
      %p53 = pneg %p47
      %p54 = scmp.eq.s32.totalorder %s17, 1
      %p55 = por %p53, %p54
      %p56 = scmp.ne.s32.totalorder %s48, %s51
      %p57 = scmp.eq.s32.totalorder %s17, 0
      %p58 = por %p56, %p57
      %p59 = scmp.ne.s32.totalorder %s48, %s51
      %p60 = scmp.eq.s32.totalorder %s22, 1
      %p61 = por %p59, %p60
      %p62 = scmp.ne.s32.totalorder %s51, %s52
      %p63 = scmp.eq.s32.totalorder %s22, 0
      %p64 = por %p62, %p63
      %p65 = scmp.ne.s32.totalorder %s51, %s52
      %p66 = scmp.eq.s32.totalorder %s23, 1
      %p67 = por %p65, %p66
      %p69 = scmp.ne.s32.totalorder %s52, %s68
      %p70 = scmp.eq.s32.totalorder %s23, 0
      %p71 = por %p69, %p70
      %s72 = ssub.s32 %s24, %s43
      %s73 = ssub.s32 %s26, %s35
      %s74 = sor.u32 %s72, %s73
      %p75 = scmp.eq.s32.totalorder %s74, 0
      %s77 = sadd.s32 %s76, 1
      %s78 = scalar_select %p75, %s76, %s77
      %p81 = pneg %p75
      %p82 = scmp.eq.s32.totalorder %s17, 1
      %p83 = por %p81, %p82
      %p84 = scmp.ne.s32.totalorder %s76, %s79
      %p85 = scmp.eq.s32.totalorder %s17, 0
      %p86 = por %p84, %p85
      %p87 = scmp.ne.s32.totalorder %s76, %s79
      %p88 = scmp.eq.s32.totalorder %s22, 1
      %p89 = por %p87, %p88
      %p90 = scmp.ne.s32.totalorder %s79, %s80
      %p91 = scmp.eq.s32.totalorder %s22, 0
      %p92 = por %p90, %p91
      %p93 = scmp.ne.s32.totalorder %s79, %s80
      %p94 = scmp.eq.s32.totalorder %s23, 1
      %p95 = por %p93, %p94
      %p97 = scmp.ne.s32.totalorder %s80, %s96
      %p98 = scmp.eq.s32.totalorder %s23, 0
      %p99 = por %p97, %p98
      %s100 = ssub.s32 %s24, %s43
      %s101 = ssub.s32 %s26, %s35
      %s102 = sor.u32 %s100, %s101
      %p103 = scmp.eq.s32.totalorder %s102, 0
      %s105 = sadd.s32 %s104, 1
      %s106 = scalar_select %p103, %s104, %s105
      %p109 = pneg %p103
      %p110 = scmp.eq.s32.totalorder %s17, 1
      %p111 = por %p109, %p110
      %p112 = scmp.ne.s32.totalorder %s104, %s107
      %p113 = scmp.eq.s32.totalorder %s17, 0
      %p114 = por %p112, %p113
      %p115 = scmp.ne.s32.totalorder %s104, %s107
      %p116 = scmp.eq.s32.totalorder %s22, 1
      %p117 = por %p115, %p116
      %p118 = scmp.ne.s32.totalorder %s107, %s108
      %p119 = scmp.eq.s32.totalorder %s22, 0
      %p120 = por %p118, %p119
      %p121 = scmp.ne.s32.totalorder %s107, %s108
      %p122 = scmp.eq.s32.totalorder %s23, 1
      %p123 = por %p121, %p122
      %p125 = scmp.ne.s32.totalorder %s108, %s124
      %p126 = scmp.eq.s32.totalorder %s23, 0
      %p127 = por %p125, %p126
      %s128 = ssub.s32 %s24, %s43
      %s129 = ssub.s32 %s25, %s39
      %s130 = sor.u32 %s128, %s129
      %p131 = scmp.eq.s32.totalorder %s130, 0
      %s133 = sadd.s32 %s132, 1
      %s134 = scalar_select %p131, %s132, %s133
      %p137 = pneg %p131
      %p138 = scmp.eq.s32.totalorder %s17, 1
      %p139 = por %p137, %p138
      %p140 = scmp.ne.s32.totalorder %s132, %s135
      %p141 = scmp.eq.s32.totalorder %s17, 0
      %p142 = por %p140, %p141
      %p143 = scmp.ne.s32.totalorder %s132, %s135
      %p144 = scmp.eq.s32.totalorder %s22, 1
      %p145 = por %p143, %p144
      %p146 = scmp.ne.s32.totalorder %s135, %s136
      %p147 = scmp.eq.s32.totalorder %s22, 0
      %p148 = por %p146, %p147
      %p149 = scmp.ne.s32.totalorder %s135, %s136
      %p150 = scmp.eq.s32.totalorder %s23, 1
      %p151 = por %p149, %p150
      %p153 = scmp.ne.s32.totalorder %s136, %s152
      %p154 = scmp.eq.s32.totalorder %s23, 0
      %p155 = por %p153, %p154
      %s157 = sadd.s32 %s156, 1
      %p160 = scmp.eq.s32.totalorder %s17, 1
      %p161 = scmp.ne.s32.totalorder %s156, %s158
      %p162 = scmp.eq.s32.totalorder %s17, 0
      %p163 = por %p161, %p162
      %p164 = scmp.ne.s32.totalorder %s156, %s158
      %p165 = scmp.eq.s32.totalorder %s22, 1
      %p166 = por %p164, %p165
      %p167 = scmp.ne.s32.totalorder %s158, %s159
      %p168 = scmp.eq.s32.totalorder %s22, 0
      %p169 = por %p167, %p168
      %p170 = scmp.ne.s32.totalorder %s158, %s159
      %p171 = scmp.eq.s32.totalorder %s23, 1
      %p172 = por %p170, %p171
      %p174 = scmp.ne.s32.totalorder %s159, %s173
      %p175 = scmp.eq.s32.totalorder %s23, 0
      %p176 = por %p174, %p175
      %s178 = sadd.s32 %s177, 1
      %p181 = scmp.eq.s32.totalorder %s17, 1
      %p182 = scmp.ne.s32.totalorder %s177, %s179
      %p183 = scmp.eq.s32.totalorder %s17, 0
      %p184 = por %p182, %p183
      %p185 = scmp.ne.s32.totalorder %s177, %s179
      %p186 = scmp.eq.s32.totalorder %s22, 1
      %p187 = por %p185, %p186
      %p188 = scmp.ne.s32.totalorder %s179, %s180
      %p189 = scmp.eq.s32.totalorder %s22, 0
      %p190 = por %p188, %p189
      %p191 = scmp.ne.s32.totalorder %s179, %s180
      %p192 = scmp.eq.s32.totalorder %s23, 1
      %p193 = por %p191, %p192
      %p195 = scmp.ne.s32.totalorder %s180, %s194
      %p196 = scmp.eq.s32.totalorder %s23, 0
      %p197 = por %p195, %p196
      %s199 = sadd.s32 %s198, 1
      %p202 = scmp.eq.s32.totalorder %s17, 1
      %p203 = scmp.ne.s32.totalorder %s198, %s200
      %p204 = scmp.eq.s32.totalorder %s17, 0
      %p205 = por %p203, %p204
      %p206 = scmp.ne.s32.totalorder %s198, %s200
      %p207 = scmp.eq.s32.totalorder %s22, 1
      %p208 = por %p206, %p207
      %p209 = scmp.ne.s32.totalorder %s200, %s201
      %p210 = scmp.eq.s32.totalorder %s22, 0
      %p211 = por %p209, %p210
      %p212 = scmp.ne.s32.totalorder %s200, %s201
      %p213 = scmp.eq.s32.totalorder %s23, 1
      %p214 = por %p212, %p213
      %p216 = scmp.ne.s32.totalorder %s201, %s215
      %p217 = scmp.eq.s32.totalorder %s23, 0
      %p218 = por %p216, %p217
      %s220 = sadd.s32 %s219, 1
      %p223 = scmp.eq.s32.totalorder %s17, 1
      %p224 = scmp.ne.s32.totalorder %s219, %s221
      %p225 = scmp.eq.s32.totalorder %s17, 0
      %p226 = por %p224, %p225
      %p227 = scmp.ne.s32.totalorder %s219, %s221
      %p228 = scmp.eq.s32.totalorder %s22, 1
      %p229 = por %p227, %p228
      %p230 = scmp.ne.s32.totalorder %s221, %s222
      %p231 = scmp.eq.s32.totalorder %s22, 0
      %p232 = por %p230, %p231
      %p233 = scmp.ne.s32.totalorder %s221, %s222
      %p234 = scmp.eq.s32.totalorder %s23, 1
      %p235 = por %p233, %p234
      %p237 = scmp.ne.s32.totalorder %s222, %s236
      %p238 = scmp.eq.s32.totalorder %s23, 0
      %p239 = por %p237, %p238
      %s240 = ssub.s32 %s24, %s43
      %s241 = ssub.s32 %s25, %s39
      %s242 = sor.u32 %s240, %s241
      %p243 = scmp.eq.s32.totalorder %s242, 0
      %s245 = sadd.s32 %s244, 1
      %s246 = scalar_select %p243, %s244, %s245
      %p249 = pneg %p243
      %p250 = scmp.eq.s32.totalorder %s17, 1
      %p251 = por %p249, %p250
      %p252 = scmp.ne.s32.totalorder %s244, %s247
      %p253 = scmp.eq.s32.totalorder %s17, 0
      %p254 = por %p252, %p253
      %p255 = scmp.ne.s32.totalorder %s244, %s247
      %p256 = scmp.eq.s32.totalorder %s22, 1
      %p257 = por %p255, %p256
      %p258 = scmp.ne.s32.totalorder %s247, %s248
      %p259 = scmp.eq.s32.totalorder %s22, 0
      %p260 = por %p258, %p259
      %p261 = scmp.ne.s32.totalorder %s247, %s248
      %p262 = scmp.eq.s32.totalorder %s23, 1
      %p263 = por %p261, %p262
      %p265 = scmp.ne.s32.totalorder %s248, %s264
      %p266 = scmp.eq.s32.totalorder %s23, 0
      %p267 = por %p265, %p266
      %p268 = scmp.le.s32.totalorder 1, %s17
      %p269 = scmp.lt.s32.totalorder %s17, 3
      %p270 = pnand %p268, %p269
      %p271 = pneg %p270
      // Predicated region
      $region9: #{decoder_forward.20} parent=5 // pred_check
        _
      $region10: #{decoder_forward.20} parent=5 // pred_check_branch
        %273 = sbr.rel (%p270) target = $region12
      $region11: #{decoder_forward.20} parent=5 // pred_region
        %s274 = ssub.s32 %s17, 1
        // Predicated region
        $region13: #{decoder_forward.20} parent=11 // pred_check
          %p275 = pneg %p169
        $region14: #{decoder_forward.20} parent=11 // pred_check_branch
          %277 = sbr.rel (%p275) target = $region16
        $region15: #{decoder_forward.20} parent=11 // pred_region
          %279 = vsyncadd [#allocation6], 0
          %s280 = sshll.u32 %s4, 4
          %s281 = int_to_ptr.hbm [resolvable:$true] %s280
          %s282 = sshll.u32 [#allocation5], 4
          %s283 = int_to_ptr.vmem [resolvable:$true] %s282
          %288 = dma.hbm_to_vmem [thread:$0]  %s281, 512, %s283, [#allocation6], 128, 128, 8
        $region16: #{decoder_forward.20} parent=11 // pred_fallthru
          _
        // Predicated region
        $region17: #{decoder_forward.20} parent=11 // pred_check
          %p289 = pneg %p190
        $region18: #{decoder_forward.20} parent=11 // pred_check_branch
          %291 = sbr.rel (%p289) target = $region20
        $region19: #{decoder_forward.20} parent=11 // pred_region
          %293 = vsyncadd [#allocation8], 0
          %s295 = sshll.u32 %s5, 4
          %s296 = int_to_ptr.hbm [resolvable:$true] %s295
          %s297 = sshll.u32 [#allocation7], 4
          %s298 = int_to_ptr.vmem [resolvable:$true] %s297
          %300 = dma.hbm_to_vmem [thread:$0]  %s296, 16, %s298, [#allocation8]
        $region20: #{decoder_forward.20} parent=11 // pred_fallthru
          _
        // Predicated region
        $region21: #{decoder_forward.20} parent=11 // pred_check
          %p301 = pneg %p211
        $region22: #{decoder_forward.20} parent=11 // pred_check_branch
          %303 = sbr.rel (%p301) target = $region24
        $region23: #{decoder_forward.20} parent=11 // pred_region
          %305 = vsyncadd [#allocation8], 0
          %s307 = sshll.u32 %s6, 4
          %s308 = int_to_ptr.hbm [resolvable:$true] %s307
          %s309 = sshll.u32 [#allocation9], 4
          %s310 = int_to_ptr.vmem [resolvable:$true] %s309
          %312 = dma.hbm_to_vmem [thread:$0]  %s308, 16, %s310, [#allocation8]
        $region24: #{decoder_forward.20} parent=11 // pred_fallthru
          _
        // Predicated region
        $region25: #{decoder_forward.20} parent=11 // pred_check
          %p313 = pneg %p232
        $region26: #{decoder_forward.20} parent=11 // pred_check_branch
          %315 = sbr.rel (%p313) target = $region28
        $region27: #{decoder_forward.20} parent=11 // pred_region
          %317 = vsyncadd [#allocation11], 0
          %s319 = sshll.u32 %s7, 4
          %s320 = int_to_ptr.hbm [resolvable:$true] %s319
          %s321 = sshll.u32 [#allocation10], 4
          %s322 = int_to_ptr.vmem [resolvable:$true] %s321
          %324 = dma.hbm_to_vmem [thread:$0]  %s320, 16, %s322, [#allocation11]
        $region28: #{decoder_forward.20} parent=11 // pred_fallthru
          _
      $region12: #{decoder_forward.20} parent=5 // pred_fallthru
        _
      %p325 = scmp.lt.s32.totalorder %s17, 2
      // Predicated region
      $region29: #{decoder_forward.20} parent=5 // pred_check
        %p326 = pneg %p325
      $region30: #{decoder_forward.20} parent=5 // pred_check_branch
        %328 = sbr.rel (%p326) target = $region32
      $region31: #{decoder_forward.20} parent=5 // pred_region
        // Predicated region
        $region33: #{decoder_forward.20} parent=31 // pred_check
          %p329 = pneg %p58
        $region34: #{decoder_forward.20} parent=31 // pred_check_branch
          %331 = sbr.rel (%p329) target = $region36
        $region35: #{decoder_forward.20} parent=31 // pred_region
          %p332 = scmp.lt.s32.totalorder %s24, 1
          %s333 = scalar_select %p332, %s24, 1
          %p334 = scmp.lt.s32.totalorder %s25, 0
          %s335 = scalar_select %p334, %s25, 0
          %s336 = sadd.s32 %s335, %s333
          %s337 = smul.addr %s336, 4
          %s338 = scalar_lea.vmem %s0, %s337
        $region36: #{decoder_forward.20} parent=31 // pred_fallthru
          _
        // Predicated region
        $region37: #{decoder_forward.20} parent=31 // pred_check
          %p339 = pneg %p86
        $region38: #{decoder_forward.20} parent=31 // pred_check_branch
          %341 = sbr.rel (%p339) target = $region40
        $region39: #{decoder_forward.20} parent=31 // pred_region
          %p342 = scmp.lt.s32.totalorder %s24, 1
          %s343 = scalar_select %p342, %s24, 1
          %p344 = scmp.lt.s32.totalorder %s26, 0
          %s345 = scalar_select %p344, %s26, 0
          %s346 = sadd.s32 %s345, %s343
          %s347 = sadd.s32 %s346, 2
          %s348 = smul.addr %s347, 4
          %s349 = scalar_lea.vmem %s1, %s348
        $region40: #{decoder_forward.20} parent=31 // pred_fallthru
          _
        // Predicated region
        $region41: #{decoder_forward.20} parent=31 // pred_check
          %p350 = pneg %p114
        $region42: #{decoder_forward.20} parent=31 // pred_check_branch
          %352 = sbr.rel (%p350) target = $region44
        $region43: #{decoder_forward.20} parent=31 // pred_region
          %p353 = scmp.lt.s32.totalorder %s24, 1
          %s354 = scalar_select %p353, %s24, 1
          %p355 = scmp.lt.s32.totalorder %s26, 0
          %s356 = scalar_select %p355, %s26, 0
          %s357 = sadd.s32 %s356, %s354
          %s358 = sadd.s32 %s357, 4
          %s359 = smul.addr %s358, 4
          %s360 = scalar_lea.vmem %s2, %s359
        $region44: #{decoder_forward.20} parent=31 // pred_fallthru
          _
        // Predicated region
        $region45: #{decoder_forward.20} parent=31 // pred_check
          %p361 = pneg %p142
        $region46: #{decoder_forward.20} parent=31 // pred_check_branch
          %363 = sbr.rel (%p361) target = $region48
        $region47: #{decoder_forward.20} parent=31 // pred_region
          %p364 = scmp.lt.s32.totalorder %s24, 1
          %s365 = scalar_select %p364, %s24, 1
          %p366 = scmp.lt.s32.totalorder %s25, 0
          %s367 = scalar_select %p366, %s25, 0
          %s368 = sadd.s32 %s367, %s365
          %s369 = smul.addr %s368, 8
          %s370 = scalar_lea.vmem %s3, %s369
        $region48: #{decoder_forward.20} parent=31 // pred_fallthru
          _
      $region32: #{decoder_forward.20} parent=5 // pred_fallthru
        _
      %p371 = scmp.le.s32.totalorder 1, %s17
      %p372 = scmp.lt.s32.totalorder %s17, 3
      %p373 = pnand %p371, %p372
      %p374 = pneg %p373
      // Predicated region
      $region49: #{decoder_forward.20} parent=5 // pred_check
        _
      $region50: #{decoder_forward.20} parent=5 // pred_check_branch
        %376 = sbr.rel (%p373) target = $region52
      $region51: #{decoder_forward.20} parent=5 // pred_region
        %s377 = ssub.s32 %s17, 1
        // Predicated region
        $region53: #{decoder_forward.20} parent=51 // pred_check
          %p378 = pneg %p169
        $region54: #{decoder_forward.20} parent=51 // pred_check_branch
          %380 = sbr.rel (%p378) target = $region56
        $region55: #{decoder_forward.20} parent=51 // pred_region
          %382 = dma.done [#allocation6], 512
        $region56: #{decoder_forward.20} parent=51 // pred_fallthru
          _
        // Predicated region
        $region57: #{decoder_forward.20} parent=51 // pred_check
          %p383 = pneg %p190
        $region58: #{decoder_forward.20} parent=51 // pred_check_branch
          %385 = sbr.rel (%p383) target = $region60
        $region59: #{decoder_forward.20} parent=51 // pred_region
          %387 = dma.done [#allocation8], 16
        $region60: #{decoder_forward.20} parent=51 // pred_fallthru
          _
        // Predicated region
        $region61: #{decoder_forward.20} parent=51 // pred_check
          %p388 = pneg %p211
        $region62: #{decoder_forward.20} parent=51 // pred_check_branch
          %390 = sbr.rel (%p388) target = $region64
        $region63: #{decoder_forward.20} parent=51 // pred_region
          %392 = dma.done [#allocation8], 16
        $region64: #{decoder_forward.20} parent=51 // pred_fallthru
          _
        // Predicated region
        $region65: #{decoder_forward.20} parent=51 // pred_check
          %p393 = pneg %p232
        $region66: #{decoder_forward.20} parent=51 // pred_check_branch
          %395 = sbr.rel (%p393) target = $region68
        $region67: #{decoder_forward.20} parent=51 // pred_region
          %397 = dma.done [#allocation11], 16
        $region68: #{decoder_forward.20} parent=51 // pred_fallthru
          _
        %p398 = scmp.lt.s32.totalorder %s27, 1
        %s399 = scalar_select %p398, %s27, 1
        %p400 = scmp.lt.s32.totalorder %s28, 0
        %s401 = scalar_select %p400, %s28, 0
        %s402 = sadd.s32 %s401, %s399
        %s403 = smul.addr %s402, 4
        %s404 = scalar_lea.vmem %s0, %s403
        %p405 = pneg %p64
        %p406 = pneg %p61
        %p407 = scmp.lt.s32.totalorder %s27, 1
        %s408 = scalar_select %p407, %s27, 1
        %p409 = scmp.lt.s32.totalorder %s29, 0
        %s410 = scalar_select %p409, %s29, 0
        %s411 = sadd.s32 %s410, %s408
        %s412 = sadd.s32 %s411, 2
        %s413 = smul.addr %s412, 4
        %s414 = scalar_lea.vmem %s1, %s413
        %p415 = pneg %p92
        %p416 = pneg %p89
        %p417 = scmp.lt.s32.totalorder %s27, 1
        %s418 = scalar_select %p417, %s27, 1
        %p419 = scmp.lt.s32.totalorder %s29, 0
        %s420 = scalar_select %p419, %s29, 0
        %s421 = sadd.s32 %s420, %s418
        %s422 = sadd.s32 %s421, 4
        %s423 = smul.addr %s422, 4
        %s424 = scalar_lea.vmem %s2, %s423
        %p425 = pneg %p120
        %p426 = pneg %p117
        %p427 = scmp.lt.s32.totalorder %s27, 1
        %s428 = scalar_select %p427, %s27, 1
        %p429 = scmp.lt.s32.totalorder %s28, 0
        %s430 = scalar_select %p429, %s28, 0
        %s431 = sadd.s32 %s430, %s428
        %s432 = smul.addr %s431, 8
        %s433 = scalar_lea.vmem %s3, %s432
        %p434 = pneg %p148
        %p435 = pneg %p145
        %p436 = pneg %p169
        %p437 = pneg %p166
        %p438 = pneg %p190
        %p439 = pneg %p187
        %p440 = pneg %p211
        %p441 = pneg %p208
        %p442 = pneg %p232
        %p443 = pneg %p229
        %p444 = pneg %p260
        %p445 = pneg %p257
        %p446 = scmp.lt.s32.totalorder %s27, 1
        %s447 = scalar_select %p446, %s27, 1
        %p448 = scmp.lt.s32.totalorder %s28, 0
        %s449 = scalar_select %p448, %s28, 0
        %s450 = sadd.s32 %s449, %s447
        %s451 = smul.addr %s450, 8
        %s452 = scalar_lea.vmem %s8, %s451
        %p453 = scmp.lt.s32.totalorder %s27, 1
        %s454 = scalar_select %p453, %s27, 1
        %p455 = scmp.lt.s32.totalorder %s28, 0
        %s456 = scalar_select %p455, %s28, 0
        %s457 = sadd.s32 %s456, %s454
        %s458 = smul.addr %s457, 4
        %s459 = scalar_lea.vmem %s0, %s458
        %p460 = scmp.lt.s32.totalorder %s27, 1
        %s461 = scalar_select %p460, %s27, 1
        %p462 = scmp.lt.s32.totalorder %s29, 0
        %s463 = scalar_select %p462, %s29, 0
        %s464 = sadd.s32 %s463, %s461
        %s465 = sadd.s32 %s464, 2
        %s466 = smul.addr %s465, 4
        %s467 = scalar_lea.vmem %s1, %s466
        %p468 = scmp.lt.s32.totalorder %s27, 1
        %s469 = scalar_select %p468, %s27, 1
        %p470 = scmp.lt.s32.totalorder %s29, 0
        %s471 = scalar_select %p470, %s29, 0
        %s472 = sadd.s32 %s471, %s469
        %s473 = sadd.s32 %s472, 4
        %s474 = smul.addr %s473, 4
        %s475 = scalar_lea.vmem %s2, %s474
        %p476 = scmp.lt.s32.totalorder %s27, 1
        %s477 = scalar_select %p476, %s27, 1
        %p478 = scmp.lt.s32.totalorder %s28, 0
        %s479 = scalar_select %p478, %s28, 0
        %s480 = sadd.s32 %s479, %s477
        %s481 = smul.addr %s480, 8
        %s482 = scalar_lea.vmem %s3, %s481
        %p483 = scmp.lt.s32.totalorder %s27, 1
        %s484 = scalar_select %p483, %s27, 1
        %p485 = scmp.lt.s32.totalorder %s28, 0
        %s486 = scalar_select %p485, %s28, 0
        %s487 = sadd.s32 %s486, %s484
        %s488 = smul.addr %s487, 8
        %s489 = scalar_lea.vmem %s8, %s488
        %p491 = scmp.eq.s32.totalorder %s29, 0
        // Predicated region
        $region69: #{decoder_forward.20} parent=51 // pred_check
          %p492 = pneg %p491
        $region70: #{decoder_forward.20} parent=51 // pred_check_branch
          %494 = sbr.rel (%p492) target = $region72
        $region71: #{decoder_forward.20} parent=51 // pred_region
          %vm495 = vcmask 7168
          %496 = vst.msk [vmem:[#allocation2] sm:$0xff] %vm495, -inf
          %497 = vst.msk [vmem:[#allocation2 + $0x8] sm:$0xff] %vm495, -inf
          %498 = vst.msk [vmem:[#allocation2 + $0x10] sm:$0xff] %vm495, -inf
          %499 = vst.msk [vmem:[#allocation2 + $0x18] sm:$0xff] %vm495, -inf
          %500 = vst.msk [vmem:[#allocation3] sm:$0xff] %vm495, 0.0
          %501 = vst.msk [vmem:[#allocation3 + $0x8] sm:$0xff] %vm495, 0.0
          %502 = vst.msk [vmem:[#allocation3 + $0x10] sm:$0xff] %vm495, 0.0
          %503 = vst.msk [vmem:[#allocation3 + $0x18] sm:$0xff] %vm495, 0.0
          %vm504 = vcmask 261120
          %505 = vst.msk [vmem:[#allocation4] sm:$0xff] %vm504, 0.0
        $region72: #{decoder_forward.20} parent=51 // pred_fallthru
          _
        %v506 = vld [vmem:[%s459] sm:$0xf]
        %v507 = vld [vmem:[%s467] sm:$0xf]
        %v508 = vld [vmem:[%s475] sm:$0xf]
        %vm509 = vcmask 64512
        %v511 = vsel %vm509, %v506, 0
        %v514 = vsel %vm509, %v507, 0
        %516 = vmatpush.bf16.xpose.msra.mxu0 0
        %517 = vmatpush.bf16.xpose.msra.mxu0 0
        %518 = vmatpush.bf16.xpose.msra.mxu0 0
        %519 = vmatpush.bf16.xpose.msra.mxu0 0
        %520 = vmatpush.bf16.xpose.msra.mxu0 0
        %521 = vmatpush.bf16.xpose.msra.mxu0 0
        %522 = vmatpush.bf16.xpose.msra.mxu0 0
        %523 = vmatpush.bf16.xpose.msra.mxu0 %v514
        %524 = vmatmul.bf16.gmra.mxu0 %v511
        %v525 = vpop.f32.mrf.mxu0
        %v526 = vadd.f32 0.0, %v525
        %v527 = vpop.f32.mrf.mxu0
        %528 = vdwg.mxu0
        %v529 = vmul.f32 %v526, 0.35355338
        %v530 = vld [vmem:[#allocation2] sm:$0xff]
        %v531 = vsel %vm509, %v529, -inf
        %532 = vmax.xlane.f32.xlu0 %v531
        %v533 = vpop.xlane.xlu0 %532
        %v534 = vmax.f32 %v530, %v533
        %v535 = vsub.f32 %v530, %v534
        %v536 = vmul.f32 %v535, 1.442695
        %v537 = vpow.pop %v536
        %539 = vset.pattern.permute.xlu0 0
        %540 = vperm.xlu0 %539, %v534
        %v541 = vpop.permute.xlu0 %540
        %v543 = vsub.f32 %v529, %v541
        %v544 = vmul.f32 %v543, 1.442695
        %v545 = vpow.pop %v544
        %v546 = vld [vmem:[#allocation3] sm:$0xff]
        %v547 = vmul.f32 %v537, %v546
        %v548 = vsel %vm509, %v545, 0.0
        %549 = vadd.xlane.f32.xlu0 %v548
        %v550 = vpop.xlane.xlu0 %549
        %v551 = vadd.f32 %v547, %v550
        %vm552 = vcmask 7168
        %553 = vst.msk [vmem:[#allocation3] sm:$0xff] %vm552, %v551
        %554 = vst.msk [vmem:[#allocation2] sm:$0xff] %vm552, %v534
        %v555 = vpack.c.bf16 %v545, %v545
        %v557 = vsel %vm509, %v555, 0
        %vm559 = vcmask 1043456
        %v561 = vsel %vm559, %v508, 0
        %563 = vmatpush.bf16.msra.mxu0 0
        %564 = vmatpush.bf16.msra.mxu0 0
        %565 = vmatpush.bf16.msra.mxu0 0
        %566 = vmatpush.bf16.msra.mxu0 0
        %567 = vmatpush.bf16.msra.mxu0 0
        %568 = vmatpush.bf16.msra.mxu0 0
        %569 = vmatpush.bf16.msra.mxu0 0
        %570 = vmatpush.bf16.msra.mxu0 %v561
        %571 = vmatmul.bf16.gmra.mxu0 %v557
        %v572 = vpop.f32.mrf.mxu0
        %v573 = vadd.f32 0.0, %v572
        %v574 = vpop.f32.mrf.mxu0
        %575 = vdwg.mxu0
        %v576 = vld [vmem:[#allocation4] sm:$0xff]
        %578 = vset.pattern.permute.xlu0 0
        %579 = vperm.xlu0 %578, %v537
        %v580 = vpop.permute.xlu0 %579
        %v582 = vmul.f32 %v580, %v576
        %v583 = vadd.f32 %v582, %v573
        %584 = vst.msk [vmem:[#allocation4] sm:$0xff] %vm509, %v583
        %v586 = vunpack.c.l.b16 %v506
        %v587 = vpack.c.b16 %v586, %v586
        %588 = vrot.lane.b32.xlu0 %v587, 120
        %v589 = vpop.permute.xlu0 %588
        %v591 = vunpack.c.l.b16 %v507
        %v592 = vpack.c.b16 %v591, %v591
        %593 = vrot.lane.b32.xlu0 %v592, 120
        %v594 = vpop.permute.xlu0 %593
        %v596 = vsel %vm509, %v589, 0
        %v599 = vsel %vm509, %v594, 0
        %601 = vmatpush.bf16.xpose.msra.mxu0 0
        %602 = vmatpush.bf16.xpose.msra.mxu0 0
        %603 = vmatpush.bf16.xpose.msra.mxu0 0
        %604 = vmatpush.bf16.xpose.msra.mxu0 0
        %605 = vmatpush.bf16.xpose.msra.mxu0 0
        %606 = vmatpush.bf16.xpose.msra.mxu0 0
        %607 = vmatpush.bf16.xpose.msra.mxu0 0
        %608 = vmatpush.bf16.xpose.msra.mxu0 %v599
        %609 = vmatmul.bf16.gmra.mxu0 %v596
        %v610 = vpop.f32.mrf.mxu0
        %v611 = vadd.f32 0.0, %v610
        %v612 = vpop.f32.mrf.mxu0
        %613 = vdwg.mxu0
        %v614 = vmul.f32 %v611, 0.35355338
        %s615 = scalar_lea.vmem [#allocation2], 8
        %v616 = vld [vmem:[%s615] sm:$0xff]
        %v617 = vsel %vm509, %v614, -inf
        %618 = vmax.xlane.f32.xlu0 %v617
        %v619 = vpop.xlane.xlu0 %618
        %v620 = vmax.f32 %v616, %v619
        %v621 = vsub.f32 %v616, %v620
        %v622 = vmul.f32 %v621, 1.442695
        %v623 = vpow.pop %v622
        %625 = vset.pattern.permute.xlu0 0
        %626 = vperm.xlu0 %625, %v620
        %v627 = vpop.permute.xlu0 %626
        %v629 = vsub.f32 %v614, %v627
        %v630 = vmul.f32 %v629, 1.442695
        %v631 = vpow.pop %v630
        %s632 = scalar_lea.vmem [#allocation3], 8
        %v633 = vld [vmem:[%s632] sm:$0xff]
        %v634 = vmul.f32 %v623, %v633
        %v635 = vsel %vm509, %v631, 0.0
        %636 = vadd.xlane.f32.xlu0 %v635
        %v637 = vpop.xlane.xlu0 %636
        %v638 = vadd.f32 %v634, %v637
        %639 = vst.msk [vmem:[%s632] sm:$0xff] %vm552, %v638
        %640 = vst.msk [vmem:[%s615] sm:$0xff] %vm552, %v620
        %v641 = vpack.c.bf16 %v631, %v631
        %v643 = vunpack.c.l.b16 %v508
        %v644 = vpack.c.b16 %v643, %v643
        %645 = vrot.lane.b32.xlu0 %v644, 120
        %v646 = vpop.permute.xlu0 %645
        %v648 = vsel %vm509, %v641, 0
        %v651 = vsel %vm559, %v646, 0
        %653 = vmatpush.bf16.msra.mxu0 0
        %654 = vmatpush.bf16.msra.mxu0 0
        %655 = vmatpush.bf16.msra.mxu0 0
        %656 = vmatpush.bf16.msra.mxu0 0
        %657 = vmatpush.bf16.msra.mxu0 0
        %658 = vmatpush.bf16.msra.mxu0 0
        %659 = vmatpush.bf16.msra.mxu0 0
        %660 = vmatpush.bf16.msra.mxu0 %v651
        %661 = vmatmul.bf16.gmra.mxu0 %v648
        %v662 = vpop.f32.mrf.mxu0
        %v663 = vadd.f32 0.0, %v662
        %v664 = vpop.f32.mrf.mxu0
        %665 = vdwg.mxu0
        %v666 = vld [vmem:[#allocation4] sm:$0xff]
        %668 = vset.pattern.permute.xlu0 0
        %669 = vperm.xlu0 %668, %v623
        %v670 = vpop.permute.xlu0 %669
        %v672 = vmul.f32 %v670, %v666
        %674 = vrot.lane.b32.xlu0 %v663, 8
        %v675 = vpop.permute.xlu0 %674
        %v677 = vadd.f32 %v672, %v675
        %vm678 = vcmask 130112
        %679 = vst.msk [vmem:[#allocation4] sm:$0xff] %vm678, %v677
        %680 = vrot.lane.b32.xlu0 %v587, 112
        %v681 = vpop.permute.xlu0 %680
        %682 = vrot.lane.b32.xlu0 %v592, 112
        %v683 = vpop.permute.xlu0 %682
        %v685 = vsel %vm509, %v681, 0
        %v688 = vsel %vm509, %v683, 0
        %690 = vmatpush.bf16.xpose.msra.mxu0 0
        %691 = vmatpush.bf16.xpose.msra.mxu0 0
        %692 = vmatpush.bf16.xpose.msra.mxu0 0
        %693 = vmatpush.bf16.xpose.msra.mxu0 0
        %694 = vmatpush.bf16.xpose.msra.mxu0 0
        %695 = vmatpush.bf16.xpose.msra.mxu0 0
        %696 = vmatpush.bf16.xpose.msra.mxu0 0
        %697 = vmatpush.bf16.xpose.msra.mxu0 %v688
        %698 = vmatmul.bf16.gmra.mxu0 %v685
        %v699 = vpop.f32.mrf.mxu0
        %v700 = vadd.f32 0.0, %v699
        %v701 = vpop.f32.mrf.mxu0
        %702 = vdwg.mxu0
        %v703 = vmul.f32 %v700, 0.35355338
        %s704 = scalar_lea.vmem [#allocation2], 16
        %v705 = vld [vmem:[%s704] sm:$0xff]
        %v706 = vsel %vm509, %v703, -inf
        %707 = vmax.xlane.f32.xlu0 %v706
        %v708 = vpop.xlane.xlu0 %707
        %v709 = vmax.f32 %v705, %v708
        %v710 = vsub.f32 %v705, %v709
        %v711 = vmul.f32 %v710, 1.442695
        %v712 = vpow.pop %v711
        %714 = vset.pattern.permute.xlu0 0
        %715 = vperm.xlu0 %714, %v709
        %v716 = vpop.permute.xlu0 %715
        %v718 = vsub.f32 %v703, %v716
        %v719 = vmul.f32 %v718, 1.442695
        %v720 = vpow.pop %v719
        %s721 = scalar_lea.vmem [#allocation3], 16
        %v722 = vld [vmem:[%s721] sm:$0xff]
        %v723 = vmul.f32 %v712, %v722
        %v724 = vsel %vm509, %v720, 0.0
        %725 = vadd.xlane.f32.xlu0 %v724
        %v726 = vpop.xlane.xlu0 %725
        %v727 = vadd.f32 %v723, %v726
        %728 = vst.msk [vmem:[%s721] sm:$0xff] %vm552, %v727
        %729 = vst.msk [vmem:[%s704] sm:$0xff] %vm552, %v709
        %v730 = vpack.c.bf16 %v720, %v720
        %731 = vrot.lane.b32.xlu0 %v644, 112
        %v732 = vpop.permute.xlu0 %731
        %v734 = vsel %vm509, %v730, 0
        %v737 = vsel %vm559, %v732, 0
        %739 = vmatpush.bf16.msra.mxu0 0
        %740 = vmatpush.bf16.msra.mxu0 0
        %741 = vmatpush.bf16.msra.mxu0 0
        %742 = vmatpush.bf16.msra.mxu0 0
        %743 = vmatpush.bf16.msra.mxu0 0
        %744 = vmatpush.bf16.msra.mxu0 0
        %745 = vmatpush.bf16.msra.mxu0 0
        %746 = vmatpush.bf16.msra.mxu0 %v737
        %747 = vmatmul.bf16.gmra.mxu0 %v734
        %v748 = vpop.f32.mrf.mxu0
        %v749 = vadd.f32 0.0, %v748
        %v750 = vpop.f32.mrf.mxu0
        %751 = vdwg.mxu0
        %v752 = vld [vmem:[#allocation4] sm:$0xff]
        %754 = vset.pattern.permute.xlu0 0
        %755 = vperm.xlu0 %754, %v712
        %v756 = vpop.permute.xlu0 %755
        %v758 = vmul.f32 %v756, %v752
        %760 = vrot.lane.b32.xlu0 %v749, 16
        %v761 = vpop.permute.xlu0 %760
        %v763 = vadd.f32 %v758, %v761
        %vm764 = vcmask 195712
        %765 = vst.msk [vmem:[#allocation4] sm:$0xff] %vm764, %v763
        %766 = vrot.lane.b32.xlu0 %v587, 104
        %v767 = vpop.permute.xlu0 %766
        %768 = vrot.lane.b32.xlu0 %v592, 104
        %v769 = vpop.permute.xlu0 %768
        %v771 = vsel %vm509, %v767, 0
        %v774 = vsel %vm509, %v769, 0
        %776 = vmatpush.bf16.xpose.msra.mxu0 0
        %777 = vmatpush.bf16.xpose.msra.mxu0 0
        %778 = vmatpush.bf16.xpose.msra.mxu0 0
        %779 = vmatpush.bf16.xpose.msra.mxu0 0
        %780 = vmatpush.bf16.xpose.msra.mxu0 0
        %781 = vmatpush.bf16.xpose.msra.mxu0 0
        %782 = vmatpush.bf16.xpose.msra.mxu0 0
        %783 = vmatpush.bf16.xpose.msra.mxu0 %v774
        %784 = vmatmul.bf16.gmra.mxu0 %v771
        %v785 = vpop.f32.mrf.mxu0
        %v786 = vadd.f32 0.0, %v785
        %v787 = vpop.f32.mrf.mxu0
        %788 = vdwg.mxu0
        %v789 = vmul.f32 %v786, 0.35355338
        %s790 = scalar_lea.vmem [#allocation2], 24
        %v791 = vld [vmem:[%s790] sm:$0xff]
        %v792 = vsel %vm509, %v789, -inf
        %793 = vmax.xlane.f32.xlu0 %v792
        %v794 = vpop.xlane.xlu0 %793
        %v795 = vmax.f32 %v791, %v794
        %v796 = vsub.f32 %v791, %v795
        %v797 = vmul.f32 %v796, 1.442695
        %v798 = vpow.pop %v797
        %800 = vset.pattern.permute.xlu0 0
        %801 = vperm.xlu0 %800, %v795
        %v802 = vpop.permute.xlu0 %801
        %v804 = vsub.f32 %v789, %v802
        %v805 = vmul.f32 %v804, 1.442695
        %v806 = vpow.pop %v805
        %s807 = scalar_lea.vmem [#allocation3], 24
        %v808 = vld [vmem:[%s807] sm:$0xff]
        %v809 = vmul.f32 %v798, %v808
        %v810 = vsel %vm509, %v806, 0.0
        %811 = vadd.xlane.f32.xlu0 %v810
        %v812 = vpop.xlane.xlu0 %811
        %v813 = vadd.f32 %v809, %v812
        %814 = vst.msk [vmem:[%s807] sm:$0xff] %vm552, %v813
        %815 = vst.msk [vmem:[%s790] sm:$0xff] %vm552, %v795
        %v816 = vpack.c.bf16 %v806, %v806
        %817 = vrot.lane.b32.xlu0 %v644, 104
        %v818 = vpop.permute.xlu0 %817
        %v820 = vsel %vm509, %v816, 0
        %v823 = vsel %vm559, %v818, 0
        %825 = vmatpush.bf16.msra.mxu0 0
        %826 = vmatpush.bf16.msra.mxu0 0
        %827 = vmatpush.bf16.msra.mxu0 0
        %828 = vmatpush.bf16.msra.mxu0 0
        %829 = vmatpush.bf16.msra.mxu0 0
        %830 = vmatpush.bf16.msra.mxu0 0
        %831 = vmatpush.bf16.msra.mxu0 0
        %832 = vmatpush.bf16.msra.mxu0 %v823
        %833 = vmatmul.bf16.gmra.mxu0 %v820
        %v834 = vpop.f32.mrf.mxu0
        %v835 = vadd.f32 0.0, %v834
        %v836 = vpop.f32.mrf.mxu0
        %837 = vdwg.mxu0
        %v838 = vld [vmem:[#allocation4] sm:$0xff]
        %840 = vset.pattern.permute.xlu0 0
        %841 = vperm.xlu0 %840, %v798
        %v842 = vpop.permute.xlu0 %841
        %v844 = vmul.f32 %v842, %v838
        %846 = vrot.lane.b32.xlu0 %v835, 24
        %v847 = vpop.permute.xlu0 %846
        %v849 = vadd.f32 %v844, %v847
        %vm850 = vcmask 261312
        %851 = vst.msk [vmem:[#allocation4] sm:$0xff] %vm850, %v849
        // Predicated region
        $region73: #{decoder_forward.20} parent=51 // pred_check
          %p852 = pneg %p491
        $region74: #{decoder_forward.20} parent=51 // pred_check_branch
          %854 = sbr.rel (%p852) target = $region76
        $region75: #{decoder_forward.20} parent=51 // pred_region
          %v855 = vld [vmem:[#allocation4] sm:$0xff]
          %v856 = vld [vmem:[#allocation3] sm:$0xff]
          %v857 = vrcp.pop %v856
          %859 = vset.pattern.permute.xlu0 0
          %860 = vperm.xlu0 %859, %v857
          %v861 = vpop.permute.xlu0 %860
          %v863 = vmul.f32 %v855, %v861
          %864 = vst.msk [vmem:[#allocation4] sm:$0xff] %vm509, %v863
          %v865 = vld [vmem:[#allocation4] sm:$0xff]
          %v866 = vld [vmem:[%s632] sm:$0xff]
          %v867 = vrcp.pop %v866
          %869 = vset.pattern.permute.xlu0 0
          %870 = vperm.xlu0 %869, %v867
          %v871 = vpop.permute.xlu0 %870
          %v873 = vmul.f32 %v865, %v871
          %874 = vst.msk [vmem:[#allocation4] sm:$0xff] %vm678, %v873
          %v875 = vld [vmem:[#allocation4] sm:$0xff]
          %v876 = vld [vmem:[%s721] sm:$0xff]
          %v877 = vrcp.pop %v876
          %879 = vset.pattern.permute.xlu0 0
          %880 = vperm.xlu0 %879, %v877
          %v881 = vpop.permute.xlu0 %880
          %v883 = vmul.f32 %v875, %v881
          %884 = vst.msk [vmem:[#allocation4] sm:$0xff] %vm764, %v883
          %v885 = vld [vmem:[#allocation4] sm:$0xff]
          %v886 = vld [vmem:[%s807] sm:$0xff]
          %v887 = vrcp.pop %v886
          %889 = vset.pattern.permute.xlu0 0
          %890 = vperm.xlu0 %889, %v887
          %v891 = vpop.permute.xlu0 %890
          %v893 = vmul.f32 %v885, %v891
          %894 = vst.msk [vmem:[#allocation4] sm:$0xff] %vm850, %v893
          %v895 = vld [vmem:[#allocation4] sm:$0xff]
          %v896 = vpack.c.bf16 %v895, %v895
          %v897 = vld [vmem:[#allocation5] sm:$0xff]
          %v898 = vld [vmem:[#allocation5 + $0x8] sm:$0xff]
          %v899 = vld [vmem:[#allocation5 + $0x10] sm:$0xff]
          %v900 = vld [vmem:[#allocation5 + $0x18] sm:$0xff]
          %v901 = vpack.c.bf16 %v898, %v897
          %v902 = vpack.c.bf16 %v900, %v899
          %v903 = vld [vmem:[#allocation7] sm:$0x1]
          %v905 = vperm.slane %v903, 0
          %vm907 = vcmask 261120
          %v909 = vsel %vm907, %v896, 0
          %911 = vmatpush.bf16.msra.mxu0 0
          %912 = vmatpush.bf16.msra.mxu0 0
          %913 = vmatpush.bf16.msra.mxu0 0
          %914 = vmatpush.bf16.msra.mxu0 0
          %915 = vmatpush.bf16.msra.mxu0 0
          %916 = vmatpush.bf16.msra.mxu0 0
          %917 = vmatpush.bf16.msra.mxu0 %v902
          %918 = vmatpush.bf16.msra.mxu0 %v901
          %919 = vmatmul.bf16.gmra.mxu0 %v909
          %v920 = vpop.f32.mrf.mxu0
          %v921 = vadd.f32 %v905, %v920
          %v922 = vpop.f32.mrf.mxu0
          %923 = vdwg.mxu0
          %v924 = vld [vmem:[%s482] sm:$0xff]
          %v925 = vadd.f32 %v921, %v924
          %v926 = vsel %vm907, %v925, 0.0
          %927 = vadd.xlane.f32.xlu0 %v926
          %v928 = vpop.xlane.xlu0 %927
          %v929 = vrcp.pop 32.0
          %v930 = vmul.f32 32.0, %v929
          %v931 = vsub.f32 1.0, %v930
          %v932 = vmul.f32 %v929, %v931
          %v933 = vadd.f32 %v929, %v932
          %vm934 = vweird.f32 %v929
          %v935 = vsel %vm934, %v929, %v933
          %v936 = vmul.f32 %v928, %v935
          %v937 = vsub.f32 %v925, %v936
          %v938 = vmul.f32 %v937, %v937
          %v939 = vsel %vm907, %v938, 0.0
          %940 = vadd.xlane.f32.xlu0 %v939
          %v941 = vpop.xlane.xlu0 %940
          %v942 = vmul.f32 %v941, %v935
          %v943 = vadd.f32 %v942, 1e-05
          %v944 = vrsqrt.pop %v943
          %v945 = vmul.f32 %v944, %v943
          %v946 = vmul.f32 %v945, %v944
          %v947 = vmul.f32 0.5, %v946
          %v948 = vsub.f32 1.5, %v947
          %v949 = vmul.f32 %v944, %v948
          %vm950 = vweird.f32 %v943
          %vm951 = vweird.f32 %v944
          %vm952 = vmor %vm950, %vm951
          %v953 = vsel %vm952, %v944, %v949
          %v954 = vmul.f32 %v937, %v953
          %v955 = vld [vmem:[#allocation9] sm:$0x1]
          %v957 = vperm.slane %v955, 0
          %v959 = vmul.f32 %v954, %v957
          %v960 = vld [vmem:[#allocation10] sm:$0x1]
          %v962 = vperm.slane %v960, 0
          %v964 = vadd.f32 %v959, %v962
          %965 = vst.msk [vmem:[%s489] sm:$0xff] %vm907, %v964
        $region76: #{decoder_forward.20} parent=51 // pred_fallthru
          _
        %p966 = scmp.lt.s32.totalorder %s27, 1
        %s967 = scalar_select %p966, %s27, 1
        %p968 = scmp.lt.s32.totalorder %s28, 0
        %s969 = scalar_select %p968, %s28, 0
        %s970 = sadd.s32 %s969, %s967
        %s971 = smul.addr %s970, 8
        %s972 = scalar_lea.vmem %s8, %s971
        // Predicated region
        $region77: #{decoder_forward.20} parent=51 // pred_check
          %p973 = pneg %p257
        $region78: #{decoder_forward.20} parent=51 // pred_check_branch
          %975 = sbr.rel (%p973) target = $region80
        $region79: #{decoder_forward.20} parent=51 // pred_region
          _
        $region80: #{decoder_forward.20} parent=51 // pred_fallthru
          _
      $region52: #{decoder_forward.20} parent=5 // pred_fallthru
        _
      %p976 = scmp.le.s32.totalorder 2, %s17
      // Predicated region
      $region81: #{decoder_forward.20} parent=5 // pred_check
        %p977 = pneg %p976
      $region82: #{decoder_forward.20} parent=5 // pred_check_branch
        %979 = sbr.rel (%p977) target = $region84
      $region83: #{decoder_forward.20} parent=5 // pred_region
        %s980 = ssub.s32 %s17, 2
        // Predicated region
        $region85: #{decoder_forward.20} parent=83 // pred_check
          %p981 = pneg %p263
        $region86: #{decoder_forward.20} parent=83 // pred_check_branch
          %983 = sbr.rel (%p981) target = $region88
        $region87: #{decoder_forward.20} parent=83 // pred_region
          %p984 = scmp.lt.s32.totalorder %s30, 1
          %s985 = scalar_select %p984, %s30, 1
          %p986 = scmp.lt.s32.totalorder %s31, 0
          %s987 = scalar_select %p986, %s31, 0
          %s988 = sadd.s32 %s987, %s985
          %s989 = smul.addr %s988, 8
          %s990 = scalar_lea.vmem %s8, %s989
        $region88: #{decoder_forward.20} parent=83 // pred_fallthru
          _
      $region84: #{decoder_forward.20} parent=5 // pred_fallthru
        _
    $region6: #{decoder_forward.20} parent=1 // loop_footer
      %s21 = sadd.s32 1, %s17
    $region7: #{decoder_forward.20} parent=1 // loop_footer_branch
      %16 = sbr.rel target = $region3
    $region8: #{decoder_forward.20} parent=1 // loop_exit
      _
    %991 = vsyncpa [#allocation6], 1
    %s992 = scalar_lea.sflag [#allocation6], 1
    %993 = vsyncpa %s992, 1
    %994 = vsyncpa [#allocation8], 1
    %995 = vsyncpa [#allocation11], 1

// kernel: decoder_forward.22
$region0: #{decoder_forward.22}
  #allocation0 [shape = 'u32[]', space=smem, size = 0x4, offset = 0x4, fixed_abs, tag = 'smem constant byte address 0x4 - core index']
  #allocation1 [shape = 'u32[72,128]{1,0:T(1,128)}', space=vmem, size = 0x9000, scoped, tag = 'internal scratch']
  #allocation2 [shape = 'f32[2,16,32]{2,1,0:T(8,128)}', space=vmem, size = 0x4000, scoped, tag = 'scratch operand']
  %s0 = inlined_call_operand.vmem [shape: f32[16,32], index: 0, kind: input, shape index: {}]
  %s1 = inlined_call_operand.vmem [shape: f32[2,32,32], index: 1, kind: input, shape index: {}]
  %s2 = inlined_call_operand.vmem [shape: f32[2,1,32], index: 2, kind: input, shape index: {}]
  %s3 = inlined_call_operand.vmem [shape: bf16[2,16,32], index: 3, kind: output, shape index: {}]
  %s4 = sld [smem:[#allocation0]]
  $region30: #{decoder_forward.22} parent=0
    _
  %s6 = ssub.s32 1, %s4
  %s7 = scalar_select 0, %s6, %s4
  // Predicated region
  $region2: #{decoder_forward.22} parent=0 // pred_check
    _
  $region3: #{decoder_forward.22} parent=0 // pred_check_branch
    %9 = sbr.rel (0) target = $region5
  $region4: #{decoder_forward.22} parent=0 // pred_region
    _
  $region5: #{decoder_forward.22} parent=0 // pred_fallthru
    _
  // Predicated region
  $region6: #{decoder_forward.22} parent=0 // pred_check
    _
  $region7: #{decoder_forward.22} parent=0 // pred_check_branch
    %11 = sbr.rel (0) target = $region9
  $region8: #{decoder_forward.22} parent=0 // pred_region
    _
  $region9: #{decoder_forward.22} parent=0 // pred_fallthru
    _
  // Predicated region
  $region10: #{decoder_forward.22} parent=0 // pred_check
    _
  $region11: #{decoder_forward.22} parent=0 // pred_check_branch
    %13 = sbr.rel (0) target = $region13
  $region12: #{decoder_forward.22} parent=0 // pred_region
    _
  $region13: #{decoder_forward.22} parent=0 // pred_fallthru
    _
  %p15 = scmp.eq.s32.totalorder 0, 0
  // Predicated region
  $region14: #{decoder_forward.22} parent=0 // pred_check
    %p16 = pneg %p15
  $region15: #{decoder_forward.22} parent=0 // pred_check_branch
    %18 = sbr.rel (%p16) target = $region17
  $region16: #{decoder_forward.22} parent=0 // pred_region
    %vm19 = vcmask 261120
    %20 = vst.msk [vmem:[#allocation2] sm:$0xff] %vm19, 0.0
    %21 = vst.msk [vmem:[#allocation2 + $0x8] sm:$0xff] %vm19, 0.0
    %22 = vst.msk [vmem:[#allocation2 + $0x10] sm:$0xff] %vm19, 0.0
    %23 = vst.msk [vmem:[#allocation2 + $0x18] sm:$0xff] %vm19, 0.0
  $region17: #{decoder_forward.22} parent=0 // pred_fallthru
    _
  %v24 = vld [vmem:[%s0] sm:$0xff]
  %v25 = vld [vmem:[%s0 + $0x8] sm:$0xff]
  %v26 = vpack.c.bf16 %v25, %v24
  %v27 = vld [vmem:[#allocation2] sm:$0xff]
  %v28 = vld [vmem:[#allocation2 + $0x8] sm:$0xff]
  %v29 = vld [vmem:[%s1] sm:$0xff]
  %v30 = vld [vmem:[%s1 + $0x8] sm:$0xff]
  %v31 = vld [vmem:[%s1 + $0x10] sm:$0xff]
  %v32 = vld [vmem:[%s1 + $0x18] sm:$0xff]
  %v33 = vpack.c.bf16 %v30, %v29
  %v34 = vpack.c.bf16 %v32, %v31
  %vm35 = vcmask 261120
  %v37 = vsel %vm35, %v26, 0
  %39 = vmatpush.bf16.msra.mxu0 0
  %40 = vmatpush.bf16.msra.mxu0 0
  %41 = vmatpush.bf16.msra.mxu0 0
  %42 = vmatpush.bf16.msra.mxu0 0
  %43 = vmatpush.bf16.msra.mxu0 0
  %44 = vmatpush.bf16.msra.mxu0 0
  %45 = vmatpush.bf16.msra.mxu0 %v34
  %46 = vmatpush.bf16.msra.mxu0 %v33
  %47 = vmatmul.bf16.gmra.mxu0 %v37
  %v48 = vpop.f32.mrf.mxu0
  %v49 = vadd.f32 0.0, %v48
  %v50 = vpop.f32.mrf.mxu0
  %v51 = vadd.f32 0.0, %v50
  %52 = vdwg.mxu0
  %v53 = vadd.f32 %v27, %v49
  %v54 = vadd.f32 %v28, %v51
  %55 = vst.msk [vmem:[#allocation2] sm:$0xff] %vm35, %v53
  %56 = vst.msk [vmem:[#allocation2 + $0x8] sm:$0xff] %vm35, %v54
  %s57 = scalar_lea.vmem [#allocation2], 16
  %v58 = vld [vmem:[%s57] sm:$0xff]
  %v59 = vld [vmem:[%s57 + $0x8] sm:$0xff]
  %s60 = scalar_lea.vmem %s1, 32
  %v61 = vld [vmem:[%s60] sm:$0xff]
  %v62 = vld [vmem:[%s60 + $0x8] sm:$0xff]
  %v63 = vld [vmem:[%s60 + $0x10] sm:$0xff]
  %v64 = vld [vmem:[%s60 + $0x18] sm:$0xff]
  %v65 = vpack.c.bf16 %v62, %v61
  %v66 = vpack.c.bf16 %v64, %v63
  %67 = vmatpush.bf16.msra.mxu0 0
  %68 = vmatpush.bf16.msra.mxu0 0
  %69 = vmatpush.bf16.msra.mxu0 0
  %70 = vmatpush.bf16.msra.mxu0 0
  %71 = vmatpush.bf16.msra.mxu0 0
  %72 = vmatpush.bf16.msra.mxu0 0
  %73 = vmatpush.bf16.msra.mxu0 %v66
  %74 = vmatpush.bf16.msra.mxu0 %v65
  %75 = vmatmul.bf16.gmra.mxu0 %v37
  %v76 = vpop.f32.mrf.mxu0
  %v77 = vadd.f32 0.0, %v76
  %v78 = vpop.f32.mrf.mxu0
  %v79 = vadd.f32 0.0, %v78
  %80 = vdwg.mxu0
  %v81 = vadd.f32 %v58, %v77
  %v82 = vadd.f32 %v59, %v79
  %83 = vst.msk [vmem:[%s57] sm:$0xff] %vm35, %v81
  %84 = vst.msk [vmem:[%s57 + $0x8] sm:$0xff] %vm35, %v82
  // Predicated region
  $region18: #{decoder_forward.22} parent=0 // pred_check
    %p85 = pneg %p15
  $region19: #{decoder_forward.22} parent=0 // pred_check_branch
    %87 = sbr.rel (%p85) target = $region21
  $region20: #{decoder_forward.22} parent=0 // pred_region
    %v88 = vld [vmem:[#allocation2] sm:$0xff]
    %v89 = vld [vmem:[#allocation2 + $0x8] sm:$0xff]
    %v90 = vld [vmem:[#allocation2 + $0x10] sm:$0xff]
    %v91 = vld [vmem:[#allocation2 + $0x18] sm:$0xff]
    %v92 = vld [vmem:[%s2] sm:$0x1]
    %v93 = vld [vmem:[%s2 + $0x1] sm:$0x1]
    %v96 = vperm.slane %v92, 0
    %v97 = vperm.slane %v93, 0
    %v100 = vadd.f32 %v88, %v96
    %v101 = vadd.f32 %v89, %v96
    %v102 = vadd.f32 %v90, %v97
    %v103 = vadd.f32 %v91, %v97
    %v104 = vpack.c.bf16 %v100, %v100
    %v105 = vpack.c.bf16 %v101, %v101
    %v106 = vpack.c.bf16 %v102, %v102
    %v107 = vpack.c.bf16 %v103, %v103
    %vm108 = vcmask 257024
    %109 = vst.msk [vmem:[%s3] sm:$0xf] %vm108, %v104
    %110 = vst.msk [vmem:[%s3 + $0x4] sm:$0xf] %vm108, %v105
    %111 = vst.msk [vmem:[%s3 + $0x8] sm:$0xf] %vm108, %v106
    %112 = vst.msk [vmem:[%s3 + $0xc] sm:$0xf] %vm108, %v107
  $region21: #{decoder_forward.22} parent=0 // pred_fallthru
    _
  // Predicated region
  $region22: #{decoder_forward.22} parent=0 // pred_check
    _
  $region23: #{decoder_forward.22} parent=0 // pred_check_branch
    %114 = sbr.rel (0) target = $region25
  $region24: #{decoder_forward.22} parent=0 // pred_region
    _
  $region25: #{decoder_forward.22} parent=0 // pred_fallthru
    _
  // Predicated region
  $region26: #{decoder_forward.22} parent=0 // pred_check
    _
  $region27: #{decoder_forward.22} parent=0 // pred_check_branch
    %116 = sbr.rel (0) target = $region29
  $region28: #{decoder_forward.22} parent=0 // pred_region
    _
  $region29: #{decoder_forward.22} parent=0 // pred_fallthru
    _

// kernel: decoder_forward.25
$region0: #{decoder_forward.25}
  #allocation0 [shape = 'u32[]', space=smem, size = 0x4, offset = 0x4, fixed_abs, tag = 'smem constant byte address 0x4 - core index']
  #allocation1 [shape = 'u32[72,128]{1,0:T(1,128)}', space=vmem, size = 0x9000, scoped, tag = 'internal scratch']
  %s0 = inlined_call_operand.vmem [shape: f32[16,32], index: 0, kind: input, shape index: {}]
  %s1 = inlined_call_operand.vmem [shape: f32[1,32], index: 1, kind: input, shape index: {}]
  %s2 = inlined_call_operand.vmem [shape: f32[1,32], index: 2, kind: input, shape index: {}]
  %s3 = inlined_call_operand.hbm [shape: f32[16,32], index: 3, kind: output, shape index: {}]
  %s4 = sld [smem:[#allocation0]]
  $region22: #{decoder_forward.25} parent=0
    _
  %s6 = ssub.s32 1, %s4
  %s7 = scalar_select 0, %s6, %s4
  $region1: #{decoder_forward.25} parent=0
    #allocation2 [shape = 'u8[8192]{0}', space=vmem, size = 0x2000, scoped, tag = 'output window, operand 0, single buffered']
    #allocation3 [shape = 's32[1]{0}', space=sflag, size = 0x4, scoped, tag = 'scoped memory for decoder_forward.25']
    %8 = vsyncpa [#allocation3], 0
    // Predicated region
    $region2: #{decoder_forward.25} parent=1 // pred_check
      _
    $region3: #{decoder_forward.25} parent=1 // pred_check_branch
      %10 = sbr.rel (0) target = $region5
    $region4: #{decoder_forward.25} parent=1 // pred_region
      _
    $region5: #{decoder_forward.25} parent=1 // pred_fallthru
      _
    // Predicated region
    $region6: #{decoder_forward.25} parent=1 // pred_check
      _
    $region7: #{decoder_forward.25} parent=1 // pred_check_branch
      %12 = sbr.rel (0) target = $region9
    $region8: #{decoder_forward.25} parent=1 // pred_region
      _
    $region9: #{decoder_forward.25} parent=1 // pred_fallthru
      _
    // Predicated region
    $region10: #{decoder_forward.25} parent=1 // pred_check
      _
    $region11: #{decoder_forward.25} parent=1 // pred_check_branch
      %14 = sbr.rel (0) target = $region13
    $region12: #{decoder_forward.25} parent=1 // pred_region
      _
    $region13: #{decoder_forward.25} parent=1 // pred_fallthru
      _
    %v15 = vld [vmem:[%s0] sm:$0xff]
    %v16 = vld [vmem:[%s0 + $0x8] sm:$0xff]
    %vm17 = vcmask 261120
    %v18 = vsel %vm17, %v15, 0.0
    %19 = vadd.xlane.f32.xlu0 %v18
    %v20 = vpop.xlane.xlu0 %19
    %v21 = vsel %vm17, %v16, 0.0
    %22 = vadd.xlane.f32.xlu0 %v21
    %v23 = vpop.xlane.xlu0 %22
    %v24 = vrcp.pop 32.0
    %v25 = vmul.f32 32.0, %v24
    %v26 = vsub.f32 1.0, %v25
    %v27 = vmul.f32 %v24, %v26
    %v28 = vadd.f32 %v24, %v27
    %vm29 = vweird.f32 %v24
    %v30 = vsel %vm29, %v24, %v28
    %v31 = vmul.f32 %v20, %v30
    %v32 = vmul.f32 %v23, %v30
    %v33 = vsub.f32 %v15, %v31
    %v34 = vsub.f32 %v16, %v32
    %v35 = vmul.f32 %v33, %v33
    %v36 = vmul.f32 %v34, %v34
    %v37 = vsel %vm17, %v35, 0.0
    %38 = vadd.xlane.f32.xlu0 %v37
    %v39 = vpop.xlane.xlu0 %38
    %v40 = vsel %vm17, %v36, 0.0
    %41 = vadd.xlane.f32.xlu0 %v40
    %v42 = vpop.xlane.xlu0 %41
    %v43 = vmul.f32 %v39, %v30
    %v44 = vmul.f32 %v42, %v30
    %v45 = vadd.f32 %v43, 1e-05
    %v46 = vadd.f32 %v44, 1e-05
    %v47 = vrsqrt.pop %v45
    %v48 = vmul.f32 %v47, %v45
    %v49 = vmul.f32 %v48, %v47
    %v50 = vmul.f32 0.5, %v49
    %v51 = vsub.f32 1.5, %v50
    %v52 = vmul.f32 %v47, %v51
    %vm53 = vweird.f32 %v45
    %vm54 = vweird.f32 %v47
    %vm55 = vmor %vm53, %vm54
    %v56 = vsel %vm55, %v47, %v52
    %v57 = vrsqrt.pop %v46
    %v58 = vmul.f32 %v57, %v46
    %v59 = vmul.f32 %v58, %v57
    %v60 = vmul.f32 0.5, %v59
    %v61 = vsub.f32 1.5, %v60
    %v62 = vmul.f32 %v57, %v61
    %vm63 = vweird.f32 %v46
    %vm64 = vweird.f32 %v57
    %vm65 = vmor %vm63, %vm64
    %v66 = vsel %vm65, %v57, %v62
    %v67 = vmul.f32 %v33, %v56
    %v68 = vmul.f32 %v34, %v66
    %v69 = vld [vmem:[%s1] sm:$0x1]
    %v71 = vperm.slane %v69, 0
    %v73 = vmul.f32 %v67, %v71
    %v74 = vmul.f32 %v68, %v71
    %v75 = vld [vmem:[%s2] sm:$0x1]
    %v77 = vperm.slane %v75, 0
    %v79 = vadd.f32 %v73, %v77
    %v80 = vadd.f32 %v74, %v77
    %81 = vst.msk [vmem:[#allocation2] sm:$0xff] %vm17, %v79
    %82 = vst.msk [vmem:[#allocation2 + $0x8] sm:$0xff] %vm17, %v80
    // Predicated region
    $region14: #{decoder_forward.25} parent=1 // pred_check
      _
    $region15: #{decoder_forward.25} parent=1 // pred_check_branch
      %84 = sbr.rel (0) target = $region17
    $region16: #{decoder_forward.25} parent=1 // pred_region
      %86 = vsyncadd [#allocation3], 0
      %s87 = sshll.u32 [#allocation2], 4
      %s88 = int_to_ptr.vmem [resolvable:$true] %s87
      %s89 = sshll.u32 %s3, 4
      %s90 = int_to_ptr.hbm [resolvable:$true] %s89
      %95 = dma.vmem_to_hbm [thread:$0]  %s88, 256, %s90, [#allocation3], 128, 128, 8
    $region17: #{decoder_forward.25} parent=1 // pred_fallthru
      _
    // Predicated region
    $region18: #{decoder_forward.25} parent=1 // pred_check
      _
    $region19: #{decoder_forward.25} parent=1 // pred_check_branch
      %97 = sbr.rel (0) target = $region21
    $region20: #{decoder_forward.25} parent=1 // pred_region
      %99 = dma.done [#allocation3], 256
    $region21: #{decoder_forward.25} parent=1 // pred_fallthru
      _
    %100 = vsyncpa [#allocation3], 1

// kernel: decoder_forward.24
$region0: #{decoder_forward.24}
  #allocation0 [shape = 'u32[]', space=smem, size = 0x4, offset = 0x4, fixed_abs, tag = 'smem constant byte address 0x4 - core index']
  #allocation1 [shape = 'u32[72,128]{1,0:T(1,128)}', space=vmem, size = 0x9000, scoped, tag = 'internal scratch']
  #allocation2 [shape = 'f32[16,32]{1,0:T(8,128)}', space=vmem, size = 0x2000, scoped, tag = 'scratch operand']
  %s0 = inlined_call_operand.vmem [shape: f32[16,32], index: 0, kind: input, shape index: {}]
  %s1 = inlined_call_operand.vmem [shape: f32[32,64], index: 1, kind: input, shape index: {}]
  %s2 = inlined_call_operand.vmem [shape: f32[1,64], index: 2, kind: input, shape index: {}]
  %s3 = inlined_call_operand.vmem [shape: f32[64,32], index: 3, kind: input, shape index: {}]
  %s4 = inlined_call_operand.vmem [shape: f32[1,32], index: 4, kind: input, shape index: {}]
  %s5 = inlined_call_operand.vmem [shape: f32[1,32], index: 5, kind: input, shape index: {}]
  %s6 = inlined_call_operand.vmem [shape: f32[1,32], index: 6, kind: input, shape index: {}]
  %s7 = inlined_call_operand.vmem [shape: f32[16,32], index: 7, kind: output, shape index: {}]
  %s8 = sld [smem:[#allocation0]]
  $region46: #{decoder_forward.24} parent=0
    _
  %s10 = ssub.s32 1, %s8
  %s11 = scalar_select 0, %s10, %s8
  // Predicated region
  $region2: #{decoder_forward.24} parent=0 // pred_check
    _
  $region3: #{decoder_forward.24} parent=0 // pred_check_branch
    %13 = sbr.rel (0) target = $region5
  $region4: #{decoder_forward.24} parent=0 // pred_region
    _
  $region5: #{decoder_forward.24} parent=0 // pred_fallthru
    _
  // Predicated region
  $region6: #{decoder_forward.24} parent=0 // pred_check
    _
  $region7: #{decoder_forward.24} parent=0 // pred_check_branch
    %15 = sbr.rel (0) target = $region9
  $region8: #{decoder_forward.24} parent=0 // pred_region
    _
  $region9: #{decoder_forward.24} parent=0 // pred_fallthru
    _
  // Predicated region
  $region10: #{decoder_forward.24} parent=0 // pred_check
    _
  $region11: #{decoder_forward.24} parent=0 // pred_check_branch
    %17 = sbr.rel (0) target = $region13
  $region12: #{decoder_forward.24} parent=0 // pred_region
    _
  $region13: #{decoder_forward.24} parent=0 // pred_fallthru
    _
  // Predicated region
  $region14: #{decoder_forward.24} parent=0 // pred_check
    _
  $region15: #{decoder_forward.24} parent=0 // pred_check_branch
    %19 = sbr.rel (0) target = $region17
  $region16: #{decoder_forward.24} parent=0 // pred_region
    _
  $region17: #{decoder_forward.24} parent=0 // pred_fallthru
    _
  // Predicated region
  $region18: #{decoder_forward.24} parent=0 // pred_check
    _
  $region19: #{decoder_forward.24} parent=0 // pred_check_branch
    %21 = sbr.rel (0) target = $region21
  $region20: #{decoder_forward.24} parent=0 // pred_region
    _
  $region21: #{decoder_forward.24} parent=0 // pred_fallthru
    _
  // Predicated region
  $region22: #{decoder_forward.24} parent=0 // pred_check
    _
  $region23: #{decoder_forward.24} parent=0 // pred_check_branch
    %23 = sbr.rel (0) target = $region25
  $region24: #{decoder_forward.24} parent=0 // pred_region
    _
  $region25: #{decoder_forward.24} parent=0 // pred_fallthru
    _
  // Predicated region
  $region26: #{decoder_forward.24} parent=0 // pred_check
    _
  $region27: #{decoder_forward.24} parent=0 // pred_check_branch
    %25 = sbr.rel (0) target = $region29
  $region28: #{decoder_forward.24} parent=0 // pred_region
    _
  $region29: #{decoder_forward.24} parent=0 // pred_fallthru
    _
  %p27 = scmp.eq.s32.totalorder 0, 0
  // Predicated region
  $region30: #{decoder_forward.24} parent=0 // pred_check
    %p28 = pneg %p27
  $region31: #{decoder_forward.24} parent=0 // pred_check_branch
    %30 = sbr.rel (%p28) target = $region33
  $region32: #{decoder_forward.24} parent=0 // pred_region
    %vm31 = vcmask 261120
    %32 = vst.msk [vmem:[#allocation2] sm:$0xff] %vm31, 0.0
    %33 = vst.msk [vmem:[#allocation2 + $0x8] sm:$0xff] %vm31, 0.0
  $region33: #{decoder_forward.24} parent=0 // pred_fallthru
    _
  %v34 = vld [vmem:[%s0] sm:$0xff]
  %v35 = vld [vmem:[%s0 + $0x8] sm:$0xff]
  %v36 = vpack.c.bf16 %v35, %v34
  %v37 = vld [vmem:[%s1] sm:$0xff]
  %v38 = vld [vmem:[%s1 + $0x8] sm:$0xff]
  %v39 = vld [vmem:[%s1 + $0x10] sm:$0xff]
  %v40 = vld [vmem:[%s1 + $0x18] sm:$0xff]
  %v41 = vpack.c.bf16 %v38, %v37
  %v42 = vpack.c.bf16 %v40, %v39
  %v43 = vld [vmem:[%s2] sm:$0x1]
  %v45 = vperm.slane %v43, 0
  %vm47 = vcmask 261120
  %v49 = vsel %vm47, %v36, 0
  %51 = vmatpush.bf16.msra.mxu0 0
  %52 = vmatpush.bf16.msra.mxu0 0
  %53 = vmatpush.bf16.msra.mxu0 0
  %54 = vmatpush.bf16.msra.mxu0 0
  %55 = vmatpush.bf16.msra.mxu0 0
  %56 = vmatpush.bf16.msra.mxu0 0
  %57 = vmatpush.bf16.msra.mxu0 %v42
  %58 = vmatpush.bf16.msra.mxu0 %v41
  %59 = vmatmul.bf16.gmra.mxu0 %v49
  %v60 = vpop.f32.mrf.mxu0
  %v61 = vadd.f32 %v45, %v60
  %v62 = vpop.f32.mrf.mxu0
  %v63 = vadd.f32 %v45, %v62
  %64 = vdwg.mxu0
  %v65 = vmax.f32 %v61, 0.0
  %v66 = vmax.f32 %v63, 0.0
  %v67 = vld [vmem:[#allocation2] sm:$0xff]
  %v68 = vld [vmem:[#allocation2 + $0x8] sm:$0xff]
  %v69 = vpack.c.bf16 %v66, %v65
  %v70 = vld [vmem:[%s3] sm:$0xff]
  %v71 = vld [vmem:[%s3 + $0x8] sm:$0xff]
  %v72 = vld [vmem:[%s3 + $0x10] sm:$0xff]
  %v73 = vld [vmem:[%s3 + $0x18] sm:$0xff]
  %v74 = vld [vmem:[%s3 + $0x20] sm:$0xff]
  %v75 = vld [vmem:[%s3 + $0x28] sm:$0xff]
  %v76 = vld [vmem:[%s3 + $0x30] sm:$0xff]
  %v77 = vld [vmem:[%s3 + $0x38] sm:$0xff]
  %v78 = vpack.c.bf16 %v71, %v70
  %v79 = vpack.c.bf16 %v73, %v72
  %v80 = vpack.c.bf16 %v75, %v74
  %v81 = vpack.c.bf16 %v77, %v76
  %vm82 = vcmask 523264
  %v84 = vsel %vm82, %v69, 0
  %86 = vmatpush.bf16.msra.mxu0 0
  %87 = vmatpush.bf16.msra.mxu0 0
  %88 = vmatpush.bf16.msra.mxu0 0
  %89 = vmatpush.bf16.msra.mxu0 0
  %90 = vmatpush.bf16.msra.mxu0 %v81
  %91 = vmatpush.bf16.msra.mxu0 %v80
  %92 = vmatpush.bf16.msra.mxu0 %v79
  %93 = vmatpush.bf16.msra.mxu0 %v78
  %94 = vmatmul.bf16.gmra.mxu0 %v84
  %v95 = vpop.f32.mrf.mxu0
  %v96 = vadd.f32 0.0, %v95
  %v97 = vpop.f32.mrf.mxu0
  %v98 = vadd.f32 0.0, %v97
  %99 = vdwg.mxu0
  %v100 = vadd.f32 %v67, %v96
  %v101 = vadd.f32 %v68, %v98
  %102 = vst.msk [vmem:[#allocation2] sm:$0xff] %vm47, %v100
  %103 = vst.msk [vmem:[#allocation2 + $0x8] sm:$0xff] %vm47, %v101
  // Predicated region
  $region34: #{decoder_forward.24} parent=0 // pred_check
    %p104 = pneg %p27
  $region35: #{decoder_forward.24} parent=0 // pred_check_branch
    %106 = sbr.rel (%p104) target = $region37
  $region36: #{decoder_forward.24} parent=0 // pred_region
    %v107 = vld [vmem:[#allocation2] sm:$0xff]
    %v108 = vld [vmem:[#allocation2 + $0x8] sm:$0xff]
    %v109 = vadd.f32 %v34, %v107
    %v110 = vadd.f32 %v35, %v108
    %v111 = vld [vmem:[%s4] sm:$0x1]
    %v113 = vperm.slane %v111, 0
    %v115 = vadd.f32 %v109, %v113
    %v116 = vadd.f32 %v110, %v113
    %v117 = vsel %vm47, %v115, 0.0
    %118 = vadd.xlane.f32.xlu0 %v117
    %v119 = vpop.xlane.xlu0 %118
    %v120 = vsel %vm47, %v116, 0.0
    %121 = vadd.xlane.f32.xlu0 %v120
    %v122 = vpop.xlane.xlu0 %121
    %v123 = vrcp.pop 32.0
    %v124 = vmul.f32 32.0, %v123
    %v125 = vsub.f32 1.0, %v124
    %v126 = vmul.f32 %v123, %v125
    %v127 = vadd.f32 %v123, %v126
    %vm128 = vweird.f32 %v123
    %v129 = vsel %vm128, %v123, %v127
    %v130 = vmul.f32 %v119, %v129
    %v131 = vmul.f32 %v122, %v129
    %v132 = vsub.f32 %v115, %v130
    %v133 = vsub.f32 %v116, %v131
    %v134 = vmul.f32 %v132, %v132
    %v135 = vmul.f32 %v133, %v133
    %v136 = vsel %vm47, %v134, 0.0
    %137 = vadd.xlane.f32.xlu0 %v136
    %v138 = vpop.xlane.xlu0 %137
    %v139 = vsel %vm47, %v135, 0.0
    %140 = vadd.xlane.f32.xlu0 %v139
    %v141 = vpop.xlane.xlu0 %140
    %v142 = vmul.f32 %v138, %v129
    %v143 = vmul.f32 %v141, %v129
    %v144 = vadd.f32 %v142, 1e-05
    %v145 = vadd.f32 %v143, 1e-05
    %v146 = vrsqrt.pop %v144
    %v147 = vmul.f32 %v146, %v144
    %v148 = vmul.f32 %v147, %v146
    %v149 = vmul.f32 0.5, %v148
    %v150 = vsub.f32 1.5, %v149
    %v151 = vmul.f32 %v146, %v150
    %vm152 = vweird.f32 %v144
    %vm153 = vweird.f32 %v146
    %vm154 = vmor %vm152, %vm153
    %v155 = vsel %vm154, %v146, %v151
    %v156 = vrsqrt.pop %v145
    %v157 = vmul.f32 %v156, %v145
    %v158 = vmul.f32 %v157, %v156
    %v159 = vmul.f32 0.5, %v158
    %v160 = vsub.f32 1.5, %v159
    %v161 = vmul.f32 %v156, %v160
    %vm162 = vweird.f32 %v145
    %vm163 = vweird.f32 %v156
    %vm164 = vmor %vm162, %vm163
    %v165 = vsel %vm164, %v156, %v161
    %v166 = vmul.f32 %v132, %v155
    %v167 = vmul.f32 %v133, %v165
    %v168 = vld [vmem:[%s5] sm:$0x1]
    %v170 = vperm.slane %v168, 0
    %v172 = vmul.f32 %v166, %v170
    %v173 = vmul.f32 %v167, %v170
    %v174 = vld [vmem:[%s6] sm:$0x1]
    %v176 = vperm.slane %v174, 0
    %v178 = vadd.f32 %v172, %v176
    %v179 = vadd.f32 %v173, %v176
    %180 = vst.msk [vmem:[%s7] sm:$0xff] %vm47, %v178
    %181 = vst.msk [vmem:[%s7 + $0x8] sm:$0xff] %vm47, %v179
  $region37: #{decoder_forward.24} parent=0 // pred_fallthru
    _
  // Predicated region
  $region38: #{decoder_forward.24} parent=0 // pred_check
    _
  $region39: #{decoder_forward.24} parent=0 // pred_check_branch
    %183 = sbr.rel (0) target = $region41
  $region40: #{decoder_forward.24} parent=0 // pred_region
    _
  $region41: #{decoder_forward.24} parent=0 // pred_fallthru
    _
  // Predicated region
  $region42: #{decoder_forward.24} parent=0 // pred_check
    _
  $region43: #{decoder_forward.24} parent=0 // pred_check_branch
    %185 = sbr.rel (0) target = $region45
  $region44: #{decoder_forward.24} parent=0 // pred_region
    _
  $region45: #{decoder_forward.24} parent=0 // pred_fallthru
    _

// kernel: decoder_forward.23
$region0: #{decoder_forward.23}
  #allocation0 [shape = 'u32[]', space=smem, size = 0x4, offset = 0x4, fixed_abs, tag = 'smem constant byte address 0x4 - core index']
  #allocation1 [shape = 'u32[72,128]{1,0:T(1,128)}', space=vmem, size = 0x9000, scoped, tag = 'internal scratch']
  #allocation2 [shape = 'f32[4,8,1]{2,1,0:T(8,128)}', space=vmem, size = 0x4000, scoped, tag = 'scratch operand']
  #allocation3 [shape = 'f32[4,8,1]{2,1,0:T(8,128)}', space=vmem, size = 0x4000, scoped, tag = 'scratch operand']
  #allocation4 [shape = 'f32[8,32]{1,0:T(8,128)}', space=vmem, size = 0x1000, scoped, tag = 'scratch operand']
  %s0 = inlined_call_operand.vmem [shape: bf16[1,2,8,32], index: 0, kind: input, shape index: {}]
  %s1 = inlined_call_operand.vmem [shape: bf16[2,2,8,32], index: 1, kind: input, shape index: {}, may-alias: {1,2}]
  %s2 = inlined_call_operand.vmem [shape: bf16[2,2,8,32], index: 2, kind: input, shape index: {}, may-alias: {1,2}]
  %s3 = inlined_call_operand.vmem [shape: f32[2,8,32], index: 3, kind: input, shape index: {}]
  %s4 = inlined_call_operand.hbm [shape: f32[32,32], index: 4, kind: input, shape index: {}]
  %s5 = inlined_call_operand.vmem [shape: f32[1,32], index: 5, kind: input, shape index: {}]
  %s6 = inlined_call_operand.vmem [shape: f32[1,32], index: 6, kind: input, shape index: {}]
  %s7 = inlined_call_operand.vmem [shape: f32[1,32], index: 7, kind: input, shape index: {}]
  %s8 = inlined_call_operand.vmem [shape: f32[2,8,32], index: 8, kind: output, shape index: {}]
  %s9 = sld [smem:[#allocation0]]
  $region77: #{decoder_forward.23} parent=0
    _
  %s11 = ssub.s32 1, %s9
  %s12 = scalar_select 0, %s11, %s9
  $region1: #{decoder_forward.23} parent=0
    #allocation5 [shape = 'u8[16384]{0}', space=vmem, size = 0x4000, scoped, tag = 'input window, operand 4, single buffered']
    #allocation6 [shape = 's32[2]{0}', space=sflag, size = 0x8, scoped, tag = 'scoped memory for decoder_forward.23']
    %13 = vsyncpa [#allocation6], 0
    loop: start=0, step=1, limit=4
    $region2: #{decoder_forward.23} parent=1 // loop_pre_header
      _
    $region3: #{decoder_forward.23} parent=1 // loop_header
      %s15 = sphi 0, %s19
      %p16 = scmp.ge.s32.totalorder %s15, 4
      %s22 = sphi 0, %s41
      %s23 = sphi 0, %s37
      %s24 = sphi 0, %s33
      %s25 = sphi 0, %s22
      %s26 = sphi 0, %s23
      %s27 = sphi 0, %s24
      %s28 = sphi 0, %s25
      %s29 = sphi 0, %s26
      %s30 = sphi 0, %s27
      %s46 = sphi 0, %s48
      %s49 = sphi 0, %s46
      %s50 = sphi 0, %s49
      %s66 = sphi 0, %s50
      %s74 = sphi 0, %s76
      %s77 = sphi 0, %s74
      %s78 = sphi 0, %s77
      %s94 = sphi 0, %s78
      %s102 = sphi 0, %s104
      %s105 = sphi 0, %s102
      %s106 = sphi 0, %s105
      %s122 = sphi 0, %s106
      %s130 = sphi 0, %s132
      %s133 = sphi 0, %s130
      %s134 = sphi 0, %s133
      %s150 = sphi 0, %s134
      %s154 = sphi 0, %s154
      %s156 = sphi 0, %s154
      %s157 = sphi 0, %s156
      %s171 = sphi 0, %s157
      %s175 = sphi 0, %s175
      %s177 = sphi 0, %s175
      %s178 = sphi 0, %s177
      %s192 = sphi 0, %s178
      %s196 = sphi 0, %s196
      %s198 = sphi 0, %s196
      %s199 = sphi 0, %s198
      %s213 = sphi 0, %s199
      %s217 = sphi 0, %s217
      %s219 = sphi 0, %s217
      %s220 = sphi 0, %s219
      %s234 = sphi 0, %s220
      %s242 = sphi 0, %s244
      %s245 = sphi 0, %s242
      %s246 = sphi 0, %s245
      %s262 = sphi 0, %s246
    $region4: #{decoder_forward.23} parent=1 // loop_header_branch
      %18 = sbr.rel (%p16) target = $region8
    $region5: #{decoder_forward.23} parent=1 // loop_body
      %s20 = ssub.s32 %s15, 1
      %s21 = ssub.s32 %s15, 2
      %s31 = sadd.s32 1, %s24
      %p32 = scmp.ge.s32.totalorder %s31, 1
      %s33 = scalar_select %p32, 0, %s31
      %s34 = sadd.s32 1, %s23
      %s35 = scalar_select %p32, %s34, %s23
      %p36 = scmp.ge.s32.totalorder %s35, 1
      %s37 = scalar_select %p36, 0, %s35
      %s38 = sadd.s32 1, %s22
      %s39 = scalar_select %p36, %s38, %s22
      %p40 = scmp.ge.s32.totalorder %s39, 2
      %s41 = scalar_select %p40, 0, %s39
      %s42 = ssub.s32 %s22, %s41
      %s43 = ssub.s32 %s23, %s37
      %s44 = sor.u32 %s42, %s43
      %p45 = scmp.eq.s32.totalorder %s44, 0
      %s47 = sadd.s32 %s46, 1
      %s48 = scalar_select %p45, %s46, %s47
      %p51 = pneg %p45
      %p52 = scmp.eq.s32.totalorder %s15, 1
      %p53 = por %p51, %p52
      %p54 = scmp.ne.s32.totalorder %s46, %s49
      %p55 = scmp.eq.s32.totalorder %s15, 0
      %p56 = por %p54, %p55
      %p57 = scmp.ne.s32.totalorder %s46, %s49
      %p58 = scmp.eq.s32.totalorder %s20, 1
      %p59 = por %p57, %p58
      %p60 = scmp.ne.s32.totalorder %s49, %s50
      %p61 = scmp.eq.s32.totalorder %s20, 0
      %p62 = por %p60, %p61
      %p63 = scmp.ne.s32.totalorder %s49, %s50
      %p64 = scmp.eq.s32.totalorder %s21, 1
      %p65 = por %p63, %p64
      %p67 = scmp.ne.s32.totalorder %s50, %s66
      %p68 = scmp.eq.s32.totalorder %s21, 0
      %p69 = por %p67, %p68
      %s70 = ssub.s32 %s22, %s41
      %s71 = ssub.s32 %s24, %s33
      %s72 = sor.u32 %s70, %s71
      %p73 = scmp.eq.s32.totalorder %s72, 0
      %s75 = sadd.s32 %s74, 1
      %s76 = scalar_select %p73, %s74, %s75
      %p79 = pneg %p73
      %p80 = scmp.eq.s32.totalorder %s15, 1
      %p81 = por %p79, %p80
      %p82 = scmp.ne.s32.totalorder %s74, %s77
      %p83 = scmp.eq.s32.totalorder %s15, 0
      %p84 = por %p82, %p83
      %p85 = scmp.ne.s32.totalorder %s74, %s77
      %p86 = scmp.eq.s32.totalorder %s20, 1
      %p87 = por %p85, %p86
      %p88 = scmp.ne.s32.totalorder %s77, %s78
      %p89 = scmp.eq.s32.totalorder %s20, 0
      %p90 = por %p88, %p89
      %p91 = scmp.ne.s32.totalorder %s77, %s78
      %p92 = scmp.eq.s32.totalorder %s21, 1
      %p93 = por %p91, %p92
      %p95 = scmp.ne.s32.totalorder %s78, %s94
      %p96 = scmp.eq.s32.totalorder %s21, 0
      %p97 = por %p95, %p96
      %s98 = ssub.s32 %s22, %s41
      %s99 = ssub.s32 %s24, %s33
      %s100 = sor.u32 %s98, %s99
      %p101 = scmp.eq.s32.totalorder %s100, 0
      %s103 = sadd.s32 %s102, 1
      %s104 = scalar_select %p101, %s102, %s103
      %p107 = pneg %p101
      %p108 = scmp.eq.s32.totalorder %s15, 1
      %p109 = por %p107, %p108
      %p110 = scmp.ne.s32.totalorder %s102, %s105
      %p111 = scmp.eq.s32.totalorder %s15, 0
      %p112 = por %p110, %p111
      %p113 = scmp.ne.s32.totalorder %s102, %s105
      %p114 = scmp.eq.s32.totalorder %s20, 1
      %p115 = por %p113, %p114
      %p116 = scmp.ne.s32.totalorder %s105, %s106
      %p117 = scmp.eq.s32.totalorder %s20, 0
      %p118 = por %p116, %p117
      %p119 = scmp.ne.s32.totalorder %s105, %s106
      %p120 = scmp.eq.s32.totalorder %s21, 1
      %p121 = por %p119, %p120
      %p123 = scmp.ne.s32.totalorder %s106, %s122
      %p124 = scmp.eq.s32.totalorder %s21, 0
      %p125 = por %p123, %p124
      %s126 = ssub.s32 %s22, %s41
      %s127 = ssub.s32 %s23, %s37
      %s128 = sor.u32 %s126, %s127
      %p129 = scmp.eq.s32.totalorder %s128, 0
      %s131 = sadd.s32 %s130, 1
      %s132 = scalar_select %p129, %s130, %s131
      %p135 = pneg %p129
      %p136 = scmp.eq.s32.totalorder %s15, 1
      %p137 = por %p135, %p136
      %p138 = scmp.ne.s32.totalorder %s130, %s133
      %p139 = scmp.eq.s32.totalorder %s15, 0
      %p140 = por %p138, %p139
      %p141 = scmp.ne.s32.totalorder %s130, %s133
      %p142 = scmp.eq.s32.totalorder %s20, 1
      %p143 = por %p141, %p142
      %p144 = scmp.ne.s32.totalorder %s133, %s134
      %p145 = scmp.eq.s32.totalorder %s20, 0
      %p146 = por %p144, %p145
      %p147 = scmp.ne.s32.totalorder %s133, %s134
      %p148 = scmp.eq.s32.totalorder %s21, 1
      %p149 = por %p147, %p148
      %p151 = scmp.ne.s32.totalorder %s134, %s150
      %p152 = scmp.eq.s32.totalorder %s21, 0
      %p153 = por %p151, %p152
      %s155 = sadd.s32 %s154, 1
      %p158 = scmp.eq.s32.totalorder %s15, 1
      %p159 = scmp.ne.s32.totalorder %s154, %s156
      %p160 = scmp.eq.s32.totalorder %s15, 0
      %p161 = por %p159, %p160
      %p162 = scmp.ne.s32.totalorder %s154, %s156
      %p163 = scmp.eq.s32.totalorder %s20, 1
      %p164 = por %p162, %p163
      %p165 = scmp.ne.s32.totalorder %s156, %s157
      %p166 = scmp.eq.s32.totalorder %s20, 0
      %p167 = por %p165, %p166
      %p168 = scmp.ne.s32.totalorder %s156, %s157
      %p169 = scmp.eq.s32.totalorder %s21, 1
      %p170 = por %p168, %p169
      %p172 = scmp.ne.s32.totalorder %s157, %s171
      %p173 = scmp.eq.s32.totalorder %s21, 0
      %p174 = por %p172, %p173
      %s176 = sadd.s32 %s175, 1
      %p179 = scmp.eq.s32.totalorder %s15, 1
      %p180 = scmp.ne.s32.totalorder %s175, %s177
      %p181 = scmp.eq.s32.totalorder %s15, 0
      %p182 = por %p180, %p181
      %p183 = scmp.ne.s32.totalorder %s175, %s177
      %p184 = scmp.eq.s32.totalorder %s20, 1
      %p185 = por %p183, %p184
      %p186 = scmp.ne.s32.totalorder %s177, %s178
      %p187 = scmp.eq.s32.totalorder %s20, 0
      %p188 = por %p186, %p187
      %p189 = scmp.ne.s32.totalorder %s177, %s178
      %p190 = scmp.eq.s32.totalorder %s21, 1
      %p191 = por %p189, %p190
      %p193 = scmp.ne.s32.totalorder %s178, %s192
      %p194 = scmp.eq.s32.totalorder %s21, 0
      %p195 = por %p193, %p194
      %s197 = sadd.s32 %s196, 1
      %p200 = scmp.eq.s32.totalorder %s15, 1
      %p201 = scmp.ne.s32.totalorder %s196, %s198
      %p202 = scmp.eq.s32.totalorder %s15, 0
      %p203 = por %p201, %p202
      %p204 = scmp.ne.s32.totalorder %s196, %s198
      %p205 = scmp.eq.s32.totalorder %s20, 1
      %p206 = por %p204, %p205
      %p207 = scmp.ne.s32.totalorder %s198, %s199
      %p208 = scmp.eq.s32.totalorder %s20, 0
      %p209 = por %p207, %p208
      %p210 = scmp.ne.s32.totalorder %s198, %s199
      %p211 = scmp.eq.s32.totalorder %s21, 1
      %p212 = por %p210, %p211
      %p214 = scmp.ne.s32.totalorder %s199, %s213
      %p215 = scmp.eq.s32.totalorder %s21, 0
      %p216 = por %p214, %p215
      %s218 = sadd.s32 %s217, 1
      %p221 = scmp.eq.s32.totalorder %s15, 1
      %p222 = scmp.ne.s32.totalorder %s217, %s219
      %p223 = scmp.eq.s32.totalorder %s15, 0
      %p224 = por %p222, %p223
      %p225 = scmp.ne.s32.totalorder %s217, %s219
      %p226 = scmp.eq.s32.totalorder %s20, 1
      %p227 = por %p225, %p226
      %p228 = scmp.ne.s32.totalorder %s219, %s220
      %p229 = scmp.eq.s32.totalorder %s20, 0
      %p230 = por %p228, %p229
      %p231 = scmp.ne.s32.totalorder %s219, %s220
      %p232 = scmp.eq.s32.totalorder %s21, 1
      %p233 = por %p231, %p232
      %p235 = scmp.ne.s32.totalorder %s220, %s234
      %p236 = scmp.eq.s32.totalorder %s21, 0
      %p237 = por %p235, %p236
      %s238 = ssub.s32 %s22, %s41
      %s239 = ssub.s32 %s23, %s37
      %s240 = sor.u32 %s238, %s239
      %p241 = scmp.eq.s32.totalorder %s240, 0
      %s243 = sadd.s32 %s242, 1
      %s244 = scalar_select %p241, %s242, %s243
      %p247 = pneg %p241
      %p248 = scmp.eq.s32.totalorder %s15, 1
      %p249 = por %p247, %p248
      %p250 = scmp.ne.s32.totalorder %s242, %s245
      %p251 = scmp.eq.s32.totalorder %s15, 0
      %p252 = por %p250, %p251
      %p253 = scmp.ne.s32.totalorder %s242, %s245
      %p254 = scmp.eq.s32.totalorder %s20, 1
      %p255 = por %p253, %p254
      %p256 = scmp.ne.s32.totalorder %s245, %s246
      %p257 = scmp.eq.s32.totalorder %s20, 0
      %p258 = por %p256, %p257
      %p259 = scmp.ne.s32.totalorder %s245, %s246
      %p260 = scmp.eq.s32.totalorder %s21, 1
      %p261 = por %p259, %p260
      %p263 = scmp.ne.s32.totalorder %s246, %s262
      %p264 = scmp.eq.s32.totalorder %s21, 0
      %p265 = por %p263, %p264
      %p266 = scmp.le.s32.totalorder 1, %s15
      %p267 = scmp.lt.s32.totalorder %s15, 3
      %p268 = pnand %p266, %p267
      %p269 = pneg %p268
      // Predicated region
      $region9: #{decoder_forward.23} parent=5 // pred_check
        _
      $region10: #{decoder_forward.23} parent=5 // pred_check_branch
        %271 = sbr.rel (%p268) target = $region12
      $region11: #{decoder_forward.23} parent=5 // pred_region
        %s272 = ssub.s32 %s15, 1
        // Predicated region
        $region13: #{decoder_forward.23} parent=11 // pred_check
          %p273 = pneg %p167
        $region14: #{decoder_forward.23} parent=11 // pred_check_branch
          %275 = sbr.rel (%p273) target = $region16
        $region15: #{decoder_forward.23} parent=11 // pred_region
          %277 = vsyncadd [#allocation6], 0
          %s278 = sshll.u32 %s4, 4
          %s279 = int_to_ptr.hbm [resolvable:$true] %s278
          %s280 = sshll.u32 [#allocation5], 4
          %s281 = int_to_ptr.vmem [resolvable:$true] %s280
          %286 = dma.hbm_to_vmem [thread:$0]  %s279, 512, %s281, [#allocation6], 128, 128, 8
        $region16: #{decoder_forward.23} parent=11 // pred_fallthru
          _
        // Predicated region
        $region17: #{decoder_forward.23} parent=11 // pred_check
          %p287 = pneg %p188
        $region18: #{decoder_forward.23} parent=11 // pred_check_branch
          %289 = sbr.rel (%p287) target = $region20
        $region19: #{decoder_forward.23} parent=11 // pred_region
          _
        $region20: #{decoder_forward.23} parent=11 // pred_fallthru
          _
        // Predicated region
        $region21: #{decoder_forward.23} parent=11 // pred_check
          %p290 = pneg %p209
        $region22: #{decoder_forward.23} parent=11 // pred_check_branch
          %292 = sbr.rel (%p290) target = $region24
        $region23: #{decoder_forward.23} parent=11 // pred_region
          _
        $region24: #{decoder_forward.23} parent=11 // pred_fallthru
          _
        // Predicated region
        $region25: #{decoder_forward.23} parent=11 // pred_check
          %p293 = pneg %p230
        $region26: #{decoder_forward.23} parent=11 // pred_check_branch
          %295 = sbr.rel (%p293) target = $region28
        $region27: #{decoder_forward.23} parent=11 // pred_region
          _
        $region28: #{decoder_forward.23} parent=11 // pred_fallthru
          _
      $region12: #{decoder_forward.23} parent=5 // pred_fallthru
        _
      %p296 = scmp.lt.s32.totalorder %s15, 2
      // Predicated region
      $region29: #{decoder_forward.23} parent=5 // pred_check
        %p297 = pneg %p296
      $region30: #{decoder_forward.23} parent=5 // pred_check_branch
        %299 = sbr.rel (%p297) target = $region32
      $region31: #{decoder_forward.23} parent=5 // pred_region
        // Predicated region
        $region33: #{decoder_forward.23} parent=31 // pred_check
          %p300 = pneg %p56
        $region34: #{decoder_forward.23} parent=31 // pred_check_branch
          %302 = sbr.rel (%p300) target = $region36
        $region35: #{decoder_forward.23} parent=31 // pred_region
          %p303 = scmp.lt.s32.totalorder %s22, 1
          %s304 = scalar_select %p303, %s22, 1
          %p305 = scmp.lt.s32.totalorder %s23, 0
          %s306 = scalar_select %p305, %s23, 0
          %s307 = sadd.s32 %s306, %s304
          %s308 = smul.addr %s307, 4
          %s309 = scalar_lea.vmem %s0, %s308
        $region36: #{decoder_forward.23} parent=31 // pred_fallthru
          _
        // Predicated region
        $region37: #{decoder_forward.23} parent=31 // pred_check
          %p310 = pneg %p84
        $region38: #{decoder_forward.23} parent=31 // pred_check_branch
          %312 = sbr.rel (%p310) target = $region40
        $region39: #{decoder_forward.23} parent=31 // pred_region
          %p313 = scmp.lt.s32.totalorder %s22, 1
          %s314 = scalar_select %p313, %s22, 1
          %p315 = scmp.lt.s32.totalorder %s24, 0
          %s316 = scalar_select %p315, %s24, 0
          %s317 = sadd.s32 %s316, %s314
          %s318 = smul.addr %s317, 4
          %s319 = scalar_lea.vmem %s1, %s318
        $region40: #{decoder_forward.23} parent=31 // pred_fallthru
          _
        // Predicated region
        $region41: #{decoder_forward.23} parent=31 // pred_check
          %p320 = pneg %p112
        $region42: #{decoder_forward.23} parent=31 // pred_check_branch
          %322 = sbr.rel (%p320) target = $region44
        $region43: #{decoder_forward.23} parent=31 // pred_region
          %p323 = scmp.lt.s32.totalorder %s22, 1
          %s324 = scalar_select %p323, %s22, 1
          %p325 = scmp.lt.s32.totalorder %s24, 0
          %s326 = scalar_select %p325, %s24, 0
          %s327 = sadd.s32 %s326, %s324
          %s328 = sadd.s32 %s327, 2
          %s329 = smul.addr %s328, 4
          %s330 = scalar_lea.vmem %s2, %s329
        $region44: #{decoder_forward.23} parent=31 // pred_fallthru
          _
        // Predicated region
        $region45: #{decoder_forward.23} parent=31 // pred_check
          %p331 = pneg %p140
        $region46: #{decoder_forward.23} parent=31 // pred_check_branch
          %333 = sbr.rel (%p331) target = $region48
        $region47: #{decoder_forward.23} parent=31 // pred_region
          %p334 = scmp.lt.s32.totalorder %s22, 1
          %s335 = scalar_select %p334, %s22, 1
          %p336 = scmp.lt.s32.totalorder %s23, 0
          %s337 = scalar_select %p336, %s23, 0
          %s338 = sadd.s32 %s337, %s335
          %s339 = smul.addr %s338, 8
          %s340 = scalar_lea.vmem %s3, %s339
        $region48: #{decoder_forward.23} parent=31 // pred_fallthru
          _
      $region32: #{decoder_forward.23} parent=5 // pred_fallthru
        _
      %p341 = scmp.le.s32.totalorder 1, %s15
      %p342 = scmp.lt.s32.totalorder %s15, 3
      %p343 = pnand %p341, %p342
      %p344 = pneg %p343
      // Predicated region
      $region49: #{decoder_forward.23} parent=5 // pred_check
        _
      $region50: #{decoder_forward.23} parent=5 // pred_check_branch
        %346 = sbr.rel (%p343) target = $region52
      $region51: #{decoder_forward.23} parent=5 // pred_region
        %s347 = ssub.s32 %s15, 1
        // Predicated region
        $region53: #{decoder_forward.23} parent=51 // pred_check
          %p348 = pneg %p167
        $region54: #{decoder_forward.23} parent=51 // pred_check_branch
          %350 = sbr.rel (%p348) target = $region56
        $region55: #{decoder_forward.23} parent=51 // pred_region
          %352 = dma.done [#allocation6], 512
        $region56: #{decoder_forward.23} parent=51 // pred_fallthru
          _
        %p353 = scmp.lt.s32.totalorder %s25, 1
        %s354 = scalar_select %p353, %s25, 1
        %p355 = scmp.lt.s32.totalorder %s26, 0
        %s356 = scalar_select %p355, %s26, 0
        %s357 = sadd.s32 %s356, %s354
        %s358 = smul.addr %s357, 4
        %s359 = scalar_lea.vmem %s0, %s358
        %p360 = pneg %p62
        %p361 = pneg %p59
        %p362 = scmp.lt.s32.totalorder %s25, 1
        %s363 = scalar_select %p362, %s25, 1
        %p364 = scmp.lt.s32.totalorder %s27, 0
        %s365 = scalar_select %p364, %s27, 0
        %s366 = sadd.s32 %s365, %s363
        %s367 = smul.addr %s366, 4
        %s368 = scalar_lea.vmem %s1, %s367
        %p369 = pneg %p90
        %p370 = pneg %p87
        %p371 = scmp.lt.s32.totalorder %s25, 1
        %s372 = scalar_select %p371, %s25, 1
        %p373 = scmp.lt.s32.totalorder %s27, 0
        %s374 = scalar_select %p373, %s27, 0
        %s375 = sadd.s32 %s374, %s372
        %s376 = sadd.s32 %s375, 2
        %s377 = smul.addr %s376, 4
        %s378 = scalar_lea.vmem %s2, %s377
        %p379 = pneg %p118
        %p380 = pneg %p115
        %p381 = scmp.lt.s32.totalorder %s25, 1
        %s382 = scalar_select %p381, %s25, 1
        %p383 = scmp.lt.s32.totalorder %s26, 0
        %s384 = scalar_select %p383, %s26, 0
        %s385 = sadd.s32 %s384, %s382
        %s386 = smul.addr %s385, 8
        %s387 = scalar_lea.vmem %s3, %s386
        %p388 = pneg %p146
        %p389 = pneg %p143
        %p390 = pneg %p167
        %p391 = pneg %p164
        %p392 = pneg %p188
        %p393 = pneg %p185
        %p394 = pneg %p209
        %p395 = pneg %p206
        %p396 = pneg %p230
        %p397 = pneg %p227
        %p398 = pneg %p258
        %p399 = pneg %p255
        %p400 = scmp.lt.s32.totalorder %s25, 1
        %s401 = scalar_select %p400, %s25, 1
        %p402 = scmp.lt.s32.totalorder %s26, 0
        %s403 = scalar_select %p402, %s26, 0
        %s404 = sadd.s32 %s403, %s401
        %s405 = smul.addr %s404, 8
        %s406 = scalar_lea.vmem %s8, %s405
        %p407 = scmp.lt.s32.totalorder %s25, 1
        %s408 = scalar_select %p407, %s25, 1
        %p409 = scmp.lt.s32.totalorder %s26, 0
        %s410 = scalar_select %p409, %s26, 0
        %s411 = sadd.s32 %s410, %s408
        %s412 = smul.addr %s411, 4
        %s413 = scalar_lea.vmem %s0, %s412
        %p414 = scmp.lt.s32.totalorder %s25, 1
        %s415 = scalar_select %p414, %s25, 1
        %p416 = scmp.lt.s32.totalorder %s27, 0
        %s417 = scalar_select %p416, %s27, 0
        %s418 = sadd.s32 %s417, %s415
        %s419 = smul.addr %s418, 4
        %s420 = scalar_lea.vmem %s1, %s419
        %p421 = scmp.lt.s32.totalorder %s25, 1
        %s422 = scalar_select %p421, %s25, 1
        %p423 = scmp.lt.s32.totalorder %s27, 0
        %s424 = scalar_select %p423, %s27, 0
        %s425 = sadd.s32 %s424, %s422
        %s426 = sadd.s32 %s425, 2
        %s427 = smul.addr %s426, 4
        %s428 = scalar_lea.vmem %s2, %s427
        %p429 = scmp.lt.s32.totalorder %s25, 1
        %s430 = scalar_select %p429, %s25, 1
        %p431 = scmp.lt.s32.totalorder %s26, 0
        %s432 = scalar_select %p431, %s26, 0
        %s433 = sadd.s32 %s432, %s430
        %s434 = smul.addr %s433, 8
        %s435 = scalar_lea.vmem %s3, %s434
        %p436 = scmp.lt.s32.totalorder %s25, 1
        %s437 = scalar_select %p436, %s25, 1
        %p438 = scmp.lt.s32.totalorder %s26, 0
        %s439 = scalar_select %p438, %s26, 0
        %s440 = sadd.s32 %s439, %s437
        %s441 = smul.addr %s440, 8
        %s442 = scalar_lea.vmem %s8, %s441
        %p444 = scmp.eq.s32.totalorder %s27, 0
        // Predicated region
        $region57: #{decoder_forward.23} parent=51 // pred_check
          %p445 = pneg %p444
        $region58: #{decoder_forward.23} parent=51 // pred_check_branch
          %447 = sbr.rel (%p445) target = $region60
        $region59: #{decoder_forward.23} parent=51 // pred_region
          %vm448 = vcmask 7168
          %449 = vst.msk [vmem:[#allocation2] sm:$0xff] %vm448, -inf
          %450 = vst.msk [vmem:[#allocation2 + $0x8] sm:$0xff] %vm448, -inf
          %451 = vst.msk [vmem:[#allocation2 + $0x10] sm:$0xff] %vm448, -inf
          %452 = vst.msk [vmem:[#allocation2 + $0x18] sm:$0xff] %vm448, -inf
          %453 = vst.msk [vmem:[#allocation3] sm:$0xff] %vm448, 0.0
          %454 = vst.msk [vmem:[#allocation3 + $0x8] sm:$0xff] %vm448, 0.0
          %455 = vst.msk [vmem:[#allocation3 + $0x10] sm:$0xff] %vm448, 0.0
          %456 = vst.msk [vmem:[#allocation3 + $0x18] sm:$0xff] %vm448, 0.0
          %vm457 = vcmask 261120
          %458 = vst.msk [vmem:[#allocation4] sm:$0xff] %vm457, 0.0
        $region60: #{decoder_forward.23} parent=51 // pred_fallthru
          _
        %v459 = vld [vmem:[%s413] sm:$0xf]
        %v460 = vld [vmem:[%s420] sm:$0xf]
        %v461 = vld [vmem:[%s428] sm:$0xf]
        %vm462 = vcmask 64512
        %v464 = vsel %vm462, %v459, 0
        %v467 = vsel %vm462, %v460, 0
        %469 = vmatpush.bf16.xpose.msra.mxu0 0
        %470 = vmatpush.bf16.xpose.msra.mxu0 0
        %471 = vmatpush.bf16.xpose.msra.mxu0 0
        %472 = vmatpush.bf16.xpose.msra.mxu0 0
        %473 = vmatpush.bf16.xpose.msra.mxu0 0
        %474 = vmatpush.bf16.xpose.msra.mxu0 0
        %475 = vmatpush.bf16.xpose.msra.mxu0 0
        %476 = vmatpush.bf16.xpose.msra.mxu0 %v467
        %477 = vmatmul.bf16.gmra.mxu0 %v464
        %v478 = vpop.f32.mrf.mxu0
        %v479 = vadd.f32 0.0, %v478
        %v480 = vpop.f32.mrf.mxu0
        %481 = vdwg.mxu0
        %v482 = vmul.f32 %v479, 0.35355338
        %v483 = vld [vmem:[#allocation2] sm:$0xff]
        %v484 = vsel %vm462, %v482, -inf
        %485 = vmax.xlane.f32.xlu0 %v484
        %v486 = vpop.xlane.xlu0 %485
        %v487 = vmax.f32 %v483, %v486
        %v488 = vsub.f32 %v483, %v487
        %v489 = vmul.f32 %v488, 1.442695
        %v490 = vpow.pop %v489
        %492 = vset.pattern.permute.xlu0 0
        %493 = vperm.xlu0 %492, %v487
        %v494 = vpop.permute.xlu0 %493
        %v496 = vsub.f32 %v482, %v494
        %v497 = vmul.f32 %v496, 1.442695
        %v498 = vpow.pop %v497
        %v499 = vld [vmem:[#allocation3] sm:$0xff]
        %v500 = vmul.f32 %v490, %v499
        %v501 = vsel %vm462, %v498, 0.0
        %502 = vadd.xlane.f32.xlu0 %v501
        %v503 = vpop.xlane.xlu0 %502
        %v504 = vadd.f32 %v500, %v503
        %vm505 = vcmask 7168
        %506 = vst.msk [vmem:[#allocation3] sm:$0xff] %vm505, %v504
        %507 = vst.msk [vmem:[#allocation2] sm:$0xff] %vm505, %v487
        %v508 = vpack.c.bf16 %v498, %v498
        %v510 = vsel %vm462, %v508, 0
        %vm512 = vcmask 1043456
        %v514 = vsel %vm512, %v461, 0
        %516 = vmatpush.bf16.msra.mxu0 0
        %517 = vmatpush.bf16.msra.mxu0 0
        %518 = vmatpush.bf16.msra.mxu0 0
        %519 = vmatpush.bf16.msra.mxu0 0
        %520 = vmatpush.bf16.msra.mxu0 0
        %521 = vmatpush.bf16.msra.mxu0 0
        %522 = vmatpush.bf16.msra.mxu0 0
        %523 = vmatpush.bf16.msra.mxu0 %v514
        %524 = vmatmul.bf16.gmra.mxu0 %v510
        %v525 = vpop.f32.mrf.mxu0
        %v526 = vadd.f32 0.0, %v525
        %v527 = vpop.f32.mrf.mxu0
        %528 = vdwg.mxu0
        %v529 = vld [vmem:[#allocation4] sm:$0xff]
        %531 = vset.pattern.permute.xlu0 0
        %532 = vperm.xlu0 %531, %v490
        %v533 = vpop.permute.xlu0 %532
        %v535 = vmul.f32 %v533, %v529
        %v536 = vadd.f32 %v535, %v526
        %537 = vst.msk [vmem:[#allocation4] sm:$0xff] %vm462, %v536
        %v539 = vunpack.c.l.b16 %v459
        %v540 = vpack.c.b16 %v539, %v539
        %541 = vrot.lane.b32.xlu0 %v540, 120
        %v542 = vpop.permute.xlu0 %541
        %v544 = vunpack.c.l.b16 %v460
        %v545 = vpack.c.b16 %v544, %v544
        %546 = vrot.lane.b32.xlu0 %v545, 120
        %v547 = vpop.permute.xlu0 %546
        %v549 = vsel %vm462, %v542, 0
        %v552 = vsel %vm462, %v547, 0
        %554 = vmatpush.bf16.xpose.msra.mxu0 0
        %555 = vmatpush.bf16.xpose.msra.mxu0 0
        %556 = vmatpush.bf16.xpose.msra.mxu0 0
        %557 = vmatpush.bf16.xpose.msra.mxu0 0
        %558 = vmatpush.bf16.xpose.msra.mxu0 0
        %559 = vmatpush.bf16.xpose.msra.mxu0 0
        %560 = vmatpush.bf16.xpose.msra.mxu0 0
        %561 = vmatpush.bf16.xpose.msra.mxu0 %v552
        %562 = vmatmul.bf16.gmra.mxu0 %v549
        %v563 = vpop.f32.mrf.mxu0
        %v564 = vadd.f32 0.0, %v563
        %v565 = vpop.f32.mrf.mxu0
        %566 = vdwg.mxu0
        %v567 = vmul.f32 %v564, 0.35355338
        %s568 = scalar_lea.vmem [#allocation2], 8
        %v569 = vld [vmem:[%s568] sm:$0xff]
        %v570 = vsel %vm462, %v567, -inf
        %571 = vmax.xlane.f32.xlu0 %v570
        %v572 = vpop.xlane.xlu0 %571
        %v573 = vmax.f32 %v569, %v572
        %v574 = vsub.f32 %v569, %v573
        %v575 = vmul.f32 %v574, 1.442695
        %v576 = vpow.pop %v575
        %578 = vset.pattern.permute.xlu0 0
        %579 = vperm.xlu0 %578, %v573
        %v580 = vpop.permute.xlu0 %579
        %v582 = vsub.f32 %v567, %v580
        %v583 = vmul.f32 %v582, 1.442695
        %v584 = vpow.pop %v583
        %s585 = scalar_lea.vmem [#allocation3], 8
        %v586 = vld [vmem:[%s585] sm:$0xff]
        %v587 = vmul.f32 %v576, %v586
        %v588 = vsel %vm462, %v584, 0.0
        %589 = vadd.xlane.f32.xlu0 %v588
        %v590 = vpop.xlane.xlu0 %589
        %v591 = vadd.f32 %v587, %v590
        %592 = vst.msk [vmem:[%s585] sm:$0xff] %vm505, %v591
        %593 = vst.msk [vmem:[%s568] sm:$0xff] %vm505, %v573
        %v594 = vpack.c.bf16 %v584, %v584
        %v596 = vunpack.c.l.b16 %v461
        %v597 = vpack.c.b16 %v596, %v596
        %598 = vrot.lane.b32.xlu0 %v597, 120
        %v599 = vpop.permute.xlu0 %598
        %v601 = vsel %vm462, %v594, 0
        %v604 = vsel %vm512, %v599, 0
        %606 = vmatpush.bf16.msra.mxu0 0
        %607 = vmatpush.bf16.msra.mxu0 0
        %608 = vmatpush.bf16.msra.mxu0 0
        %609 = vmatpush.bf16.msra.mxu0 0
        %610 = vmatpush.bf16.msra.mxu0 0
        %611 = vmatpush.bf16.msra.mxu0 0
        %612 = vmatpush.bf16.msra.mxu0 0
        %613 = vmatpush.bf16.msra.mxu0 %v604
        %614 = vmatmul.bf16.gmra.mxu0 %v601
        %v615 = vpop.f32.mrf.mxu0
        %v616 = vadd.f32 0.0, %v615
        %v617 = vpop.f32.mrf.mxu0
        %618 = vdwg.mxu0
        %v619 = vld [vmem:[#allocation4] sm:$0xff]
        %621 = vset.pattern.permute.xlu0 0
        %622 = vperm.xlu0 %621, %v576
        %v623 = vpop.permute.xlu0 %622
        %v625 = vmul.f32 %v623, %v619
        %627 = vrot.lane.b32.xlu0 %v616, 8
        %v628 = vpop.permute.xlu0 %627
        %v630 = vadd.f32 %v625, %v628
        %vm631 = vcmask 130112
        %632 = vst.msk [vmem:[#allocation4] sm:$0xff] %vm631, %v630
        %633 = vrot.lane.b32.xlu0 %v540, 112
        %v634 = vpop.permute.xlu0 %633
        %635 = vrot.lane.b32.xlu0 %v545, 112
        %v636 = vpop.permute.xlu0 %635
        %v638 = vsel %vm462, %v634, 0
        %v641 = vsel %vm462, %v636, 0
        %643 = vmatpush.bf16.xpose.msra.mxu0 0
        %644 = vmatpush.bf16.xpose.msra.mxu0 0
        %645 = vmatpush.bf16.xpose.msra.mxu0 0
        %646 = vmatpush.bf16.xpose.msra.mxu0 0
        %647 = vmatpush.bf16.xpose.msra.mxu0 0
        %648 = vmatpush.bf16.xpose.msra.mxu0 0
        %649 = vmatpush.bf16.xpose.msra.mxu0 0
        %650 = vmatpush.bf16.xpose.msra.mxu0 %v641
        %651 = vmatmul.bf16.gmra.mxu0 %v638
        %v652 = vpop.f32.mrf.mxu0
        %v653 = vadd.f32 0.0, %v652
        %v654 = vpop.f32.mrf.mxu0
        %655 = vdwg.mxu0
        %v656 = vmul.f32 %v653, 0.35355338
        %s657 = scalar_lea.vmem [#allocation2], 16
        %v658 = vld [vmem:[%s657] sm:$0xff]
        %v659 = vsel %vm462, %v656, -inf
        %660 = vmax.xlane.f32.xlu0 %v659
        %v661 = vpop.xlane.xlu0 %660
        %v662 = vmax.f32 %v658, %v661
        %v663 = vsub.f32 %v658, %v662
        %v664 = vmul.f32 %v663, 1.442695
        %v665 = vpow.pop %v664
        %667 = vset.pattern.permute.xlu0 0
        %668 = vperm.xlu0 %667, %v662
        %v669 = vpop.permute.xlu0 %668
        %v671 = vsub.f32 %v656, %v669
        %v672 = vmul.f32 %v671, 1.442695
        %v673 = vpow.pop %v672
        %s674 = scalar_lea.vmem [#allocation3], 16
        %v675 = vld [vmem:[%s674] sm:$0xff]
        %v676 = vmul.f32 %v665, %v675
        %v677 = vsel %vm462, %v673, 0.0
        %678 = vadd.xlane.f32.xlu0 %v677
        %v679 = vpop.xlane.xlu0 %678
        %v680 = vadd.f32 %v676, %v679
        %681 = vst.msk [vmem:[%s674] sm:$0xff] %vm505, %v680
        %682 = vst.msk [vmem:[%s657] sm:$0xff] %vm505, %v662
        %v683 = vpack.c.bf16 %v673, %v673
        %684 = vrot.lane.b32.xlu0 %v597, 112
        %v685 = vpop.permute.xlu0 %684
        %v687 = vsel %vm462, %v683, 0
        %v690 = vsel %vm512, %v685, 0
        %692 = vmatpush.bf16.msra.mxu0 0
        %693 = vmatpush.bf16.msra.mxu0 0
        %694 = vmatpush.bf16.msra.mxu0 0
        %695 = vmatpush.bf16.msra.mxu0 0
        %696 = vmatpush.bf16.msra.mxu0 0
        %697 = vmatpush.bf16.msra.mxu0 0
        %698 = vmatpush.bf16.msra.mxu0 0
        %699 = vmatpush.bf16.msra.mxu0 %v690
        %700 = vmatmul.bf16.gmra.mxu0 %v687
        %v701 = vpop.f32.mrf.mxu0
        %v702 = vadd.f32 0.0, %v701
        %v703 = vpop.f32.mrf.mxu0
        %704 = vdwg.mxu0
        %v705 = vld [vmem:[#allocation4] sm:$0xff]
        %707 = vset.pattern.permute.xlu0 0
        %708 = vperm.xlu0 %707, %v665
        %v709 = vpop.permute.xlu0 %708
        %v711 = vmul.f32 %v709, %v705
        %713 = vrot.lane.b32.xlu0 %v702, 16
        %v714 = vpop.permute.xlu0 %713
        %v716 = vadd.f32 %v711, %v714
        %vm717 = vcmask 195712
        %718 = vst.msk [vmem:[#allocation4] sm:$0xff] %vm717, %v716
        %719 = vrot.lane.b32.xlu0 %v540, 104
        %v720 = vpop.permute.xlu0 %719
        %721 = vrot.lane.b32.xlu0 %v545, 104
        %v722 = vpop.permute.xlu0 %721
        %v724 = vsel %vm462, %v720, 0
        %v727 = vsel %vm462, %v722, 0
        %729 = vmatpush.bf16.xpose.msra.mxu0 0
        %730 = vmatpush.bf16.xpose.msra.mxu0 0
        %731 = vmatpush.bf16.xpose.msra.mxu0 0
        %732 = vmatpush.bf16.xpose.msra.mxu0 0
        %733 = vmatpush.bf16.xpose.msra.mxu0 0
        %734 = vmatpush.bf16.xpose.msra.mxu0 0
        %735 = vmatpush.bf16.xpose.msra.mxu0 0
        %736 = vmatpush.bf16.xpose.msra.mxu0 %v727
        %737 = vmatmul.bf16.gmra.mxu0 %v724
        %v738 = vpop.f32.mrf.mxu0
        %v739 = vadd.f32 0.0, %v738
        %v740 = vpop.f32.mrf.mxu0
        %741 = vdwg.mxu0
        %v742 = vmul.f32 %v739, 0.35355338
        %s743 = scalar_lea.vmem [#allocation2], 24
        %v744 = vld [vmem:[%s743] sm:$0xff]
        %v745 = vsel %vm462, %v742, -inf
        %746 = vmax.xlane.f32.xlu0 %v745
        %v747 = vpop.xlane.xlu0 %746
        %v748 = vmax.f32 %v744, %v747
        %v749 = vsub.f32 %v744, %v748
        %v750 = vmul.f32 %v749, 1.442695
        %v751 = vpow.pop %v750
        %753 = vset.pattern.permute.xlu0 0
        %754 = vperm.xlu0 %753, %v748
        %v755 = vpop.permute.xlu0 %754
        %v757 = vsub.f32 %v742, %v755
        %v758 = vmul.f32 %v757, 1.442695
        %v759 = vpow.pop %v758
        %s760 = scalar_lea.vmem [#allocation3], 24
        %v761 = vld [vmem:[%s760] sm:$0xff]
        %v762 = vmul.f32 %v751, %v761
        %v763 = vsel %vm462, %v759, 0.0
        %764 = vadd.xlane.f32.xlu0 %v763
        %v765 = vpop.xlane.xlu0 %764
        %v766 = vadd.f32 %v762, %v765
        %767 = vst.msk [vmem:[%s760] sm:$0xff] %vm505, %v766
        %768 = vst.msk [vmem:[%s743] sm:$0xff] %vm505, %v748
        %v769 = vpack.c.bf16 %v759, %v759
        %770 = vrot.lane.b32.xlu0 %v597, 104
        %v771 = vpop.permute.xlu0 %770
        %v773 = vsel %vm462, %v769, 0
        %v776 = vsel %vm512, %v771, 0
        %778 = vmatpush.bf16.msra.mxu0 0
        %779 = vmatpush.bf16.msra.mxu0 0
        %780 = vmatpush.bf16.msra.mxu0 0
        %781 = vmatpush.bf16.msra.mxu0 0
        %782 = vmatpush.bf16.msra.mxu0 0
        %783 = vmatpush.bf16.msra.mxu0 0
        %784 = vmatpush.bf16.msra.mxu0 0
        %785 = vmatpush.bf16.msra.mxu0 %v776
        %786 = vmatmul.bf16.gmra.mxu0 %v773
        %v787 = vpop.f32.mrf.mxu0
        %v788 = vadd.f32 0.0, %v787
        %v789 = vpop.f32.mrf.mxu0
        %790 = vdwg.mxu0
        %v791 = vld [vmem:[#allocation4] sm:$0xff]
        %793 = vset.pattern.permute.xlu0 0
        %794 = vperm.xlu0 %793, %v751
        %v795 = vpop.permute.xlu0 %794
        %v797 = vmul.f32 %v795, %v791
        %799 = vrot.lane.b32.xlu0 %v788, 24
        %v800 = vpop.permute.xlu0 %799
        %v802 = vadd.f32 %v797, %v800
        %vm803 = vcmask 261312
        %804 = vst.msk [vmem:[#allocation4] sm:$0xff] %vm803, %v802
        // Predicated region
        $region61: #{decoder_forward.23} parent=51 // pred_check
          %p805 = pneg %p444
        $region62: #{decoder_forward.23} parent=51 // pred_check_branch
          %807 = sbr.rel (%p805) target = $region64
        $region63: #{decoder_forward.23} parent=51 // pred_region
          %v808 = vld [vmem:[#allocation4] sm:$0xff]
          %v809 = vld [vmem:[#allocation3] sm:$0xff]
          %v810 = vrcp.pop %v809
          %812 = vset.pattern.permute.xlu0 0
          %813 = vperm.xlu0 %812, %v810
          %v814 = vpop.permute.xlu0 %813
          %v816 = vmul.f32 %v808, %v814
          %817 = vst.msk [vmem:[#allocation4] sm:$0xff] %vm462, %v816
          %v818 = vld [vmem:[#allocation4] sm:$0xff]
          %v819 = vld [vmem:[%s585] sm:$0xff]
          %v820 = vrcp.pop %v819
          %822 = vset.pattern.permute.xlu0 0
          %823 = vperm.xlu0 %822, %v820
          %v824 = vpop.permute.xlu0 %823
          %v826 = vmul.f32 %v818, %v824
          %827 = vst.msk [vmem:[#allocation4] sm:$0xff] %vm631, %v826
          %v828 = vld [vmem:[#allocation4] sm:$0xff]
          %v829 = vld [vmem:[%s674] sm:$0xff]
          %v830 = vrcp.pop %v829
          %832 = vset.pattern.permute.xlu0 0
          %833 = vperm.xlu0 %832, %v830
          %v834 = vpop.permute.xlu0 %833
          %v836 = vmul.f32 %v828, %v834
          %837 = vst.msk [vmem:[#allocation4] sm:$0xff] %vm717, %v836
          %v838 = vld [vmem:[#allocation4] sm:$0xff]
          %v839 = vld [vmem:[%s760] sm:$0xff]
          %v840 = vrcp.pop %v839
          %842 = vset.pattern.permute.xlu0 0
          %843 = vperm.xlu0 %842, %v840
          %v844 = vpop.permute.xlu0 %843
          %v846 = vmul.f32 %v838, %v844
          %847 = vst.msk [vmem:[#allocation4] sm:$0xff] %vm803, %v846
          %v848 = vld [vmem:[#allocation4] sm:$0xff]
          %v849 = vpack.c.bf16 %v848, %v848
          %v850 = vld [vmem:[#allocation5] sm:$0xff]
          %v851 = vld [vmem:[#allocation5 + $0x8] sm:$0xff]
          %v852 = vld [vmem:[#allocation5 + $0x10] sm:$0xff]
          %v853 = vld [vmem:[#allocation5 + $0x18] sm:$0xff]
          %v854 = vpack.c.bf16 %v851, %v850
          %v855 = vpack.c.bf16 %v853, %v852
          %v856 = vld [vmem:[%s5] sm:$0x1]
          %v858 = vperm.slane %v856, 0
          %vm860 = vcmask 261120
          %v862 = vsel %vm860, %v849, 0
          %864 = vmatpush.bf16.msra.mxu0 0
          %865 = vmatpush.bf16.msra.mxu0 0
          %866 = vmatpush.bf16.msra.mxu0 0
          %867 = vmatpush.bf16.msra.mxu0 0
          %868 = vmatpush.bf16.msra.mxu0 0
          %869 = vmatpush.bf16.msra.mxu0 0
          %870 = vmatpush.bf16.msra.mxu0 %v855
          %871 = vmatpush.bf16.msra.mxu0 %v854
          %872 = vmatmul.bf16.gmra.mxu0 %v862
          %v873 = vpop.f32.mrf.mxu0
          %v874 = vadd.f32 %v858, %v873
          %v875 = vpop.f32.mrf.mxu0
          %876 = vdwg.mxu0
          %v877 = vld [vmem:[%s435] sm:$0xff]
          %v878 = vadd.f32 %v874, %v877
          %v879 = vsel %vm860, %v878, 0.0
          %880 = vadd.xlane.f32.xlu0 %v879
          %v881 = vpop.xlane.xlu0 %880
          %v882 = vrcp.pop 32.0
          %v883 = vmul.f32 32.0, %v882
          %v884 = vsub.f32 1.0, %v883
          %v885 = vmul.f32 %v882, %v884
          %v886 = vadd.f32 %v882, %v885
          %vm887 = vweird.f32 %v882
          %v888 = vsel %vm887, %v882, %v886
          %v889 = vmul.f32 %v881, %v888
          %v890 = vsub.f32 %v878, %v889
          %v891 = vmul.f32 %v890, %v890
          %v892 = vsel %vm860, %v891, 0.0
          %893 = vadd.xlane.f32.xlu0 %v892
          %v894 = vpop.xlane.xlu0 %893
          %v895 = vmul.f32 %v894, %v888
          %v896 = vadd.f32 %v895, 1e-05
          %v897 = vrsqrt.pop %v896
          %v898 = vmul.f32 %v897, %v896
          %v899 = vmul.f32 %v898, %v897
          %v900 = vmul.f32 0.5, %v899
          %v901 = vsub.f32 1.5, %v900
          %v902 = vmul.f32 %v897, %v901
          %vm903 = vweird.f32 %v896
          %vm904 = vweird.f32 %v897
          %vm905 = vmor %vm903, %vm904
          %v906 = vsel %vm905, %v897, %v902
          %v907 = vmul.f32 %v890, %v906
          %v908 = vld [vmem:[%s6] sm:$0x1]
          %v910 = vperm.slane %v908, 0
          %v912 = vmul.f32 %v907, %v910
          %v913 = vld [vmem:[%s7] sm:$0x1]
          %v915 = vperm.slane %v913, 0
          %v917 = vadd.f32 %v912, %v915
          %918 = vst.msk [vmem:[%s442] sm:$0xff] %vm860, %v917
        $region64: #{decoder_forward.23} parent=51 // pred_fallthru
          _
        %p919 = scmp.lt.s32.totalorder %s25, 1
        %s920 = scalar_select %p919, %s25, 1
        %p921 = scmp.lt.s32.totalorder %s26, 0
        %s922 = scalar_select %p921, %s26, 0
        %s923 = sadd.s32 %s922, %s920
        %s924 = smul.addr %s923, 8
        %s925 = scalar_lea.vmem %s8, %s924
        // Predicated region
        $region65: #{decoder_forward.23} parent=51 // pred_check
          %p926 = pneg %p255
        $region66: #{decoder_forward.23} parent=51 // pred_check_branch
          %928 = sbr.rel (%p926) target = $region68
        $region67: #{decoder_forward.23} parent=51 // pred_region
          _
        $region68: #{decoder_forward.23} parent=51 // pred_fallthru
          _
      $region52: #{decoder_forward.23} parent=5 // pred_fallthru
        _
      %p929 = scmp.le.s32.totalorder 2, %s15
      // Predicated region
      $region69: #{decoder_forward.23} parent=5 // pred_check
        %p930 = pneg %p929
      $region70: #{decoder_forward.23} parent=5 // pred_check_branch
        %932 = sbr.rel (%p930) target = $region72
      $region71: #{decoder_forward.23} parent=5 // pred_region
        %s933 = ssub.s32 %s15, 2
        // Predicated region
        $region73: #{decoder_forward.23} parent=71 // pred_check
          %p934 = pneg %p261
        $region74: #{decoder_forward.23} parent=71 // pred_check_branch
          %936 = sbr.rel (%p934) target = $region76
        $region75: #{decoder_forward.23} parent=71 // pred_region
          %p937 = scmp.lt.s32.totalorder %s28, 1
          %s938 = scalar_select %p937, %s28, 1
          %p939 = scmp.lt.s32.totalorder %s29, 0
          %s940 = scalar_select %p939, %s29, 0
          %s941 = sadd.s32 %s940, %s938
          %s942 = smul.addr %s941, 8
          %s943 = scalar_lea.vmem %s8, %s942
        $region76: #{decoder_forward.23} parent=71 // pred_fallthru
          _
      $region72: #{decoder_forward.23} parent=5 // pred_fallthru
        _
    $region6: #{decoder_forward.23} parent=1 // loop_footer
      %s19 = sadd.s32 1, %s15
    $region7: #{decoder_forward.23} parent=1 // loop_footer_branch
      %14 = sbr.rel target = $region3
    $region8: #{decoder_forward.23} parent=1 // loop_exit
      _
    %944 = vsyncpa [#allocation6], 1
    %s945 = scalar_lea.sflag [#allocation6], 1
    %946 = vsyncpa %s945, 1

</llo_original>
